<compile_context>
chip_gen: v7x
topology: tpu7x:2x2x1
jax: 0.10.0
libtpu: 0.0.40
codegen_flags: <defaults>
</compile_context>

<pallas_src>
import functools
import math

import numpy as np

import jax
import jax.numpy as jnp
from jax import lax
from jax.experimental import pallas as pl
from jax.experimental.pallas import tpu as pltpu

_EPS = 1e-5


# --------------------------- in-kernel helpers ------------------------------ #

def _layernorm(x, g, b, eps):
    mu = jnp.mean(x, axis=-1, keepdims=True)
    var = jnp.mean((x - mu) ** 2, axis=-1, keepdims=True)
    return (x - mu) * lax.rsqrt(var + eps) * g + b


def _activate(x, activation):
    if activation == "relu":
        return jnp.maximum(x, 0.0)
    # TODO(synk): PyTorch F.gelu default is the exact erf form; the tanh
    #             approximation is used here for robust Mosaic lowering.
    return jax.nn.gelu(x, approximate=True)


def _mha(q, k, v, n_heads):
    """Multi-head softmax attention on lane-dense (L, D) tiles.

    Per-head scores use a transposed-contraction dot_general (no k.T copy);
    the softmax divide goes through pl.reciprocal (EUP slot).
    """
    _, D = q.shape
    E = D // n_heads
    scale = 1.0 / math.sqrt(E)
    outs = []
    for h in range(n_heads):
        sl = slice(h * E, (h + 1) * E)
        qh, kh, vh = q[:, sl], k[:, sl], v[:, sl]
        s = lax.dot_general(qh, kh, (((1,), (1,)), ((), ())),
                            preferred_element_type=jnp.float32) * scale
        m = jnp.max(s, axis=-1, keepdims=True)
        p = jnp.exp(s - m)
        p = p * pl.reciprocal(jnp.sum(p, axis=-1, keepdims=True), approx=True)
        outs.append(lax.dot_general(p, vh, (((1,), (0,)), ((), ())),
                                    preferred_element_type=jnp.float32))
    return jnp.concatenate(outs, axis=-1)


# ------------------------------ Pallas kernels ------------------------------ #

def _embed_kernel(xc_ref, mark_ref, tokw_ref, tmpw_ref, pos_ref, o_ref):
    val = jnp.dot(xc_ref[0], tokw_ref[...], preferred_element_type=jnp.float32)
    tmp = jnp.dot(mark_ref[0], tmpw_ref[...], preferred_element_type=jnp.float32)
    o_ref[0] = (val + tmp + pos_ref[...]).astype(o_ref.dtype)


def _encoder_layer_kernel(x_ref,
                          wqkv_ref, bqkv_ref, wo_ref, bo_ref,
                          ln1_g_ref, ln1_b_ref,
                          c1_w_ref, c1_b_ref, c2_w_ref, c2_b_ref,
                          ln2_g_ref, ln2_b_ref,
                          o_ref, *, n_heads, eps, activation):
    x = x_ref[0].astype(jnp.float32)                       # (L, D)
    D = x.shape[1]

    # fused QKV projection (lane-dense 3D output)
    qkv = jnp.dot(x, wqkv_ref[...], preferred_element_type=jnp.float32) + bqkv_ref[...]
    a = _mha(qkv[:, :D], qkv[:, D:2 * D], qkv[:, 2 * D:], n_heads)
    a = jnp.dot(a, wo_ref[...], preferred_element_type=jnp.float32) + bo_ref[...]

    x = _layernorm(x + a, ln1_g_ref[...], ln1_b_ref[...], eps)

    # fused FFN: the (L, d_ff) intermediate never leaves VMEM
    h = jnp.dot(x, c1_w_ref[...], preferred_element_type=jnp.float32) + c1_b_ref[...]
    h = _activate(h, activation)
    y = jnp.dot(h, c2_w_ref[...], preferred_element_type=jnp.float32) + c2_b_ref[...]

    o_ref[0] = _layernorm(x + y, ln2_g_ref[...], ln2_b_ref[...], eps).astype(o_ref.dtype)


def _decoder_layer_kernel(x_ref, cross_ref,
                          s_wqkv_ref, s_bqkv_ref, s_wo_ref, s_bo_ref,
                          ln1_g_ref, ln1_b_ref,
                          c_wq_ref, c_bq_ref, c_wkv_ref, c_bkv_ref, c_wo_ref, c_bo_ref,
                          ln2_g_ref, ln2_b_ref,
                          f1_w_ref, f1_b_ref, f2_w_ref, f2_b_ref,
                          ln3_g_ref, ln3_b_ref,
                          o_ref, *, n_heads, eps, activation):
    x = x_ref[0].astype(jnp.float32)                       # (Ld, D)
    cross = cross_ref[0].astype(jnp.float32)               # (Le, D)
    D = x.shape[1]

    # self attention (fused QKV)
    qkv = jnp.dot(x, s_wqkv_ref[...], preferred_element_type=jnp.float32) + s_bqkv_ref[...]
    a = _mha(qkv[:, :D], qkv[:, D:2 * D], qkv[:, 2 * D:], n_heads)
    a = jnp.dot(a, s_wo_ref[...], preferred_element_type=jnp.float32) + s_bo_ref[...]
    x = _layernorm(x + a, ln1_g_ref[...], ln1_b_ref[...], eps)

    # cross attention (fused KV)
    q = jnp.dot(x, c_wq_ref[...], preferred_element_type=jnp.float32) + c_bq_ref[...]
    kv = jnp.dot(cross, c_wkv_ref[...], preferred_element_type=jnp.float32) + c_bkv_ref[...]
    a = _mha(q, kv[:, :D], kv[:, D:], n_heads)
    a = jnp.dot(a, c_wo_ref[...], preferred_element_type=jnp.float32) + c_bo_ref[...]
    x = _layernorm(x + a, ln2_g_ref[...], ln2_b_ref[...], eps)

    # fused FFN
    h = jnp.dot(x, f1_w_ref[...], preferred_element_type=jnp.float32) + f1_b_ref[...]
    h = _activate(h, activation)
    y = jnp.dot(h, f2_w_ref[...], preferred_element_type=jnp.float32) + f2_b_ref[...]

    o_ref[0] = _layernorm(x + y, ln3_g_ref[...], ln3_b_ref[...], eps).astype(o_ref.dtype)


def _ln_kernel(x_ref, g_ref, b_ref, o_ref, *, eps):
    o_ref[0] = _layernorm(x_ref[0].astype(jnp.float32),
                          g_ref[...], b_ref[...], eps).astype(o_ref.dtype)


def _ln_proj_kernel(x_ref, g_ref, b_ref, w_ref, pb_ref, o_ref, *, eps):
    xn = _layernorm(x_ref[0].astype(jnp.float32), g_ref[...], b_ref[...], eps)
    o_ref[0] = (jnp.dot(xn, w_ref[...], preferred_element_type=jnp.float32)
                + pb_ref[...]).astype(o_ref.dtype)


# ------------------------------ BlockSpec helpers --------------------------- #

def _rep_spec(shape):
    """Full-array block, same block for every grid step (weights stay resident)."""
    nd = len(shape)
    return pl.BlockSpec(tuple(shape), lambda b, _nd=nd: (0,) * _nd)


def _batch_spec(shape):
    """One batch row per grid step, full extent in the trailing dims."""
    nd = len(shape)
    return pl.BlockSpec((1,) + tuple(shape[1:]),
                        lambda b, _nd=nd: (b,) + (0,) * (_nd - 1))


_PARALLEL = pltpu.CompilerParams(dimension_semantics=("parallel",))


# ------------------------------ Pallas wrappers ------------------------------ #

@functools.lru_cache(maxsize=None)
def _positional_embedding(L, d_model):
    # Baked constant (computed once with numpy, not re-traced per forward).
    pos = np.arange(L, dtype=np.float32)[:, None]
    div = np.exp(np.arange(0, d_model, 2, dtype=np.float32)
                 * (-math.log(10000.0) / d_model))
    pe = np.zeros((L, d_model), dtype=np.float32)
    pe[:, 0::2] = np.sin(pos * div)
    pe[:, 1::2] = np.cos(pos * div)
    return jnp.asarray(pe)


def data_embedding(p, x, x_mark):
    B, L, _ = x.shape
    D = p["token_w"].shape[1]
    # Circular Conv1d(kernel=3, pad=1, no bias) folded into one matmul on shifted copies.
    xc = jnp.concatenate([jnp.roll(x, 1, axis=1), x, jnp.roll(x, -1, axis=1)], axis=-1)
    pos = _positional_embedding(L, D)

    args = [xc, x_mark, p["token_w"], p["temporal_w"], pos]
    in_specs = [_batch_spec(xc.shape), _batch_spec(x_mark.shape),
                _rep_spec(p["token_w"].shape), _rep_spec(p["temporal_w"].shape),
                _rep_spec(pos.shape)]
    return pl.pallas_call(
        _embed_kernel,
        out_shape=jax.ShapeDtypeStruct((B, L, D), x.dtype),
        grid=(B,),
        in_specs=in_specs,
        out_specs=_batch_spec((B, L, D)),
        compiler_params=_PARALLEL,
    )(*args)


def encoder_layer(p, x, n_heads, activation):
    B, L, D = x.shape
    a = p["attn"]
    args = [x,
            a["wqkv"], a["bqkv"].reshape(1, -1),
            a["o_w"], a["o_b"].reshape(1, -1),
            p["ln1_g"].reshape(1, -1), p["ln1_b"].reshape(1, -1),
            p["c1_w"], p["c1_b"].reshape(1, -1),
            p["c2_w"], p["c2_b"].reshape(1, -1),
            p["ln2_g"].reshape(1, -1), p["ln2_b"].reshape(1, -1)]
    in_specs = [_batch_spec(x.shape)] + [_rep_spec(t.shape) for t in args[1:]]
    return pl.pallas_call(
        functools.partial(_encoder_layer_kernel, n_heads=n_heads, eps=_EPS,
                          activation=activation),
        out_shape=jax.ShapeDtypeStruct((B, L, D), x.dtype),
        grid=(B,),
        in_specs=in_specs,
        out_specs=_batch_spec((B, L, D)),
        compiler_params=_PARALLEL,
    )(*args)


def decoder_layer(p, x, cross, n_heads, activation):
    B, Ld, D = x.shape
    sa, ca = p["self_attn"], p["cross_attn"]
    args = [x, cross,
            sa["wqkv"], sa["bqkv"].reshape(1, -1),
            sa["o_w"], sa["o_b"].reshape(1, -1),
            p["ln1_g"].reshape(1, -1), p["ln1_b"].reshape(1, -1),
            ca["wq"], ca["bq"].reshape(1, -1),
            ca["wkv"], ca["bkv"].reshape(1, -1),
            ca["o_w"], ca["o_b"].reshape(1, -1),
            p["ln2_g"].reshape(1, -1), p["ln2_b"].reshape(1, -1),
            p["c1_w"], p["c1_b"].reshape(1, -1),
            p["c2_w"], p["c2_b"].reshape(1, -1),
            p["ln3_g"].reshape(1, -1), p["ln3_b"].reshape(1, -1)]
    in_specs = ([_batch_spec(x.shape), _batch_spec(cross.shape)]
                + [_rep_spec(t.shape) for t in args[2:]])
    return pl.pallas_call(
        functools.partial(_decoder_layer_kernel, n_heads=n_heads, eps=_EPS,
                          activation=activation),
        out_shape=jax.ShapeDtypeStruct((B, Ld, D), x.dtype),
        grid=(B,),
        in_specs=in_specs,
        out_specs=_batch_spec((B, Ld, D)),
        compiler_params=_PARALLEL,
    )(*args)


def layer_norm(x, g, b, eps=_EPS):
    B, L, D = x.shape
    return pl.pallas_call(
        functools.partial(_ln_kernel, eps=eps),
        out_shape=jax.ShapeDtypeStruct((B, L, D), x.dtype),
        grid=(B,),
        in_specs=[_batch_spec(x.shape), _rep_spec((1, D)), _rep_spec((1, D))],
        out_specs=_batch_spec((B, L, D)),
        compiler_params=_PARALLEL,
    )(x, g.reshape(1, D), b.reshape(1, D))


def layer_norm_project(x, g, b, w, pb, eps=_EPS):
    B, L, D = x.shape
    C = w.shape[1]
    args = [x, g.reshape(1, D), b.reshape(1, D), w, pb.reshape(1, C)]
    in_specs = [_batch_spec(x.shape)] + [_rep_spec(t.shape) for t in args[1:]]
    return pl.pallas_call(
        functools.partial(_ln_proj_kernel, eps=eps),
        out_shape=jax.ShapeDtypeStruct((B, L, C), x.dtype),
        grid=(B,),
        in_specs=in_specs,
        out_specs=_batch_spec((B, L, C)),
        compiler_params=_PARALLEL,
    )(*args)


# --------------------------------- Forward ----------------------------------- #

def model_forward(params, x_enc, x_mark_enc, x_dec, x_mark_dec,
                  *, n_heads, pred_len, activation):
    enc = data_embedding(params["enc_emb"], x_enc, x_mark_enc)
    for lp in params["enc_layers"]:
        enc = encoder_layer(lp, enc, n_heads, activation)
    enc = layer_norm(enc, params["enc_norm_g"], params["enc_norm_b"])

    dec = data_embedding(params["dec_emb"], x_dec, x_mark_dec)
    for lp in params["dec_layers"]:
        dec = decoder_layer(lp, dec, enc, n_heads, activation)
    dec = layer_norm_project(dec, params["dec_norm_g"], params["dec_norm_b"],
                             params["proj_w"], params["proj_b"])
    return dec[:, -pred_len:, :]


# ------------------------------- Param init ---------------------------------- #

def _w(key, shape, scale=0.02):
    return (scale * jax.random.normal(key, shape)).astype(jnp.float32)


def init_self_attention_params(key, d_model):
    k1, k2 = jax.random.split(key)
    return {
        "wqkv": _w(k1, (d_model, 3 * d_model)),        # fused Q|K|V
        "bqkv": jnp.zeros((3 * d_model,), jnp.float32),
        "o_w": _w(k2, (d_model, d_model)),
        "o_b": jnp.zeros((d_model,), jnp.float32),
    }


def init_cross_attention_params(key, d_model):
    k1, k2, k3 = jax.random.split(key, 3)
    return {
        "wq": _w(k1, (d_model, d_model)),
        "bq": jnp.zeros((d_model,), jnp.float32),
        "wkv": _w(k2, (d_model, 2 * d_model)),         # fused K|V
        "bkv": jnp.zeros((2 * d_model,), jnp.float32),
        "o_w": _w(k3, (d_model, d_model)),
        "o_b": jnp.zeros((d_model,), jnp.float32),
    }


def init_embedding_params(key, c_in, mark_dim, d_model):
    k1, k2 = jax.random.split(key)
    return {
        "token_w": _w(k1, (3 * c_in, d_model)),        # flattened circular conv weight
        "temporal_w": _w(k2, (mark_dim, d_model)),
    }


def init_encoder_layer(key, d_model, d_ff):
    k1, k2, k3 = jax.random.split(key, 3)
    return {
        "attn": init_self_attention_params(k1, d_model),
        "c1_w": _w(k2, (d_model, d_ff)), "c1_b": jnp.zeros((d_ff,), jnp.float32),
        "c2_w": _w(k3, (d_ff, d_model)), "c2_b": jnp.zeros((d_model,), jnp.float32),
        "ln1_g": jnp.ones((d_model,), jnp.float32), "ln1_b": jnp.zeros((d_model,), jnp.float32),
        "ln2_g": jnp.ones((d_model,), jnp.float32), "ln2_b": jnp.zeros((d_model,), jnp.float32),
    }


def init_decoder_layer(key, d_model, d_ff):
    k1, k2, k3, k4 = jax.random.split(key, 4)
    return {
        "self_attn": init_self_attention_params(k1, d_model),
        "cross_attn": init_cross_attention_params(k2, d_model),
        "c1_w": _w(k3, (d_model, d_ff)), "c1_b": jnp.zeros((d_ff,), jnp.float32),
        "c2_w": _w(k4, (d_ff, d_model)), "c2_b": jnp.zeros((d_model,), jnp.float32),
        "ln1_g": jnp.ones((d_model,), jnp.float32), "ln1_b": jnp.zeros((d_model,), jnp.float32),
        "ln2_g": jnp.ones((d_model,), jnp.float32), "ln2_b": jnp.zeros((d_model,), jnp.float32),
        "ln3_g": jnp.ones((d_model,), jnp.float32), "ln3_b": jnp.zeros((d_model,), jnp.float32),
    }


def init_model(key, *, enc_in, dec_in, c_out, mark_dim, d_model, d_ff,
               e_layers, d_layers):
    keys = jax.random.split(key, 6 + e_layers + d_layers)
    return {
        "enc_emb": init_embedding_params(keys[0], enc_in, mark_dim, d_model),
        "dec_emb": init_embedding_params(keys[1], dec_in, mark_dim, d_model),
        "enc_layers": [init_encoder_layer(keys[2 + i], d_model, d_ff)
                       for i in range(e_layers)],
        "dec_layers": [init_decoder_layer(keys[2 + e_layers + i], d_model, d_ff)
                       for i in range(d_layers)],
        "enc_norm_g": jnp.ones((d_model,), jnp.float32),
        "enc_norm_b": jnp.zeros((d_model,), jnp.float32),
        "dec_norm_g": jnp.ones((d_model,), jnp.float32),
        "dec_norm_b": jnp.zeros((d_model,), jnp.float32),
        "proj_w": _w(keys[-1], (d_model, c_out)),
        "proj_b": jnp.zeros((c_out,), jnp.float32),
    }


# ---------------------------------- Main ------------------------------------- #

if __name__ == "__main__":
    # Small synthetic config (analogue of `configs`).
    B = 2
    seq_len = 16
    label_len = 8
    pred_len = 8
    enc_in = dec_in = c_out = 4
    mark_dim = 4           # embed='timeF', freq='h'
    d_model = 32
    n_heads = 4
    d_ff = 64
    e_layers = 1
    d_layers = 1
    activation = "gelu"

    key = jax.random.PRNGKey(0)
    k_par, k_xe, k_me, k_xd, k_md = jax.random.split(key, 5)

    params = init_model(k_par, enc_in=enc_in, dec_in=dec_in, c_out=c_out,
                        mark_dim=mark_dim, d_model=d_model, d_ff=d_ff,
                        e_layers=e_layers, d_layers=d_layers)

    x_enc = jax.random.normal(k_xe, (B, seq_len, enc_in), jnp.float32)
    x_mark_enc = jax.random.normal(k_me, (B, seq_len, mark_dim), jnp.float32)
    x_dec = jax.random.normal(k_xd, (B, label_len + pred_len, dec_in), jnp.float32)
    x_mark_dec = jax.random.normal(k_md, (B, label_len + pred_len, mark_dim), jnp.float32)

    fwd = jax.jit(functools.partial(model_forward, n_heads=n_heads,
                                    pred_len=pred_len, activation=activation))
    out = fwd(params, x_enc, x_mark_enc, x_dec, x_mark_dec)
    out = jax.block_until_ready(out)
    assert out.shape == (B, pred_len, c_out), out.shape
    print("KERNEL_OK")
</pallas_src>

<mosaic_0001>
module attributes {stable_mosaic.version = 11 : i64} {
  func.func @_ln_kernel(%arg0: i32, %arg1: memref<1x16x32xf32, #tpu.memory_space<vmem>>, %arg2: memref<1x32xf32, #tpu.memory_space<vmem>>, %arg3: memref<1x32xf32, #tpu.memory_space<vmem>>, %arg4: memref<1x16x32xf32, #tpu.memory_space<vmem>>) attributes {dimension_semantics = [#tpu.dimension_semantics<parallel>], iteration_bounds = array<i64: 2>, scalar_prefetch = 0 : i64, scratch_operands = 0 : i64, tpu.core_type = #tpu.core_type<tc>, window_params = [{transform_indices = @transform_0, window_bounds = array<i64: 1, 16, 32>}, {pipeline_mode = #tpu.pipeline_mode<synchronous>, transform_indices = @transform_1, window_bounds = array<i64: 1, 32>}, {pipeline_mode = #tpu.pipeline_mode<synchronous>, transform_indices = @transform_2, window_bounds = array<i64: 1, 32>}, {transform_indices = @transform_3, window_bounds = array<i64: 1, 16, 32>}]} {
    %c0 = arith.constant 0 : index
    %c0_0 = arith.constant 0 : index
    %c0_1 = arith.constant 0 : index
    %0 = vector.load %arg1[%c0, %c0_0, %c0_1] : memref<1x16x32xf32, #tpu.memory_space<vmem>>, vector<1x16x32xf32>
    %1 = vector.shape_cast %0 : vector<1x16x32xf32> to vector<16x32xf32>
    %c0_2 = arith.constant 0 : index
    %c0_3 = arith.constant 0 : index
    %2 = vector.load %arg2[%c0_2, %c0_3] : memref<1x32xf32, #tpu.memory_space<vmem>>, vector<1x32xf32>
    %c0_4 = arith.constant 0 : index
    %c0_5 = arith.constant 0 : index
    %3 = vector.load %arg3[%c0_4, %c0_5] : memref<1x32xf32, #tpu.memory_space<vmem>>, vector<1x32xf32>
    %cst = arith.constant dense<0.000000e+00> : vector<16xf32>
    %4 = vector.multi_reduction <add>, %1, %cst [1] : vector<16x32xf32> to vector<16xf32>
    %5 = vector.shape_cast %4 : vector<16xf32> to vector<16x1xf32>
    %cst_6 = arith.constant 3.200000e+01 : f32
    %6 = vector.broadcast %cst_6 : f32 to vector<16x1xf32>
    %7 = arith.divf %5, %6 : vector<16x1xf32>
    %8 = vector.broadcast %7 : vector<16x1xf32> to vector<16x32xf32>
    %9 = arith.subf %1, %8 : vector<16x32xf32>
    %10 = arith.mulf %9, %9 : vector<16x32xf32>
    %cst_7 = arith.constant dense<0.000000e+00> : vector<16xf32>
    %11 = vector.multi_reduction <add>, %10, %cst_7 [1] : vector<16x32xf32> to vector<16xf32>
    %12 = vector.shape_cast %11 : vector<16xf32> to vector<16x1xf32>
    %cst_8 = arith.constant 3.200000e+01 : f32
    %13 = vector.broadcast %cst_8 : f32 to vector<16x1xf32>
    %14 = arith.divf %12, %13 : vector<16x1xf32>
    %15 = vector.broadcast %7 : vector<16x1xf32> to vector<16x32xf32>
    %16 = arith.subf %1, %15 : vector<16x32xf32>
    %cst_9 = arith.constant 9.99999974E-6 : f32
    %17 = vector.broadcast %cst_9 : f32 to vector<16x1xf32>
    %18 = arith.addf %14, %17 : vector<16x1xf32>
    %19 = math.rsqrt %18 : vector<16x1xf32>
    %20 = vector.broadcast %19 : vector<16x1xf32> to vector<16x32xf32>
    %21 = arith.mulf %16, %20 : vector<16x32xf32>
    %22 = vector.broadcast %2 : vector<1x32xf32> to vector<16x32xf32>
    %23 = arith.mulf %21, %22 : vector<16x32xf32>
    %24 = vector.broadcast %3 : vector<1x32xf32> to vector<16x32xf32>
    %25 = arith.addf %23, %24 : vector<16x32xf32>
    %c0_10 = arith.constant 0 : index
    %c0_11 = arith.constant 0 : index
    %c0_12 = arith.constant 0 : index
    %26 = vector.load %arg4[%c0_10, %c0_11, %c0_12] : memref<1x16x32xf32, #tpu.memory_space<vmem>>, vector<1x16x32xf32>
    %27 = vector.shape_cast %26 : vector<1x16x32xf32> to vector<16x32xf32>
    %28 = vector.shape_cast %25 : vector<16x32xf32> to vector<1x16x32xf32>
    tpu.vector_store %arg4[%c0_10, %c0_11, %c0_12], %28 {strides = array<i32>} : memref<1x16x32xf32, #tpu.memory_space<vmem>>, vector<1x16x32xf32>,
    return
  }
  func.func @transform_0(%arg0: i32) -> (i32, i32, i32) {
    %c0_i32 = arith.constant 0 : i32
    %c0_i32_0 = arith.constant 0 : i32
    %c0_i32_1 = arith.constant 0 : i32
    return %arg0, %c0_i32, %c0_i32_0 : i32, i32, i32
  }
  func.func @transform_1(%arg0: i32) -> (i32, i32) {
    %c0_i32 = arith.constant 0 : i32
    %c0_i32_0 = arith.constant 0 : i32
    %c0_i32_1 = arith.constant 0 : i32
    return %c0_i32, %c0_i32_0 : i32, i32
  }
  func.func @transform_2(%arg0: i32) -> (i32, i32) {
    %c0_i32 = arith.constant 0 : i32
    %c0_i32_0 = arith.constant 0 : i32
    %c0_i32_1 = arith.constant 0 : i32
    return %c0_i32, %c0_i32_0 : i32, i32
  }
  func.func @transform_3(%arg0: i32) -> (i32, i32, i32) {
    %c0_i32 = arith.constant 0 : i32
    %c0_i32_0 = arith.constant 0 : i32
    %c0_i32_1 = arith.constant 0 : i32
    return %arg0, %c0_i32, %c0_i32_0 : i32, i32, i32
  }
}

module attributes {stable_mosaic.version = 11 : i64} {
  func.func @_embed_kernel(%arg0: i32, %arg1: memref<1x16x12xf32, #tpu.memory_space<vmem>>, %arg2: memref<1x16x4xf32, #tpu.memory_space<vmem>>, %arg3: memref<12x32xf32, #tpu.memory_space<vmem>>, %arg4: memref<4x32xf32, #tpu.memory_space<vmem>>, %arg5: memref<16x32xf32, #tpu.memory_space<vmem>>, %arg6: memref<1x16x32xf32, #tpu.memory_space<vmem>>) attributes {dimension_semantics = [#tpu.dimension_semantics<parallel>], iteration_bounds = array<i64: 2>, scalar_prefetch = 0 : i64, scratch_operands = 0 : i64, tpu.core_type = #tpu.core_type<tc>, window_params = [{transform_indices = @transform_0, window_bounds = array<i64: 1, 16, 12>}, {transform_indices = @transform_1, window_bounds = array<i64: 1, 16, 4>}, {pipeline_mode = #tpu.pipeline_mode<synchronous>, transform_indices = @transform_2, window_bounds = array<i64: 12, 32>}, {pipeline_mode = #tpu.pipeline_mode<synchronous>, transform_indices = @transform_3, window_bounds = array<i64: 4, 32>}, {pipeline_mode = #tpu.pipeline_mode<synchronous>, transform_indices = @transform_4, window_bounds = array<i64: 16, 32>}, {transform_indices = @transform_5, window_bounds = array<i64: 1, 16, 32>}]} {
    %c0 = arith.constant 0 : index
    %c0_0 = arith.constant 0 : index
    %c0_1 = arith.constant 0 : index
    %0 = vector.load %arg1[%c0, %c0_0, %c0_1] : memref<1x16x12xf32, #tpu.memory_space<vmem>>, vector<1x16x12xf32>
    %1 = vector.shape_cast %0 : vector<1x16x12xf32> to vector<16x12xf32>
    %c0_2 = arith.constant 0 : index
    %c0_3 = arith.constant 0 : index
    %2 = vector.load %arg3[%c0_2, %c0_3] : memref<12x32xf32, #tpu.memory_space<vmem>>, vector<12x32xf32>
    %cst = arith.constant dense<0.000000e+00> : vector<16x32xf32>
    %3 = tpu.matmul %1, %2, %cst {dimension_numbers = #tpu.dot_dimension_numbers<[1], [0], [0], [1], [0, 0, 1, 1], [], []>} : vector<16x12xf32>, vector<12x32xf32>, vector<16x32xf32> -> vector<16x32xf32>
    %c0_4 = arith.constant 0 : index
    %c0_5 = arith.constant 0 : index
    %c0_6 = arith.constant 0 : index
    %4 = vector.load %arg2[%c0_4, %c0_5, %c0_6] : memref<1x16x4xf32, #tpu.memory_space<vmem>>, vector<1x16x4xf32>
    %5 = vector.shape_cast %4 : vector<1x16x4xf32> to vector<16x4xf32>
    %c0_7 = arith.constant 0 : index
    %c0_8 = arith.constant 0 : index
    %6 = vector.load %arg4[%c0_7, %c0_8] : memref<4x32xf32, #tpu.memory_space<vmem>>, vector<4x32xf32>
    %cst_9 = arith.constant dense<0.000000e+00> : vector<16x32xf32>
    %7 = tpu.matmul %5, %6, %cst_9 {dimension_numbers = #tpu.dot_dimension_numbers<[1], [0], [0], [1], [0, 0, 1, 1], [], []>} : vector<16x4xf32>, vector<4x32xf32>, vector<16x32xf32> -> vector<16x32xf32>
    %8 = arith.addf %3, %7 : vector<16x32xf32>
    %c0_10 = arith.constant 0 : index
    %c0_11 = arith.constant 0 : index
    %9 = vector.load %arg5[%c0_10, %c0_11] : memref<16x32xf32, #tpu.memory_space<vmem>>, vector<16x32xf32>
    %10 = arith.addf %8, %9 : vector<16x32xf32>
    %c0_12 = arith.constant 0 : index
    %c0_13 = arith.constant 0 : index
    %c0_14 = arith.constant 0 : index
    %11 = vector.load %arg6[%c0_12, %c0_13, %c0_14] : memref<1x16x32xf32, #tpu.memory_space<vmem>>, vector<1x16x32xf32>
    %12 = vector.shape_cast %11 : vector<1x16x32xf32> to vector<16x32xf32>
    %13 = vector.shape_cast %10 : vector<16x32xf32> to vector<1x16x32xf32>
    tpu.vector_store %arg6[%c0_12, %c0_13, %c0_14], %13 {strides = array<i32>} : memref<1x16x32xf32, #tpu.memory_space<vmem>>, vector<1x16x32xf32>,
    return
  }
  func.func @transform_0(%arg0: i32) -> (i32, i32, i32) {
    %c0_i32 = arith.constant 0 : i32
    %c0_i32_0 = arith.constant 0 : i32
    %c0_i32_1 = arith.constant 0 : i32
    return %arg0, %c0_i32, %c0_i32_0 : i32, i32, i32
  }
  func.func @transform_1(%arg0: i32) -> (i32, i32, i32) {
    %c0_i32 = arith.constant 0 : i32
    %c0_i32_0 = arith.constant 0 : i32
    %c0_i32_1 = arith.constant 0 : i32
    return %arg0, %c0_i32, %c0_i32_0 : i32, i32, i32
  }
  func.func @transform_2(%arg0: i32) -> (i32, i32) {
    %c0_i32 = arith.constant 0 : i32
    %c0_i32_0 = arith.constant 0 : i32
    %c0_i32_1 = arith.constant 0 : i32
    return %c0_i32, %c0_i32_0 : i32, i32
  }
  func.func @transform_3(%arg0: i32) -> (i32, i32) {
    %c0_i32 = arith.constant 0 : i32
    %c0_i32_0 = arith.constant 0 : i32
    %c0_i32_1 = arith.constant 0 : i32
    return %c0_i32, %c0_i32_0 : i32, i32
  }
  func.func @transform_4(%arg0: i32) -> (i32, i32) {
    %c0_i32 = arith.constant 0 : i32
    %c0_i32_0 = arith.constant 0 : i32
    %c0_i32_1 = arith.constant 0 : i32
    return %c0_i32, %c0_i32_0 : i32, i32
  }
  func.func @transform_5(%arg0: i32) -> (i32, i32, i32) {
    %c0_i32 = arith.constant 0 : i32
    %c0_i32_0 = arith.constant 0 : i32
    %c0_i32_1 = arith.constant 0 : i32
    return %arg0, %c0_i32, %c0_i32_0 : i32, i32, i32
  }
}

module attributes {stable_mosaic.version = 11 : i64} {
  func.func @_encoder_layer_kernel(%arg0: i32, %arg1: memref<1x16x32xf32, #tpu.memory_space<vmem>>, %arg2: memref<32x96xf32, #tpu.memory_space<vmem>>, %arg3: memref<1x96xf32, #tpu.memory_space<vmem>>, %arg4: memref<32x32xf32, #tpu.memory_space<vmem>>, %arg5: memref<1x32xf32, #tpu.memory_space<vmem>>, %arg6: memref<1x32xf32, #tpu.memory_space<vmem>>, %arg7: memref<1x32xf32, #tpu.memory_space<vmem>>, %arg8: memref<32x64xf32, #tpu.memory_space<vmem>>, %arg9: memref<1x64xf32, #tpu.memory_space<vmem>>, %arg10: memref<64x32xf32, #tpu.memory_space<vmem>>, %arg11: memref<1x32xf32, #tpu.memory_space<vmem>>, %arg12: memref<1x32xf32, #tpu.memory_space<vmem>>, %arg13: memref<1x32xf32, #tpu.memory_space<vmem>>, %arg14: memref<1x16x32xf32, #tpu.memory_space<vmem>>) attributes {dimension_semantics = [#tpu.dimension_semantics<parallel>], iteration_bounds = array<i64: 2>, scalar_prefetch = 0 : i64, scratch_operands = 0 : i64, tpu.core_type = #tpu.core_type<tc>, window_params = [{transform_indices = @transform_0, window_bounds = array<i64: 1, 16, 32>}, {pipeline_mode = #tpu.pipeline_mode<synchronous>, transform_indices = @transform_1, window_bounds = array<i64: 32, 96>}, {pipeline_mode = #tpu.pipeline_mode<synchronous>, transform_indices = @transform_2, window_bounds = array<i64: 1, 96>}, {pipeline_mode = #tpu.pipeline_mode<synchronous>, transform_indices = @transform_3, window_bounds = array<i64: 32, 32>}, {pipeline_mode = #tpu.pipeline_mode<synchronous>, transform_indices = @transform_4, window_bounds = array<i64: 1, 32>}, {pipeline_mode = #tpu.pipeline_mode<synchronous>, transform_indices = @transform_5, window_bounds = array<i64: 1, 32>}, {pipeline_mode = #tpu.pipeline_mode<synchronous>, transform_indices = @transform_6, window_bounds = array<i64: 1, 32>}, {pipeline_mode = #tpu.pipeline_mode<synchronous>, transform_indices = @transform_7, window_bounds = array<i64: 32, 64>}, {pipeline_mode = #tpu.pipeline_mode<synchronous>, transform_indices = @transform_8, window_bounds = array<i64: 1, 64>}, {pipeline_mode = #tpu.pipeline_mode<synchronous>, transform_indices = @transform_9, window_bounds = array<i64: 64, 32>}, {pipeline_mode = #tpu.pipeline_mode<synchronous>, transform_indices = @transform_10, window_bounds = array<i64: 1, 32>}, {pipeline_mode = #tpu.pipeline_mode<synchronous>, transform_indices = @transform_11, window_bounds = array<i64: 1, 32>}, {pipeline_mode = #tpu.pipeline_mode<synchronous>, transform_indices = @transform_12, window_bounds = array<i64: 1, 32>}, {transform_indices = @transform_13, window_bounds = array<i64: 1, 16, 32>}]} {
    %c0 = arith.constant 0 : index
    %c0_0 = arith.constant 0 : index
    %c0_1 = arith.constant 0 : index
    %0 = vector.load %arg1[%c0, %c0_0, %c0_1] : memref<1x16x32xf32, #tpu.memory_space<vmem>>, vector<1x16x32xf32>
    %1 = vector.shape_cast %0 : vector<1x16x32xf32> to vector<16x32xf32>
    %c0_2 = arith.constant 0 : index
    %c0_3 = arith.constant 0 : index
    %2 = vector.load %arg2[%c0_2, %c0_3] : memref<32x96xf32, #tpu.memory_space<vmem>>, vector<32x96xf32>
    %cst = arith.constant dense<0.000000e+00> : vector<16x96xf32>
    %3 = tpu.matmul %1, %2, %cst {dimension_numbers = #tpu.dot_dimension_numbers<[1], [0], [0], [1], [0, 0, 1, 1], [], []>} : vector<16x32xf32>, vector<32x96xf32>, vector<16x96xf32> -> vector<16x96xf32>
    %c0_4 = arith.constant 0 : index
    %c0_5 = arith.constant 0 : index
    %4 = vector.load %arg3[%c0_4, %c0_5] : memref<1x96xf32, #tpu.memory_space<vmem>>, vector<1x96xf32>
    %5 = vector.broadcast %4 : vector<1x96xf32> to vector<16x96xf32>
    %6 = arith.addf %3, %5 : vector<16x96xf32>
    %7 = vector.extract_strided_slice %6 {offsets = [0, 0], sizes = [16, 32], strides = [1, 1]} : vector<16x96xf32> to vector<16x32xf32>
    %8 = vector.extract_strided_slice %6 {offsets = [0, 32], sizes = [16, 32], strides = [1, 1]} : vector<16x96xf32> to vector<16x32xf32>
    %9 = vector.extract_strided_slice %6 {offsets = [0, 64], sizes = [16, 32], strides = [1, 1]} : vector<16x96xf32> to vector<16x32xf32>
    %10 = vector.extract_strided_slice %7 {offsets = [0, 0], sizes = [16, 8], strides = [1, 1]} : vector<16x32xf32> to vector<16x8xf32>
    %11 = vector.extract_strided_slice %8 {offsets = [0, 0], sizes = [16, 8], strides = [1, 1]} : vector<16x32xf32> to vector<16x8xf32>
    %12 = vector.extract_strided_slice %9 {offsets = [0, 0], sizes = [16, 8], strides = [1, 1]} : vector<16x32xf32> to vector<16x8xf32>
    %cst_6 = arith.constant dense<0.000000e+00> : vector<16x16xf32>
    %13 = tpu.matmul %10, %11, %cst_6 {dimension_numbers = #tpu.dot_dimension_numbers<[1], [1], [0], [0], [0, 0, 1, 0], [], []>} : vector<16x8xf32>, vector<16x8xf32>, vector<16x16xf32> -> vector<16x16xf32>
    %cst_7 = arith.constant 0.353553385 : f32
    %14 = vector.broadcast %cst_7 : f32 to vector<16x16xf32>
    %15 = arith.mulf %13, %14 : vector<16x16xf32>
    %cst_8 = arith.constant dense<0xFF800000> : vector<16xf32>
    %16 = vector.multi_reduction <maximumf>, %15, %cst_8 [1] : vector<16x16xf32> to vector<16xf32>
    %17 = vector.shape_cast %16 : vector<16xf32> to vector<16x1xf32>
    %18 = vector.broadcast %17 : vector<16x1xf32> to vector<16x16xf32>
    %19 = arith.subf %15, %18 : vector<16x16xf32>
    %20 = math.exp %19 : vector<16x16xf32>
    %cst_9 = arith.constant dense<0.000000e+00> : vector<16xf32>
    %21 = vector.multi_reduction <add>, %20, %cst_9 [1] : vector<16x16xf32> to vector<16xf32>
    %22 = vector.shape_cast %21 : vector<16xf32> to vector<16x1xf32>
    %23 = tpu.reciprocal %22 {approx = true} : vector<16x1xf32> -> vector<16x1xf32>
    %24 = vector.broadcast %23 : vector<16x1xf32> to vector<16x16xf32>
    %25 = arith.mulf %20, %24 : vector<16x16xf32>
    %cst_10 = arith.constant dense<0.000000e+00> : vector<16x8xf32>
    %26 = tpu.matmul %25, %12, %cst_10 {dimension_numbers = #tpu.dot_dimension_numbers<[1], [0], [0], [1], [0, 0, 1, 1], [], []>} : vector<16x16xf32>, vector<16x8xf32>, vector<16x8xf32> -> vector<16x8xf32>
    %27 = vector.extract_strided_slice %7 {offsets = [0, 8], sizes = [16, 8], strides = [1, 1]} : vector<16x32xf32> to vector<16x8xf32>
    %28 = vector.extract_strided_slice %8 {offsets = [0, 8], sizes = [16, 8], strides = [1, 1]} : vector<16x32xf32> to vector<16x8xf32>
    %29 = vector.extract_strided_slice %9 {offsets = [0, 8], sizes = [16, 8], strides = [1, 1]} : vector<16x32xf32> to vector<16x8xf32>
    %cst_11 = arith.constant dense<0.000000e+00> : vector<16x16xf32>
    %30 = tpu.matmul %27, %28, %cst_11 {dimension_numbers = #tpu.dot_dimension_numbers<[1], [1], [0], [0], [0, 0, 1, 0], [], []>} : vector<16x8xf32>, vector<16x8xf32>, vector<16x16xf32> -> vector<16x16xf32>
    %cst_12 = arith.constant 0.353553385 : f32
    %31 = vector.broadcast %cst_12 : f32 to vector<16x16xf32>
    %32 = arith.mulf %30, %31 : vector<16x16xf32>
    %cst_13 = arith.constant dense<0xFF800000> : vector<16xf32>
    %33 = vector.multi_reduction <maximumf>, %32, %cst_13 [1] : vector<16x16xf32> to vector<16xf32>
    %34 = vector.shape_cast %33 : vector<16xf32> to vector<16x1xf32>
    %35 = vector.broadcast %34 : vector<16x1xf32> to vector<16x16xf32>
    %36 = arith.subf %32, %35 : vector<16x16xf32>
    %37 = math.exp %36 : vector<16x16xf32>
    %cst_14 = arith.constant dense<0.000000e+00> : vector<16xf32>
    %38 = vector.multi_reduction <add>, %37, %cst_14 [1] : vector<16x16xf32> to vector<16xf32>
    %39 = vector.shape_cast %38 : vector<16xf32> to vector<16x1xf32>
    %40 = tpu.reciprocal %39 {approx = true} : vector<16x1xf32> -> vector<16x1xf32>
    %41 = vector.broadcast %40 : vector<16x1xf32> to vector<16x16xf32>
    %42 = arith.mulf %37, %41 : vector<16x16xf32>
    %cst_15 = arith.constant dense<0.000000e+00> : vector<16x8xf32>
    %43 = tpu.matmul %42, %29, %cst_15 {dimension_numbers = #tpu.dot_dimension_numbers<[1], [0], [0], [1], [0, 0, 1, 1], [], []>} : vector<16x16xf32>, vector<16x8xf32>, vector<16x8xf32> -> vector<16x8xf32>
    %44 = vector.extract_strided_slice %7 {offsets = [0, 16], sizes = [16, 8], strides = [1, 1]} : vector<16x32xf32> to vector<16x8xf32>
    %45 = vector.extract_strided_slice %8 {offsets = [0, 16], sizes = [16, 8], strides = [1, 1]} : vector<16x32xf32> to vector<16x8xf32>
    %46 = vector.extract_strided_slice %9 {offsets = [0, 16], sizes = [16, 8], strides = [1, 1]} : vector<16x32xf32> to vector<16x8xf32>
    %cst_16 = arith.constant dense<0.000000e+00> : vector<16x16xf32>
    %47 = tpu.matmul %44, %45, %cst_16 {dimension_numbers = #tpu.dot_dimension_numbers<[1], [1], [0], [0], [0, 0, 1, 0], [], []>} : vector<16x8xf32>, vector<16x8xf32>, vector<16x16xf32> -> vector<16x16xf32>
    %cst_17 = arith.constant 0.353553385 : f32
    %48 = vector.broadcast %cst_17 : f32 to vector<16x16xf32>
    %49 = arith.mulf %47, %48 : vector<16x16xf32>
    %cst_18 = arith.constant dense<0xFF800000> : vector<16xf32>
    %50 = vector.multi_reduction <maximumf>, %49, %cst_18 [1] : vector<16x16xf32> to vector<16xf32>
    %51 = vector.shape_cast %50 : vector<16xf32> to vector<16x1xf32>
    %52 = vector.broadcast %51 : vector<16x1xf32> to vector<16x16xf32>
    %53 = arith.subf %49, %52 : vector<16x16xf32>
    %54 = math.exp %53 : vector<16x16xf32>
    %cst_19 = arith.constant dense<0.000000e+00> : vector<16xf32>
    %55 = vector.multi_reduction <add>, %54, %cst_19 [1] : vector<16x16xf32> to vector<16xf32>
    %56 = vector.shape_cast %55 : vector<16xf32> to vector<16x1xf32>
    %57 = tpu.reciprocal %56 {approx = true} : vector<16x1xf32> -> vector<16x1xf32>
    %58 = vector.broadcast %57 : vector<16x1xf32> to vector<16x16xf32>
    %59 = arith.mulf %54, %58 : vector<16x16xf32>
    %cst_20 = arith.constant dense<0.000000e+00> : vector<16x8xf32>
    %60 = tpu.matmul %59, %46, %cst_20 {dimension_numbers = #tpu.dot_dimension_numbers<[1], [0], [0], [1], [0, 0, 1, 1], [], []>} : vector<16x16xf32>, vector<16x8xf32>, vector<16x8xf32> -> vector<16x8xf32>
    %61 = vector.extract_strided_slice %7 {offsets = [0, 24], sizes = [16, 8], strides = [1, 1]} : vector<16x32xf32> to vector<16x8xf32>
    %62 = vector.extract_strided_slice %8 {offsets = [0, 24], sizes = [16, 8], strides = [1, 1]} : vector<16x32xf32> to vector<16x8xf32>
    %63 = vector.extract_strided_slice %9 {offsets = [0, 24], sizes = [16, 8], strides = [1, 1]} : vector<16x32xf32> to vector<16x8xf32>
    %cst_21 = arith.constant dense<0.000000e+00> : vector<16x16xf32>
    %64 = tpu.matmul %61, %62, %cst_21 {dimension_numbers = #tpu.dot_dimension_numbers<[1], [1], [0], [0], [0, 0, 1, 0], [], []>} : vector<16x8xf32>, vector<16x8xf32>, vector<16x16xf32> -> vector<16x16xf32>
    %cst_22 = arith.constant 0.353553385 : f32
    %65 = vector.broadcast %cst_22 : f32 to vector<16x16xf32>
    %66 = arith.mulf %64, %65 : vector<16x16xf32>
    %cst_23 = arith.constant dense<0xFF800000> : vector<16xf32>
    %67 = vector.multi_reduction <maximumf>, %66, %cst_23 [1] : vector<16x16xf32> to vector<16xf32>
    %68 = vector.shape_cast %67 : vector<16xf32> to vector<16x1xf32>
    %69 = vector.broadcast %68 : vector<16x1xf32> to vector<16x16xf32>
    %70 = arith.subf %66, %69 : vector<16x16xf32>
    %71 = math.exp %70 : vector<16x16xf32>
    %cst_24 = arith.constant dense<0.000000e+00> : vector<16xf32>
    %72 = vector.multi_reduction <add>, %71, %cst_24 [1] : vector<16x16xf32> to vector<16xf32>
    %73 = vector.shape_cast %72 : vector<16xf32> to vector<16x1xf32>
    %74 = tpu.reciprocal %73 {approx = true} : vector<16x1xf32> -> vector<16x1xf32>
    %75 = vector.broadcast %74 : vector<16x1xf32> to vector<16x16xf32>
    %76 = arith.mulf %71, %75 : vector<16x16xf32>
    %cst_25 = arith.constant dense<0.000000e+00> : vector<16x8xf32>
    %77 = tpu.matmul %76, %63, %cst_25 {dimension_numbers = #tpu.dot_dimension_numbers<[1], [0], [0], [1], [0, 0, 1, 1], [], []>} : vector<16x16xf32>, vector<16x8xf32>, vector<16x8xf32> -> vector<16x8xf32>
    %78 = tpu.concatenate %26, %43, %60, %77 in 1 : vector<16x8xf32>, vector<16x8xf32>, vector<16x8xf32>, vector<16x8xf32> -> vector<16x32xf32>
    %c0_26 = arith.constant 0 : index
    %c0_27 = arith.constant 0 : index
    %79 = vector.load %arg4[%c0_26, %c0_27] : memref<32x32xf32, #tpu.memory_space<vmem>>, vector<32x32xf32>
    %cst_28 = arith.constant dense<0.000000e+00> : vector<16x32xf32>
    %80 = tpu.matmul %78, %79, %cst_28 {dimension_numbers = #tpu.dot_dimension_numbers<[1], [0], [0], [1], [0, 0, 1, 1], [], []>} : vector<16x32xf32>, vector<32x32xf32>, vector<16x32xf32> -> vector<16x32xf32>
    %c0_29 = arith.constant 0 : index
    %c0_30 = arith.constant 0 : index
    %81 = vector.load %arg5[%c0_29, %c0_30] : memref<1x32xf32, #tpu.memory_space<vmem>>, vector<1x32xf32>
    %82 = vector.broadcast %81 : vector<1x32xf32> to vector<16x32xf32>
    %83 = arith.addf %80, %82 : vector<16x32xf32>
    %84 = arith.addf %1, %83 : vector<16x32xf32>
    %c0_31 = arith.constant 0 : index
    %c0_32 = arith.constant 0 : index
    %85 = vector.load %arg6[%c0_31, %c0_32] : memref<1x32xf32, #tpu.memory_space<vmem>>, vector<1x32xf32>
    %c0_33 = arith.constant 0 : index
    %c0_34 = arith.constant 0 : index
    %86 = vector.load %arg7[%c0_33, %c0_34] : memref<1x32xf32, #tpu.memory_space<vmem>>, vector<1x32xf32>
    %cst_35 = arith.constant dense<0.000000e+00> : vector<16xf32>
    %87 = vector.multi_reduction <add>, %84, %cst_35 [1] : vector<16x32xf32> to vector<16xf32>
    %88 = vector.shape_cast %87 : vector<16xf32> to vector<16x1xf32>
    %cst_36 = arith.constant 3.200000e+01 : f32
    %89 = vector.broadcast %cst_36 : f32 to vector<16x1xf32>
    %90 = arith.divf %88, %89 : vector<16x1xf32>
    %91 = vector.broadcast %90 : vector<16x1xf32> to vector<16x32xf32>
    %92 = arith.subf %84, %91 : vector<16x32xf32>
    %93 = arith.mulf %92, %92 : vector<16x32xf32>
    %cst_37 = arith.constant dense<0.000000e+00> : vector<16xf32>
    %94 = vector.multi_reduction <add>, %93, %cst_37 [1] : vector<16x32xf32> to vector<16xf32>
    %95 = vector.shape_cast %94 : vector<16xf32> to vector<16x1xf32>
    %cst_38 = arith.constant 3.200000e+01 : f32
    %96 = vector.broadcast %cst_38 : f32 to vector<16x1xf32>
    %97 = arith.divf %95, %96 : vector<16x1xf32>
    %98 = vector.broadcast %90 : vector<16x1xf32> to vector<16x32xf32>
    %99 = arith.subf %84, %98 : vector<16x32xf32>
    %cst_39 = arith.constant 9.99999974E-6 : f32
    %100 = vector.broadcast %cst_39 : f32 to vector<16x1xf32>
    %101 = arith.addf %97, %100 : vector<16x1xf32>
    %102 = math.rsqrt %101 : vector<16x1xf32>
    %103 = vector.broadcast %102 : vector<16x1xf32> to vector<16x32xf32>
    %104 = arith.mulf %99, %103 : vector<16x32xf32>
    %105 = vector.broadcast %85 : vector<1x32xf32> to vector<16x32xf32>
    %106 = arith.mulf %104, %105 : vector<16x32xf32>
    %107 = vector.broadcast %86 : vector<1x32xf32> to vector<16x32xf32>
    %108 = arith.addf %106, %107 : vector<16x32xf32>
    %c0_40 = arith.constant 0 : index
    %c0_41 = arith.constant 0 : index
    %109 = vector.load %arg8[%c0_40, %c0_41] : memref<32x64xf32, #tpu.memory_space<vmem>>, vector<32x64xf32>
    %cst_42 = arith.constant dense<0.000000e+00> : vector<16x64xf32>
    %110 = tpu.matmul %108, %109, %cst_42 {dimension_numbers = #tpu.dot_dimension_numbers<[1], [0], [0], [1], [0, 0, 1, 1], [], []>} : vector<16x32xf32>, vector<32x64xf32>, vector<16x64xf32> -> vector<16x64xf32>
    %c0_43 = arith.constant 0 : index
    %c0_44 = arith.constant 0 : index
    %111 = vector.load %arg9[%c0_43, %c0_44] : memref<1x64xf32, #tpu.memory_space<vmem>>, vector<1x64xf32>
    %112 = vector.broadcast %111 : vector<1x64xf32> to vector<16x64xf32>
    %113 = arith.addf %110, %112 : vector<16x64xf32>
    %114 = arith.mulf %113, %113 : vector<16x64xf32>
    %115 = arith.mulf %113, %114 : vector<16x64xf32>
    %cst_45 = arith.constant 4.471500e-02 : f32
    %116 = vector.broadcast %cst_45 : f32 to vector<16x64xf32>
    %117 = arith.mulf %116, %115 : vector<16x64xf32>
    %118 = arith.addf %113, %117 : vector<16x64xf32>
    %cst_46 = arith.constant 0.797884583 : f32
    %119 = vector.broadcast %cst_46 : f32 to vector<16x64xf32>
    %120 = arith.mulf %119, %118 : vector<16x64xf32>
    %121 = math.tanh %120 : vector<16x64xf32>
    %cst_47 = arith.constant 1.000000e+00 : f32
    %122 = vector.broadcast %cst_47 : f32 to vector<16x64xf32>
    %123 = arith.addf %122, %121 : vector<16x64xf32>
    %cst_48 = arith.constant 5.000000e-01 : f32
    %124 = vector.broadcast %cst_48 : f32 to vector<16x64xf32>
    %125 = arith.mulf %124, %123 : vector<16x64xf32>
    %126 = arith.mulf %113, %125 : vector<16x64xf32>
    %c0_49 = arith.constant 0 : index
    %c0_50 = arith.constant 0 : index
    %127 = vector.load %arg10[%c0_49, %c0_50] : memref<64x32xf32, #tpu.memory_space<vmem>>, vector<64x32xf32>
    %cst_51 = arith.constant dense<0.000000e+00> : vector<16x32xf32>
    %128 = tpu.matmul %126, %127, %cst_51 {dimension_numbers = #tpu.dot_dimension_numbers<[1], [0], [0], [1], [0, 0, 1, 1], [], []>} : vector<16x64xf32>, vector<64x32xf32>, vector<16x32xf32> -> vector<16x32xf32>
    %c0_52 = arith.constant 0 : index
    %c0_53 = arith.constant 0 : index
    %129 = vector.load %arg11[%c0_52, %c0_53] : memref<1x32xf32, #tpu.memory_space<vmem>>, vector<1x32xf32>
    %130 = vector.broadcast %129 : vector<1x32xf32> to vector<16x32xf32>
    %131 = arith.addf %128, %130 : vector<16x32xf32>
    %132 = arith.addf %108, %131 : vector<16x32xf32>
    %c0_54 = arith.constant 0 : index
    %c0_55 = arith.constant 0 : index
    %133 = vector.load %arg12[%c0_54, %c0_55] : memref<1x32xf32, #tpu.memory_space<vmem>>, vector<1x32xf32>
    %c0_56 = arith.constant 0 : index
    %c0_57 = arith.constant 0 : index
    %134 = vector.load %arg13[%c0_56, %c0_57] : memref<1x32xf32, #tpu.memory_space<vmem>>, vector<1x32xf32>
    %cst_58 = arith.constant dense<0.000000e+00> : vector<16xf32>
    %135 = vector.multi_reduction <add>, %132, %cst_58 [1] : vector<16x32xf32> to vector<16xf32>
    %136 = vector.shape_cast %135 : vector<16xf32> to vector<16x1xf32>
    %cst_59 = arith.constant 3.200000e+01 : f32
    %137 = vector.broadcast %cst_59 : f32 to vector<16x1xf32>
    %138 = arith.divf %136, %137 : vector<16x1xf32>
    %139 = vector.broadcast %138 : vector<16x1xf32> to vector<16x32xf32>
    %140 = arith.subf %132, %139 : vector<16x32xf32>
    %141 = arith.mulf %140, %140 : vector<16x32xf32>
    %cst_60 = arith.constant dense<0.000000e+00> : vector<16xf32>
    %142 = vector.multi_reduction <add>, %141, %cst_60 [1] : vector<16x32xf32> to vector<16xf32>
    %143 = vector.shape_cast %142 : vector<16xf32> to vector<16x1xf32>
    %cst_61 = arith.constant 3.200000e+01 : f32
    %144 = vector.broadcast %cst_61 : f32 to vector<16x1xf32>
    %145 = arith.divf %143, %144 : vector<16x1xf32>
    %146 = vector.broadcast %138 : vector<16x1xf32> to vector<16x32xf32>
    %147 = arith.subf %132, %146 : vector<16x32xf32>
    %cst_62 = arith.constant 9.99999974E-6 : f32
    %148 = vector.broadcast %cst_62 : f32 to vector<16x1xf32>
    %149 = arith.addf %145, %148 : vector<16x1xf32>
    %150 = math.rsqrt %149 : vector<16x1xf32>
    %151 = vector.broadcast %150 : vector<16x1xf32> to vector<16x32xf32>
    %152 = arith.mulf %147, %151 : vector<16x32xf32>
    %153 = vector.broadcast %133 : vector<1x32xf32> to vector<16x32xf32>
    %154 = arith.mulf %152, %153 : vector<16x32xf32>
    %155 = vector.broadcast %134 : vector<1x32xf32> to vector<16x32xf32>
    %156 = arith.addf %154, %155 : vector<16x32xf32>
    %c0_63 = arith.constant 0 : index
    %c0_64 = arith.constant 0 : index
    %c0_65 = arith.constant 0 : index
    %157 = vector.load %arg14[%c0_63, %c0_64, %c0_65] : memref<1x16x32xf32, #tpu.memory_space<vmem>>, vector<1x16x32xf32>
    %158 = vector.shape_cast %157 : vector<1x16x32xf32> to vector<16x32xf32>
    %159 = vector.shape_cast %156 : vector<16x32xf32> to vector<1x16x32xf32>
    tpu.vector_store %arg14[%c0_63, %c0_64, %c0_65], %159 {strides = array<i32>} : memref<1x16x32xf32, #tpu.memory_space<vmem>>, vector<1x16x32xf32>,
    return
  }
  func.func @transform_0(%arg0: i32) -> (i32, i32, i32) {
    %c0_i32 = arith.constant 0 : i32
    %c0_i32_0 = arith.constant 0 : i32
    %c0_i32_1 = arith.constant 0 : i32
    return %arg0, %c0_i32, %c0_i32_0 : i32, i32, i32
  }
  func.func @transform_1(%arg0: i32) -> (i32, i32) {
    %c0_i32 = arith.constant 0 : i32
    %c0_i32_0 = arith.constant 0 : i32
    %c0_i32_1 = arith.constant 0 : i32
    return %c0_i32, %c0_i32_0 : i32, i32
  }
  func.func @transform_2(%arg0: i32) -> (i32, i32) {
    %c0_i32 = arith.constant 0 : i32
    %c0_i32_0 = arith.constant 0 : i32
    %c0_i32_1 = arith.constant 0 : i32
    return %c0_i32, %c0_i32_0 : i32, i32
  }
  func.func @transform_3(%arg0: i32) -> (i32, i32) {
    %c0_i32 = arith.constant 0 : i32
    %c0_i32_0 = arith.constant 0 : i32
    %c0_i32_1 = arith.constant 0 : i32
    return %c0_i32, %c0_i32_0 : i32, i32
  }
  func.func @transform_4(%arg0: i32) -> (i32, i32) {
    %c0_i32 = arith.constant 0 : i32
    %c0_i32_0 = arith.constant 0 : i32
    %c0_i32_1 = arith.constant 0 : i32
    return %c0_i32, %c0_i32_0 : i32, i32
  }
  func.func @transform_5(%arg0: i32) -> (i32, i32) {
    %c0_i32 = arith.constant 0 : i32
    %c0_i32_0 = arith.constant 0 : i32
    %c0_i32_1 = arith.constant 0 : i32
    return %c0_i32, %c0_i32_0 : i32, i32
  }
  func.func @transform_6(%arg0: i32) -> (i32, i32) {
    %c0_i32 = arith.constant 0 : i32
    %c0_i32_0 = arith.constant 0 : i32
    %c0_i32_1 = arith.constant 0 : i32
    return %c0_i32, %c0_i32_0 : i32, i32
  }
  func.func @transform_7(%arg0: i32) -> (i32, i32) {
    %c0_i32 = arith.constant 0 : i32
    %c0_i32_0 = arith.constant 0 : i32
    %c0_i32_1 = arith.constant 0 : i32
    return %c0_i32, %c0_i32_0 : i32, i32
  }
  func.func @transform_8(%arg0: i32) -> (i32, i32) {
    %c0_i32 = arith.constant 0 : i32
    %c0_i32_0 = arith.constant 0 : i32
    %c0_i32_1 = arith.constant 0 : i32
    return %c0_i32, %c0_i32_0 : i32, i32
  }
  func.func @transform_9(%arg0: i32) -> (i32, i32) {
    %c0_i32 = arith.constant 0 : i32
    %c0_i32_0 = arith.constant 0 : i32
    %c0_i32_1 = arith.constant 0 : i32
    return %c0_i32, %c0_i32_0 : i32, i32
  }
  func.func @transform_10(%arg0: i32) -> (i32, i32) {
    %c0_i32 = arith.constant 0 : i32
    %c0_i32_0 = arith.constant 0 : i32
    %c0_i32_1 = arith.constant 0 : i32
    return %c0_i32, %c0_i32_0 : i32, i32
  }
  func.func @transform_11(%arg0: i32) -> (i32, i32) {
    %c0_i32 = arith.constant 0 : i32
    %c0_i32_0 = arith.constant 0 : i32
    %c0_i32_1 = arith.constant 0 : i32
    return %c0_i32, %c0_i32_0 : i32, i32
  }
  func.func @transform_12(%arg0: i32) -> (i32, i32) {
    %c0_i32 = arith.constant 0 : i32
    %c0_i32_0 = arith.constant 0 : i32
    %c0_i32_1 = arith.constant 0 : i32
    return %c0_i32, %c0_i32_0 : i32, i32
  }
  func.func @transform_13(%arg0: i32) -> (i32, i32, i32) {
    %c0_i32 = arith.constant 0 : i32
    %c0_i32_0 = arith.constant 0 : i32
    %c0_i32_1 = arith.constant 0 : i32
    return %arg0, %c0_i32, %c0_i32_0 : i32, i32, i32
  }
}

module attributes {stable_mosaic.version = 11 : i64} {
  func.func @_decoder_layer_kernel(%arg0: i32, %arg1: memref<1x16x32xf32, #tpu.memory_space<vmem>>, %arg2: memref<1x16x32xf32, #tpu.memory_space<vmem>>, %arg3: memref<32x96xf32, #tpu.memory_space<vmem>>, %arg4: memref<1x96xf32, #tpu.memory_space<vmem>>, %arg5: memref<32x32xf32, #tpu.memory_space<vmem>>, %arg6: memref<1x32xf32, #tpu.memory_space<vmem>>, %arg7: memref<1x32xf32, #tpu.memory_space<vmem>>, %arg8: memref<1x32xf32, #tpu.memory_space<vmem>>, %arg9: memref<32x32xf32, #tpu.memory_space<vmem>>, %arg10: memref<1x32xf32, #tpu.memory_space<vmem>>, %arg11: memref<32x64xf32, #tpu.memory_space<vmem>>, %arg12: memref<1x64xf32, #tpu.memory_space<vmem>>, %arg13: memref<32x32xf32, #tpu.memory_space<vmem>>, %arg14: memref<1x32xf32, #tpu.memory_space<vmem>>, %arg15: memref<1x32xf32, #tpu.memory_space<vmem>>, %arg16: memref<1x32xf32, #tpu.memory_space<vmem>>, %arg17: memref<32x64xf32, #tpu.memory_space<vmem>>, %arg18: memref<1x64xf32, #tpu.memory_space<vmem>>, %arg19: memref<64x32xf32, #tpu.memory_space<vmem>>, %arg20: memref<1x32xf32, #tpu.memory_space<vmem>>, %arg21: memref<1x32xf32, #tpu.memory_space<vmem>>, %arg22: memref<1x32xf32, #tpu.memory_space<vmem>>, %arg23: memref<1x16x32xf32, #tpu.memory_space<vmem>>) attributes {dimension_semantics = [#tpu.dimension_semantics<parallel>], iteration_bounds = array<i64: 2>, scalar_prefetch = 0 : i64, scratch_operands = 0 : i64, tpu.core_type = #tpu.core_type<tc>, window_params = [{transform_indices = @transform_0, window_bounds = array<i64: 1, 16, 32>}, {transform_indices = @transform_1, window_bounds = array<i64: 1, 16, 32>}, {pipeline_mode = #tpu.pipeline_mode<synchronous>, transform_indices = @transform_2, window_bounds = array<i64: 32, 96>}, {pipeline_mode = #tpu.pipeline_mode<synchronous>, transform_indices = @transform_3, window_bounds = array<i64: 1, 96>}, {pipeline_mode = #tpu.pipeline_mode<synchronous>, transform_indices = @transform_4, window_bounds = array<i64: 32, 32>}, {pipeline_mode = #tpu.pipeline_mode<synchronous>, transform_indices = @transform_5, window_bounds = array<i64: 1, 32>}, {pipeline_mode = #tpu.pipeline_mode<synchronous>, transform_indices = @transform_6, window_bounds = array<i64: 1, 32>}, {pipeline_mode = #tpu.pipeline_mode<synchronous>, transform_indices = @transform_7, window_bounds = array<i64: 1, 32>}, {pipeline_mode = #tpu.pipeline_mode<synchronous>, transform_indices = @transform_8, window_bounds = array<i64: 32, 32>}, {pipeline_mode = #tpu.pipeline_mode<synchronous>, transform_indices = @transform_9, window_bounds = array<i64: 1, 32>}, {pipeline_mode = #tpu.pipeline_mode<synchronous>, transform_indices = @transform_10, window_bounds = array<i64: 32, 64>}, {pipeline_mode = #tpu.pipeline_mode<synchronous>, transform_indices = @transform_11, window_bounds = array<i64: 1, 64>}, {pipeline_mode = #tpu.pipeline_mode<synchronous>, transform_indices = @transform_12, window_bounds = array<i64: 32, 32>}, {pipeline_mode = #tpu.pipeline_mode<synchronous>, transform_indices = @transform_13, window_bounds = array<i64: 1, 32>}, {pipeline_mode = #tpu.pipeline_mode<synchronous>, transform_indices = @transform_14, window_bounds = array<i64: 1, 32>}, {pipeline_mode = #tpu.pipeline_mode<synchronous>, transform_indices = @transform_15, window_bounds = array<i64: 1, 32>}, {pipeline_mode = #tpu.pipeline_mode<synchronous>, transform_indices = @transform_16, window_bounds = array<i64: 32, 64>}, {pipeline_mode = #tpu.pipeline_mode<synchronous>, transform_indices = @transform_17, window_bounds = array<i64: 1, 64>}, {pipeline_mode = #tpu.pipeline_mode<synchronous>, transform_indices = @transform_18, window_bounds = array<i64: 64, 32>}, {pipeline_mode = #tpu.pipeline_mode<synchronous>, transform_indices = @transform_19, window_bounds = array<i64: 1, 32>}, {pipeline_mode = #tpu.pipeline_mode<synchronous>, transform_indices = @transform_20, window_bounds = array<i64: 1, 32>}, {pipeline_mode = #tpu.pipeline_mode<synchronous>, transform_indices = @transform_21, window_bounds = array<i64: 1, 32>}, {transform_indices = @transform_22, window_bounds = array<i64: 1, 16, 32>}]} {
    %c0 = arith.constant 0 : index
    %c0_0 = arith.constant 0 : index
    %c0_1 = arith.constant 0 : index
    %0 = vector.load %arg1[%c0, %c0_0, %c0_1] : memref<1x16x32xf32, #tpu.memory_space<vmem>>, vector<1x16x32xf32>
    %1 = vector.shape_cast %0 : vector<1x16x32xf32> to vector<16x32xf32>
    %c0_2 = arith.constant 0 : index
    %c0_3 = arith.constant 0 : index
    %c0_4 = arith.constant 0 : index
    %2 = vector.load %arg2[%c0_2, %c0_3, %c0_4] : memref<1x16x32xf32, #tpu.memory_space<vmem>>, vector<1x16x32xf32>
    %3 = vector.shape_cast %2 : vector<1x16x32xf32> to vector<16x32xf32>
    %c0_5 = arith.constant 0 : index
    %c0_6 = arith.constant 0 : index
    %4 = vector.load %arg3[%c0_5, %c0_6] : memref<32x96xf32, #tpu.memory_space<vmem>>, vector<32x96xf32>
    %cst = arith.constant dense<0.000000e+00> : vector<16x96xf32>
    %5 = tpu.matmul %1, %4, %cst {dimension_numbers = #tpu.dot_dimension_numbers<[1], [0], [0], [1], [0, 0, 1, 1], [], []>} : vector<16x32xf32>, vector<32x96xf32>, vector<16x96xf32> -> vector<16x96xf32>
    %c0_7 = arith.constant 0 : index
    %c0_8 = arith.constant 0 : index
    %6 = vector.load %arg4[%c0_7, %c0_8] : memref<1x96xf32, #tpu.memory_space<vmem>>, vector<1x96xf32>
    %7 = vector.broadcast %6 : vector<1x96xf32> to vector<16x96xf32>
    %8 = arith.addf %5, %7 : vector<16x96xf32>
    %9 = vector.extract_strided_slice %8 {offsets = [0, 0], sizes = [16, 32], strides = [1, 1]} : vector<16x96xf32> to vector<16x32xf32>
    %10 = vector.extract_strided_slice %8 {offsets = [0, 32], sizes = [16, 32], strides = [1, 1]} : vector<16x96xf32> to vector<16x32xf32>
    %11 = vector.extract_strided_slice %8 {offsets = [0, 64], sizes = [16, 32], strides = [1, 1]} : vector<16x96xf32> to vector<16x32xf32>
    %12 = vector.extract_strided_slice %9 {offsets = [0, 0], sizes = [16, 8], strides = [1, 1]} : vector<16x32xf32> to vector<16x8xf32>
    %13 = vector.extract_strided_slice %10 {offsets = [0, 0], sizes = [16, 8], strides = [1, 1]} : vector<16x32xf32> to vector<16x8xf32>
    %14 = vector.extract_strided_slice %11 {offsets = [0, 0], sizes = [16, 8], strides = [1, 1]} : vector<16x32xf32> to vector<16x8xf32>
    %cst_9 = arith.constant dense<0.000000e+00> : vector<16x16xf32>
    %15 = tpu.matmul %12, %13, %cst_9 {dimension_numbers = #tpu.dot_dimension_numbers<[1], [1], [0], [0], [0, 0, 1, 0], [], []>} : vector<16x8xf32>, vector<16x8xf32>, vector<16x16xf32> -> vector<16x16xf32>
    %cst_10 = arith.constant 0.353553385 : f32
    %16 = vector.broadcast %cst_10 : f32 to vector<16x16xf32>
    %17 = arith.mulf %15, %16 : vector<16x16xf32>
    %cst_11 = arith.constant dense<0xFF800000> : vector<16xf32>
    %18 = vector.multi_reduction <maximumf>, %17, %cst_11 [1] : vector<16x16xf32> to vector<16xf32>
    %19 = vector.shape_cast %18 : vector<16xf32> to vector<16x1xf32>
    %20 = vector.broadcast %19 : vector<16x1xf32> to vector<16x16xf32>
    %21 = arith.subf %17, %20 : vector<16x16xf32>
    %22 = math.exp %21 : vector<16x16xf32>
    %cst_12 = arith.constant dense<0.000000e+00> : vector<16xf32>
    %23 = vector.multi_reduction <add>, %22, %cst_12 [1] : vector<16x16xf32> to vector<16xf32>
    %24 = vector.shape_cast %23 : vector<16xf32> to vector<16x1xf32>
    %25 = tpu.reciprocal %24 {approx = true} : vector<16x1xf32> -> vector<16x1xf32>
    %26 = vector.broadcast %25 : vector<16x1xf32> to vector<16x16xf32>
    %27 = arith.mulf %22, %26 : vector<16x16xf32>
    %cst_13 = arith.constant dense<0.000000e+00> : vector<16x8xf32>
    %28 = tpu.matmul %27, %14, %cst_13 {dimension_numbers = #tpu.dot_dimension_numbers<[1], [0], [0], [1], [0, 0, 1, 1], [], []>} : vector<16x16xf32>, vector<16x8xf32>, vector<16x8xf32> -> vector<16x8xf32>
    %29 = vector.extract_strided_slice %9 {offsets = [0, 8], sizes = [16, 8], strides = [1, 1]} : vector<16x32xf32> to vector<16x8xf32>
    %30 = vector.extract_strided_slice %10 {offsets = [0, 8], sizes = [16, 8], strides = [1, 1]} : vector<16x32xf32> to vector<16x8xf32>
    %31 = vector.extract_strided_slice %11 {offsets = [0, 8], sizes = [16, 8], strides = [1, 1]} : vector<16x32xf32> to vector<16x8xf32>
    %cst_14 = arith.constant dense<0.000000e+00> : vector<16x16xf32>
    %32 = tpu.matmul %29, %30, %cst_14 {dimension_numbers = #tpu.dot_dimension_numbers<[1], [1], [0], [0], [0, 0, 1, 0], [], []>} : vector<16x8xf32>, vector<16x8xf32>, vector<16x16xf32> -> vector<16x16xf32>
    %cst_15 = arith.constant 0.353553385 : f32
    %33 = vector.broadcast %cst_15 : f32 to vector<16x16xf32>
    %34 = arith.mulf %32, %33 : vector<16x16xf32>
    %cst_16 = arith.constant dense<0xFF800000> : vector<16xf32>
    %35 = vector.multi_reduction <maximumf>, %34, %cst_16 [1] : vector<16x16xf32> to vector<16xf32>
    %36 = vector.shape_cast %35 : vector<16xf32> to vector<16x1xf32>
    %37 = vector.broadcast %36 : vector<16x1xf32> to vector<16x16xf32>
    %38 = arith.subf %34, %37 : vector<16x16xf32>
    %39 = math.exp %38 : vector<16x16xf32>
    %cst_17 = arith.constant dense<0.000000e+00> : vector<16xf32>
    %40 = vector.multi_reduction <add>, %39, %cst_17 [1] : vector<16x16xf32> to vector<16xf32>
    %41 = vector.shape_cast %40 : vector<16xf32> to vector<16x1xf32>
    %42 = tpu.reciprocal %41 {approx = true} : vector<16x1xf32> -> vector<16x1xf32>
    %43 = vector.broadcast %42 : vector<16x1xf32> to vector<16x16xf32>
    %44 = arith.mulf %39, %43 : vector<16x16xf32>
    %cst_18 = arith.constant dense<0.000000e+00> : vector<16x8xf32>
    %45 = tpu.matmul %44, %31, %cst_18 {dimension_numbers = #tpu.dot_dimension_numbers<[1], [0], [0], [1], [0, 0, 1, 1], [], []>} : vector<16x16xf32>, vector<16x8xf32>, vector<16x8xf32> -> vector<16x8xf32>
    %46 = vector.extract_strided_slice %9 {offsets = [0, 16], sizes = [16, 8], strides = [1, 1]} : vector<16x32xf32> to vector<16x8xf32>
    %47 = vector.extract_strided_slice %10 {offsets = [0, 16], sizes = [16, 8], strides = [1, 1]} : vector<16x32xf32> to vector<16x8xf32>
    %48 = vector.extract_strided_slice %11 {offsets = [0, 16], sizes = [16, 8], strides = [1, 1]} : vector<16x32xf32> to vector<16x8xf32>
    %cst_19 = arith.constant dense<0.000000e+00> : vector<16x16xf32>
    %49 = tpu.matmul %46, %47, %cst_19 {dimension_numbers = #tpu.dot_dimension_numbers<[1], [1], [0], [0], [0, 0, 1, 0], [], []>} : vector<16x8xf32>, vector<16x8xf32>, vector<16x16xf32> -> vector<16x16xf32>
    %cst_20 = arith.constant 0.353553385 : f32
    %50 = vector.broadcast %cst_20 : f32 to vector<16x16xf32>
    %51 = arith.mulf %49, %50 : vector<16x16xf32>
    %cst_21 = arith.constant dense<0xFF800000> : vector<16xf32>
    %52 = vector.multi_reduction <maximumf>, %51, %cst_21 [1] : vector<16x16xf32> to vector<16xf32>
    %53 = vector.shape_cast %52 : vector<16xf32> to vector<16x1xf32>
    %54 = vector.broadcast %53 : vector<16x1xf32> to vector<16x16xf32>
    %55 = arith.subf %51, %54 : vector<16x16xf32>
    %56 = math.exp %55 : vector<16x16xf32>
    %cst_22 = arith.constant dense<0.000000e+00> : vector<16xf32>
    %57 = vector.multi_reduction <add>, %56, %cst_22 [1] : vector<16x16xf32> to vector<16xf32>
    %58 = vector.shape_cast %57 : vector<16xf32> to vector<16x1xf32>
    %59 = tpu.reciprocal %58 {approx = true} : vector<16x1xf32> -> vector<16x1xf32>
    %60 = vector.broadcast %59 : vector<16x1xf32> to vector<16x16xf32>
    %61 = arith.mulf %56, %60 : vector<16x16xf32>
    %cst_23 = arith.constant dense<0.000000e+00> : vector<16x8xf32>
    %62 = tpu.matmul %61, %48, %cst_23 {dimension_numbers = #tpu.dot_dimension_numbers<[1], [0], [0], [1], [0, 0, 1, 1], [], []>} : vector<16x16xf32>, vector<16x8xf32>, vector<16x8xf32> -> vector<16x8xf32>
    %63 = vector.extract_strided_slice %9 {offsets = [0, 24], sizes = [16, 8], strides = [1, 1]} : vector<16x32xf32> to vector<16x8xf32>
    %64 = vector.extract_strided_slice %10 {offsets = [0, 24], sizes = [16, 8], strides = [1, 1]} : vector<16x32xf32> to vector<16x8xf32>
    %65 = vector.extract_strided_slice %11 {offsets = [0, 24], sizes = [16, 8], strides = [1, 1]} : vector<16x32xf32> to vector<16x8xf32>
    %cst_24 = arith.constant dense<0.000000e+00> : vector<16x16xf32>
    %66 = tpu.matmul %63, %64, %cst_24 {dimension_numbers = #tpu.dot_dimension_numbers<[1], [1], [0], [0], [0, 0, 1, 0], [], []>} : vector<16x8xf32>, vector<16x8xf32>, vector<16x16xf32> -> vector<16x16xf32>
    %cst_25 = arith.constant 0.353553385 : f32
    %67 = vector.broadcast %cst_25 : f32 to vector<16x16xf32>
    %68 = arith.mulf %66, %67 : vector<16x16xf32>
    %cst_26 = arith.constant dense<0xFF800000> : vector<16xf32>
    %69 = vector.multi_reduction <maximumf>, %68, %cst_26 [1] : vector<16x16xf32> to vector<16xf32>
    %70 = vector.shape_cast %69 : vector<16xf32> to vector<16x1xf32>
    %71 = vector.broadcast %70 : vector<16x1xf32> to vector<16x16xf32>
    %72 = arith.subf %68, %71 : vector<16x16xf32>
    %73 = math.exp %72 : vector<16x16xf32>
    %cst_27 = arith.constant dense<0.000000e+00> : vector<16xf32>
    %74 = vector.multi_reduction <add>, %73, %cst_27 [1] : vector<16x16xf32> to vector<16xf32>
    %75 = vector.shape_cast %74 : vector<16xf32> to vector<16x1xf32>
    %76 = tpu.reciprocal %75 {approx = true} : vector<16x1xf32> -> vector<16x1xf32>
    %77 = vector.broadcast %76 : vector<16x1xf32> to vector<16x16xf32>
    %78 = arith.mulf %73, %77 : vector<16x16xf32>
    %cst_28 = arith.constant dense<0.000000e+00> : vector<16x8xf32>
    %79 = tpu.matmul %78, %65, %cst_28 {dimension_numbers = #tpu.dot_dimension_numbers<[1], [0], [0], [1], [0, 0, 1, 1], [], []>} : vector<16x16xf32>, vector<16x8xf32>, vector<16x8xf32> -> vector<16x8xf32>
    %80 = tpu.concatenate %28, %45, %62, %79 in 1 : vector<16x8xf32>, vector<16x8xf32>, vector<16x8xf32>, vector<16x8xf32> -> vector<16x32xf32>
    %c0_29 = arith.constant 0 : index
    %c0_30 = arith.constant 0 : index
    %81 = vector.load %arg5[%c0_29, %c0_30] : memref<32x32xf32, #tpu.memory_space<vmem>>, vector<32x32xf32>
    %cst_31 = arith.constant dense<0.000000e+00> : vector<16x32xf32>
    %82 = tpu.matmul %80, %81, %cst_31 {dimension_numbers = #tpu.dot_dimension_numbers<[1], [0], [0], [1], [0, 0, 1, 1], [], []>} : vector<16x32xf32>, vector<32x32xf32>, vector<16x32xf32> -> vector<16x32xf32>
    %c0_32 = arith.constant 0 : index
    %c0_33 = arith.constant 0 : index
    %83 = vector.load %arg6[%c0_32, %c0_33] : memref<1x32xf32, #tpu.memory_space<vmem>>, vector<1x32xf32>
    %84 = vector.broadcast %83 : vector<1x32xf32> to vector<16x32xf32>
    %85 = arith.addf %82, %84 : vector<16x32xf32>
    %86 = arith.addf %1, %85 : vector<16x32xf32>
    %c0_34 = arith.constant 0 : index
    %c0_35 = arith.constant 0 : index
    %87 = vector.load %arg7[%c0_34, %c0_35] : memref<1x32xf32, #tpu.memory_space<vmem>>, vector<1x32xf32>
    %c0_36 = arith.constant 0 : index
    %c0_37 = arith.constant 0 : index
    %88 = vector.load %arg8[%c0_36, %c0_37] : memref<1x32xf32, #tpu.memory_space<vmem>>, vector<1x32xf32>
    %cst_38 = arith.constant dense<0.000000e+00> : vector<16xf32>
    %89 = vector.multi_reduction <add>, %86, %cst_38 [1] : vector<16x32xf32> to vector<16xf32>
    %90 = vector.shape_cast %89 : vector<16xf32> to vector<16x1xf32>
    %cst_39 = arith.constant 3.200000e+01 : f32
    %91 = vector.broadcast %cst_39 : f32 to vector<16x1xf32>
    %92 = arith.divf %90, %91 : vector<16x1xf32>
    %93 = vector.broadcast %92 : vector<16x1xf32> to vector<16x32xf32>
    %94 = arith.subf %86, %93 : vector<16x32xf32>
    %95 = arith.mulf %94, %94 : vector<16x32xf32>
    %cst_40 = arith.constant dense<0.000000e+00> : vector<16xf32>
    %96 = vector.multi_reduction <add>, %95, %cst_40 [1] : vector<16x32xf32> to vector<16xf32>
    %97 = vector.shape_cast %96 : vector<16xf32> to vector<16x1xf32>
    %cst_41 = arith.constant 3.200000e+01 : f32
    %98 = vector.broadcast %cst_41 : f32 to vector<16x1xf32>
    %99 = arith.divf %97, %98 : vector<16x1xf32>
    %100 = vector.broadcast %92 : vector<16x1xf32> to vector<16x32xf32>
    %101 = arith.subf %86, %100 : vector<16x32xf32>
    %cst_42 = arith.constant 9.99999974E-6 : f32
    %102 = vector.broadcast %cst_42 : f32 to vector<16x1xf32>
    %103 = arith.addf %99, %102 : vector<16x1xf32>
    %104 = math.rsqrt %103 : vector<16x1xf32>
    %105 = vector.broadcast %104 : vector<16x1xf32> to vector<16x32xf32>
    %106 = arith.mulf %101, %105 : vector<16x32xf32>
    %107 = vector.broadcast %87 : vector<1x32xf32> to vector<16x32xf32>
    %108 = arith.mulf %106, %107 : vector<16x32xf32>
    %109 = vector.broadcast %88 : vector<1x32xf32> to vector<16x32xf32>
    %110 = arith.addf %108, %109 : vector<16x32xf32>
    %c0_43 = arith.constant 0 : index
    %c0_44 = arith.constant 0 : index
    %111 = vector.load %arg9[%c0_43, %c0_44] : memref<32x32xf32, #tpu.memory_space<vmem>>, vector<32x32xf32>
    %cst_45 = arith.constant dense<0.000000e+00> : vector<16x32xf32>
    %112 = tpu.matmul %110, %111, %cst_45 {dimension_numbers = #tpu.dot_dimension_numbers<[1], [0], [0], [1], [0, 0, 1, 1], [], []>} : vector<16x32xf32>, vector<32x32xf32>, vector<16x32xf32> -> vector<16x32xf32>
    %c0_46 = arith.constant 0 : index
    %c0_47 = arith.constant 0 : index
    %113 = vector.load %arg10[%c0_46, %c0_47] : memref<1x32xf32, #tpu.memory_space<vmem>>, vector<1x32xf32>
    %114 = vector.broadcast %113 : vector<1x32xf32> to vector<16x32xf32>
    %115 = arith.addf %112, %114 : vector<16x32xf32>
    %c0_48 = arith.constant 0 : index
    %c0_49 = arith.constant 0 : index
    %116 = vector.load %arg11[%c0_48, %c0_49] : memref<32x64xf32, #tpu.memory_space<vmem>>, vector<32x64xf32>
    %cst_50 = arith.constant dense<0.000000e+00> : vector<16x64xf32>
    %117 = tpu.matmul %3, %116, %cst_50 {dimension_numbers = #tpu.dot_dimension_numbers<[1], [0], [0], [1], [0, 0, 1, 1], [], []>} : vector<16x32xf32>, vector<32x64xf32>, vector<16x64xf32> -> vector<16x64xf32>
    %c0_51 = arith.constant 0 : index
    %c0_52 = arith.constant 0 : index
    %118 = vector.load %arg12[%c0_51, %c0_52] : memref<1x64xf32, #tpu.memory_space<vmem>>, vector<1x64xf32>
    %119 = vector.broadcast %118 : vector<1x64xf32> to vector<16x64xf32>
    %120 = arith.addf %117, %119 : vector<16x64xf32>
    %121 = vector.extract_strided_slice %120 {offsets = [0, 0], sizes = [16, 32], strides = [1, 1]} : vector<16x64xf32> to vector<16x32xf32>
    %122 = vector.extract_strided_slice %120 {offsets = [0, 32], sizes = [16, 32], strides = [1, 1]} : vector<16x64xf32> to vector<16x32xf32>
    %123 = vector.extract_strided_slice %115 {offsets = [0, 0], sizes = [16, 8], strides = [1, 1]} : vector<16x32xf32> to vector<16x8xf32>
    %124 = vector.extract_strided_slice %121 {offsets = [0, 0], sizes = [16, 8], strides = [1, 1]} : vector<16x32xf32> to vector<16x8xf32>
    %125 = vector.extract_strided_slice %122 {offsets = [0, 0], sizes = [16, 8], strides = [1, 1]} : vector<16x32xf32> to vector<16x8xf32>
    %cst_53 = arith.constant dense<0.000000e+00> : vector<16x16xf32>
    %126 = tpu.matmul %123, %124, %cst_53 {dimension_numbers = #tpu.dot_dimension_numbers<[1], [1], [0], [0], [0, 0, 1, 0], [], []>} : vector<16x8xf32>, vector<16x8xf32>, vector<16x16xf32> -> vector<16x16xf32>
    %cst_54 = arith.constant 0.353553385 : f32
    %127 = vector.broadcast %cst_54 : f32 to vector<16x16xf32>
    %128 = arith.mulf %126, %127 : vector<16x16xf32>
    %cst_55 = arith.constant dense<0xFF800000> : vector<16xf32>
    %129 = vector.multi_reduction <maximumf>, %128, %cst_55 [1] : vector<16x16xf32> to vector<16xf32>
    %130 = vector.shape_cast %129 : vector<16xf32> to vector<16x1xf32>
    %131 = vector.broadcast %130 : vector<16x1xf32> to vector<16x16xf32>
    %132 = arith.subf %128, %131 : vector<16x16xf32>
    %133 = math.exp %132 : vector<16x16xf32>
    %cst_56 = arith.constant dense<0.000000e+00> : vector<16xf32>
    %134 = vector.multi_reduction <add>, %133, %cst_56 [1] : vector<16x16xf32> to vector<16xf32>
    %135 = vector.shape_cast %134 : vector<16xf32> to vector<16x1xf32>
    %136 = tpu.reciprocal %135 {approx = true} : vector<16x1xf32> -> vector<16x1xf32>
    %137 = vector.broadcast %136 : vector<16x1xf32> to vector<16x16xf32>
    %138 = arith.mulf %133, %137 : vector<16x16xf32>
    %cst_57 = arith.constant dense<0.000000e+00> : vector<16x8xf32>
    %139 = tpu.matmul %138, %125, %cst_57 {dimension_numbers = #tpu.dot_dimension_numbers<[1], [0], [0], [1], [0, 0, 1, 1], [], []>} : vector<16x16xf32>, vector<16x8xf32>, vector<16x8xf32> -> vector<16x8xf32>
    %140 = vector.extract_strided_slice %115 {offsets = [0, 8], sizes = [16, 8], strides = [1, 1]} : vector<16x32xf32> to vector<16x8xf32>
    %141 = vector.extract_strided_slice %121 {offsets = [0, 8], sizes = [16, 8], strides = [1, 1]} : vector<16x32xf32> to vector<16x8xf32>
    %142 = vector.extract_strided_slice %122 {offsets = [0, 8], sizes = [16, 8], strides = [1, 1]} : vector<16x32xf32> to vector<16x8xf32>
    %cst_58 = arith.constant dense<0.000000e+00> : vector<16x16xf32>
    %143 = tpu.matmul %140, %141, %cst_58 {dimension_numbers = #tpu.dot_dimension_numbers<[1], [1], [0], [0], [0, 0, 1, 0], [], []>} : vector<16x8xf32>, vector<16x8xf32>, vector<16x16xf32> -> vector<16x16xf32>
    %cst_59 = arith.constant 0.353553385 : f32
    %144 = vector.broadcast %cst_59 : f32 to vector<16x16xf32>
    %145 = arith.mulf %143, %144 : vector<16x16xf32>
    %cst_60 = arith.constant dense<0xFF800000> : vector<16xf32>
    %146 = vector.multi_reduction <maximumf>, %145, %cst_60 [1] : vector<16x16xf32> to vector<16xf32>
    %147 = vector.shape_cast %146 : vector<16xf32> to vector<16x1xf32>
    %148 = vector.broadcast %147 : vector<16x1xf32> to vector<16x16xf32>
    %149 = arith.subf %145, %148 : vector<16x16xf32>
    %150 = math.exp %149 : vector<16x16xf32>
    %cst_61 = arith.constant dense<0.000000e+00> : vector<16xf32>
    %151 = vector.multi_reduction <add>, %150, %cst_61 [1] : vector<16x16xf32> to vector<16xf32>
    %152 = vector.shape_cast %151 : vector<16xf32> to vector<16x1xf32>
    %153 = tpu.reciprocal %152 {approx = true} : vector<16x1xf32> -> vector<16x1xf32>
    %154 = vector.broadcast %153 : vector<16x1xf32> to vector<16x16xf32>
    %155 = arith.mulf %150, %154 : vector<16x16xf32>
    %cst_62 = arith.constant dense<0.000000e+00> : vector<16x8xf32>
    %156 = tpu.matmul %155, %142, %cst_62 {dimension_numbers = #tpu.dot_dimension_numbers<[1], [0], [0], [1], [0, 0, 1, 1], [], []>} : vector<16x16xf32>, vector<16x8xf32>, vector<16x8xf32> -> vector<16x8xf32>
    %157 = vector.extract_strided_slice %115 {offsets = [0, 16], sizes = [16, 8], strides = [1, 1]} : vector<16x32xf32> to vector<16x8xf32>
    %158 = vector.extract_strided_slice %121 {offsets = [0, 16], sizes = [16, 8], strides = [1, 1]} : vector<16x32xf32> to vector<16x8xf32>
    %159 = vector.extract_strided_slice %122 {offsets = [0, 16], sizes = [16, 8], strides = [1, 1]} : vector<16x32xf32> to vector<16x8xf32>
    %cst_63 = arith.constant dense<0.000000e+00> : vector<16x16xf32>
    %160 = tpu.matmul %157, %158, %cst_63 {dimension_numbers = #tpu.dot_dimension_numbers<[1], [1], [0], [0], [0, 0, 1, 0], [], []>} : vector<16x8xf32>, vector<16x8xf32>, vector<16x16xf32> -> vector<16x16xf32>
    %cst_64 = arith.constant 0.353553385 : f32
    %161 = vector.broadcast %cst_64 : f32 to vector<16x16xf32>
    %162 = arith.mulf %160, %161 : vector<16x16xf32>
    %cst_65 = arith.constant dense<0xFF800000> : vector<16xf32>
    %163 = vector.multi_reduction <maximumf>, %162, %cst_65 [1] : vector<16x16xf32> to vector<16xf32>
    %164 = vector.shape_cast %163 : vector<16xf32> to vector<16x1xf32>
    %165 = vector.broadcast %164 : vector<16x1xf32> to vector<16x16xf32>
    %166 = arith.subf %162, %165 : vector<16x16xf32>
    %167 = math.exp %166 : vector<16x16xf32>
    %cst_66 = arith.constant dense<0.000000e+00> : vector<16xf32>
    %168 = vector.multi_reduction <add>, %167, %cst_66 [1] : vector<16x16xf32> to vector<16xf32>
    %169 = vector.shape_cast %168 : vector<16xf32> to vector<16x1xf32>
    %170 = tpu.reciprocal %169 {approx = true} : vector<16x1xf32> -> vector<16x1xf32>
    %171 = vector.broadcast %170 : vector<16x1xf32> to vector<16x16xf32>
    %172 = arith.mulf %167, %171 : vector<16x16xf32>
    %cst_67 = arith.constant dense<0.000000e+00> : vector<16x8xf32>
    %173 = tpu.matmul %172, %159, %cst_67 {dimension_numbers = #tpu.dot_dimension_numbers<[1], [0], [0], [1], [0, 0, 1, 1], [], []>} : vector<16x16xf32>, vector<16x8xf32>, vector<16x8xf32> -> vector<16x8xf32>
    %174 = vector.extract_strided_slice %115 {offsets = [0, 24], sizes = [16, 8], strides = [1, 1]} : vector<16x32xf32> to vector<16x8xf32>
    %175 = vector.extract_strided_slice %121 {offsets = [0, 24], sizes = [16, 8], strides = [1, 1]} : vector<16x32xf32> to vector<16x8xf32>
    %176 = vector.extract_strided_slice %122 {offsets = [0, 24], sizes = [16, 8], strides = [1, 1]} : vector<16x32xf32> to vector<16x8xf32>
    %cst_68 = arith.constant dense<0.000000e+00> : vector<16x16xf32>
    %177 = tpu.matmul %174, %175, %cst_68 {dimension_numbers = #tpu.dot_dimension_numbers<[1], [1], [0], [0], [0, 0, 1, 0], [], []>} : vector<16x8xf32>, vector<16x8xf32>, vector<16x16xf32> -> vector<16x16xf32>
    %cst_69 = arith.constant 0.353553385 : f32
    %178 = vector.broadcast %cst_69 : f32 to vector<16x16xf32>
    %179 = arith.mulf %177, %178 : vector<16x16xf32>
    %cst_70 = arith.constant dense<0xFF800000> : vector<16xf32>
    %180 = vector.multi_reduction <maximumf>, %179, %cst_70 [1] : vector<16x16xf32> to vector<16xf32>
    %181 = vector.shape_cast %180 : vector<16xf32> to vector<16x1xf32>
    %182 = vector.broadcast %181 : vector<16x1xf32> to vector<16x16xf32>
    %183 = arith.subf %179, %182 : vector<16x16xf32>
    %184 = math.exp %183 : vector<16x16xf32>
    %cst_71 = arith.constant dense<0.000000e+00> : vector<16xf32>
    %185 = vector.multi_reduction <add>, %184, %cst_71 [1] : vector<16x16xf32> to vector<16xf32>
    %186 = vector.shape_cast %185 : vector<16xf32> to vector<16x1xf32>
    %187 = tpu.reciprocal %186 {approx = true} : vector<16x1xf32> -> vector<16x1xf32>
    %188 = vector.broadcast %187 : vector<16x1xf32> to vector<16x16xf32>
    %189 = arith.mulf %184, %188 : vector<16x16xf32>
    %cst_72 = arith.constant dense<0.000000e+00> : vector<16x8xf32>
    %190 = tpu.matmul %189, %176, %cst_72 {dimension_numbers = #tpu.dot_dimension_numbers<[1], [0], [0], [1], [0, 0, 1, 1], [], []>} : vector<16x16xf32>, vector<16x8xf32>, vector<16x8xf32> -> vector<16x8xf32>
    %191 = tpu.concatenate %139, %156, %173, %190 in 1 : vector<16x8xf32>, vector<16x8xf32>, vector<16x8xf32>, vector<16x8xf32> -> vector<16x32xf32>
    %c0_73 = arith.constant 0 : index
    %c0_74 = arith.constant 0 : index
    %192 = vector.load %arg13[%c0_73, %c0_74] : memref<32x32xf32, #tpu.memory_space<vmem>>, vector<32x32xf32>
    %cst_75 = arith.constant dense<0.000000e+00> : vector<16x32xf32>
    %193 = tpu.matmul %191, %192, %cst_75 {dimension_numbers = #tpu.dot_dimension_numbers<[1], [0], [0], [1], [0, 0, 1, 1], [], []>} : vector<16x32xf32>, vector<32x32xf32>, vector<16x32xf32> -> vector<16x32xf32>
    %c0_76 = arith.constant 0 : index
    %c0_77 = arith.constant 0 : index
    %194 = vector.load %arg14[%c0_76, %c0_77] : memref<1x32xf32, #tpu.memory_space<vmem>>, vector<1x32xf32>
    %195 = vector.broadcast %194 : vector<1x32xf32> to vector<16x32xf32>
    %196 = arith.addf %193, %195 : vector<16x32xf32>
    %197 = arith.addf %110, %196 : vector<16x32xf32>
    %c0_78 = arith.constant 0 : index
    %c0_79 = arith.constant 0 : index
    %198 = vector.load %arg15[%c0_78, %c0_79] : memref<1x32xf32, #tpu.memory_space<vmem>>, vector<1x32xf32>
    %c0_80 = arith.constant 0 : index
    %c0_81 = arith.constant 0 : index
    %199 = vector.load %arg16[%c0_80, %c0_81] : memref<1x32xf32, #tpu.memory_space<vmem>>, vector<1x32xf32>
    %cst_82 = arith.constant dense<0.000000e+00> : vector<16xf32>
    %200 = vector.multi_reduction <add>, %197, %cst_82 [1] : vector<16x32xf32> to vector<16xf32>
    %201 = vector.shape_cast %200 : vector<16xf32> to vector<16x1xf32>
    %cst_83 = arith.constant 3.200000e+01 : f32
    %202 = vector.broadcast %cst_83 : f32 to vector<16x1xf32>
    %203 = arith.divf %201, %202 : vector<16x1xf32>
    %204 = vector.broadcast %203 : vector<16x1xf32> to vector<16x32xf32>
    %205 = arith.subf %197, %204 : vector<16x32xf32>
    %206 = arith.mulf %205, %205 : vector<16x32xf32>
    %cst_84 = arith.constant dense<0.000000e+00> : vector<16xf32>
    %207 = vector.multi_reduction <add>, %206, %cst_84 [1] : vector<16x32xf32> to vector<16xf32>
    %208 = vector.shape_cast %207 : vector<16xf32> to vector<16x1xf32>
    %cst_85 = arith.constant 3.200000e+01 : f32
    %209 = vector.broadcast %cst_85 : f32 to vector<16x1xf32>
    %210 = arith.divf %208, %209 : vector<16x1xf32>
    %211 = vector.broadcast %203 : vector<16x1xf32> to vector<16x32xf32>
    %212 = arith.subf %197, %211 : vector<16x32xf32>
    %cst_86 = arith.constant 9.99999974E-6 : f32
    %213 = vector.broadcast %cst_86 : f32 to vector<16x1xf32>
    %214 = arith.addf %210, %213 : vector<16x1xf32>
    %215 = math.rsqrt %214 : vector<16x1xf32>
    %216 = vector.broadcast %215 : vector<16x1xf32> to vector<16x32xf32>
    %217 = arith.mulf %212, %216 : vector<16x32xf32>
    %218 = vector.broadcast %198 : vector<1x32xf32> to vector<16x32xf32>
    %219 = arith.mulf %217, %218 : vector<16x32xf32>
    %220 = vector.broadcast %199 : vector<1x32xf32> to vector<16x32xf32>
    %221 = arith.addf %219, %220 : vector<16x32xf32>
    %c0_87 = arith.constant 0 : index
    %c0_88 = arith.constant 0 : index
    %222 = vector.load %arg17[%c0_87, %c0_88] : memref<32x64xf32, #tpu.memory_space<vmem>>, vector<32x64xf32>
    %cst_89 = arith.constant dense<0.000000e+00> : vector<16x64xf32>
    %223 = tpu.matmul %221, %222, %cst_89 {dimension_numbers = #tpu.dot_dimension_numbers<[1], [0], [0], [1], [0, 0, 1, 1], [], []>} : vector<16x32xf32>, vector<32x64xf32>, vector<16x64xf32> -> vector<16x64xf32>
    %c0_90 = arith.constant 0 : index
    %c0_91 = arith.constant 0 : index
    %224 = vector.load %arg18[%c0_90, %c0_91] : memref<1x64xf32, #tpu.memory_space<vmem>>, vector<1x64xf32>
    %225 = vector.broadcast %224 : vector<1x64xf32> to vector<16x64xf32>
    %226 = arith.addf %223, %225 : vector<16x64xf32>
    %227 = arith.mulf %226, %226 : vector<16x64xf32>
    %228 = arith.mulf %226, %227 : vector<16x64xf32>
    %cst_92 = arith.constant 4.471500e-02 : f32
    %229 = vector.broadcast %cst_92 : f32 to vector<16x64xf32>
    %230 = arith.mulf %229, %228 : vector<16x64xf32>
    %231 = arith.addf %226, %230 : vector<16x64xf32>
    %cst_93 = arith.constant 0.797884583 : f32
    %232 = vector.broadcast %cst_93 : f32 to vector<16x64xf32>
    %233 = arith.mulf %232, %231 : vector<16x64xf32>
    %234 = math.tanh %233 : vector<16x64xf32>
    %cst_94 = arith.constant 1.000000e+00 : f32
    %235 = vector.broadcast %cst_94 : f32 to vector<16x64xf32>
    %236 = arith.addf %235, %234 : vector<16x64xf32>
    %cst_95 = arith.constant 5.000000e-01 : f32
    %237 = vector.broadcast %cst_95 : f32 to vector<16x64xf32>
    %238 = arith.mulf %237, %236 : vector<16x64xf32>
    %239 = arith.mulf %226, %238 : vector<16x64xf32>
    %c0_96 = arith.constant 0 : index
    %c0_97 = arith.constant 0 : index
    %240 = vector.load %arg19[%c0_96, %c0_97] : memref<64x32xf32, #tpu.memory_space<vmem>>, vector<64x32xf32>
    %cst_98 = arith.constant dense<0.000000e+00> : vector<16x32xf32>
    %241 = tpu.matmul %239, %240, %cst_98 {dimension_numbers = #tpu.dot_dimension_numbers<[1], [0], [0], [1], [0, 0, 1, 1], [], []>} : vector<16x64xf32>, vector<64x32xf32>, vector<16x32xf32> -> vector<16x32xf32>
    %c0_99 = arith.constant 0 : index
    %c0_100 = arith.constant 0 : index
    %242 = vector.load %arg20[%c0_99, %c0_100] : memref<1x32xf32, #tpu.memory_space<vmem>>, vector<1x32xf32>
    %243 = vector.broadcast %242 : vector<1x32xf32> to vector<16x32xf32>
    %244 = arith.addf %241, %243 : vector<16x32xf32>
    %245 = arith.addf %221, %244 : vector<16x32xf32>
    %c0_101 = arith.constant 0 : index
    %c0_102 = arith.constant 0 : index
    %246 = vector.load %arg21[%c0_101, %c0_102] : memref<1x32xf32, #tpu.memory_space<vmem>>, vector<1x32xf32>
    %c0_103 = arith.constant 0 : index
    %c0_104 = arith.constant 0 : index
    %247 = vector.load %arg22[%c0_103, %c0_104] : memref<1x32xf32, #tpu.memory_space<vmem>>, vector<1x32xf32>
    %cst_105 = arith.constant dense<0.000000e+00> : vector<16xf32>
    %248 = vector.multi_reduction <add>, %245, %cst_105 [1] : vector<16x32xf32> to vector<16xf32>
    %249 = vector.shape_cast %248 : vector<16xf32> to vector<16x1xf32>
    %cst_106 = arith.constant 3.200000e+01 : f32
    %250 = vector.broadcast %cst_106 : f32 to vector<16x1xf32>
    %251 = arith.divf %249, %250 : vector<16x1xf32>
    %252 = vector.broadcast %251 : vector<16x1xf32> to vector<16x32xf32>
    %253 = arith.subf %245, %252 : vector<16x32xf32>
    %254 = arith.mulf %253, %253 : vector<16x32xf32>
    %cst_107 = arith.constant dense<0.000000e+00> : vector<16xf32>
    %255 = vector.multi_reduction <add>, %254, %cst_107 [1] : vector<16x32xf32> to vector<16xf32>
    %256 = vector.shape_cast %255 : vector<16xf32> to vector<16x1xf32>
    %cst_108 = arith.constant 3.200000e+01 : f32
    %257 = vector.broadcast %cst_108 : f32 to vector<16x1xf32>
    %258 = arith.divf %256, %257 : vector<16x1xf32>
    %259 = vector.broadcast %251 : vector<16x1xf32> to vector<16x32xf32>
    %260 = arith.subf %245, %259 : vector<16x32xf32>
    %cst_109 = arith.constant 9.99999974E-6 : f32
    %261 = vector.broadcast %cst_109 : f32 to vector<16x1xf32>
    %262 = arith.addf %258, %261 : vector<16x1xf32>
    %263 = math.rsqrt %262 : vector<16x1xf32>
    %264 = vector.broadcast %263 : vector<16x1xf32> to vector<16x32xf32>
    %265 = arith.mulf %260, %264 : vector<16x32xf32>
    %266 = vector.broadcast %246 : vector<1x32xf32> to vector<16x32xf32>
    %267 = arith.mulf %265, %266 : vector<16x32xf32>
    %268 = vector.broadcast %247 : vector<1x32xf32> to vector<16x32xf32>
    %269 = arith.addf %267, %268 : vector<16x32xf32>
    %c0_110 = arith.constant 0 : index
    %c0_111 = arith.constant 0 : index
    %c0_112 = arith.constant 0 : index
    %270 = vector.load %arg23[%c0_110, %c0_111, %c0_112] : memref<1x16x32xf32, #tpu.memory_space<vmem>>, vector<1x16x32xf32>
    %271 = vector.shape_cast %270 : vector<1x16x32xf32> to vector<16x32xf32>
    %272 = vector.shape_cast %269 : vector<16x32xf32> to vector<1x16x32xf32>
    tpu.vector_store %arg23[%c0_110, %c0_111, %c0_112], %272 {strides = array<i32>} : memref<1x16x32xf32, #tpu.memory_space<vmem>>, vector<1x16x32xf32>,
    return
  }
  func.func @transform_0(%arg0: i32) -> (i32, i32, i32) {
    %c0_i32 = arith.constant 0 : i32
    %c0_i32_0 = arith.constant 0 : i32
    %c0_i32_1 = arith.constant 0 : i32
    return %arg0, %c0_i32, %c0_i32_0 : i32, i32, i32
  }
  func.func @transform_1(%arg0: i32) -> (i32, i32, i32) {
    %c0_i32 = arith.constant 0 : i32
    %c0_i32_0 = arith.constant 0 : i32
    %c0_i32_1 = arith.constant 0 : i32
    return %arg0, %c0_i32, %c0_i32_0 : i32, i32, i32
  }
  func.func @transform_2(%arg0: i32) -> (i32, i32) {
    %c0_i32 = arith.constant 0 : i32
    %c0_i32_0 = arith.constant 0 : i32
    %c0_i32_1 = arith.constant 0 : i32
    return %c0_i32, %c0_i32_0 : i32, i32
  }
  func.func @transform_3(%arg0: i32) -> (i32, i32) {
    %c0_i32 = arith.constant 0 : i32
    %c0_i32_0 = arith.constant 0 : i32
    %c0_i32_1 = arith.constant 0 : i32
    return %c0_i32, %c0_i32_0 : i32, i32
  }
  func.func @transform_4(%arg0: i32) -> (i32, i32) {
    %c0_i32 = arith.constant 0 : i32
    %c0_i32_0 = arith.constant 0 : i32
    %c0_i32_1 = arith.constant 0 : i32
    return %c0_i32, %c0_i32_0 : i32, i32
  }
  func.func @transform_5(%arg0: i32) -> (i32, i32) {
    %c0_i32 = arith.constant 0 : i32
    %c0_i32_0 = arith.constant 0 : i32
    %c0_i32_1 = arith.constant 0 : i32
    return %c0_i32, %c0_i32_0 : i32, i32
  }
  func.func @transform_6(%arg0: i32) -> (i32, i32) {
    %c0_i32 = arith.constant 0 : i32
    %c0_i32_0 = arith.constant 0 : i32
    %c0_i32_1 = arith.constant 0 : i32
    return %c0_i32, %c0_i32_0 : i32, i32
  }
  func.func @transform_7(%arg0: i32) -> (i32, i32) {
    %c0_i32 = arith.constant 0 : i32
    %c0_i32_0 = arith.constant 0 : i32
    %c0_i32_1 = arith.constant 0 : i32
    return %c0_i32, %c0_i32_0 : i32, i32
  }
  func.func @transform_8(%arg0: i32) -> (i32, i32) {
    %c0_i32 = arith.constant 0 : i32
    %c0_i32_0 = arith.constant 0 : i32
    %c0_i32_1 = arith.constant 0 : i32
    return %c0_i32, %c0_i32_0 : i32, i32
  }
  func.func @transform_9(%arg0: i32) -> (i32, i32) {
    %c0_i32 = arith.constant 0 : i32
    %c0_i32_0 = arith.constant 0 : i32
    %c0_i32_1 = arith.constant 0 : i32
    return %c0_i32, %c0_i32_0 : i32, i32
  }
  func.func @transform_10(%arg0: i32) -> (i32, i32) {
    %c0_i32 = arith.constant 0 : i32
    %c0_i32_0 = arith.constant 0 : i32
    %c0_i32_1 = arith.constant 0 : i32
    return %c0_i32, %c0_i32_0 : i32, i32
  }
  func.func @transform_11(%arg0: i32) -> (i32, i32) {
    %c0_i32 = arith.constant 0 : i32
    %c0_i32_0 = arith.constant 0 : i32
    %c0_i32_1 = arith.constant 0 : i32
    return %c0_i32, %c0_i32_0 : i32, i32
  }
  func.func @transform_12(%arg0: i32) -> (i32, i32) {
    %c0_i32 = arith.constant 0 : i32
    %c0_i32_0 = arith.constant 0 : i32
    %c0_i32_1 = arith.constant 0 : i32
    return %c0_i32, %c0_i32_0 : i32, i32
  }
  func.func @transform_13(%arg0: i32) -> (i32, i32) {
    %c0_i32 = arith.constant 0 : i32
    %c0_i32_0 = arith.constant 0 : i32
    %c0_i32_1 = arith.constant 0 : i32
    return %c0_i32, %c0_i32_0 : i32, i32
  }
  func.func @transform_14(%arg0: i32) -> (i32, i32) {
    %c0_i32 = arith.constant 0 : i32
    %c0_i32_0 = arith.constant 0 : i32
    %c0_i32_1 = arith.constant 0 : i32
    return %c0_i32, %c0_i32_0 : i32, i32
  }
  func.func @transform_15(%arg0: i32) -> (i32, i32) {
    %c0_i32 = arith.constant 0 : i32
    %c0_i32_0 = arith.constant 0 : i32
    %c0_i32_1 = arith.constant 0 : i32
    return %c0_i32, %c0_i32_0 : i32, i32
  }
  func.func @transform_16(%arg0: i32) -> (i32, i32) {
    %c0_i32 = arith.constant 0 : i32
    %c0_i32_0 = arith.constant 0 : i32
    %c0_i32_1 = arith.constant 0 : i32
    return %c0_i32, %c0_i32_0 : i32, i32
  }
  func.func @transform_17(%arg0: i32) -> (i32, i32) {
    %c0_i32 = arith.constant 0 : i32
    %c0_i32_0 = arith.constant 0 : i32
    %c0_i32_1 = arith.constant 0 : i32
    return %c0_i32, %c0_i32_0 : i32, i32
  }
  func.func @transform_18(%arg0: i32) -> (i32, i32) {
    %c0_i32 = arith.constant 0 : i32
    %c0_i32_0 = arith.constant 0 : i32
    %c0_i32_1 = arith.constant 0 : i32
    return %c0_i32, %c0_i32_0 : i32, i32
  }
  func.func @transform_19(%arg0: i32) -> (i32, i32) {
    %c0_i32 = arith.constant 0 : i32
    %c0_i32_0 = arith.constant 0 : i32
    %c0_i32_1 = arith.constant 0 : i32
    return %c0_i32, %c0_i32_0 : i32, i32
  }
  func.func @transform_20(%arg0: i32) -> (i32, i32) {
    %c0_i32 = arith.constant 0 : i32
    %c0_i32_0 = arith.constant 0 : i32
    %c0_i32_1 = arith.constant 0 : i32
    return %c0_i32, %c0_i32_0 : i32, i32
  }
  func.func @transform_21(%arg0: i32) -> (i32, i32) {
    %c0_i32 = arith.constant 0 : i32
    %c0_i32_0 = arith.constant 0 : i32
    %c0_i32_1 = arith.constant 0 : i32
    return %c0_i32, %c0_i32_0 : i32, i32
  }
  func.func @transform_22(%arg0: i32) -> (i32, i32, i32) {
    %c0_i32 = arith.constant 0 : i32
    %c0_i32_0 = arith.constant 0 : i32
    %c0_i32_1 = arith.constant 0 : i32
    return %arg0, %c0_i32, %c0_i32_0 : i32, i32, i32
  }
}

module attributes {stable_mosaic.version = 11 : i64} {
  func.func @_ln_proj_kernel(%arg0: i32, %arg1: memref<1x16x32xf32, #tpu.memory_space<vmem>>, %arg2: memref<1x32xf32, #tpu.memory_space<vmem>>, %arg3: memref<1x32xf32, #tpu.memory_space<vmem>>, %arg4: memref<32x4xf32, #tpu.memory_space<vmem>>, %arg5: memref<1x4xf32, #tpu.memory_space<vmem>>, %arg6: memref<1x16x4xf32, #tpu.memory_space<vmem>>) attributes {dimension_semantics = [#tpu.dimension_semantics<parallel>], iteration_bounds = array<i64: 2>, scalar_prefetch = 0 : i64, scratch_operands = 0 : i64, tpu.core_type = #tpu.core_type<tc>, window_params = [{transform_indices = @transform_0, window_bounds = array<i64: 1, 16, 32>}, {pipeline_mode = #tpu.pipeline_mode<synchronous>, transform_indices = @transform_1, window_bounds = array<i64: 1, 32>}, {pipeline_mode = #tpu.pipeline_mode<synchronous>, transform_indices = @transform_2, window_bounds = array<i64: 1, 32>}, {pipeline_mode = #tpu.pipeline_mode<synchronous>, transform_indices = @transform_3, window_bounds = array<i64: 32, 4>}, {pipeline_mode = #tpu.pipeline_mode<synchronous>, transform_indices = @transform_4, window_bounds = array<i64: 1, 4>}, {transform_indices = @transform_5, window_bounds = array<i64: 1, 16, 4>}]} {
    %c0 = arith.constant 0 : index
    %c0_0 = arith.constant 0 : index
    %c0_1 = arith.constant 0 : index
    %0 = vector.load %arg1[%c0, %c0_0, %c0_1] : memref<1x16x32xf32, #tpu.memory_space<vmem>>, vector<1x16x32xf32>
    %1 = vector.shape_cast %0 : vector<1x16x32xf32> to vector<16x32xf32>
    %c0_2 = arith.constant 0 : index
    %c0_3 = arith.constant 0 : index
    %2 = vector.load %arg2[%c0_2, %c0_3] : memref<1x32xf32, #tpu.memory_space<vmem>>, vector<1x32xf32>
    %c0_4 = arith.constant 0 : index
    %c0_5 = arith.constant 0 : index
    %3 = vector.load %arg3[%c0_4, %c0_5] : memref<1x32xf32, #tpu.memory_space<vmem>>, vector<1x32xf32>
    %cst = arith.constant dense<0.000000e+00> : vector<16xf32>
    %4 = vector.multi_reduction <add>, %1, %cst [1] : vector<16x32xf32> to vector<16xf32>
    %5 = vector.shape_cast %4 : vector<16xf32> to vector<16x1xf32>
    %cst_6 = arith.constant 3.200000e+01 : f32
    %6 = vector.broadcast %cst_6 : f32 to vector<16x1xf32>
    %7 = arith.divf %5, %6 : vector<16x1xf32>
    %8 = vector.broadcast %7 : vector<16x1xf32> to vector<16x32xf32>
    %9 = arith.subf %1, %8 : vector<16x32xf32>
    %10 = arith.mulf %9, %9 : vector<16x32xf32>
    %cst_7 = arith.constant dense<0.000000e+00> : vector<16xf32>
    %11 = vector.multi_reduction <add>, %10, %cst_7 [1] : vector<16x32xf32> to vector<16xf32>
    %12 = vector.shape_cast %11 : vector<16xf32> to vector<16x1xf32>
    %cst_8 = arith.constant 3.200000e+01 : f32
    %13 = vector.broadcast %cst_8 : f32 to vector<16x1xf32>
    %14 = arith.divf %12, %13 : vector<16x1xf32>
    %15 = vector.broadcast %7 : vector<16x1xf32> to vector<16x32xf32>
    %16 = arith.subf %1, %15 : vector<16x32xf32>
    %cst_9 = arith.constant 9.99999974E-6 : f32
    %17 = vector.broadcast %cst_9 : f32 to vector<16x1xf32>
    %18 = arith.addf %14, %17 : vector<16x1xf32>
    %19 = math.rsqrt %18 : vector<16x1xf32>
    %20 = vector.broadcast %19 : vector<16x1xf32> to vector<16x32xf32>
    %21 = arith.mulf %16, %20 : vector<16x32xf32>
    %22 = vector.broadcast %2 : vector<1x32xf32> to vector<16x32xf32>
    %23 = arith.mulf %21, %22 : vector<16x32xf32>
    %24 = vector.broadcast %3 : vector<1x32xf32> to vector<16x32xf32>
    %25 = arith.addf %23, %24 : vector<16x32xf32>
    %c0_10 = arith.constant 0 : index
    %c0_11 = arith.constant 0 : index
    %26 = vector.load %arg4[%c0_10, %c0_11] : memref<32x4xf32, #tpu.memory_space<vmem>>, vector<32x4xf32>
    %cst_12 = arith.constant dense<0.000000e+00> : vector<16x4xf32>
    %27 = tpu.matmul %25, %26, %cst_12 {dimension_numbers = #tpu.dot_dimension_numbers<[1], [0], [0], [1], [0, 0, 1, 1], [], []>} : vector<16x32xf32>, vector<32x4xf32>, vector<16x4xf32> -> vector<16x4xf32>
    %c0_13 = arith.constant 0 : index
    %c0_14 = arith.constant 0 : index
    %28 = vector.load %arg5[%c0_13, %c0_14] : memref<1x4xf32, #tpu.memory_space<vmem>>, vector<1x4xf32>
    %29 = vector.broadcast %28 : vector<1x4xf32> to vector<16x4xf32>
    %30 = arith.addf %27, %29 : vector<16x4xf32>
    %c0_15 = arith.constant 0 : index
    %c0_16 = arith.constant 0 : index
    %c0_17 = arith.constant 0 : index
    %31 = vector.load %arg6[%c0_15, %c0_16, %c0_17] : memref<1x16x4xf32, #tpu.memory_space<vmem>>, vector<1x16x4xf32>
    %32 = vector.shape_cast %31 : vector<1x16x4xf32> to vector<16x4xf32>
    %33 = vector.shape_cast %30 : vector<16x4xf32> to vector<1x16x4xf32>
    tpu.vector_store %arg6[%c0_15, %c0_16, %c0_17], %33 {strides = array<i32>} : memref<1x16x4xf32, #tpu.memory_space<vmem>>, vector<1x16x4xf32>,
    return
  }
  func.func @transform_0(%arg0: i32) -> (i32, i32, i32) {
    %c0_i32 = arith.constant 0 : i32
    %c0_i32_0 = arith.constant 0 : i32
    %c0_i32_1 = arith.constant 0 : i32
    return %arg0, %c0_i32, %c0_i32_0 : i32, i32, i32
  }
  func.func @transform_1(%arg0: i32) -> (i32, i32) {
    %c0_i32 = arith.constant 0 : i32
    %c0_i32_0 = arith.constant 0 : i32
    %c0_i32_1 = arith.constant 0 : i32
    return %c0_i32, %c0_i32_0 : i32, i32
  }
  func.func @transform_2(%arg0: i32) -> (i32, i32) {
    %c0_i32 = arith.constant 0 : i32
    %c0_i32_0 = arith.constant 0 : i32
    %c0_i32_1 = arith.constant 0 : i32
    return %c0_i32, %c0_i32_0 : i32, i32
  }
  func.func @transform_3(%arg0: i32) -> (i32, i32) {
    %c0_i32 = arith.constant 0 : i32
    %c0_i32_0 = arith.constant 0 : i32
    %c0_i32_1 = arith.constant 0 : i32
    return %c0_i32, %c0_i32_0 : i32, i32
  }
  func.func @transform_4(%arg0: i32) -> (i32, i32) {
    %c0_i32 = arith.constant 0 : i32
    %c0_i32_0 = arith.constant 0 : i32
    %c0_i32_1 = arith.constant 0 : i32
    return %c0_i32, %c0_i32_0 : i32, i32
  }
  func.func @transform_5(%arg0: i32) -> (i32, i32, i32) {
    %c0_i32 = arith.constant 0 : i32
    %c0_i32_0 = arith.constant 0 : i32
    %c0_i32_1 = arith.constant 0 : i32
    return %arg0, %c0_i32, %c0_i32_0 : i32, i32, i32
  }
}

</mosaic_0001>

<llo_original>
// kernel: model_forward.6
$region0: #{model_forward.6}
  #allocation0 [shape = 'u32[]', space=smem, size = 0x4, offset = 0x4, fixed_abs, tag = 'smem constant byte address 0x4 - core index']
  #allocation1 [shape = 'u32[144,128]{1,0:T(1,128)}', space=vmem, size = 0x12000, scoped, tag = 'internal scratch']
  %s0 = inlined_call_operand.vmem [shape: f32[2,16,12], index: 0, kind: input, shape index: {}]
  %s1 = inlined_call_operand.vmem [shape: f32[2,16,4], index: 1, kind: input, shape index: {}]
  %s2 = inlined_call_operand.vmem [shape: f32[12,32], index: 2, kind: input, shape index: {}]
  %s3 = inlined_call_operand.vmem [shape: f32[4,32], index: 3, kind: input, shape index: {}]
  %s4 = inlined_call_operand.vmem [shape: f32[16,32], index: 4, kind: input, shape index: {}]
  %s5 = inlined_call_operand.vmem [shape: f32[2,16,32], index: 5, kind: output, shape index: {}]
  %s6 = sld [smem:[#allocation0]]
  $region53: #{model_forward.6} parent=0
    _
  %s8 = ssub.s32 1, %s6
  %s9 = scalar_select 0, %s8, %s6
  loop: start=0, step=1, limit=4
  $region2: #{model_forward.6} parent=0 // loop_pre_header
    _
  $region3: #{model_forward.6} parent=0 // loop_header
    %s11 = sphi 0, %s15
    %p12 = scmp.ge.s32.totalorder %s11, 4
    %s21 = sphi 0, %s23
    %s24 = sphi 0, %s21
    %s25 = sphi 0, %s24
    %s41 = sphi 0, %s25
    %s47 = sphi 0, %s49
    %s50 = sphi 0, %s47
    %s51 = sphi 0, %s50
    %s67 = sphi 0, %s51
    %s71 = sphi 0, %s71
    %s73 = sphi 0, %s71
    %s74 = sphi 0, %s73
    %s88 = sphi 0, %s74
    %s92 = sphi 0, %s92
    %s94 = sphi 0, %s92
    %s95 = sphi 0, %s94
    %s109 = sphi 0, %s95
    %s113 = sphi 0, %s113
    %s115 = sphi 0, %s113
    %s116 = sphi 0, %s115
    %s130 = sphi 0, %s116
    %s136 = sphi 0, %s138
    %s139 = sphi 0, %s136
    %s140 = sphi 0, %s139
    %s156 = sphi 0, %s140
  $region4: #{model_forward.6} parent=0 // loop_header_branch
    %14 = sbr.rel (%p12) target = $region8
  $region5: #{model_forward.6} parent=0 // loop_body
    %s16 = ssub.s32 %s11, 1
    %s17 = ssub.s32 %s11, 2
    %s18 = sadd.s32 %s11, 1
    %s19 = ssub.s32 %s11, %s18
    %p20 = scmp.eq.s32.totalorder %s19, 0
    %s22 = sadd.s32 %s21, 1
    %s23 = scalar_select %p20, %s21, %s22
    %p26 = pneg %p20
    %p27 = scmp.eq.s32.totalorder %s11, 1
    %p28 = por %p26, %p27
    %p29 = scmp.ne.s32.totalorder %s21, %s24
    %p30 = scmp.eq.s32.totalorder %s11, 0
    %p31 = por %p29, %p30
    %p32 = scmp.ne.s32.totalorder %s21, %s24
    %p33 = scmp.eq.s32.totalorder %s16, 1
    %p34 = por %p32, %p33
    %p35 = scmp.ne.s32.totalorder %s24, %s25
    %p36 = scmp.eq.s32.totalorder %s16, 0
    %p37 = por %p35, %p36
    %p38 = scmp.ne.s32.totalorder %s24, %s25
    %p39 = scmp.eq.s32.totalorder %s17, 1
    %p40 = por %p38, %p39
    %p42 = scmp.ne.s32.totalorder %s25, %s41
    %p43 = scmp.eq.s32.totalorder %s17, 0
    %p44 = por %p42, %p43
    %s45 = ssub.s32 %s11, %s18
    %p46 = scmp.eq.s32.totalorder %s45, 0
    %s48 = sadd.s32 %s47, 1
    %s49 = scalar_select %p46, %s47, %s48
    %p52 = pneg %p46
    %p53 = scmp.eq.s32.totalorder %s11, 1
    %p54 = por %p52, %p53
    %p55 = scmp.ne.s32.totalorder %s47, %s50
    %p56 = scmp.eq.s32.totalorder %s11, 0
    %p57 = por %p55, %p56
    %p58 = scmp.ne.s32.totalorder %s47, %s50
    %p59 = scmp.eq.s32.totalorder %s16, 1
    %p60 = por %p58, %p59
    %p61 = scmp.ne.s32.totalorder %s50, %s51
    %p62 = scmp.eq.s32.totalorder %s16, 0
    %p63 = por %p61, %p62
    %p64 = scmp.ne.s32.totalorder %s50, %s51
    %p65 = scmp.eq.s32.totalorder %s17, 1
    %p66 = por %p64, %p65
    %p68 = scmp.ne.s32.totalorder %s51, %s67
    %p69 = scmp.eq.s32.totalorder %s17, 0
    %p70 = por %p68, %p69
    %s72 = sadd.s32 %s71, 1
    %p75 = scmp.eq.s32.totalorder %s11, 1
    %p76 = scmp.ne.s32.totalorder %s71, %s73
    %p77 = scmp.eq.s32.totalorder %s11, 0
    %p78 = por %p76, %p77
    %p79 = scmp.ne.s32.totalorder %s71, %s73
    %p80 = scmp.eq.s32.totalorder %s16, 1
    %p81 = por %p79, %p80
    %p82 = scmp.ne.s32.totalorder %s73, %s74
    %p83 = scmp.eq.s32.totalorder %s16, 0
    %p84 = por %p82, %p83
    %p85 = scmp.ne.s32.totalorder %s73, %s74
    %p86 = scmp.eq.s32.totalorder %s17, 1
    %p87 = por %p85, %p86
    %p89 = scmp.ne.s32.totalorder %s74, %s88
    %p90 = scmp.eq.s32.totalorder %s17, 0
    %p91 = por %p89, %p90
    %s93 = sadd.s32 %s92, 1
    %p96 = scmp.eq.s32.totalorder %s11, 1
    %p97 = scmp.ne.s32.totalorder %s92, %s94
    %p98 = scmp.eq.s32.totalorder %s11, 0
    %p99 = por %p97, %p98
    %p100 = scmp.ne.s32.totalorder %s92, %s94
    %p101 = scmp.eq.s32.totalorder %s16, 1
    %p102 = por %p100, %p101
    %p103 = scmp.ne.s32.totalorder %s94, %s95
    %p104 = scmp.eq.s32.totalorder %s16, 0
    %p105 = por %p103, %p104
    %p106 = scmp.ne.s32.totalorder %s94, %s95
    %p107 = scmp.eq.s32.totalorder %s17, 1
    %p108 = por %p106, %p107
    %p110 = scmp.ne.s32.totalorder %s95, %s109
    %p111 = scmp.eq.s32.totalorder %s17, 0
    %p112 = por %p110, %p111
    %s114 = sadd.s32 %s113, 1
    %p117 = scmp.eq.s32.totalorder %s11, 1
    %p118 = scmp.ne.s32.totalorder %s113, %s115
    %p119 = scmp.eq.s32.totalorder %s11, 0
    %p120 = por %p118, %p119
    %p121 = scmp.ne.s32.totalorder %s113, %s115
    %p122 = scmp.eq.s32.totalorder %s16, 1
    %p123 = por %p121, %p122
    %p124 = scmp.ne.s32.totalorder %s115, %s116
    %p125 = scmp.eq.s32.totalorder %s16, 0
    %p126 = por %p124, %p125
    %p127 = scmp.ne.s32.totalorder %s115, %s116
    %p128 = scmp.eq.s32.totalorder %s17, 1
    %p129 = por %p127, %p128
    %p131 = scmp.ne.s32.totalorder %s116, %s130
    %p132 = scmp.eq.s32.totalorder %s17, 0
    %p133 = por %p131, %p132
    %s134 = ssub.s32 %s11, %s18
    %p135 = scmp.eq.s32.totalorder %s134, 0
    %s137 = sadd.s32 %s136, 1
    %s138 = scalar_select %p135, %s136, %s137
    %p141 = pneg %p135
    %p142 = scmp.eq.s32.totalorder %s11, 1
    %p143 = por %p141, %p142
    %p144 = scmp.ne.s32.totalorder %s136, %s139
    %p145 = scmp.eq.s32.totalorder %s11, 0
    %p146 = por %p144, %p145
    %p147 = scmp.ne.s32.totalorder %s136, %s139
    %p148 = scmp.eq.s32.totalorder %s16, 1
    %p149 = por %p147, %p148
    %p150 = scmp.ne.s32.totalorder %s139, %s140
    %p151 = scmp.eq.s32.totalorder %s16, 0
    %p152 = por %p150, %p151
    %p153 = scmp.ne.s32.totalorder %s139, %s140
    %p154 = scmp.eq.s32.totalorder %s17, 1
    %p155 = por %p153, %p154
    %p157 = scmp.ne.s32.totalorder %s140, %s156
    %p158 = scmp.eq.s32.totalorder %s17, 0
    %p159 = por %p157, %p158
    %p160 = scmp.le.s32.totalorder 1, %s11
    %p161 = scmp.lt.s32.totalorder %s11, 3
    %p162 = pnand %p160, %p161
    %p163 = pneg %p162
    // Predicated region
    $region9: #{model_forward.6} parent=5 // pred_check
      _
    $region10: #{model_forward.6} parent=5 // pred_check_branch
      %165 = sbr.rel (%p162) target = $region12
    $region11: #{model_forward.6} parent=5 // pred_region
      %s166 = ssub.s32 %s11, 1
      // Predicated region
      $region13: #{model_forward.6} parent=11 // pred_check
        %p167 = pneg %p84
      $region14: #{model_forward.6} parent=11 // pred_check_branch
        %169 = sbr.rel (%p167) target = $region16
      $region15: #{model_forward.6} parent=11 // pred_region
        _
      $region16: #{model_forward.6} parent=11 // pred_fallthru
        _
      // Predicated region
      $region17: #{model_forward.6} parent=11 // pred_check
        %p170 = pneg %p105
      $region18: #{model_forward.6} parent=11 // pred_check_branch
        %172 = sbr.rel (%p170) target = $region20
      $region19: #{model_forward.6} parent=11 // pred_region
        _
      $region20: #{model_forward.6} parent=11 // pred_fallthru
        _
      // Predicated region
      $region21: #{model_forward.6} parent=11 // pred_check
        %p173 = pneg %p126
      $region22: #{model_forward.6} parent=11 // pred_check_branch
        %175 = sbr.rel (%p173) target = $region24
      $region23: #{model_forward.6} parent=11 // pred_region
        _
      $region24: #{model_forward.6} parent=11 // pred_fallthru
        _
    $region12: #{model_forward.6} parent=5 // pred_fallthru
      _
    %p176 = scmp.lt.s32.totalorder %s11, 2
    // Predicated region
    $region25: #{model_forward.6} parent=5 // pred_check
      %p177 = pneg %p176
    $region26: #{model_forward.6} parent=5 // pred_check_branch
      %179 = sbr.rel (%p177) target = $region28
    $region27: #{model_forward.6} parent=5 // pred_region
      // Predicated region
      $region29: #{model_forward.6} parent=27 // pred_check
        %p180 = pneg %p31
      $region30: #{model_forward.6} parent=27 // pred_check_branch
        %182 = sbr.rel (%p180) target = $region32
      $region31: #{model_forward.6} parent=27 // pred_region
        %p183 = scmp.lt.s32.totalorder %s11, 1
        %s184 = scalar_select %p183, %s11, 1
        %s185 = smul.addr %s184, 2
        %s186 = smul.addr %s185, 8
        %s187 = scalar_lea.vmem %s0, %s186
      $region32: #{model_forward.6} parent=27 // pred_fallthru
        _
      // Predicated region
      $region33: #{model_forward.6} parent=27 // pred_check
        %p188 = pneg %p57
      $region34: #{model_forward.6} parent=27 // pred_check_branch
        %190 = sbr.rel (%p188) target = $region36
      $region35: #{model_forward.6} parent=27 // pred_region
        %p191 = scmp.lt.s32.totalorder %s11, 1
        %s192 = scalar_select %p191, %s11, 1
        %s193 = smul.addr %s192, 2
        %s194 = smul.addr %s193, 8
        %s195 = scalar_lea.vmem %s1, %s194
      $region36: #{model_forward.6} parent=27 // pred_fallthru
        _
    $region28: #{model_forward.6} parent=5 // pred_fallthru
      _
    %p196 = scmp.le.s32.totalorder 1, %s11
    %p197 = scmp.lt.s32.totalorder %s11, 3
    %p198 = pnand %p196, %p197
    %p199 = pneg %p198
    // Predicated region
    $region37: #{model_forward.6} parent=5 // pred_check
      _
    $region38: #{model_forward.6} parent=5 // pred_check_branch
      %201 = sbr.rel (%p198) target = $region40
    $region39: #{model_forward.6} parent=5 // pred_region
      %s202 = ssub.s32 %s11, 1
      %p203 = scmp.lt.s32.totalorder %s16, 1
      %s204 = scalar_select %p203, %s16, 1
      %s205 = smul.addr %s204, 2
      %s206 = smul.addr %s205, 8
      %s207 = scalar_lea.vmem %s0, %s206
      %p208 = pneg %p37
      %p209 = pneg %p34
      %p210 = scmp.lt.s32.totalorder %s16, 1
      %s211 = scalar_select %p210, %s16, 1
      %s212 = smul.addr %s211, 2
      %s213 = smul.addr %s212, 8
      %s214 = scalar_lea.vmem %s1, %s213
      %p215 = pneg %p63
      %p216 = pneg %p60
      %p217 = pneg %p84
      %p218 = pneg %p81
      %p219 = pneg %p105
      %p220 = pneg %p102
      %p221 = pneg %p126
      %p222 = pneg %p123
      %p223 = pneg %p152
      %p224 = pneg %p149
      %p225 = scmp.lt.s32.totalorder %s16, 1
      %s226 = scalar_select %p225, %s16, 1
      %s227 = smul.addr %s226, 2
      %s228 = smul.addr %s227, 8
      %s229 = scalar_lea.vmem %s5, %s228
      %p230 = scmp.lt.s32.totalorder %s16, 1
      %s231 = scalar_select %p230, %s16, 1
      %s232 = smul.addr %s231, 2
      %s233 = smul.addr %s232, 8
      %s234 = scalar_lea.vmem %s0, %s233
      %p235 = scmp.lt.s32.totalorder %s16, 1
      %s236 = scalar_select %p235, %s16, 1
      %s237 = smul.addr %s236, 2
      %s238 = smul.addr %s237, 8
      %s239 = scalar_lea.vmem %s1, %s238
      %p240 = scmp.lt.s32.totalorder %s16, 1
      %s241 = scalar_select %p240, %s16, 1
      %s242 = smul.addr %s241, 2
      %s243 = smul.addr %s242, 8
      %s244 = scalar_lea.vmem %s5, %s243
      %v245 = vld [vmem:[%s234] sm:$0xff]
      %v246 = vld [vmem:[%s234 + $0x8] sm:$0xff]
      %v247 = vld [vmem:[%s2] sm:$0xff]
      %v248 = vld [vmem:[%s2 + $0x8] sm:$0xf]
      %v249 = vld [vmem:[%s239] sm:$0xff]
      %v250 = vld [vmem:[%s239 + $0x8] sm:$0xff]
      %v251 = vld [vmem:[%s3] sm:$0xf]
      %vm252 = vcmask 31744
      %v254 = vsel %vm252, %v249, 0
      %v257 = vsel %vm252, %v250, 0
      %vm259 = vcmask 1043456
      %v261 = vsel %vm259, %v251, 0
      %263 = vmatprep.subr.mxu0 0.0
      %264 = vmatpush1.msra.mxu0 %v261
      %265 = vmatprep.subr.mxu0 0.0
      %266 = vmatpush1.msra.mxu0 0.0
      %267 = vmatprep.subr.mxu0 0.0
      %268 = vmatpush1.msra.mxu0 0.0
      %269 = vmatprep.subr.mxu0 0.0
      %270 = vmatpush1.msra.mxu0 0.0
      %271 = vmatprep.subr.mxu0 0.0
      %272 = vmatpush1.msra.mxu0 0.0
      %273 = vmatprep.subr.mxu0 0.0
      %274 = vmatpush1.msra.mxu0 0.0
      %275 = vmatprep.subr.mxu0 0.0
      %276 = vmatpush1.msra.mxu0 0.0
      %277 = vmatprep.subr.mxu0 0.0
      %278 = vmatpush1.msra.mxu0 0.0
      %279 = vmatprep.subr.mxu0 0.0
      %280 = vmatpush1.msra.mxu0 0.0
      %281 = vmatprep.subr.mxu0 0.0
      %282 = vmatpush1.msra.mxu0 0.0
      %283 = vmatprep.subr.mxu0 0.0
      %284 = vmatpush1.msra.mxu0 0.0
      %285 = vmatprep.subr.mxu0 0.0
      %286 = vmatpush1.msra.mxu0 0.0
      %287 = vmatprep.subr.mxu0 0.0
      %288 = vmatpush1.msra.mxu0 0.0
      %289 = vmatprep.subr.mxu0 0.0
      %290 = vmatpush1.msra.mxu0 0.0
      %291 = vmatprep.subr.mxu0 0.0
      %292 = vmatpush1.msra.mxu0 0.0
      %293 = vmatprep.subr.mxu0 0.0
      %294 = vmatpush1.msra.mxu0 0.0
      %295 = vmatprep.subr.mxu0 0.0
      %296 = vmatpush1.msra.mxu0 0.0
      %297 = vmatprep.subr.mxu0 0.0
      %298 = vmatpush1.msra.mxu0 0.0
      %299 = vmatprep.subr.mxu0 0.0
      %300 = vmatpush1.msra.mxu0 0.0
      %301 = vmatprep.subr.mxu0 0.0
      %302 = vmatpush1.msra.mxu0 0.0
      %303 = vmatprep.subr.mxu0 0.0
      %304 = vmatpush1.msra.mxu0 0.0
      %305 = vmatprep.subr.mxu0 0.0
      %306 = vmatpush1.msra.mxu0 0.0
      %307 = vmatprep.subr.mxu0 0.0
      %308 = vmatpush1.msra.mxu0 0.0
      %309 = vmatprep.subr.mxu0 0.0
      %310 = vmatpush1.msra.mxu0 0.0
      %311 = vmatprep.subr.mxu0 0.0
      %312 = vmatpush1.msra.mxu0 0.0
      %313 = vmatprep.subr.mxu0 0.0
      %314 = vmatpush1.msra.mxu0 0.0
      %315 = vmatprep.subr.mxu0 0.0
      %316 = vmatpush1.msra.mxu0 0.0
      %317 = vmatprep.subr.mxu0 0.0
      %318 = vmatpush1.msra.mxu0 0.0
      %319 = vmatprep.subr.mxu0 0.0
      %320 = vmatpush1.msra.mxu0 0.0
      %321 = vmatprep.subr.mxu0 0.0
      %322 = vmatpush1.msra.mxu0 0.0
      %323 = vmatprep.subr.mxu0 0.0
      %324 = vmatpush1.msra.mxu0 0.0
      %325 = vmatprep.subr.mxu0 0.0
      %326 = vmatpush1.msra.mxu0 0.0
      %327 = vmatprep.mubr.f32.mxu0 0.0
      %328 = vmatmul.mubr.f32.gmra.mrb[0].mxu0 %v254
      %v329 = vpop.f32.mrb[0].mxu0
      %v330 = vadd.f32 0.0, %v329
      %v331 = vpop.f32.mrb[0].mxu0
      %332 = vmatprep.mubr.f32.mxu0 0.0
      %333 = vmatmul.mubr.f32.gmra.mrb[0].mxu0 %v257
      %v334 = vpop.f32.mrb[0].mxu0
      %v335 = vadd.f32 0.0, %v334
      %v336 = vpop.f32.mrb[0].mxu0
      %337 = vdwg.mxu0
      %vm338 = vcmask 97280
      %v340 = vsel %vm338, %v245, 0
      %v343 = vsel %vm338, %v246, 0
      %v346 = vsel %vm259, %v248, 0
      %348 = vmatprep.subr.mxu0 0.0
      %349 = vmatpush1.msra.mxu0 %v247
      %350 = vmatprep.subr.mxu0 0.0
      %351 = vmatpush1.msra.mxu0 %v346
      %352 = vmatprep.subr.mxu0 0.0
      %353 = vmatpush1.msra.mxu0 0.0
      %354 = vmatprep.subr.mxu0 0.0
      %355 = vmatpush1.msra.mxu0 0.0
      %356 = vmatprep.subr.mxu0 0.0
      %357 = vmatpush1.msra.mxu0 0.0
      %358 = vmatprep.subr.mxu0 0.0
      %359 = vmatpush1.msra.mxu0 0.0
      %360 = vmatprep.subr.mxu0 0.0
      %361 = vmatpush1.msra.mxu0 0.0
      %362 = vmatprep.subr.mxu0 0.0
      %363 = vmatpush1.msra.mxu0 0.0
      %364 = vmatprep.subr.mxu0 0.0
      %365 = vmatpush1.msra.mxu0 0.0
      %366 = vmatprep.subr.mxu0 0.0
      %367 = vmatpush1.msra.mxu0 0.0
      %368 = vmatprep.subr.mxu0 0.0
      %369 = vmatpush1.msra.mxu0 0.0
      %370 = vmatprep.subr.mxu0 0.0
      %371 = vmatpush1.msra.mxu0 0.0
      %372 = vmatprep.subr.mxu0 0.0
      %373 = vmatpush1.msra.mxu0 0.0
      %374 = vmatprep.subr.mxu0 0.0
      %375 = vmatpush1.msra.mxu0 0.0
      %376 = vmatprep.subr.mxu0 0.0
      %377 = vmatpush1.msra.mxu0 0.0
      %378 = vmatprep.subr.mxu0 0.0
      %379 = vmatpush1.msra.mxu0 0.0
      %380 = vmatprep.subr.mxu0 0.0
      %381 = vmatpush1.msra.mxu0 0.0
      %382 = vmatprep.subr.mxu0 0.0
      %383 = vmatpush1.msra.mxu0 0.0
      %384 = vmatprep.subr.mxu0 0.0
      %385 = vmatpush1.msra.mxu0 0.0
      %386 = vmatprep.subr.mxu0 0.0
      %387 = vmatpush1.msra.mxu0 0.0
      %388 = vmatprep.subr.mxu0 0.0
      %389 = vmatpush1.msra.mxu0 0.0
      %390 = vmatprep.subr.mxu0 0.0
      %391 = vmatpush1.msra.mxu0 0.0
      %392 = vmatprep.subr.mxu0 0.0
      %393 = vmatpush1.msra.mxu0 0.0
      %394 = vmatprep.subr.mxu0 0.0
      %395 = vmatpush1.msra.mxu0 0.0
      %396 = vmatprep.subr.mxu0 0.0
      %397 = vmatpush1.msra.mxu0 0.0
      %398 = vmatprep.subr.mxu0 0.0
      %399 = vmatpush1.msra.mxu0 0.0
      %400 = vmatprep.subr.mxu0 0.0
      %401 = vmatpush1.msra.mxu0 0.0
      %402 = vmatprep.subr.mxu0 0.0
      %403 = vmatpush1.msra.mxu0 0.0
      %404 = vmatprep.subr.mxu0 0.0
      %405 = vmatpush1.msra.mxu0 0.0
      %406 = vmatprep.subr.mxu0 0.0
      %407 = vmatpush1.msra.mxu0 0.0
      %408 = vmatprep.subr.mxu0 0.0
      %409 = vmatpush1.msra.mxu0 0.0
      %410 = vmatprep.subr.mxu0 0.0
      %411 = vmatpush1.msra.mxu0 0.0
      %412 = vmatprep.mubr.f32.mxu0 0.0
      %413 = vmatmul.mubr.f32.gmra.mrb[0].mxu0 %v340
      %v414 = vpop.f32.mrb[0].mxu0
      %v415 = vadd.f32 %v330, %v414
      %v416 = vpop.f32.mrb[0].mxu0
      %417 = vmatprep.mubr.f32.mxu0 0.0
      %418 = vmatmul.mubr.f32.gmra.mrb[0].mxu0 %v343
      %v419 = vpop.f32.mrb[0].mxu0
      %v420 = vadd.f32 %v335, %v419
      %v421 = vpop.f32.mrb[0].mxu0
      %422 = vdwg.mxu0
      %v423 = vld [vmem:[%s4] sm:$0xff]
      %v424 = vld [vmem:[%s4 + $0x8] sm:$0xff]
      %v425 = vadd.f32 %v415, %v423
      %v426 = vadd.f32 %v420, %v424
      %vm427 = vcmask 261120
      %428 = vst.msk [vmem:[%s244] sm:$0xff] %vm427, %v425
      %429 = vst.msk [vmem:[%s244 + $0x8] sm:$0xff] %vm427, %v426
      %p430 = scmp.lt.s32.totalorder %s16, 1
      %s431 = scalar_select %p430, %s16, 1
      %s432 = smul.addr %s431, 2
      %s433 = smul.addr %s432, 8
      %s434 = scalar_lea.vmem %s5, %s433
      // Predicated region
      $region41: #{model_forward.6} parent=39 // pred_check
        %p435 = pneg %p149
      $region42: #{model_forward.6} parent=39 // pred_check_branch
        %437 = sbr.rel (%p435) target = $region44
      $region43: #{model_forward.6} parent=39 // pred_region
        _
      $region44: #{model_forward.6} parent=39 // pred_fallthru
        _
    $region40: #{model_forward.6} parent=5 // pred_fallthru
      _
    %p438 = scmp.le.s32.totalorder 2, %s11
    // Predicated region
    $region45: #{model_forward.6} parent=5 // pred_check
      %p439 = pneg %p438
    $region46: #{model_forward.6} parent=5 // pred_check_branch
      %441 = sbr.rel (%p439) target = $region48
    $region47: #{model_forward.6} parent=5 // pred_region
      %s442 = ssub.s32 %s11, 2
      // Predicated region
      $region49: #{model_forward.6} parent=47 // pred_check
        %p443 = pneg %p155
      $region50: #{model_forward.6} parent=47 // pred_check_branch
        %445 = sbr.rel (%p443) target = $region52
      $region51: #{model_forward.6} parent=47 // pred_region
        %p446 = scmp.lt.s32.totalorder %s17, 1
        %s447 = scalar_select %p446, %s17, 1
        %s448 = smul.addr %s447, 2
        %s449 = smul.addr %s448, 8
        %s450 = scalar_lea.vmem %s5, %s449
      $region52: #{model_forward.6} parent=47 // pred_fallthru
        _
    $region48: #{model_forward.6} parent=5 // pred_fallthru
      _
  $region6: #{model_forward.6} parent=0 // loop_footer
    %s15 = sadd.s32 1, %s11
  $region7: #{model_forward.6} parent=0 // loop_footer_branch
    %10 = sbr.rel target = $region3
  $region8: #{model_forward.6} parent=0 // loop_exit
    _

// kernel: model_forward.8
$region0: #{model_forward.8}
  #allocation0 [shape = 'u32[]', space=smem, size = 0x4, offset = 0x4, fixed_abs, tag = 'smem constant byte address 0x4 - core index']
  #allocation1 [shape = 'u32[144,128]{1,0:T(1,128)}', space=vmem, size = 0x12000, scoped, tag = 'internal scratch']
  %s0 = inlined_call_operand.vmem [shape: f32[2,16,32], index: 0, kind: input, shape index: {}]
  %s1 = inlined_call_operand.vmem [shape: f32[1,32], index: 1, kind: input, shape index: {}]
  %s2 = inlined_call_operand.vmem [shape: f32[1,32], index: 2, kind: input, shape index: {}]
  %s3 = inlined_call_operand.vmem [shape: f32[2,16,32], index: 3, kind: output, shape index: {}]
  %s4 = sld [smem:[#allocation0]]
  $region45: #{model_forward.8} parent=0
    _
  %s6 = ssub.s32 1, %s4
  %s7 = scalar_select 0, %s6, %s4
  loop: start=0, step=1, limit=4
  $region2: #{model_forward.8} parent=0 // loop_pre_header
    _
  $region3: #{model_forward.8} parent=0 // loop_header
    %s9 = sphi 0, %s13
    %p10 = scmp.ge.s32.totalorder %s9, 4
    %s19 = sphi 0, %s21
    %s22 = sphi 0, %s19
    %s23 = sphi 0, %s22
    %s39 = sphi 0, %s23
    %s43 = sphi 0, %s43
    %s45 = sphi 0, %s43
    %s46 = sphi 0, %s45
    %s60 = sphi 0, %s46
    %s64 = sphi 0, %s64
    %s66 = sphi 0, %s64
    %s67 = sphi 0, %s66
    %s81 = sphi 0, %s67
    %s87 = sphi 0, %s89
    %s90 = sphi 0, %s87
    %s91 = sphi 0, %s90
    %s107 = sphi 0, %s91
  $region4: #{model_forward.8} parent=0 // loop_header_branch
    %12 = sbr.rel (%p10) target = $region8
  $region5: #{model_forward.8} parent=0 // loop_body
    %s14 = ssub.s32 %s9, 1
    %s15 = ssub.s32 %s9, 2
    %s16 = sadd.s32 %s9, 1
    %s17 = ssub.s32 %s9, %s16
    %p18 = scmp.eq.s32.totalorder %s17, 0
    %s20 = sadd.s32 %s19, 1
    %s21 = scalar_select %p18, %s19, %s20
    %p24 = pneg %p18
    %p25 = scmp.eq.s32.totalorder %s9, 1
    %p26 = por %p24, %p25
    %p27 = scmp.ne.s32.totalorder %s19, %s22
    %p28 = scmp.eq.s32.totalorder %s9, 0
    %p29 = por %p27, %p28
    %p30 = scmp.ne.s32.totalorder %s19, %s22
    %p31 = scmp.eq.s32.totalorder %s14, 1
    %p32 = por %p30, %p31
    %p33 = scmp.ne.s32.totalorder %s22, %s23
    %p34 = scmp.eq.s32.totalorder %s14, 0
    %p35 = por %p33, %p34
    %p36 = scmp.ne.s32.totalorder %s22, %s23
    %p37 = scmp.eq.s32.totalorder %s15, 1
    %p38 = por %p36, %p37
    %p40 = scmp.ne.s32.totalorder %s23, %s39
    %p41 = scmp.eq.s32.totalorder %s15, 0
    %p42 = por %p40, %p41
    %s44 = sadd.s32 %s43, 1
    %p47 = scmp.eq.s32.totalorder %s9, 1
    %p48 = scmp.ne.s32.totalorder %s43, %s45
    %p49 = scmp.eq.s32.totalorder %s9, 0
    %p50 = por %p48, %p49
    %p51 = scmp.ne.s32.totalorder %s43, %s45
    %p52 = scmp.eq.s32.totalorder %s14, 1
    %p53 = por %p51, %p52
    %p54 = scmp.ne.s32.totalorder %s45, %s46
    %p55 = scmp.eq.s32.totalorder %s14, 0
    %p56 = por %p54, %p55
    %p57 = scmp.ne.s32.totalorder %s45, %s46
    %p58 = scmp.eq.s32.totalorder %s15, 1
    %p59 = por %p57, %p58
    %p61 = scmp.ne.s32.totalorder %s46, %s60
    %p62 = scmp.eq.s32.totalorder %s15, 0
    %p63 = por %p61, %p62
    %s65 = sadd.s32 %s64, 1
    %p68 = scmp.eq.s32.totalorder %s9, 1
    %p69 = scmp.ne.s32.totalorder %s64, %s66
    %p70 = scmp.eq.s32.totalorder %s9, 0
    %p71 = por %p69, %p70
    %p72 = scmp.ne.s32.totalorder %s64, %s66
    %p73 = scmp.eq.s32.totalorder %s14, 1
    %p74 = por %p72, %p73
    %p75 = scmp.ne.s32.totalorder %s66, %s67
    %p76 = scmp.eq.s32.totalorder %s14, 0
    %p77 = por %p75, %p76
    %p78 = scmp.ne.s32.totalorder %s66, %s67
    %p79 = scmp.eq.s32.totalorder %s15, 1
    %p80 = por %p78, %p79
    %p82 = scmp.ne.s32.totalorder %s67, %s81
    %p83 = scmp.eq.s32.totalorder %s15, 0
    %p84 = por %p82, %p83
    %s85 = ssub.s32 %s9, %s16
    %p86 = scmp.eq.s32.totalorder %s85, 0
    %s88 = sadd.s32 %s87, 1
    %s89 = scalar_select %p86, %s87, %s88
    %p92 = pneg %p86
    %p93 = scmp.eq.s32.totalorder %s9, 1
    %p94 = por %p92, %p93
    %p95 = scmp.ne.s32.totalorder %s87, %s90
    %p96 = scmp.eq.s32.totalorder %s9, 0
    %p97 = por %p95, %p96
    %p98 = scmp.ne.s32.totalorder %s87, %s90
    %p99 = scmp.eq.s32.totalorder %s14, 1
    %p100 = por %p98, %p99
    %p101 = scmp.ne.s32.totalorder %s90, %s91
    %p102 = scmp.eq.s32.totalorder %s14, 0
    %p103 = por %p101, %p102
    %p104 = scmp.ne.s32.totalorder %s90, %s91
    %p105 = scmp.eq.s32.totalorder %s15, 1
    %p106 = por %p104, %p105
    %p108 = scmp.ne.s32.totalorder %s91, %s107
    %p109 = scmp.eq.s32.totalorder %s15, 0
    %p110 = por %p108, %p109
    %p111 = scmp.le.s32.totalorder 1, %s9
    %p112 = scmp.lt.s32.totalorder %s9, 3
    %p113 = pnand %p111, %p112
    %p114 = pneg %p113
    // Predicated region
    $region9: #{model_forward.8} parent=5 // pred_check
      _
    $region10: #{model_forward.8} parent=5 // pred_check_branch
      %116 = sbr.rel (%p113) target = $region12
    $region11: #{model_forward.8} parent=5 // pred_region
      %s117 = ssub.s32 %s9, 1
      // Predicated region
      $region13: #{model_forward.8} parent=11 // pred_check
        %p118 = pneg %p56
      $region14: #{model_forward.8} parent=11 // pred_check_branch
        %120 = sbr.rel (%p118) target = $region16
      $region15: #{model_forward.8} parent=11 // pred_region
        _
      $region16: #{model_forward.8} parent=11 // pred_fallthru
        _
      // Predicated region
      $region17: #{model_forward.8} parent=11 // pred_check
        %p121 = pneg %p77
      $region18: #{model_forward.8} parent=11 // pred_check_branch
        %123 = sbr.rel (%p121) target = $region20
      $region19: #{model_forward.8} parent=11 // pred_region
        _
      $region20: #{model_forward.8} parent=11 // pred_fallthru
        _
    $region12: #{model_forward.8} parent=5 // pred_fallthru
      _
    %p124 = scmp.lt.s32.totalorder %s9, 2
    // Predicated region
    $region21: #{model_forward.8} parent=5 // pred_check
      %p125 = pneg %p124
    $region22: #{model_forward.8} parent=5 // pred_check_branch
      %127 = sbr.rel (%p125) target = $region24
    $region23: #{model_forward.8} parent=5 // pred_region
      // Predicated region
      $region25: #{model_forward.8} parent=23 // pred_check
        %p128 = pneg %p29
      $region26: #{model_forward.8} parent=23 // pred_check_branch
        %130 = sbr.rel (%p128) target = $region28
      $region27: #{model_forward.8} parent=23 // pred_region
        %p131 = scmp.lt.s32.totalorder %s9, 1
        %s132 = scalar_select %p131, %s9, 1
        %s133 = smul.addr %s132, 2
        %s134 = smul.addr %s133, 8
        %s135 = scalar_lea.vmem %s0, %s134
      $region28: #{model_forward.8} parent=23 // pred_fallthru
        _
    $region24: #{model_forward.8} parent=5 // pred_fallthru
      _
    %p136 = scmp.le.s32.totalorder 1, %s9
    %p137 = scmp.lt.s32.totalorder %s9, 3
    %p138 = pnand %p136, %p137
    %p139 = pneg %p138
    // Predicated region
    $region29: #{model_forward.8} parent=5 // pred_check
      _
    $region30: #{model_forward.8} parent=5 // pred_check_branch
      %141 = sbr.rel (%p138) target = $region32
    $region31: #{model_forward.8} parent=5 // pred_region
      %s142 = ssub.s32 %s9, 1
      %p143 = scmp.lt.s32.totalorder %s14, 1
      %s144 = scalar_select %p143, %s14, 1
      %s145 = smul.addr %s144, 2
      %s146 = smul.addr %s145, 8
      %s147 = scalar_lea.vmem %s0, %s146
      %p148 = pneg %p35
      %p149 = pneg %p32
      %p150 = pneg %p56
      %p151 = pneg %p53
      %p152 = pneg %p77
      %p153 = pneg %p74
      %p154 = pneg %p103
      %p155 = pneg %p100
      %p156 = scmp.lt.s32.totalorder %s14, 1
      %s157 = scalar_select %p156, %s14, 1
      %s158 = smul.addr %s157, 2
      %s159 = smul.addr %s158, 8
      %s160 = scalar_lea.vmem %s3, %s159
      %p161 = scmp.lt.s32.totalorder %s14, 1
      %s162 = scalar_select %p161, %s14, 1
      %s163 = smul.addr %s162, 2
      %s164 = smul.addr %s163, 8
      %s165 = scalar_lea.vmem %s0, %s164
      %p166 = scmp.lt.s32.totalorder %s14, 1
      %s167 = scalar_select %p166, %s14, 1
      %s168 = smul.addr %s167, 2
      %s169 = smul.addr %s168, 8
      %s170 = scalar_lea.vmem %s3, %s169
      %v171 = vld [vmem:[%s165] sm:$0xff]
      %v172 = vld [vmem:[%s165 + $0x8] sm:$0xff]
      %v173 = vld [vmem:[%s1] sm:$0x1]
      %v174 = vld [vmem:[%s2] sm:$0x1]
      %vm175 = vcmask 261120
      %v176 = vsel %vm175, %v171, 0.0
      %177 = vadd.xlane.f32.xlu0 %v176
      %v178 = vpop.xlane.xlu0 %177
      %v179 = vsel %vm175, %v172, 0.0
      %180 = vadd.xlane.f32.xlu0 %v179
      %v181 = vpop.xlane.xlu0 %180
      %v182 = vrcp.pop 32.0
      %v183 = vmul.f32 %v178, %v182
      %v184 = vmul.f32 %v181, %v182
      %v185 = vsub.f32 %v171, %v183
      %v186 = vsub.f32 %v172, %v184
      %v187 = vmul.f32 %v185, %v185
      %v188 = vmul.f32 %v186, %v186
      %v189 = vsel %vm175, %v187, 0.0
      %190 = vadd.xlane.f32.xlu0 %v189
      %v191 = vpop.xlane.xlu0 %190
      %v192 = vsel %vm175, %v188, 0.0
      %193 = vadd.xlane.f32.xlu0 %v192
      %v194 = vpop.xlane.xlu0 %193
      %v195 = vmul.f32 %v191, %v182
      %v196 = vmul.f32 %v194, %v182
      %v197 = vadd.f32 %v195, 1e-05
      %v198 = vadd.f32 %v196, 1e-05
      %v199 = vrsqrt.pop %v197
      %v200 = vrsqrt.pop %v198
      %v201 = vmul.f32 %v185, %v199
      %v202 = vmul.f32 %v186, %v200
      %v204 = vlaneseq
      %v205 = vshrl.u32 %v204, 7
      %v206 = vsub.s32 0, %v205
      %v207 = vrot.slane %v173, %v206
      %v209 = vmul.f32 %v201, %v207
      %v210 = vmul.f32 %v202, %v207
      %v212 = vlaneseq
      %v213 = vshrl.u32 %v212, 7
      %v214 = vsub.s32 0, %v213
      %v215 = vrot.slane %v174, %v214
      %v217 = vadd.f32 %v209, %v215
      %v218 = vadd.f32 %v210, %v215
      %219 = vst.msk [vmem:[%s170] sm:$0xff] %vm175, %v217
      %220 = vst.msk [vmem:[%s170 + $0x8] sm:$0xff] %vm175, %v218
      %p221 = scmp.lt.s32.totalorder %s14, 1
      %s222 = scalar_select %p221, %s14, 1
      %s223 = smul.addr %s222, 2
      %s224 = smul.addr %s223, 8
      %s225 = scalar_lea.vmem %s3, %s224
      // Predicated region
      $region33: #{model_forward.8} parent=31 // pred_check
        %p226 = pneg %p100
      $region34: #{model_forward.8} parent=31 // pred_check_branch
        %228 = sbr.rel (%p226) target = $region36
      $region35: #{model_forward.8} parent=31 // pred_region
        _
      $region36: #{model_forward.8} parent=31 // pred_fallthru
        _
    $region32: #{model_forward.8} parent=5 // pred_fallthru
      _
    %p229 = scmp.le.s32.totalorder 2, %s9
    // Predicated region
    $region37: #{model_forward.8} parent=5 // pred_check
      %p230 = pneg %p229
    $region38: #{model_forward.8} parent=5 // pred_check_branch
      %232 = sbr.rel (%p230) target = $region40
    $region39: #{model_forward.8} parent=5 // pred_region
      %s233 = ssub.s32 %s9, 2
      // Predicated region
      $region41: #{model_forward.8} parent=39 // pred_check
        %p234 = pneg %p106
      $region42: #{model_forward.8} parent=39 // pred_check_branch
        %236 = sbr.rel (%p234) target = $region44
      $region43: #{model_forward.8} parent=39 // pred_region
        %p237 = scmp.lt.s32.totalorder %s15, 1
        %s238 = scalar_select %p237, %s15, 1
        %s239 = smul.addr %s238, 2
        %s240 = smul.addr %s239, 8
        %s241 = scalar_lea.vmem %s3, %s240
      $region44: #{model_forward.8} parent=39 // pred_fallthru
        _
    $region40: #{model_forward.8} parent=5 // pred_fallthru
      _
  $region6: #{model_forward.8} parent=0 // loop_footer
    %s13 = sadd.s32 1, %s9
  $region7: #{model_forward.8} parent=0 // loop_footer_branch
    %8 = sbr.rel target = $region3
  $region8: #{model_forward.8} parent=0 // loop_exit
    _

// kernel: model_forward.7
$region0: #{model_forward.7}
  #allocation0 [shape = 'u32[]', space=smem, size = 0x4, offset = 0x4, fixed_abs, tag = 'smem constant byte address 0x4 - core index']
  #allocation1 [shape = 'u32[144,128]{1,0:T(1,128)}', space=vmem, size = 0x12000, scoped, tag = 'internal scratch']
  %s0 = inlined_call_operand.vmem [shape: f32[2,16,32], index: 0, kind: input, shape index: {}]
  %s1 = inlined_call_operand.vmem [shape: f32[32,96], index: 1, kind: input, shape index: {}]
  %s2 = inlined_call_operand.vmem [shape: f32[1,96], index: 2, kind: input, shape index: {}]
  %s3 = inlined_call_operand.vmem [shape: f32[32,32], index: 3, kind: input, shape index: {}]
  %s4 = inlined_call_operand.vmem [shape: f32[1,32], index: 4, kind: input, shape index: {}]
  %s5 = inlined_call_operand.vmem [shape: f32[1,32], index: 5, kind: input, shape index: {}]
  %s6 = inlined_call_operand.vmem [shape: f32[1,32], index: 6, kind: input, shape index: {}]
  %s7 = inlined_call_operand.vmem [shape: f32[32,64], index: 7, kind: input, shape index: {}]
  %s8 = inlined_call_operand.vmem [shape: f32[1,64], index: 8, kind: input, shape index: {}]
  %s9 = inlined_call_operand.vmem [shape: f32[64,32], index: 9, kind: input, shape index: {}]
  %s10 = inlined_call_operand.vmem [shape: f32[1,32], index: 10, kind: input, shape index: {}]
  %s11 = inlined_call_operand.vmem [shape: f32[1,32], index: 11, kind: input, shape index: {}]
  %s12 = inlined_call_operand.vmem [shape: f32[1,32], index: 12, kind: input, shape index: {}]
  %s13 = inlined_call_operand.vmem [shape: f32[2,16,32], index: 13, kind: output, shape index: {}]
  %s14 = sld [smem:[#allocation0]]
  $region85: #{model_forward.7} parent=0
    _
  %s16 = ssub.s32 1, %s14
  %s17 = scalar_select 0, %s16, %s14
  loop: start=0, step=1, limit=4
  $region2: #{model_forward.7} parent=0 // loop_pre_header
    _
  $region3: #{model_forward.7} parent=0 // loop_header
    %s19 = sphi 0, %s23
    %p20 = scmp.ge.s32.totalorder %s19, 4
    %s29 = sphi 0, %s31
    %s32 = sphi 0, %s29
    %s33 = sphi 0, %s32
    %s49 = sphi 0, %s33
    %s53 = sphi 0, %s53
    %s55 = sphi 0, %s53
    %s56 = sphi 0, %s55
    %s70 = sphi 0, %s56
    %s74 = sphi 0, %s74
    %s76 = sphi 0, %s74
    %s77 = sphi 0, %s76
    %s91 = sphi 0, %s77
    %s95 = sphi 0, %s95
    %s97 = sphi 0, %s95
    %s98 = sphi 0, %s97
    %s112 = sphi 0, %s98
    %s116 = sphi 0, %s116
    %s118 = sphi 0, %s116
    %s119 = sphi 0, %s118
    %s133 = sphi 0, %s119
    %s137 = sphi 0, %s137
    %s139 = sphi 0, %s137
    %s140 = sphi 0, %s139
    %s154 = sphi 0, %s140
    %s158 = sphi 0, %s158
    %s160 = sphi 0, %s158
    %s161 = sphi 0, %s160
    %s175 = sphi 0, %s161
    %s179 = sphi 0, %s179
    %s181 = sphi 0, %s179
    %s182 = sphi 0, %s181
    %s196 = sphi 0, %s182
    %s200 = sphi 0, %s200
    %s202 = sphi 0, %s200
    %s203 = sphi 0, %s202
    %s217 = sphi 0, %s203
    %s221 = sphi 0, %s221
    %s223 = sphi 0, %s221
    %s224 = sphi 0, %s223
    %s238 = sphi 0, %s224
    %s242 = sphi 0, %s242
    %s244 = sphi 0, %s242
    %s245 = sphi 0, %s244
    %s259 = sphi 0, %s245
    %s263 = sphi 0, %s263
    %s265 = sphi 0, %s263
    %s266 = sphi 0, %s265
    %s280 = sphi 0, %s266
    %s284 = sphi 0, %s284
    %s286 = sphi 0, %s284
    %s287 = sphi 0, %s286
    %s301 = sphi 0, %s287
    %s307 = sphi 0, %s309
    %s310 = sphi 0, %s307
    %s311 = sphi 0, %s310
    %s327 = sphi 0, %s311
  $region4: #{model_forward.7} parent=0 // loop_header_branch
    %22 = sbr.rel (%p20) target = $region8
  $region5: #{model_forward.7} parent=0 // loop_body
    %s24 = ssub.s32 %s19, 1
    %s25 = ssub.s32 %s19, 2
    %s26 = sadd.s32 %s19, 1
    %s27 = ssub.s32 %s19, %s26
    %p28 = scmp.eq.s32.totalorder %s27, 0
    %s30 = sadd.s32 %s29, 1
    %s31 = scalar_select %p28, %s29, %s30
    %p34 = pneg %p28
    %p35 = scmp.eq.s32.totalorder %s19, 1
    %p36 = por %p34, %p35
    %p37 = scmp.ne.s32.totalorder %s29, %s32
    %p38 = scmp.eq.s32.totalorder %s19, 0
    %p39 = por %p37, %p38
    %p40 = scmp.ne.s32.totalorder %s29, %s32
    %p41 = scmp.eq.s32.totalorder %s24, 1
    %p42 = por %p40, %p41
    %p43 = scmp.ne.s32.totalorder %s32, %s33
    %p44 = scmp.eq.s32.totalorder %s24, 0
    %p45 = por %p43, %p44
    %p46 = scmp.ne.s32.totalorder %s32, %s33
    %p47 = scmp.eq.s32.totalorder %s25, 1
    %p48 = por %p46, %p47
    %p50 = scmp.ne.s32.totalorder %s33, %s49
    %p51 = scmp.eq.s32.totalorder %s25, 0
    %p52 = por %p50, %p51
    %s54 = sadd.s32 %s53, 1
    %p57 = scmp.eq.s32.totalorder %s19, 1
    %p58 = scmp.ne.s32.totalorder %s53, %s55
    %p59 = scmp.eq.s32.totalorder %s19, 0
    %p60 = por %p58, %p59
    %p61 = scmp.ne.s32.totalorder %s53, %s55
    %p62 = scmp.eq.s32.totalorder %s24, 1
    %p63 = por %p61, %p62
    %p64 = scmp.ne.s32.totalorder %s55, %s56
    %p65 = scmp.eq.s32.totalorder %s24, 0
    %p66 = por %p64, %p65
    %p67 = scmp.ne.s32.totalorder %s55, %s56
    %p68 = scmp.eq.s32.totalorder %s25, 1
    %p69 = por %p67, %p68
    %p71 = scmp.ne.s32.totalorder %s56, %s70
    %p72 = scmp.eq.s32.totalorder %s25, 0
    %p73 = por %p71, %p72
    %s75 = sadd.s32 %s74, 1
    %p78 = scmp.eq.s32.totalorder %s19, 1
    %p79 = scmp.ne.s32.totalorder %s74, %s76
    %p80 = scmp.eq.s32.totalorder %s19, 0
    %p81 = por %p79, %p80
    %p82 = scmp.ne.s32.totalorder %s74, %s76
    %p83 = scmp.eq.s32.totalorder %s24, 1
    %p84 = por %p82, %p83
    %p85 = scmp.ne.s32.totalorder %s76, %s77
    %p86 = scmp.eq.s32.totalorder %s24, 0
    %p87 = por %p85, %p86
    %p88 = scmp.ne.s32.totalorder %s76, %s77
    %p89 = scmp.eq.s32.totalorder %s25, 1
    %p90 = por %p88, %p89
    %p92 = scmp.ne.s32.totalorder %s77, %s91
    %p93 = scmp.eq.s32.totalorder %s25, 0
    %p94 = por %p92, %p93
    %s96 = sadd.s32 %s95, 1
    %p99 = scmp.eq.s32.totalorder %s19, 1
    %p100 = scmp.ne.s32.totalorder %s95, %s97
    %p101 = scmp.eq.s32.totalorder %s19, 0
    %p102 = por %p100, %p101
    %p103 = scmp.ne.s32.totalorder %s95, %s97
    %p104 = scmp.eq.s32.totalorder %s24, 1
    %p105 = por %p103, %p104
    %p106 = scmp.ne.s32.totalorder %s97, %s98
    %p107 = scmp.eq.s32.totalorder %s24, 0
    %p108 = por %p106, %p107
    %p109 = scmp.ne.s32.totalorder %s97, %s98
    %p110 = scmp.eq.s32.totalorder %s25, 1
    %p111 = por %p109, %p110
    %p113 = scmp.ne.s32.totalorder %s98, %s112
    %p114 = scmp.eq.s32.totalorder %s25, 0
    %p115 = por %p113, %p114
    %s117 = sadd.s32 %s116, 1
    %p120 = scmp.eq.s32.totalorder %s19, 1
    %p121 = scmp.ne.s32.totalorder %s116, %s118
    %p122 = scmp.eq.s32.totalorder %s19, 0
    %p123 = por %p121, %p122
    %p124 = scmp.ne.s32.totalorder %s116, %s118
    %p125 = scmp.eq.s32.totalorder %s24, 1
    %p126 = por %p124, %p125
    %p127 = scmp.ne.s32.totalorder %s118, %s119
    %p128 = scmp.eq.s32.totalorder %s24, 0
    %p129 = por %p127, %p128
    %p130 = scmp.ne.s32.totalorder %s118, %s119
    %p131 = scmp.eq.s32.totalorder %s25, 1
    %p132 = por %p130, %p131
    %p134 = scmp.ne.s32.totalorder %s119, %s133
    %p135 = scmp.eq.s32.totalorder %s25, 0
    %p136 = por %p134, %p135
    %s138 = sadd.s32 %s137, 1
    %p141 = scmp.eq.s32.totalorder %s19, 1
    %p142 = scmp.ne.s32.totalorder %s137, %s139
    %p143 = scmp.eq.s32.totalorder %s19, 0
    %p144 = por %p142, %p143
    %p145 = scmp.ne.s32.totalorder %s137, %s139
    %p146 = scmp.eq.s32.totalorder %s24, 1
    %p147 = por %p145, %p146
    %p148 = scmp.ne.s32.totalorder %s139, %s140
    %p149 = scmp.eq.s32.totalorder %s24, 0
    %p150 = por %p148, %p149
    %p151 = scmp.ne.s32.totalorder %s139, %s140
    %p152 = scmp.eq.s32.totalorder %s25, 1
    %p153 = por %p151, %p152
    %p155 = scmp.ne.s32.totalorder %s140, %s154
    %p156 = scmp.eq.s32.totalorder %s25, 0
    %p157 = por %p155, %p156
    %s159 = sadd.s32 %s158, 1
    %p162 = scmp.eq.s32.totalorder %s19, 1
    %p163 = scmp.ne.s32.totalorder %s158, %s160
    %p164 = scmp.eq.s32.totalorder %s19, 0
    %p165 = por %p163, %p164
    %p166 = scmp.ne.s32.totalorder %s158, %s160
    %p167 = scmp.eq.s32.totalorder %s24, 1
    %p168 = por %p166, %p167
    %p169 = scmp.ne.s32.totalorder %s160, %s161
    %p170 = scmp.eq.s32.totalorder %s24, 0
    %p171 = por %p169, %p170
    %p172 = scmp.ne.s32.totalorder %s160, %s161
    %p173 = scmp.eq.s32.totalorder %s25, 1
    %p174 = por %p172, %p173
    %p176 = scmp.ne.s32.totalorder %s161, %s175
    %p177 = scmp.eq.s32.totalorder %s25, 0
    %p178 = por %p176, %p177
    %s180 = sadd.s32 %s179, 1
    %p183 = scmp.eq.s32.totalorder %s19, 1
    %p184 = scmp.ne.s32.totalorder %s179, %s181
    %p185 = scmp.eq.s32.totalorder %s19, 0
    %p186 = por %p184, %p185
    %p187 = scmp.ne.s32.totalorder %s179, %s181
    %p188 = scmp.eq.s32.totalorder %s24, 1
    %p189 = por %p187, %p188
    %p190 = scmp.ne.s32.totalorder %s181, %s182
    %p191 = scmp.eq.s32.totalorder %s24, 0
    %p192 = por %p190, %p191
    %p193 = scmp.ne.s32.totalorder %s181, %s182
    %p194 = scmp.eq.s32.totalorder %s25, 1
    %p195 = por %p193, %p194
    %p197 = scmp.ne.s32.totalorder %s182, %s196
    %p198 = scmp.eq.s32.totalorder %s25, 0
    %p199 = por %p197, %p198
    %s201 = sadd.s32 %s200, 1
    %p204 = scmp.eq.s32.totalorder %s19, 1
    %p205 = scmp.ne.s32.totalorder %s200, %s202
    %p206 = scmp.eq.s32.totalorder %s19, 0
    %p207 = por %p205, %p206
    %p208 = scmp.ne.s32.totalorder %s200, %s202
    %p209 = scmp.eq.s32.totalorder %s24, 1
    %p210 = por %p208, %p209
    %p211 = scmp.ne.s32.totalorder %s202, %s203
    %p212 = scmp.eq.s32.totalorder %s24, 0
    %p213 = por %p211, %p212
    %p214 = scmp.ne.s32.totalorder %s202, %s203
    %p215 = scmp.eq.s32.totalorder %s25, 1
    %p216 = por %p214, %p215
    %p218 = scmp.ne.s32.totalorder %s203, %s217
    %p219 = scmp.eq.s32.totalorder %s25, 0
    %p220 = por %p218, %p219
    %s222 = sadd.s32 %s221, 1
    %p225 = scmp.eq.s32.totalorder %s19, 1
    %p226 = scmp.ne.s32.totalorder %s221, %s223
    %p227 = scmp.eq.s32.totalorder %s19, 0
    %p228 = por %p226, %p227
    %p229 = scmp.ne.s32.totalorder %s221, %s223
    %p230 = scmp.eq.s32.totalorder %s24, 1
    %p231 = por %p229, %p230
    %p232 = scmp.ne.s32.totalorder %s223, %s224
    %p233 = scmp.eq.s32.totalorder %s24, 0
    %p234 = por %p232, %p233
    %p235 = scmp.ne.s32.totalorder %s223, %s224
    %p236 = scmp.eq.s32.totalorder %s25, 1
    %p237 = por %p235, %p236
    %p239 = scmp.ne.s32.totalorder %s224, %s238
    %p240 = scmp.eq.s32.totalorder %s25, 0
    %p241 = por %p239, %p240
    %s243 = sadd.s32 %s242, 1
    %p246 = scmp.eq.s32.totalorder %s19, 1
    %p247 = scmp.ne.s32.totalorder %s242, %s244
    %p248 = scmp.eq.s32.totalorder %s19, 0
    %p249 = por %p247, %p248
    %p250 = scmp.ne.s32.totalorder %s242, %s244
    %p251 = scmp.eq.s32.totalorder %s24, 1
    %p252 = por %p250, %p251
    %p253 = scmp.ne.s32.totalorder %s244, %s245
    %p254 = scmp.eq.s32.totalorder %s24, 0
    %p255 = por %p253, %p254
    %p256 = scmp.ne.s32.totalorder %s244, %s245
    %p257 = scmp.eq.s32.totalorder %s25, 1
    %p258 = por %p256, %p257
    %p260 = scmp.ne.s32.totalorder %s245, %s259
    %p261 = scmp.eq.s32.totalorder %s25, 0
    %p262 = por %p260, %p261
    %s264 = sadd.s32 %s263, 1
    %p267 = scmp.eq.s32.totalorder %s19, 1
    %p268 = scmp.ne.s32.totalorder %s263, %s265
    %p269 = scmp.eq.s32.totalorder %s19, 0
    %p270 = por %p268, %p269
    %p271 = scmp.ne.s32.totalorder %s263, %s265
    %p272 = scmp.eq.s32.totalorder %s24, 1
    %p273 = por %p271, %p272
    %p274 = scmp.ne.s32.totalorder %s265, %s266
    %p275 = scmp.eq.s32.totalorder %s24, 0
    %p276 = por %p274, %p275
    %p277 = scmp.ne.s32.totalorder %s265, %s266
    %p278 = scmp.eq.s32.totalorder %s25, 1
    %p279 = por %p277, %p278
    %p281 = scmp.ne.s32.totalorder %s266, %s280
    %p282 = scmp.eq.s32.totalorder %s25, 0
    %p283 = por %p281, %p282
    %s285 = sadd.s32 %s284, 1
    %p288 = scmp.eq.s32.totalorder %s19, 1
    %p289 = scmp.ne.s32.totalorder %s284, %s286
    %p290 = scmp.eq.s32.totalorder %s19, 0
    %p291 = por %p289, %p290
    %p292 = scmp.ne.s32.totalorder %s284, %s286
    %p293 = scmp.eq.s32.totalorder %s24, 1
    %p294 = por %p292, %p293
    %p295 = scmp.ne.s32.totalorder %s286, %s287
    %p296 = scmp.eq.s32.totalorder %s24, 0
    %p297 = por %p295, %p296
    %p298 = scmp.ne.s32.totalorder %s286, %s287
    %p299 = scmp.eq.s32.totalorder %s25, 1
    %p300 = por %p298, %p299
    %p302 = scmp.ne.s32.totalorder %s287, %s301
    %p303 = scmp.eq.s32.totalorder %s25, 0
    %p304 = por %p302, %p303
    %s305 = ssub.s32 %s19, %s26
    %p306 = scmp.eq.s32.totalorder %s305, 0
    %s308 = sadd.s32 %s307, 1
    %s309 = scalar_select %p306, %s307, %s308
    %p312 = pneg %p306
    %p313 = scmp.eq.s32.totalorder %s19, 1
    %p314 = por %p312, %p313
    %p315 = scmp.ne.s32.totalorder %s307, %s310
    %p316 = scmp.eq.s32.totalorder %s19, 0
    %p317 = por %p315, %p316
    %p318 = scmp.ne.s32.totalorder %s307, %s310
    %p319 = scmp.eq.s32.totalorder %s24, 1
    %p320 = por %p318, %p319
    %p321 = scmp.ne.s32.totalorder %s310, %s311
    %p322 = scmp.eq.s32.totalorder %s24, 0
    %p323 = por %p321, %p322
    %p324 = scmp.ne.s32.totalorder %s310, %s311
    %p325 = scmp.eq.s32.totalorder %s25, 1
    %p326 = por %p324, %p325
    %p328 = scmp.ne.s32.totalorder %s311, %s327
    %p329 = scmp.eq.s32.totalorder %s25, 0
    %p330 = por %p328, %p329
    %p331 = scmp.le.s32.totalorder 1, %s19
    %p332 = scmp.lt.s32.totalorder %s19, 3
    %p333 = pnand %p331, %p332
    %p334 = pneg %p333
    // Predicated region
    $region9: #{model_forward.7} parent=5 // pred_check
      _
    $region10: #{model_forward.7} parent=5 // pred_check_branch
      %336 = sbr.rel (%p333) target = $region12
    $region11: #{model_forward.7} parent=5 // pred_region
      %s337 = ssub.s32 %s19, 1
      // Predicated region
      $region13: #{model_forward.7} parent=11 // pred_check
        %p338 = pneg %p66
      $region14: #{model_forward.7} parent=11 // pred_check_branch
        %340 = sbr.rel (%p338) target = $region16
      $region15: #{model_forward.7} parent=11 // pred_region
        _
      $region16: #{model_forward.7} parent=11 // pred_fallthru
        _
      // Predicated region
      $region17: #{model_forward.7} parent=11 // pred_check
        %p341 = pneg %p87
      $region18: #{model_forward.7} parent=11 // pred_check_branch
        %343 = sbr.rel (%p341) target = $region20
      $region19: #{model_forward.7} parent=11 // pred_region
        _
      $region20: #{model_forward.7} parent=11 // pred_fallthru
        _
      // Predicated region
      $region21: #{model_forward.7} parent=11 // pred_check
        %p344 = pneg %p108
      $region22: #{model_forward.7} parent=11 // pred_check_branch
        %346 = sbr.rel (%p344) target = $region24
      $region23: #{model_forward.7} parent=11 // pred_region
        _
      $region24: #{model_forward.7} parent=11 // pred_fallthru
        _
      // Predicated region
      $region25: #{model_forward.7} parent=11 // pred_check
        %p347 = pneg %p129
      $region26: #{model_forward.7} parent=11 // pred_check_branch
        %349 = sbr.rel (%p347) target = $region28
      $region27: #{model_forward.7} parent=11 // pred_region
        _
      $region28: #{model_forward.7} parent=11 // pred_fallthru
        _
      // Predicated region
      $region29: #{model_forward.7} parent=11 // pred_check
        %p350 = pneg %p150
      $region30: #{model_forward.7} parent=11 // pred_check_branch
        %352 = sbr.rel (%p350) target = $region32
      $region31: #{model_forward.7} parent=11 // pred_region
        _
      $region32: #{model_forward.7} parent=11 // pred_fallthru
        _
      // Predicated region
      $region33: #{model_forward.7} parent=11 // pred_check
        %p353 = pneg %p171
      $region34: #{model_forward.7} parent=11 // pred_check_branch
        %355 = sbr.rel (%p353) target = $region36
      $region35: #{model_forward.7} parent=11 // pred_region
        _
      $region36: #{model_forward.7} parent=11 // pred_fallthru
        _
      // Predicated region
      $region37: #{model_forward.7} parent=11 // pred_check
        %p356 = pneg %p192
      $region38: #{model_forward.7} parent=11 // pred_check_branch
        %358 = sbr.rel (%p356) target = $region40
      $region39: #{model_forward.7} parent=11 // pred_region
        _
      $region40: #{model_forward.7} parent=11 // pred_fallthru
        _
      // Predicated region
      $region41: #{model_forward.7} parent=11 // pred_check
        %p359 = pneg %p213
      $region42: #{model_forward.7} parent=11 // pred_check_branch
        %361 = sbr.rel (%p359) target = $region44
      $region43: #{model_forward.7} parent=11 // pred_region
        _
      $region44: #{model_forward.7} parent=11 // pred_fallthru
        _
      // Predicated region
      $region45: #{model_forward.7} parent=11 // pred_check
        %p362 = pneg %p234
      $region46: #{model_forward.7} parent=11 // pred_check_branch
        %364 = sbr.rel (%p362) target = $region48
      $region47: #{model_forward.7} parent=11 // pred_region
        _
      $region48: #{model_forward.7} parent=11 // pred_fallthru
        _
      // Predicated region
      $region49: #{model_forward.7} parent=11 // pred_check
        %p365 = pneg %p255
      $region50: #{model_forward.7} parent=11 // pred_check_branch
        %367 = sbr.rel (%p365) target = $region52
      $region51: #{model_forward.7} parent=11 // pred_region
        _
      $region52: #{model_forward.7} parent=11 // pred_fallthru
        _
      // Predicated region
      $region53: #{model_forward.7} parent=11 // pred_check
        %p368 = pneg %p276
      $region54: #{model_forward.7} parent=11 // pred_check_branch
        %370 = sbr.rel (%p368) target = $region56
      $region55: #{model_forward.7} parent=11 // pred_region
        _
      $region56: #{model_forward.7} parent=11 // pred_fallthru
        _
      // Predicated region
      $region57: #{model_forward.7} parent=11 // pred_check
        %p371 = pneg %p297
      $region58: #{model_forward.7} parent=11 // pred_check_branch
        %373 = sbr.rel (%p371) target = $region60
      $region59: #{model_forward.7} parent=11 // pred_region
        _
      $region60: #{model_forward.7} parent=11 // pred_fallthru
        _
    $region12: #{model_forward.7} parent=5 // pred_fallthru
      _
    %p374 = scmp.lt.s32.totalorder %s19, 2
    // Predicated region
    $region61: #{model_forward.7} parent=5 // pred_check
      %p375 = pneg %p374
    $region62: #{model_forward.7} parent=5 // pred_check_branch
      %377 = sbr.rel (%p375) target = $region64
    $region63: #{model_forward.7} parent=5 // pred_region
      // Predicated region
      $region65: #{model_forward.7} parent=63 // pred_check
        %p378 = pneg %p39
      $region66: #{model_forward.7} parent=63 // pred_check_branch
        %380 = sbr.rel (%p378) target = $region68
      $region67: #{model_forward.7} parent=63 // pred_region
        %p381 = scmp.lt.s32.totalorder %s19, 1
        %s382 = scalar_select %p381, %s19, 1
        %s383 = smul.addr %s382, 2
        %s384 = smul.addr %s383, 8
        %s385 = scalar_lea.vmem %s0, %s384
      $region68: #{model_forward.7} parent=63 // pred_fallthru
        _
    $region64: #{model_forward.7} parent=5 // pred_fallthru
      _
    %p386 = scmp.le.s32.totalorder 1, %s19
    %p387 = scmp.lt.s32.totalorder %s19, 3
    %p388 = pnand %p386, %p387
    %p389 = pneg %p388
    // Predicated region
    $region69: #{model_forward.7} parent=5 // pred_check
      _
    $region70: #{model_forward.7} parent=5 // pred_check_branch
      %391 = sbr.rel (%p388) target = $region72
    $region71: #{model_forward.7} parent=5 // pred_region
      %s392 = ssub.s32 %s19, 1
      %p393 = scmp.lt.s32.totalorder %s24, 1
      %s394 = scalar_select %p393, %s24, 1
      %s395 = smul.addr %s394, 2
      %s396 = smul.addr %s395, 8
      %s397 = scalar_lea.vmem %s0, %s396
      %p398 = pneg %p45
      %p399 = pneg %p42
      %p400 = pneg %p66
      %p401 = pneg %p63
      %p402 = pneg %p87
      %p403 = pneg %p84
      %p404 = pneg %p108
      %p405 = pneg %p105
      %p406 = pneg %p129
      %p407 = pneg %p126
      %p408 = pneg %p150
      %p409 = pneg %p147
      %p410 = pneg %p171
      %p411 = pneg %p168
      %p412 = pneg %p192
      %p413 = pneg %p189
      %p414 = pneg %p213
      %p415 = pneg %p210
      %p416 = pneg %p234
      %p417 = pneg %p231
      %p418 = pneg %p255
      %p419 = pneg %p252
      %p420 = pneg %p276
      %p421 = pneg %p273
      %p422 = pneg %p297
      %p423 = pneg %p294
      %p424 = pneg %p323
      %p425 = pneg %p320
      %p426 = scmp.lt.s32.totalorder %s24, 1
      %s427 = scalar_select %p426, %s24, 1
      %s428 = smul.addr %s427, 2
      %s429 = smul.addr %s428, 8
      %s430 = scalar_lea.vmem %s13, %s429
      %p431 = scmp.lt.s32.totalorder %s24, 1
      %s432 = scalar_select %p431, %s24, 1
      %s433 = smul.addr %s432, 2
      %s434 = smul.addr %s433, 8
      %s435 = scalar_lea.vmem %s0, %s434
      %p436 = scmp.lt.s32.totalorder %s24, 1
      %s437 = scalar_select %p436, %s24, 1
      %s438 = smul.addr %s437, 2
      %s439 = smul.addr %s438, 8
      %s440 = scalar_lea.vmem %s13, %s439
      %v441 = vld [vmem:[%s435] sm:$0xff]
      %v442 = vld [vmem:[%s435 + $0x8] sm:$0xff]
      %v443 = vld [vmem:[%s1] sm:$0xff]
      %v444 = vld [vmem:[%s1 + $0x8] sm:$0xff]
      %v445 = vld [vmem:[%s1 + $0x10] sm:$0xff]
      %v446 = vld [vmem:[%s1 + $0x18] sm:$0xff]
      %v447 = vld [vmem:[%s2] sm:$0x1]
      %v449 = vlaneseq
      %v450 = vshrl.u32 %v449, 7
      %v451 = vsub.s32 0, %v450
      %v452 = vrot.slane %v447, %v451
      %vm454 = vcmask 261120
      %v456 = vsel %vm454, %v441, 0
      %v459 = vsel %vm454, %v442, 0
      %461 = vmatprep.subr.mxu0 0.0
      %462 = vmatpush1.msra.mxu0 %v443
      %463 = vmatprep.subr.mxu0 0.0
      %464 = vmatpush1.msra.mxu0 %v444
      %465 = vmatprep.subr.mxu0 0.0
      %466 = vmatpush1.msra.mxu0 %v445
      %467 = vmatprep.subr.mxu0 0.0
      %468 = vmatpush1.msra.mxu0 %v446
      %469 = vmatprep.subr.mxu0 0.0
      %470 = vmatpush1.msra.mxu0 0.0
      %471 = vmatprep.subr.mxu0 0.0
      %472 = vmatpush1.msra.mxu0 0.0
      %473 = vmatprep.subr.mxu0 0.0
      %474 = vmatpush1.msra.mxu0 0.0
      %475 = vmatprep.subr.mxu0 0.0
      %476 = vmatpush1.msra.mxu0 0.0
      %477 = vmatprep.subr.mxu0 0.0
      %478 = vmatpush1.msra.mxu0 0.0
      %479 = vmatprep.subr.mxu0 0.0
      %480 = vmatpush1.msra.mxu0 0.0
      %481 = vmatprep.subr.mxu0 0.0
      %482 = vmatpush1.msra.mxu0 0.0
      %483 = vmatprep.subr.mxu0 0.0
      %484 = vmatpush1.msra.mxu0 0.0
      %485 = vmatprep.subr.mxu0 0.0
      %486 = vmatpush1.msra.mxu0 0.0
      %487 = vmatprep.subr.mxu0 0.0
      %488 = vmatpush1.msra.mxu0 0.0
      %489 = vmatprep.subr.mxu0 0.0
      %490 = vmatpush1.msra.mxu0 0.0
      %491 = vmatprep.subr.mxu0 0.0
      %492 = vmatpush1.msra.mxu0 0.0
      %493 = vmatprep.subr.mxu0 0.0
      %494 = vmatpush1.msra.mxu0 0.0
      %495 = vmatprep.subr.mxu0 0.0
      %496 = vmatpush1.msra.mxu0 0.0
      %497 = vmatprep.subr.mxu0 0.0
      %498 = vmatpush1.msra.mxu0 0.0
      %499 = vmatprep.subr.mxu0 0.0
      %500 = vmatpush1.msra.mxu0 0.0
      %501 = vmatprep.subr.mxu0 0.0
      %502 = vmatpush1.msra.mxu0 0.0
      %503 = vmatprep.subr.mxu0 0.0
      %504 = vmatpush1.msra.mxu0 0.0
      %505 = vmatprep.subr.mxu0 0.0
      %506 = vmatpush1.msra.mxu0 0.0
      %507 = vmatprep.subr.mxu0 0.0
      %508 = vmatpush1.msra.mxu0 0.0
      %509 = vmatprep.subr.mxu0 0.0
      %510 = vmatpush1.msra.mxu0 0.0
      %511 = vmatprep.subr.mxu0 0.0
      %512 = vmatpush1.msra.mxu0 0.0
      %513 = vmatprep.subr.mxu0 0.0
      %514 = vmatpush1.msra.mxu0 0.0
      %515 = vmatprep.subr.mxu0 0.0
      %516 = vmatpush1.msra.mxu0 0.0
      %517 = vmatprep.subr.mxu0 0.0
      %518 = vmatpush1.msra.mxu0 0.0
      %519 = vmatprep.subr.mxu0 0.0
      %520 = vmatpush1.msra.mxu0 0.0
      %521 = vmatprep.subr.mxu0 0.0
      %522 = vmatpush1.msra.mxu0 0.0
      %523 = vmatprep.subr.mxu0 0.0
      %524 = vmatpush1.msra.mxu0 0.0
      %525 = vmatprep.mubr.f32.mxu0 0.0
      %526 = vmatmul.mubr.f32.gmra.mrb[0].mxu0 %v456
      %v527 = vpop.f32.mrb[0].mxu0
      %v528 = vadd.f32 %v452, %v527
      %v529 = vpop.f32.mrb[0].mxu0
      %530 = vmatprep.mubr.f32.mxu0 0.0
      %531 = vmatmul.mubr.f32.gmra.mrb[0].mxu0 %v459
      %v532 = vpop.f32.mrb[0].mxu0
      %v533 = vadd.f32 %v452, %v532
      %v534 = vpop.f32.mrb[0].mxu0
      %535 = vdwg.mxu0
      %538 = vrot.lane.b32.xlu0 %v528, 96
      %v539 = vpop.permute.xlu0 %538
      %540 = vrot.lane.b32.xlu0 %v533, 96
      %v541 = vpop.permute.xlu0 %540
      %vm542 = vcmask 64512
      %v543 = vsel %vm542, %v528, 0
      %v545 = vsel %vm542, %v533, 0
      %v547 = vsel %vm542, %v539, 0
      %v549 = vsel %vm542, %v541, 0
      %551 = vmatprep.subr.mxu0 0.0
      %552 = vmatpush1.xpose.msra.mxu0 %v547
      %553 = vmatprep.subr.mxu0 0.0
      %554 = vmatpush1.xpose.msra.mxu0 %v549
      %555 = vmatprep.subr.mxu0 0.0
      %556 = vmatpush1.xpose.msra.mxu0 0.0
      %557 = vmatprep.subr.mxu0 0.0
      %558 = vmatpush1.xpose.msra.mxu0 0.0
      %559 = vmatprep.subr.mxu0 0.0
      %560 = vmatpush1.xpose.msra.mxu0 0.0
      %561 = vmatprep.subr.mxu0 0.0
      %562 = vmatpush1.xpose.msra.mxu0 0.0
      %563 = vmatprep.subr.mxu0 0.0
      %564 = vmatpush1.xpose.msra.mxu0 0.0
      %565 = vmatprep.subr.mxu0 0.0
      %566 = vmatpush1.xpose.msra.mxu0 0.0
      %567 = vmatprep.subr.mxu0 0.0
      %568 = vmatpush1.xpose.msra.mxu0 0.0
      %569 = vmatprep.subr.mxu0 0.0
      %570 = vmatpush1.xpose.msra.mxu0 0.0
      %571 = vmatprep.subr.mxu0 0.0
      %572 = vmatpush1.xpose.msra.mxu0 0.0
      %573 = vmatprep.subr.mxu0 0.0
      %574 = vmatpush1.xpose.msra.mxu0 0.0
      %575 = vmatprep.subr.mxu0 0.0
      %576 = vmatpush1.xpose.msra.mxu0 0.0
      %577 = vmatprep.subr.mxu0 0.0
      %578 = vmatpush1.xpose.msra.mxu0 0.0
      %579 = vmatprep.subr.mxu0 0.0
      %580 = vmatpush1.xpose.msra.mxu0 0.0
      %581 = vmatprep.subr.mxu0 0.0
      %582 = vmatpush1.xpose.msra.mxu0 0.0
      %583 = vmatprep.subr.mxu0 0.0
      %584 = vmatpush1.xpose.msra.mxu0 0.0
      %585 = vmatprep.subr.mxu0 0.0
      %586 = vmatpush1.xpose.msra.mxu0 0.0
      %587 = vmatprep.subr.mxu0 0.0
      %588 = vmatpush1.xpose.msra.mxu0 0.0
      %589 = vmatprep.subr.mxu0 0.0
      %590 = vmatpush1.xpose.msra.mxu0 0.0
      %591 = vmatprep.subr.mxu0 0.0
      %592 = vmatpush1.xpose.msra.mxu0 0.0
      %593 = vmatprep.subr.mxu0 0.0
      %594 = vmatpush1.xpose.msra.mxu0 0.0
      %595 = vmatprep.subr.mxu0 0.0
      %596 = vmatpush1.xpose.msra.mxu0 0.0
      %597 = vmatprep.subr.mxu0 0.0
      %598 = vmatpush1.xpose.msra.mxu0 0.0
      %599 = vmatprep.subr.mxu0 0.0
      %600 = vmatpush1.xpose.msra.mxu0 0.0
      %601 = vmatprep.subr.mxu0 0.0
      %602 = vmatpush1.xpose.msra.mxu0 0.0
      %603 = vmatprep.subr.mxu0 0.0
      %604 = vmatpush1.xpose.msra.mxu0 0.0
      %605 = vmatprep.subr.mxu0 0.0
      %606 = vmatpush1.xpose.msra.mxu0 0.0
      %607 = vmatprep.subr.mxu0 0.0
      %608 = vmatpush1.xpose.msra.mxu0 0.0
      %609 = vmatprep.subr.mxu0 0.0
      %610 = vmatpush1.xpose.msra.mxu0 0.0
      %611 = vmatprep.subr.mxu0 0.0
      %612 = vmatpush1.xpose.msra.mxu0 0.0
      %613 = vmatprep.subr.mxu0 0.0
      %614 = vmatpush1.xpose.msra.mxu0 0.0
      %615 = vmatprep.mubr.f32.mxu0 0.0
      %616 = vmatmul.mubr.f32.gmra.mrb[0].mxu0 %v543
      %v617 = vpop.f32.mrb[0].mxu0
      %v618 = vadd.f32 0.0, %v617
      %v619 = vpop.f32.mrb[0].mxu0
      %620 = vmatprep.mubr.f32.mxu0 0.0
      %621 = vmatmul.mubr.f32.gmra.mrb[0].mxu0 %v545
      %v622 = vpop.f32.mrb[0].mxu0
      %v623 = vadd.f32 0.0, %v622
      %v624 = vpop.f32.mrb[0].mxu0
      %625 = vdwg.mxu0
      %v626 = vmul.f32 %v618, 0.35355338
      %v627 = vmul.f32 %v623, 0.35355338
      %vm628 = vcmask 130048
      %v629 = vsel %vm628, %v626, -inf
      %630 = vmax.xlane.f32.xlu0 %v629
      %v631 = vpop.xlane.xlu0 %630
      %v632 = vsel %vm628, %v627, -inf
      %633 = vmax.xlane.f32.xlu0 %v632
      %v634 = vpop.xlane.xlu0 %633
      %v635 = vsub.f32 %v626, %v631
      %v636 = vsub.f32 %v627, %v634
      %v637 = vmul.f32 %v635, 1.442695
      %v638 = vpow.pop %v637
      %v639 = vmul.f32 %v636, 1.442695
      %v640 = vpow.pop %v639
      %v641 = vsel %vm628, %v638, 0.0
      %642 = vadd.xlane.f32.xlu0 %v641
      %v643 = vpop.xlane.xlu0 %642
      %v644 = vsel %vm628, %v640, 0.0
      %645 = vadd.xlane.f32.xlu0 %v644
      %v646 = vpop.xlane.xlu0 %645
      %v647 = vrcp.pop %v643
      %v648 = vrcp.pop %v646
      %v649 = vmul.f32 %v638, %v647
      %v650 = vmul.f32 %v640, %v648
      %651 = vrot.lane.b32.xlu0 %v528, 64
      %v652 = vpop.permute.xlu0 %651
      %653 = vrot.lane.b32.xlu0 %v533, 64
      %v654 = vpop.permute.xlu0 %653
      %v658 = vsel %vm628, %v649, 0
      %v661 = vsel %vm628, %v650, 0
      %663 = vmatprep.subr.mxu0 0.0
      %664 = vmatpush1.msra.mxu0 %v652
      %665 = vmatprep.subr.mxu0 0.0
      %666 = vmatpush1.msra.mxu0 %v654
      %667 = vmatprep.subr.mxu0 0.0
      %668 = vmatpush1.msra.mxu0 0.0
      %669 = vmatprep.subr.mxu0 0.0
      %670 = vmatpush1.msra.mxu0 0.0
      %671 = vmatprep.subr.mxu0 0.0
      %672 = vmatpush1.msra.mxu0 0.0
      %673 = vmatprep.subr.mxu0 0.0
      %674 = vmatpush1.msra.mxu0 0.0
      %675 = vmatprep.subr.mxu0 0.0
      %676 = vmatpush1.msra.mxu0 0.0
      %677 = vmatprep.subr.mxu0 0.0
      %678 = vmatpush1.msra.mxu0 0.0
      %679 = vmatprep.subr.mxu0 0.0
      %680 = vmatpush1.msra.mxu0 0.0
      %681 = vmatprep.subr.mxu0 0.0
      %682 = vmatpush1.msra.mxu0 0.0
      %683 = vmatprep.subr.mxu0 0.0
      %684 = vmatpush1.msra.mxu0 0.0
      %685 = vmatprep.subr.mxu0 0.0
      %686 = vmatpush1.msra.mxu0 0.0
      %687 = vmatprep.subr.mxu0 0.0
      %688 = vmatpush1.msra.mxu0 0.0
      %689 = vmatprep.subr.mxu0 0.0
      %690 = vmatpush1.msra.mxu0 0.0
      %691 = vmatprep.subr.mxu0 0.0
      %692 = vmatpush1.msra.mxu0 0.0
      %693 = vmatprep.subr.mxu0 0.0
      %694 = vmatpush1.msra.mxu0 0.0
      %695 = vmatprep.subr.mxu0 0.0
      %696 = vmatpush1.msra.mxu0 0.0
      %697 = vmatprep.subr.mxu0 0.0
      %698 = vmatpush1.msra.mxu0 0.0
      %699 = vmatprep.subr.mxu0 0.0
      %700 = vmatpush1.msra.mxu0 0.0
      %701 = vmatprep.subr.mxu0 0.0
      %702 = vmatpush1.msra.mxu0 0.0
      %703 = vmatprep.subr.mxu0 0.0
      %704 = vmatpush1.msra.mxu0 0.0
      %705 = vmatprep.subr.mxu0 0.0
      %706 = vmatpush1.msra.mxu0 0.0
      %707 = vmatprep.subr.mxu0 0.0
      %708 = vmatpush1.msra.mxu0 0.0
      %709 = vmatprep.subr.mxu0 0.0
      %710 = vmatpush1.msra.mxu0 0.0
      %711 = vmatprep.subr.mxu0 0.0
      %712 = vmatpush1.msra.mxu0 0.0
      %713 = vmatprep.subr.mxu0 0.0
      %714 = vmatpush1.msra.mxu0 0.0
      %715 = vmatprep.subr.mxu0 0.0
      %716 = vmatpush1.msra.mxu0 0.0
      %717 = vmatprep.subr.mxu0 0.0
      %718 = vmatpush1.msra.mxu0 0.0
      %719 = vmatprep.subr.mxu0 0.0
      %720 = vmatpush1.msra.mxu0 0.0
      %721 = vmatprep.subr.mxu0 0.0
      %722 = vmatpush1.msra.mxu0 0.0
      %723 = vmatprep.subr.mxu0 0.0
      %724 = vmatpush1.msra.mxu0 0.0
      %725 = vmatprep.subr.mxu0 0.0
      %726 = vmatpush1.msra.mxu0 0.0
      %727 = vmatprep.mubr.f32.mxu0 0.0
      %728 = vmatmul.mubr.f32.gmra.mrb[0].mxu0 %v658
      %v729 = vpop.f32.mrb[0].mxu0
      %v730 = vadd.f32 0.0, %v729
      %v731 = vpop.f32.mrb[0].mxu0
      %732 = vmatprep.mubr.f32.mxu0 0.0
      %733 = vmatmul.mubr.f32.gmra.mrb[0].mxu0 %v661
      %v734 = vpop.f32.mrb[0].mxu0
      %v735 = vadd.f32 0.0, %v734
      %v736 = vpop.f32.mrb[0].mxu0
      %737 = vdwg.mxu0
      %738 = vrot.lane.b32.xlu0 %v528, 120
      %v739 = vpop.permute.xlu0 %738
      %740 = vrot.lane.b32.xlu0 %v533, 120
      %v741 = vpop.permute.xlu0 %740
      %742 = vrot.lane.b32.xlu0 %v528, 88
      %v743 = vpop.permute.xlu0 %742
      %744 = vrot.lane.b32.xlu0 %v533, 88
      %v745 = vpop.permute.xlu0 %744
      %v746 = vsel %vm542, %v739, 0
      %v748 = vsel %vm542, %v741, 0
      %v750 = vsel %vm542, %v743, 0
      %v752 = vsel %vm542, %v745, 0
      %754 = vmatprep.subr.mxu0 0.0
      %755 = vmatpush1.xpose.msra.mxu0 %v750
      %756 = vmatprep.subr.mxu0 0.0
      %757 = vmatpush1.xpose.msra.mxu0 %v752
      %758 = vmatprep.subr.mxu0 0.0
      %759 = vmatpush1.xpose.msra.mxu0 0.0
      %760 = vmatprep.subr.mxu0 0.0
      %761 = vmatpush1.xpose.msra.mxu0 0.0
      %762 = vmatprep.subr.mxu0 0.0
      %763 = vmatpush1.xpose.msra.mxu0 0.0
      %764 = vmatprep.subr.mxu0 0.0
      %765 = vmatpush1.xpose.msra.mxu0 0.0
      %766 = vmatprep.subr.mxu0 0.0
      %767 = vmatpush1.xpose.msra.mxu0 0.0
      %768 = vmatprep.subr.mxu0 0.0
      %769 = vmatpush1.xpose.msra.mxu0 0.0
      %770 = vmatprep.subr.mxu0 0.0
      %771 = vmatpush1.xpose.msra.mxu0 0.0
      %772 = vmatprep.subr.mxu0 0.0
      %773 = vmatpush1.xpose.msra.mxu0 0.0
      %774 = vmatprep.subr.mxu0 0.0
      %775 = vmatpush1.xpose.msra.mxu0 0.0
      %776 = vmatprep.subr.mxu0 0.0
      %777 = vmatpush1.xpose.msra.mxu0 0.0
      %778 = vmatprep.subr.mxu0 0.0
      %779 = vmatpush1.xpose.msra.mxu0 0.0
      %780 = vmatprep.subr.mxu0 0.0
      %781 = vmatpush1.xpose.msra.mxu0 0.0
      %782 = vmatprep.subr.mxu0 0.0
      %783 = vmatpush1.xpose.msra.mxu0 0.0
      %784 = vmatprep.subr.mxu0 0.0
      %785 = vmatpush1.xpose.msra.mxu0 0.0
      %786 = vmatprep.subr.mxu0 0.0
      %787 = vmatpush1.xpose.msra.mxu0 0.0
      %788 = vmatprep.subr.mxu0 0.0
      %789 = vmatpush1.xpose.msra.mxu0 0.0
      %790 = vmatprep.subr.mxu0 0.0
      %791 = vmatpush1.xpose.msra.mxu0 0.0
      %792 = vmatprep.subr.mxu0 0.0
      %793 = vmatpush1.xpose.msra.mxu0 0.0
      %794 = vmatprep.subr.mxu0 0.0
      %795 = vmatpush1.xpose.msra.mxu0 0.0
      %796 = vmatprep.subr.mxu0 0.0
      %797 = vmatpush1.xpose.msra.mxu0 0.0
      %798 = vmatprep.subr.mxu0 0.0
      %799 = vmatpush1.xpose.msra.mxu0 0.0
      %800 = vmatprep.subr.mxu0 0.0
      %801 = vmatpush1.xpose.msra.mxu0 0.0
      %802 = vmatprep.subr.mxu0 0.0
      %803 = vmatpush1.xpose.msra.mxu0 0.0
      %804 = vmatprep.subr.mxu0 0.0
      %805 = vmatpush1.xpose.msra.mxu0 0.0
      %806 = vmatprep.subr.mxu0 0.0
      %807 = vmatpush1.xpose.msra.mxu0 0.0
      %808 = vmatprep.subr.mxu0 0.0
      %809 = vmatpush1.xpose.msra.mxu0 0.0
      %810 = vmatprep.subr.mxu0 0.0
      %811 = vmatpush1.xpose.msra.mxu0 0.0
      %812 = vmatprep.subr.mxu0 0.0
      %813 = vmatpush1.xpose.msra.mxu0 0.0
      %814 = vmatprep.subr.mxu0 0.0
      %815 = vmatpush1.xpose.msra.mxu0 0.0
      %816 = vmatprep.subr.mxu0 0.0
      %817 = vmatpush1.xpose.msra.mxu0 0.0
      %818 = vmatprep.mubr.f32.mxu0 0.0
      %819 = vmatmul.mubr.f32.gmra.mrb[0].mxu0 %v746
      %v820 = vpop.f32.mrb[0].mxu0
      %v821 = vadd.f32 0.0, %v820
      %v822 = vpop.f32.mrb[0].mxu0
      %823 = vmatprep.mubr.f32.mxu0 0.0
      %824 = vmatmul.mubr.f32.gmra.mrb[0].mxu0 %v748
      %v825 = vpop.f32.mrb[0].mxu0
      %v826 = vadd.f32 0.0, %v825
      %v827 = vpop.f32.mrb[0].mxu0
      %828 = vdwg.mxu0
      %v829 = vmul.f32 %v821, 0.35355338
      %v830 = vmul.f32 %v826, 0.35355338
      %v831 = vsel %vm628, %v829, -inf
      %832 = vmax.xlane.f32.xlu0 %v831
      %v833 = vpop.xlane.xlu0 %832
      %v834 = vsel %vm628, %v830, -inf
      %835 = vmax.xlane.f32.xlu0 %v834
      %v836 = vpop.xlane.xlu0 %835
      %v837 = vsub.f32 %v829, %v833
      %v838 = vsub.f32 %v830, %v836
      %v839 = vmul.f32 %v837, 1.442695
      %v840 = vpow.pop %v839
      %v841 = vmul.f32 %v838, 1.442695
      %v842 = vpow.pop %v841
      %v843 = vsel %vm628, %v840, 0.0
      %844 = vadd.xlane.f32.xlu0 %v843
      %v845 = vpop.xlane.xlu0 %844
      %v846 = vsel %vm628, %v842, 0.0
      %847 = vadd.xlane.f32.xlu0 %v846
      %v848 = vpop.xlane.xlu0 %847
      %v849 = vrcp.pop %v845
      %v850 = vrcp.pop %v848
      %v851 = vmul.f32 %v840, %v849
      %v852 = vmul.f32 %v842, %v850
      %853 = vrot.lane.b32.xlu0 %v528, 56
      %v854 = vpop.permute.xlu0 %853
      %855 = vrot.lane.b32.xlu0 %v533, 56
      %v856 = vpop.permute.xlu0 %855
      %v860 = vsel %vm628, %v851, 0
      %v863 = vsel %vm628, %v852, 0
      %865 = vmatprep.subr.mxu0 0.0
      %866 = vmatpush1.msra.mxu0 %v854
      %867 = vmatprep.subr.mxu0 0.0
      %868 = vmatpush1.msra.mxu0 %v856
      %869 = vmatprep.subr.mxu0 0.0
      %870 = vmatpush1.msra.mxu0 0.0
      %871 = vmatprep.subr.mxu0 0.0
      %872 = vmatpush1.msra.mxu0 0.0
      %873 = vmatprep.subr.mxu0 0.0
      %874 = vmatpush1.msra.mxu0 0.0
      %875 = vmatprep.subr.mxu0 0.0
      %876 = vmatpush1.msra.mxu0 0.0
      %877 = vmatprep.subr.mxu0 0.0
      %878 = vmatpush1.msra.mxu0 0.0
      %879 = vmatprep.subr.mxu0 0.0
      %880 = vmatpush1.msra.mxu0 0.0
      %881 = vmatprep.subr.mxu0 0.0
      %882 = vmatpush1.msra.mxu0 0.0
      %883 = vmatprep.subr.mxu0 0.0
      %884 = vmatpush1.msra.mxu0 0.0
      %885 = vmatprep.subr.mxu0 0.0
      %886 = vmatpush1.msra.mxu0 0.0
      %887 = vmatprep.subr.mxu0 0.0
      %888 = vmatpush1.msra.mxu0 0.0
      %889 = vmatprep.subr.mxu0 0.0
      %890 = vmatpush1.msra.mxu0 0.0
      %891 = vmatprep.subr.mxu0 0.0
      %892 = vmatpush1.msra.mxu0 0.0
      %893 = vmatprep.subr.mxu0 0.0
      %894 = vmatpush1.msra.mxu0 0.0
      %895 = vmatprep.subr.mxu0 0.0
      %896 = vmatpush1.msra.mxu0 0.0
      %897 = vmatprep.subr.mxu0 0.0
      %898 = vmatpush1.msra.mxu0 0.0
      %899 = vmatprep.subr.mxu0 0.0
      %900 = vmatpush1.msra.mxu0 0.0
      %901 = vmatprep.subr.mxu0 0.0
      %902 = vmatpush1.msra.mxu0 0.0
      %903 = vmatprep.subr.mxu0 0.0
      %904 = vmatpush1.msra.mxu0 0.0
      %905 = vmatprep.subr.mxu0 0.0
      %906 = vmatpush1.msra.mxu0 0.0
      %907 = vmatprep.subr.mxu0 0.0
      %908 = vmatpush1.msra.mxu0 0.0
      %909 = vmatprep.subr.mxu0 0.0
      %910 = vmatpush1.msra.mxu0 0.0
      %911 = vmatprep.subr.mxu0 0.0
      %912 = vmatpush1.msra.mxu0 0.0
      %913 = vmatprep.subr.mxu0 0.0
      %914 = vmatpush1.msra.mxu0 0.0
      %915 = vmatprep.subr.mxu0 0.0
      %916 = vmatpush1.msra.mxu0 0.0
      %917 = vmatprep.subr.mxu0 0.0
      %918 = vmatpush1.msra.mxu0 0.0
      %919 = vmatprep.subr.mxu0 0.0
      %920 = vmatpush1.msra.mxu0 0.0
      %921 = vmatprep.subr.mxu0 0.0
      %922 = vmatpush1.msra.mxu0 0.0
      %923 = vmatprep.subr.mxu0 0.0
      %924 = vmatpush1.msra.mxu0 0.0
      %925 = vmatprep.subr.mxu0 0.0
      %926 = vmatpush1.msra.mxu0 0.0
      %927 = vmatprep.subr.mxu0 0.0
      %928 = vmatpush1.msra.mxu0 0.0
      %929 = vmatprep.mubr.f32.mxu0 0.0
      %930 = vmatmul.mubr.f32.gmra.mrb[0].mxu0 %v860
      %v931 = vpop.f32.mrb[0].mxu0
      %v932 = vadd.f32 0.0, %v931
      %v933 = vpop.f32.mrb[0].mxu0
      %934 = vmatprep.mubr.f32.mxu0 0.0
      %935 = vmatmul.mubr.f32.gmra.mrb[0].mxu0 %v863
      %v936 = vpop.f32.mrb[0].mxu0
      %v937 = vadd.f32 0.0, %v936
      %v938 = vpop.f32.mrb[0].mxu0
      %939 = vdwg.mxu0
      %940 = vrot.lane.b32.xlu0 %v528, 112
      %v941 = vpop.permute.xlu0 %940
      %942 = vrot.lane.b32.xlu0 %v533, 112
      %v943 = vpop.permute.xlu0 %942
      %944 = vrot.lane.b32.xlu0 %v528, 80
      %v945 = vpop.permute.xlu0 %944
      %946 = vrot.lane.b32.xlu0 %v533, 80
      %v947 = vpop.permute.xlu0 %946
      %v948 = vsel %vm542, %v941, 0
      %v950 = vsel %vm542, %v943, 0
      %v952 = vsel %vm542, %v945, 0
      %v954 = vsel %vm542, %v947, 0
      %956 = vmatprep.subr.mxu0 0.0
      %957 = vmatpush1.xpose.msra.mxu0 %v952
      %958 = vmatprep.subr.mxu0 0.0
      %959 = vmatpush1.xpose.msra.mxu0 %v954
      %960 = vmatprep.subr.mxu0 0.0
      %961 = vmatpush1.xpose.msra.mxu0 0.0
      %962 = vmatprep.subr.mxu0 0.0
      %963 = vmatpush1.xpose.msra.mxu0 0.0
      %964 = vmatprep.subr.mxu0 0.0
      %965 = vmatpush1.xpose.msra.mxu0 0.0
      %966 = vmatprep.subr.mxu0 0.0
      %967 = vmatpush1.xpose.msra.mxu0 0.0
      %968 = vmatprep.subr.mxu0 0.0
      %969 = vmatpush1.xpose.msra.mxu0 0.0
      %970 = vmatprep.subr.mxu0 0.0
      %971 = vmatpush1.xpose.msra.mxu0 0.0
      %972 = vmatprep.subr.mxu0 0.0
      %973 = vmatpush1.xpose.msra.mxu0 0.0
      %974 = vmatprep.subr.mxu0 0.0
      %975 = vmatpush1.xpose.msra.mxu0 0.0
      %976 = vmatprep.subr.mxu0 0.0
      %977 = vmatpush1.xpose.msra.mxu0 0.0
      %978 = vmatprep.subr.mxu0 0.0
      %979 = vmatpush1.xpose.msra.mxu0 0.0
      %980 = vmatprep.subr.mxu0 0.0
      %981 = vmatpush1.xpose.msra.mxu0 0.0
      %982 = vmatprep.subr.mxu0 0.0
      %983 = vmatpush1.xpose.msra.mxu0 0.0
      %984 = vmatprep.subr.mxu0 0.0
      %985 = vmatpush1.xpose.msra.mxu0 0.0
      %986 = vmatprep.subr.mxu0 0.0
      %987 = vmatpush1.xpose.msra.mxu0 0.0
      %988 = vmatprep.subr.mxu0 0.0
      %989 = vmatpush1.xpose.msra.mxu0 0.0
      %990 = vmatprep.subr.mxu0 0.0
      %991 = vmatpush1.xpose.msra.mxu0 0.0
      %992 = vmatprep.subr.mxu0 0.0
      %993 = vmatpush1.xpose.msra.mxu0 0.0
      %994 = vmatprep.subr.mxu0 0.0
      %995 = vmatpush1.xpose.msra.mxu0 0.0
      %996 = vmatprep.subr.mxu0 0.0
      %997 = vmatpush1.xpose.msra.mxu0 0.0
      %998 = vmatprep.subr.mxu0 0.0
      %999 = vmatpush1.xpose.msra.mxu0 0.0
      %1000 = vmatprep.subr.mxu0 0.0
      %1001 = vmatpush1.xpose.msra.mxu0 0.0
      %1002 = vmatprep.subr.mxu0 0.0
      %1003 = vmatpush1.xpose.msra.mxu0 0.0
      %1004 = vmatprep.subr.mxu0 0.0
      %1005 = vmatpush1.xpose.msra.mxu0 0.0
      %1006 = vmatprep.subr.mxu0 0.0
      %1007 = vmatpush1.xpose.msra.mxu0 0.0
      %1008 = vmatprep.subr.mxu0 0.0
      %1009 = vmatpush1.xpose.msra.mxu0 0.0
      %1010 = vmatprep.subr.mxu0 0.0
      %1011 = vmatpush1.xpose.msra.mxu0 0.0
      %1012 = vmatprep.subr.mxu0 0.0
      %1013 = vmatpush1.xpose.msra.mxu0 0.0
      %1014 = vmatprep.subr.mxu0 0.0
      %1015 = vmatpush1.xpose.msra.mxu0 0.0
      %1016 = vmatprep.subr.mxu0 0.0
      %1017 = vmatpush1.xpose.msra.mxu0 0.0
      %1018 = vmatprep.subr.mxu0 0.0
      %1019 = vmatpush1.xpose.msra.mxu0 0.0
      %1020 = vmatprep.mubr.f32.mxu0 0.0
      %1021 = vmatmul.mubr.f32.gmra.mrb[0].mxu0 %v948
      %v1022 = vpop.f32.mrb[0].mxu0
      %v1023 = vadd.f32 0.0, %v1022
      %v1024 = vpop.f32.mrb[0].mxu0
      %1025 = vmatprep.mubr.f32.mxu0 0.0
      %1026 = vmatmul.mubr.f32.gmra.mrb[0].mxu0 %v950
      %v1027 = vpop.f32.mrb[0].mxu0
      %v1028 = vadd.f32 0.0, %v1027
      %v1029 = vpop.f32.mrb[0].mxu0
      %1030 = vdwg.mxu0
      %v1031 = vmul.f32 %v1023, 0.35355338
      %v1032 = vmul.f32 %v1028, 0.35355338
      %v1033 = vsel %vm628, %v1031, -inf
      %1034 = vmax.xlane.f32.xlu0 %v1033
      %v1035 = vpop.xlane.xlu0 %1034
      %v1036 = vsel %vm628, %v1032, -inf
      %1037 = vmax.xlane.f32.xlu0 %v1036
      %v1038 = vpop.xlane.xlu0 %1037
      %v1039 = vsub.f32 %v1031, %v1035
      %v1040 = vsub.f32 %v1032, %v1038
      %v1041 = vmul.f32 %v1039, 1.442695
      %v1042 = vpow.pop %v1041
      %v1043 = vmul.f32 %v1040, 1.442695
      %v1044 = vpow.pop %v1043
      %v1045 = vsel %vm628, %v1042, 0.0
      %1046 = vadd.xlane.f32.xlu0 %v1045
      %v1047 = vpop.xlane.xlu0 %1046
      %v1048 = vsel %vm628, %v1044, 0.0
      %1049 = vadd.xlane.f32.xlu0 %v1048
      %v1050 = vpop.xlane.xlu0 %1049
      %v1051 = vrcp.pop %v1047
      %v1052 = vrcp.pop %v1050
      %v1053 = vmul.f32 %v1042, %v1051
      %v1054 = vmul.f32 %v1044, %v1052
      %1055 = vrot.lane.b32.xlu0 %v528, 48
      %v1056 = vpop.permute.xlu0 %1055
      %1057 = vrot.lane.b32.xlu0 %v533, 48
      %v1058 = vpop.permute.xlu0 %1057
      %v1062 = vsel %vm628, %v1053, 0
      %v1065 = vsel %vm628, %v1054, 0
      %1067 = vmatprep.subr.mxu0 0.0
      %1068 = vmatpush1.msra.mxu0 %v1056
      %1069 = vmatprep.subr.mxu0 0.0
      %1070 = vmatpush1.msra.mxu0 %v1058
      %1071 = vmatprep.subr.mxu0 0.0
      %1072 = vmatpush1.msra.mxu0 0.0
      %1073 = vmatprep.subr.mxu0 0.0
      %1074 = vmatpush1.msra.mxu0 0.0
      %1075 = vmatprep.subr.mxu0 0.0
      %1076 = vmatpush1.msra.mxu0 0.0
      %1077 = vmatprep.subr.mxu0 0.0
      %1078 = vmatpush1.msra.mxu0 0.0
      %1079 = vmatprep.subr.mxu0 0.0
      %1080 = vmatpush1.msra.mxu0 0.0
      %1081 = vmatprep.subr.mxu0 0.0
      %1082 = vmatpush1.msra.mxu0 0.0
      %1083 = vmatprep.subr.mxu0 0.0
      %1084 = vmatpush1.msra.mxu0 0.0
      %1085 = vmatprep.subr.mxu0 0.0
      %1086 = vmatpush1.msra.mxu0 0.0
      %1087 = vmatprep.subr.mxu0 0.0
      %1088 = vmatpush1.msra.mxu0 0.0
      %1089 = vmatprep.subr.mxu0 0.0
      %1090 = vmatpush1.msra.mxu0 0.0
      %1091 = vmatprep.subr.mxu0 0.0
      %1092 = vmatpush1.msra.mxu0 0.0
      %1093 = vmatprep.subr.mxu0 0.0
      %1094 = vmatpush1.msra.mxu0 0.0
      %1095 = vmatprep.subr.mxu0 0.0
      %1096 = vmatpush1.msra.mxu0 0.0
      %1097 = vmatprep.subr.mxu0 0.0
      %1098 = vmatpush1.msra.mxu0 0.0
      %1099 = vmatprep.subr.mxu0 0.0
      %1100 = vmatpush1.msra.mxu0 0.0
      %1101 = vmatprep.subr.mxu0 0.0
      %1102 = vmatpush1.msra.mxu0 0.0
      %1103 = vmatprep.subr.mxu0 0.0
      %1104 = vmatpush1.msra.mxu0 0.0
      %1105 = vmatprep.subr.mxu0 0.0
      %1106 = vmatpush1.msra.mxu0 0.0
      %1107 = vmatprep.subr.mxu0 0.0
      %1108 = vmatpush1.msra.mxu0 0.0
      %1109 = vmatprep.subr.mxu0 0.0
      %1110 = vmatpush1.msra.mxu0 0.0
      %1111 = vmatprep.subr.mxu0 0.0
      %1112 = vmatpush1.msra.mxu0 0.0
      %1113 = vmatprep.subr.mxu0 0.0
      %1114 = vmatpush1.msra.mxu0 0.0
      %1115 = vmatprep.subr.mxu0 0.0
      %1116 = vmatpush1.msra.mxu0 0.0
      %1117 = vmatprep.subr.mxu0 0.0
      %1118 = vmatpush1.msra.mxu0 0.0
      %1119 = vmatprep.subr.mxu0 0.0
      %1120 = vmatpush1.msra.mxu0 0.0
      %1121 = vmatprep.subr.mxu0 0.0
      %1122 = vmatpush1.msra.mxu0 0.0
      %1123 = vmatprep.subr.mxu0 0.0
      %1124 = vmatpush1.msra.mxu0 0.0
      %1125 = vmatprep.subr.mxu0 0.0
      %1126 = vmatpush1.msra.mxu0 0.0
      %1127 = vmatprep.subr.mxu0 0.0
      %1128 = vmatpush1.msra.mxu0 0.0
      %1129 = vmatprep.subr.mxu0 0.0
      %1130 = vmatpush1.msra.mxu0 0.0
      %1131 = vmatprep.mubr.f32.mxu0 0.0
      %1132 = vmatmul.mubr.f32.gmra.mrb[0].mxu0 %v1062
      %v1133 = vpop.f32.mrb[0].mxu0
      %v1134 = vadd.f32 0.0, %v1133
      %v1135 = vpop.f32.mrb[0].mxu0
      %1136 = vmatprep.mubr.f32.mxu0 0.0
      %1137 = vmatmul.mubr.f32.gmra.mrb[0].mxu0 %v1065
      %v1138 = vpop.f32.mrb[0].mxu0
      %v1139 = vadd.f32 0.0, %v1138
      %v1140 = vpop.f32.mrb[0].mxu0
      %1141 = vdwg.mxu0
      %1142 = vrot.lane.b32.xlu0 %v528, 104
      %v1143 = vpop.permute.xlu0 %1142
      %1144 = vrot.lane.b32.xlu0 %v533, 104
      %v1145 = vpop.permute.xlu0 %1144
      %1146 = vrot.lane.b32.xlu0 %v528, 72
      %v1147 = vpop.permute.xlu0 %1146
      %1148 = vrot.lane.b32.xlu0 %v533, 72
      %v1149 = vpop.permute.xlu0 %1148
      %v1150 = vsel %vm542, %v1143, 0
      %v1152 = vsel %vm542, %v1145, 0
      %v1154 = vsel %vm542, %v1147, 0
      %v1156 = vsel %vm542, %v1149, 0
      %1158 = vmatprep.subr.mxu0 0.0
      %1159 = vmatpush1.xpose.msra.mxu0 %v1154
      %1160 = vmatprep.subr.mxu0 0.0
      %1161 = vmatpush1.xpose.msra.mxu0 %v1156
      %1162 = vmatprep.subr.mxu0 0.0
      %1163 = vmatpush1.xpose.msra.mxu0 0.0
      %1164 = vmatprep.subr.mxu0 0.0
      %1165 = vmatpush1.xpose.msra.mxu0 0.0
      %1166 = vmatprep.subr.mxu0 0.0
      %1167 = vmatpush1.xpose.msra.mxu0 0.0
      %1168 = vmatprep.subr.mxu0 0.0
      %1169 = vmatpush1.xpose.msra.mxu0 0.0
      %1170 = vmatprep.subr.mxu0 0.0
      %1171 = vmatpush1.xpose.msra.mxu0 0.0
      %1172 = vmatprep.subr.mxu0 0.0
      %1173 = vmatpush1.xpose.msra.mxu0 0.0
      %1174 = vmatprep.subr.mxu0 0.0
      %1175 = vmatpush1.xpose.msra.mxu0 0.0
      %1176 = vmatprep.subr.mxu0 0.0
      %1177 = vmatpush1.xpose.msra.mxu0 0.0
      %1178 = vmatprep.subr.mxu0 0.0
      %1179 = vmatpush1.xpose.msra.mxu0 0.0
      %1180 = vmatprep.subr.mxu0 0.0
      %1181 = vmatpush1.xpose.msra.mxu0 0.0
      %1182 = vmatprep.subr.mxu0 0.0
      %1183 = vmatpush1.xpose.msra.mxu0 0.0
      %1184 = vmatprep.subr.mxu0 0.0
      %1185 = vmatpush1.xpose.msra.mxu0 0.0
      %1186 = vmatprep.subr.mxu0 0.0
      %1187 = vmatpush1.xpose.msra.mxu0 0.0
      %1188 = vmatprep.subr.mxu0 0.0
      %1189 = vmatpush1.xpose.msra.mxu0 0.0
      %1190 = vmatprep.subr.mxu0 0.0
      %1191 = vmatpush1.xpose.msra.mxu0 0.0
      %1192 = vmatprep.subr.mxu0 0.0
      %1193 = vmatpush1.xpose.msra.mxu0 0.0
      %1194 = vmatprep.subr.mxu0 0.0
      %1195 = vmatpush1.xpose.msra.mxu0 0.0
      %1196 = vmatprep.subr.mxu0 0.0
      %1197 = vmatpush1.xpose.msra.mxu0 0.0
      %1198 = vmatprep.subr.mxu0 0.0
      %1199 = vmatpush1.xpose.msra.mxu0 0.0
      %1200 = vmatprep.subr.mxu0 0.0
      %1201 = vmatpush1.xpose.msra.mxu0 0.0
      %1202 = vmatprep.subr.mxu0 0.0
      %1203 = vmatpush1.xpose.msra.mxu0 0.0
      %1204 = vmatprep.subr.mxu0 0.0
      %1205 = vmatpush1.xpose.msra.mxu0 0.0
      %1206 = vmatprep.subr.mxu0 0.0
      %1207 = vmatpush1.xpose.msra.mxu0 0.0
      %1208 = vmatprep.subr.mxu0 0.0
      %1209 = vmatpush1.xpose.msra.mxu0 0.0
      %1210 = vmatprep.subr.mxu0 0.0
      %1211 = vmatpush1.xpose.msra.mxu0 0.0
      %1212 = vmatprep.subr.mxu0 0.0
      %1213 = vmatpush1.xpose.msra.mxu0 0.0
      %1214 = vmatprep.subr.mxu0 0.0
      %1215 = vmatpush1.xpose.msra.mxu0 0.0
      %1216 = vmatprep.subr.mxu0 0.0
      %1217 = vmatpush1.xpose.msra.mxu0 0.0
      %1218 = vmatprep.subr.mxu0 0.0
      %1219 = vmatpush1.xpose.msra.mxu0 0.0
      %1220 = vmatprep.subr.mxu0 0.0
      %1221 = vmatpush1.xpose.msra.mxu0 0.0
      %1222 = vmatprep.mubr.f32.mxu0 0.0
      %1223 = vmatmul.mubr.f32.gmra.mrb[0].mxu0 %v1150
      %v1224 = vpop.f32.mrb[0].mxu0
      %v1225 = vadd.f32 0.0, %v1224
      %v1226 = vpop.f32.mrb[0].mxu0
      %1227 = vmatprep.mubr.f32.mxu0 0.0
      %1228 = vmatmul.mubr.f32.gmra.mrb[0].mxu0 %v1152
      %v1229 = vpop.f32.mrb[0].mxu0
      %v1230 = vadd.f32 0.0, %v1229
      %v1231 = vpop.f32.mrb[0].mxu0
      %1232 = vdwg.mxu0
      %v1233 = vmul.f32 %v1225, 0.35355338
      %v1234 = vmul.f32 %v1230, 0.35355338
      %v1235 = vsel %vm628, %v1233, -inf
      %1236 = vmax.xlane.f32.xlu0 %v1235
      %v1237 = vpop.xlane.xlu0 %1236
      %v1238 = vsel %vm628, %v1234, -inf
      %1239 = vmax.xlane.f32.xlu0 %v1238
      %v1240 = vpop.xlane.xlu0 %1239
      %v1241 = vsub.f32 %v1233, %v1237
      %v1242 = vsub.f32 %v1234, %v1240
      %v1243 = vmul.f32 %v1241, 1.442695
      %v1244 = vpow.pop %v1243
      %v1245 = vmul.f32 %v1242, 1.442695
      %v1246 = vpow.pop %v1245
      %v1247 = vsel %vm628, %v1244, 0.0
      %1248 = vadd.xlane.f32.xlu0 %v1247
      %v1249 = vpop.xlane.xlu0 %1248
      %v1250 = vsel %vm628, %v1246, 0.0
      %1251 = vadd.xlane.f32.xlu0 %v1250
      %v1252 = vpop.xlane.xlu0 %1251
      %v1253 = vrcp.pop %v1249
      %v1254 = vrcp.pop %v1252
      %v1255 = vmul.f32 %v1244, %v1253
      %v1256 = vmul.f32 %v1246, %v1254
      %1257 = vrot.lane.b32.xlu0 %v528, 40
      %v1258 = vpop.permute.xlu0 %1257
      %1259 = vrot.lane.b32.xlu0 %v533, 40
      %v1260 = vpop.permute.xlu0 %1259
      %v1264 = vsel %vm628, %v1255, 0
      %v1267 = vsel %vm628, %v1256, 0
      %1269 = vmatprep.subr.mxu0 0.0
      %1270 = vmatpush1.msra.mxu0 %v1258
      %1271 = vmatprep.subr.mxu0 0.0
      %1272 = vmatpush1.msra.mxu0 %v1260
      %1273 = vmatprep.subr.mxu0 0.0
      %1274 = vmatpush1.msra.mxu0 0.0
      %1275 = vmatprep.subr.mxu0 0.0
      %1276 = vmatpush1.msra.mxu0 0.0
      %1277 = vmatprep.subr.mxu0 0.0
      %1278 = vmatpush1.msra.mxu0 0.0
      %1279 = vmatprep.subr.mxu0 0.0
      %1280 = vmatpush1.msra.mxu0 0.0
      %1281 = vmatprep.subr.mxu0 0.0
      %1282 = vmatpush1.msra.mxu0 0.0
      %1283 = vmatprep.subr.mxu0 0.0
      %1284 = vmatpush1.msra.mxu0 0.0
      %1285 = vmatprep.subr.mxu0 0.0
      %1286 = vmatpush1.msra.mxu0 0.0
      %1287 = vmatprep.subr.mxu0 0.0
      %1288 = vmatpush1.msra.mxu0 0.0
      %1289 = vmatprep.subr.mxu0 0.0
      %1290 = vmatpush1.msra.mxu0 0.0
      %1291 = vmatprep.subr.mxu0 0.0
      %1292 = vmatpush1.msra.mxu0 0.0
      %1293 = vmatprep.subr.mxu0 0.0
      %1294 = vmatpush1.msra.mxu0 0.0
      %1295 = vmatprep.subr.mxu0 0.0
      %1296 = vmatpush1.msra.mxu0 0.0
      %1297 = vmatprep.subr.mxu0 0.0
      %1298 = vmatpush1.msra.mxu0 0.0
      %1299 = vmatprep.subr.mxu0 0.0
      %1300 = vmatpush1.msra.mxu0 0.0
      %1301 = vmatprep.subr.mxu0 0.0
      %1302 = vmatpush1.msra.mxu0 0.0
      %1303 = vmatprep.subr.mxu0 0.0
      %1304 = vmatpush1.msra.mxu0 0.0
      %1305 = vmatprep.subr.mxu0 0.0
      %1306 = vmatpush1.msra.mxu0 0.0
      %1307 = vmatprep.subr.mxu0 0.0
      %1308 = vmatpush1.msra.mxu0 0.0
      %1309 = vmatprep.subr.mxu0 0.0
      %1310 = vmatpush1.msra.mxu0 0.0
      %1311 = vmatprep.subr.mxu0 0.0
      %1312 = vmatpush1.msra.mxu0 0.0
      %1313 = vmatprep.subr.mxu0 0.0
      %1314 = vmatpush1.msra.mxu0 0.0
      %1315 = vmatprep.subr.mxu0 0.0
      %1316 = vmatpush1.msra.mxu0 0.0
      %1317 = vmatprep.subr.mxu0 0.0
      %1318 = vmatpush1.msra.mxu0 0.0
      %1319 = vmatprep.subr.mxu0 0.0
      %1320 = vmatpush1.msra.mxu0 0.0
      %1321 = vmatprep.subr.mxu0 0.0
      %1322 = vmatpush1.msra.mxu0 0.0
      %1323 = vmatprep.subr.mxu0 0.0
      %1324 = vmatpush1.msra.mxu0 0.0
      %1325 = vmatprep.subr.mxu0 0.0
      %1326 = vmatpush1.msra.mxu0 0.0
      %1327 = vmatprep.subr.mxu0 0.0
      %1328 = vmatpush1.msra.mxu0 0.0
      %1329 = vmatprep.subr.mxu0 0.0
      %1330 = vmatpush1.msra.mxu0 0.0
      %1331 = vmatprep.subr.mxu0 0.0
      %1332 = vmatpush1.msra.mxu0 0.0
      %1333 = vmatprep.mubr.f32.mxu0 0.0
      %1334 = vmatmul.mubr.f32.gmra.mrb[0].mxu0 %v1264
      %v1335 = vpop.f32.mrb[0].mxu0
      %v1336 = vadd.f32 0.0, %v1335
      %v1337 = vpop.f32.mrb[0].mxu0
      %1338 = vmatprep.mubr.f32.mxu0 0.0
      %1339 = vmatmul.mubr.f32.gmra.mrb[0].mxu0 %v1267
      %v1340 = vpop.f32.mrb[0].mxu0
      %v1341 = vadd.f32 0.0, %v1340
      %v1342 = vpop.f32.mrb[0].mxu0
      %1343 = vdwg.mxu0
      %1346 = vrot.lane.b32.xlu0 %v932, 8
      %v1347 = vpop.permute.xlu0 %1346
      %1348 = vrot.lane.b32.xlu0 %v937, 8
      %v1349 = vpop.permute.xlu0 %1348
      %1354 = vrot.lane.b32.xlu0 %v1134, 16
      %v1355 = vpop.permute.xlu0 %1354
      %1356 = vrot.lane.b32.xlu0 %v1139, 16
      %v1357 = vpop.permute.xlu0 %1356
      %1362 = vrot.lane.b32.xlu0 %v1336, 24
      %v1363 = vpop.permute.xlu0 %1362
      %1364 = vrot.lane.b32.xlu0 %v1341, 24
      %v1365 = vpop.permute.xlu0 %1364
      %v1368 = vsel %vm542, %v730, %v1347
      %v1369 = vsel %vm542, %v735, %v1349
      %v1370 = vsel %vm628, %v1368, %v1355
      %v1371 = vsel %vm628, %v1369, %v1357
      %vm1372 = vcmask 195584
      %v1373 = vsel %vm1372, %v1370, %v1363
      %v1374 = vsel %vm1372, %v1371, %v1365
      %v1375 = vld [vmem:[%s3] sm:$0xff]
      %v1376 = vld [vmem:[%s3 + $0x8] sm:$0xff]
      %v1377 = vld [vmem:[%s3 + $0x10] sm:$0xff]
      %v1378 = vld [vmem:[%s3 + $0x18] sm:$0xff]
      %v1379 = vld [vmem:[%s4] sm:$0x1]
      %v1381 = vlaneseq
      %v1382 = vshrl.u32 %v1381, 7
      %v1383 = vsub.s32 0, %v1382
      %v1384 = vrot.slane %v1379, %v1383
      %v1387 = vsel %vm454, %v1373, 0
      %v1390 = vsel %vm454, %v1374, 0
      %1392 = vmatprep.subr.mxu0 0.0
      %1393 = vmatpush1.msra.mxu0 %v1375
      %1394 = vmatprep.subr.mxu0 0.0
      %1395 = vmatpush1.msra.mxu0 %v1376
      %1396 = vmatprep.subr.mxu0 0.0
      %1397 = vmatpush1.msra.mxu0 %v1377
      %1398 = vmatprep.subr.mxu0 0.0
      %1399 = vmatpush1.msra.mxu0 %v1378
      %1400 = vmatprep.subr.mxu0 0.0
      %1401 = vmatpush1.msra.mxu0 0.0
      %1402 = vmatprep.subr.mxu0 0.0
      %1403 = vmatpush1.msra.mxu0 0.0
      %1404 = vmatprep.subr.mxu0 0.0
      %1405 = vmatpush1.msra.mxu0 0.0
      %1406 = vmatprep.subr.mxu0 0.0
      %1407 = vmatpush1.msra.mxu0 0.0
      %1408 = vmatprep.subr.mxu0 0.0
      %1409 = vmatpush1.msra.mxu0 0.0
      %1410 = vmatprep.subr.mxu0 0.0
      %1411 = vmatpush1.msra.mxu0 0.0
      %1412 = vmatprep.subr.mxu0 0.0
      %1413 = vmatpush1.msra.mxu0 0.0
      %1414 = vmatprep.subr.mxu0 0.0
      %1415 = vmatpush1.msra.mxu0 0.0
      %1416 = vmatprep.subr.mxu0 0.0
      %1417 = vmatpush1.msra.mxu0 0.0
      %1418 = vmatprep.subr.mxu0 0.0
      %1419 = vmatpush1.msra.mxu0 0.0
      %1420 = vmatprep.subr.mxu0 0.0
      %1421 = vmatpush1.msra.mxu0 0.0
      %1422 = vmatprep.subr.mxu0 0.0
      %1423 = vmatpush1.msra.mxu0 0.0
      %1424 = vmatprep.subr.mxu0 0.0
      %1425 = vmatpush1.msra.mxu0 0.0
      %1426 = vmatprep.subr.mxu0 0.0
      %1427 = vmatpush1.msra.mxu0 0.0
      %1428 = vmatprep.subr.mxu0 0.0
      %1429 = vmatpush1.msra.mxu0 0.0
      %1430 = vmatprep.subr.mxu0 0.0
      %1431 = vmatpush1.msra.mxu0 0.0
      %1432 = vmatprep.subr.mxu0 0.0
      %1433 = vmatpush1.msra.mxu0 0.0
      %1434 = vmatprep.subr.mxu0 0.0
      %1435 = vmatpush1.msra.mxu0 0.0
      %1436 = vmatprep.subr.mxu0 0.0
      %1437 = vmatpush1.msra.mxu0 0.0
      %1438 = vmatprep.subr.mxu0 0.0
      %1439 = vmatpush1.msra.mxu0 0.0
      %1440 = vmatprep.subr.mxu0 0.0
      %1441 = vmatpush1.msra.mxu0 0.0
      %1442 = vmatprep.subr.mxu0 0.0
      %1443 = vmatpush1.msra.mxu0 0.0
      %1444 = vmatprep.subr.mxu0 0.0
      %1445 = vmatpush1.msra.mxu0 0.0
      %1446 = vmatprep.subr.mxu0 0.0
      %1447 = vmatpush1.msra.mxu0 0.0
      %1448 = vmatprep.subr.mxu0 0.0
      %1449 = vmatpush1.msra.mxu0 0.0
      %1450 = vmatprep.subr.mxu0 0.0
      %1451 = vmatpush1.msra.mxu0 0.0
      %1452 = vmatprep.subr.mxu0 0.0
      %1453 = vmatpush1.msra.mxu0 0.0
      %1454 = vmatprep.subr.mxu0 0.0
      %1455 = vmatpush1.msra.mxu0 0.0
      %1456 = vmatprep.mubr.f32.mxu0 0.0
      %1457 = vmatmul.mubr.f32.gmra.mrb[0].mxu0 %v1387
      %v1458 = vpop.f32.mrb[0].mxu0
      %v1459 = vadd.f32 %v1384, %v1458
      %v1460 = vpop.f32.mrb[0].mxu0
      %1461 = vmatprep.mubr.f32.mxu0 0.0
      %1462 = vmatmul.mubr.f32.gmra.mrb[0].mxu0 %v1390
      %v1463 = vpop.f32.mrb[0].mxu0
      %v1464 = vadd.f32 %v1384, %v1463
      %v1465 = vpop.f32.mrb[0].mxu0
      %1466 = vdwg.mxu0
      %v1467 = vadd.f32 %v441, %v1459
      %v1468 = vadd.f32 %v442, %v1464
      %v1469 = vld [vmem:[%s5] sm:$0x1]
      %v1470 = vld [vmem:[%s6] sm:$0x1]
      %v1471 = vsel %vm454, %v1467, 0.0
      %1472 = vadd.xlane.f32.xlu0 %v1471
      %v1473 = vpop.xlane.xlu0 %1472
      %v1474 = vsel %vm454, %v1468, 0.0
      %1475 = vadd.xlane.f32.xlu0 %v1474
      %v1476 = vpop.xlane.xlu0 %1475
      %v1477 = vrcp.pop 32.0
      %v1478 = vmul.f32 %v1473, %v1477
      %v1479 = vmul.f32 %v1476, %v1477
      %v1480 = vsub.f32 %v1467, %v1478
      %v1481 = vsub.f32 %v1468, %v1479
      %v1482 = vmul.f32 %v1480, %v1480
      %v1483 = vmul.f32 %v1481, %v1481
      %v1484 = vsel %vm454, %v1482, 0.0
      %1485 = vadd.xlane.f32.xlu0 %v1484
      %v1486 = vpop.xlane.xlu0 %1485
      %v1487 = vsel %vm454, %v1483, 0.0
      %1488 = vadd.xlane.f32.xlu0 %v1487
      %v1489 = vpop.xlane.xlu0 %1488
      %v1490 = vmul.f32 %v1486, %v1477
      %v1491 = vmul.f32 %v1489, %v1477
      %v1492 = vadd.f32 %v1490, 1e-05
      %v1493 = vadd.f32 %v1491, 1e-05
      %v1494 = vrsqrt.pop %v1492
      %v1495 = vrsqrt.pop %v1493
      %v1496 = vmul.f32 %v1480, %v1494
      %v1497 = vmul.f32 %v1481, %v1495
      %v1499 = vlaneseq
      %v1500 = vshrl.u32 %v1499, 7
      %v1501 = vsub.s32 0, %v1500
      %v1502 = vrot.slane %v1469, %v1501
      %v1504 = vmul.f32 %v1496, %v1502
      %v1505 = vmul.f32 %v1497, %v1502
      %v1507 = vlaneseq
      %v1508 = vshrl.u32 %v1507, 7
      %v1509 = vsub.s32 0, %v1508
      %v1510 = vrot.slane %v1470, %v1509
      %v1512 = vadd.f32 %v1504, %v1510
      %v1513 = vadd.f32 %v1505, %v1510
      %v1514 = vld [vmem:[%s7] sm:$0xff]
      %v1515 = vld [vmem:[%s7 + $0x8] sm:$0xff]
      %v1516 = vld [vmem:[%s7 + $0x10] sm:$0xff]
      %v1517 = vld [vmem:[%s7 + $0x18] sm:$0xff]
      %v1518 = vld [vmem:[%s8] sm:$0x1]
      %v1520 = vlaneseq
      %v1521 = vshrl.u32 %v1520, 7
      %v1522 = vsub.s32 0, %v1521
      %v1523 = vrot.slane %v1518, %v1522
      %v1526 = vsel %vm454, %v1512, 0
      %v1529 = vsel %vm454, %v1513, 0
      %1531 = vmatprep.subr.mxu0 0.0
      %1532 = vmatpush1.msra.mxu0 %v1514
      %1533 = vmatprep.subr.mxu0 0.0
      %1534 = vmatpush1.msra.mxu0 %v1515
      %1535 = vmatprep.subr.mxu0 0.0
      %1536 = vmatpush1.msra.mxu0 %v1516
      %1537 = vmatprep.subr.mxu0 0.0
      %1538 = vmatpush1.msra.mxu0 %v1517
      %1539 = vmatprep.subr.mxu0 0.0
      %1540 = vmatpush1.msra.mxu0 0.0
      %1541 = vmatprep.subr.mxu0 0.0
      %1542 = vmatpush1.msra.mxu0 0.0
      %1543 = vmatprep.subr.mxu0 0.0
      %1544 = vmatpush1.msra.mxu0 0.0
      %1545 = vmatprep.subr.mxu0 0.0
      %1546 = vmatpush1.msra.mxu0 0.0
      %1547 = vmatprep.subr.mxu0 0.0
      %1548 = vmatpush1.msra.mxu0 0.0
      %1549 = vmatprep.subr.mxu0 0.0
      %1550 = vmatpush1.msra.mxu0 0.0
      %1551 = vmatprep.subr.mxu0 0.0
      %1552 = vmatpush1.msra.mxu0 0.0
      %1553 = vmatprep.subr.mxu0 0.0
      %1554 = vmatpush1.msra.mxu0 0.0
      %1555 = vmatprep.subr.mxu0 0.0
      %1556 = vmatpush1.msra.mxu0 0.0
      %1557 = vmatprep.subr.mxu0 0.0
      %1558 = vmatpush1.msra.mxu0 0.0
      %1559 = vmatprep.subr.mxu0 0.0
      %1560 = vmatpush1.msra.mxu0 0.0
      %1561 = vmatprep.subr.mxu0 0.0
      %1562 = vmatpush1.msra.mxu0 0.0
      %1563 = vmatprep.subr.mxu0 0.0
      %1564 = vmatpush1.msra.mxu0 0.0
      %1565 = vmatprep.subr.mxu0 0.0
      %1566 = vmatpush1.msra.mxu0 0.0
      %1567 = vmatprep.subr.mxu0 0.0
      %1568 = vmatpush1.msra.mxu0 0.0
      %1569 = vmatprep.subr.mxu0 0.0
      %1570 = vmatpush1.msra.mxu0 0.0
      %1571 = vmatprep.subr.mxu0 0.0
      %1572 = vmatpush1.msra.mxu0 0.0
      %1573 = vmatprep.subr.mxu0 0.0
      %1574 = vmatpush1.msra.mxu0 0.0
      %1575 = vmatprep.subr.mxu0 0.0
      %1576 = vmatpush1.msra.mxu0 0.0
      %1577 = vmatprep.subr.mxu0 0.0
      %1578 = vmatpush1.msra.mxu0 0.0
      %1579 = vmatprep.subr.mxu0 0.0
      %1580 = vmatpush1.msra.mxu0 0.0
      %1581 = vmatprep.subr.mxu0 0.0
      %1582 = vmatpush1.msra.mxu0 0.0
      %1583 = vmatprep.subr.mxu0 0.0
      %1584 = vmatpush1.msra.mxu0 0.0
      %1585 = vmatprep.subr.mxu0 0.0
      %1586 = vmatpush1.msra.mxu0 0.0
      %1587 = vmatprep.subr.mxu0 0.0
      %1588 = vmatpush1.msra.mxu0 0.0
      %1589 = vmatprep.subr.mxu0 0.0
      %1590 = vmatpush1.msra.mxu0 0.0
      %1591 = vmatprep.subr.mxu0 0.0
      %1592 = vmatpush1.msra.mxu0 0.0
      %1593 = vmatprep.subr.mxu0 0.0
      %1594 = vmatpush1.msra.mxu0 0.0
      %1595 = vmatprep.mubr.f32.mxu0 0.0
      %1596 = vmatmul.mubr.f32.gmra.mrb[0].mxu0 %v1526
      %v1597 = vpop.f32.mrb[0].mxu0
      %v1598 = vadd.f32 %v1523, %v1597
      %v1599 = vpop.f32.mrb[0].mxu0
      %1600 = vmatprep.mubr.f32.mxu0 0.0
      %1601 = vmatmul.mubr.f32.gmra.mrb[0].mxu0 %v1529
      %v1602 = vpop.f32.mrb[0].mxu0
      %v1603 = vadd.f32 %v1523, %v1602
      %v1604 = vpop.f32.mrb[0].mxu0
      %1605 = vdwg.mxu0
      %v1606 = vmul.f32 %v1598, %v1598
      %v1607 = vmul.f32 %v1603, %v1603
      %v1608 = vmul.f32 %v1598, %v1606
      %v1609 = vmul.f32 %v1603, %v1607
      %v1610 = vmul.f32 %v1608, 0.044715
      %v1611 = vmul.f32 %v1609, 0.044715
      %v1612 = vadd.f32 %v1598, %v1610
      %v1613 = vadd.f32 %v1603, %v1611
      %v1614 = vmul.f32 %v1612, 0.7978846
      %v1615 = vmul.f32 %v1613, 0.7978846
      %v1616 = vtanh.pop %v1614
      %v1617 = vtanh.pop %v1615
      %v1618 = vadd.f32 %v1616, 1.0
      %v1619 = vadd.f32 %v1617, 1.0
      %v1620 = vmul.f32 %v1618, 0.5
      %v1621 = vmul.f32 %v1619, 0.5
      %v1622 = vmul.f32 %v1598, %v1620
      %v1623 = vmul.f32 %v1603, %v1621
      %v1624 = vld [vmem:[%s9] sm:$0xff]
      %v1625 = vld [vmem:[%s9 + $0x8] sm:$0xff]
      %v1626 = vld [vmem:[%s9 + $0x10] sm:$0xff]
      %v1627 = vld [vmem:[%s9 + $0x18] sm:$0xff]
      %v1628 = vld [vmem:[%s9 + $0x20] sm:$0xff]
      %v1629 = vld [vmem:[%s9 + $0x28] sm:$0xff]
      %v1630 = vld [vmem:[%s9 + $0x30] sm:$0xff]
      %v1631 = vld [vmem:[%s9 + $0x38] sm:$0xff]
      %v1632 = vld [vmem:[%s10] sm:$0x1]
      %v1634 = vlaneseq
      %v1635 = vshrl.u32 %v1634, 7
      %v1636 = vsub.s32 0, %v1635
      %v1637 = vrot.slane %v1632, %v1636
      %vm1639 = vcmask 523264
      %v1641 = vsel %vm1639, %v1622, 0
      %v1644 = vsel %vm1639, %v1623, 0
      %1646 = vmatprep.subr.mxu0 0.0
      %1647 = vmatpush1.msra.mxu0 %v1624
      %1648 = vmatprep.subr.mxu0 0.0
      %1649 = vmatpush1.msra.mxu0 %v1625
      %1650 = vmatprep.subr.mxu0 0.0
      %1651 = vmatpush1.msra.mxu0 %v1626
      %1652 = vmatprep.subr.mxu0 0.0
      %1653 = vmatpush1.msra.mxu0 %v1627
      %1654 = vmatprep.subr.mxu0 0.0
      %1655 = vmatpush1.msra.mxu0 %v1628
      %1656 = vmatprep.subr.mxu0 0.0
      %1657 = vmatpush1.msra.mxu0 %v1629
      %1658 = vmatprep.subr.mxu0 0.0
      %1659 = vmatpush1.msra.mxu0 %v1630
      %1660 = vmatprep.subr.mxu0 0.0
      %1661 = vmatpush1.msra.mxu0 %v1631
      %1662 = vmatprep.subr.mxu0 0.0
      %1663 = vmatpush1.msra.mxu0 0.0
      %1664 = vmatprep.subr.mxu0 0.0
      %1665 = vmatpush1.msra.mxu0 0.0
      %1666 = vmatprep.subr.mxu0 0.0
      %1667 = vmatpush1.msra.mxu0 0.0
      %1668 = vmatprep.subr.mxu0 0.0
      %1669 = vmatpush1.msra.mxu0 0.0
      %1670 = vmatprep.subr.mxu0 0.0
      %1671 = vmatpush1.msra.mxu0 0.0
      %1672 = vmatprep.subr.mxu0 0.0
      %1673 = vmatpush1.msra.mxu0 0.0
      %1674 = vmatprep.subr.mxu0 0.0
      %1675 = vmatpush1.msra.mxu0 0.0
      %1676 = vmatprep.subr.mxu0 0.0
      %1677 = vmatpush1.msra.mxu0 0.0
      %1678 = vmatprep.subr.mxu0 0.0
      %1679 = vmatpush1.msra.mxu0 0.0
      %1680 = vmatprep.subr.mxu0 0.0
      %1681 = vmatpush1.msra.mxu0 0.0
      %1682 = vmatprep.subr.mxu0 0.0
      %1683 = vmatpush1.msra.mxu0 0.0
      %1684 = vmatprep.subr.mxu0 0.0
      %1685 = vmatpush1.msra.mxu0 0.0
      %1686 = vmatprep.subr.mxu0 0.0
      %1687 = vmatpush1.msra.mxu0 0.0
      %1688 = vmatprep.subr.mxu0 0.0
      %1689 = vmatpush1.msra.mxu0 0.0
      %1690 = vmatprep.subr.mxu0 0.0
      %1691 = vmatpush1.msra.mxu0 0.0
      %1692 = vmatprep.subr.mxu0 0.0
      %1693 = vmatpush1.msra.mxu0 0.0
      %1694 = vmatprep.subr.mxu0 0.0
      %1695 = vmatpush1.msra.mxu0 0.0
      %1696 = vmatprep.subr.mxu0 0.0
      %1697 = vmatpush1.msra.mxu0 0.0
      %1698 = vmatprep.subr.mxu0 0.0
      %1699 = vmatpush1.msra.mxu0 0.0
      %1700 = vmatprep.subr.mxu0 0.0
      %1701 = vmatpush1.msra.mxu0 0.0
      %1702 = vmatprep.subr.mxu0 0.0
      %1703 = vmatpush1.msra.mxu0 0.0
      %1704 = vmatprep.subr.mxu0 0.0
      %1705 = vmatpush1.msra.mxu0 0.0
      %1706 = vmatprep.subr.mxu0 0.0
      %1707 = vmatpush1.msra.mxu0 0.0
      %1708 = vmatprep.subr.mxu0 0.0
      %1709 = vmatpush1.msra.mxu0 0.0
      %1710 = vmatprep.mubr.f32.mxu0 0.0
      %1711 = vmatmul.mubr.f32.gmra.mrb[0].mxu0 %v1641
      %v1712 = vpop.f32.mrb[0].mxu0
      %v1713 = vadd.f32 %v1637, %v1712
      %v1714 = vpop.f32.mrb[0].mxu0
      %1715 = vmatprep.mubr.f32.mxu0 0.0
      %1716 = vmatmul.mubr.f32.gmra.mrb[0].mxu0 %v1644
      %v1717 = vpop.f32.mrb[0].mxu0
      %v1718 = vadd.f32 %v1637, %v1717
      %v1719 = vpop.f32.mrb[0].mxu0
      %1720 = vdwg.mxu0
      %v1721 = vadd.f32 %v1512, %v1713
      %v1722 = vadd.f32 %v1513, %v1718
      %v1723 = vld [vmem:[%s11] sm:$0x1]
      %v1724 = vld [vmem:[%s12] sm:$0x1]
      %v1725 = vsel %vm454, %v1721, 0.0
      %1726 = vadd.xlane.f32.xlu0 %v1725
      %v1727 = vpop.xlane.xlu0 %1726
      %v1728 = vsel %vm454, %v1722, 0.0
      %1729 = vadd.xlane.f32.xlu0 %v1728
      %v1730 = vpop.xlane.xlu0 %1729
      %v1731 = vmul.f32 %v1727, %v1477
      %v1732 = vmul.f32 %v1730, %v1477
      %v1733 = vsub.f32 %v1721, %v1731
      %v1734 = vsub.f32 %v1722, %v1732
      %v1735 = vmul.f32 %v1733, %v1733
      %v1736 = vmul.f32 %v1734, %v1734
      %v1737 = vsel %vm454, %v1735, 0.0
      %1738 = vadd.xlane.f32.xlu0 %v1737
      %v1739 = vpop.xlane.xlu0 %1738
      %v1740 = vsel %vm454, %v1736, 0.0
      %1741 = vadd.xlane.f32.xlu0 %v1740
      %v1742 = vpop.xlane.xlu0 %1741
      %v1743 = vmul.f32 %v1739, %v1477
      %v1744 = vmul.f32 %v1742, %v1477
      %v1745 = vadd.f32 %v1743, 1e-05
      %v1746 = vadd.f32 %v1744, 1e-05
      %v1747 = vrsqrt.pop %v1745
      %v1748 = vrsqrt.pop %v1746
      %v1749 = vmul.f32 %v1733, %v1747
      %v1750 = vmul.f32 %v1734, %v1748
      %v1752 = vlaneseq
      %v1753 = vshrl.u32 %v1752, 7
      %v1754 = vsub.s32 0, %v1753
      %v1755 = vrot.slane %v1723, %v1754
      %v1757 = vmul.f32 %v1749, %v1755
      %v1758 = vmul.f32 %v1750, %v1755
      %v1760 = vlaneseq
      %v1761 = vshrl.u32 %v1760, 7
      %v1762 = vsub.s32 0, %v1761
      %v1763 = vrot.slane %v1724, %v1762
      %v1765 = vadd.f32 %v1757, %v1763
      %v1766 = vadd.f32 %v1758, %v1763
      %1767 = vst.msk [vmem:[%s440] sm:$0xff] %vm454, %v1765
      %1768 = vst.msk [vmem:[%s440 + $0x8] sm:$0xff] %vm454, %v1766
      %p1769 = scmp.lt.s32.totalorder %s24, 1
      %s1770 = scalar_select %p1769, %s24, 1
      %s1771 = smul.addr %s1770, 2
      %s1772 = smul.addr %s1771, 8
      %s1773 = scalar_lea.vmem %s13, %s1772
      // Predicated region
      $region73: #{model_forward.7} parent=71 // pred_check
        %p1774 = pneg %p320
      $region74: #{model_forward.7} parent=71 // pred_check_branch
        %1776 = sbr.rel (%p1774) target = $region76
      $region75: #{model_forward.7} parent=71 // pred_region
        _
      $region76: #{model_forward.7} parent=71 // pred_fallthru
        _
    $region72: #{model_forward.7} parent=5 // pred_fallthru
      _
    %p1777 = scmp.le.s32.totalorder 2, %s19
    // Predicated region
    $region77: #{model_forward.7} parent=5 // pred_check
      %p1778 = pneg %p1777
    $region78: #{model_forward.7} parent=5 // pred_check_branch
      %1780 = sbr.rel (%p1778) target = $region80
    $region79: #{model_forward.7} parent=5 // pred_region
      %s1781 = ssub.s32 %s19, 2
      // Predicated region
      $region81: #{model_forward.7} parent=79 // pred_check
        %p1782 = pneg %p326
      $region82: #{model_forward.7} parent=79 // pred_check_branch
        %1784 = sbr.rel (%p1782) target = $region84
      $region83: #{model_forward.7} parent=79 // pred_region
        %p1785 = scmp.lt.s32.totalorder %s25, 1
        %s1786 = scalar_select %p1785, %s25, 1
        %s1787 = smul.addr %s1786, 2
        %s1788 = smul.addr %s1787, 8
        %s1789 = scalar_lea.vmem %s13, %s1788
      $region84: #{model_forward.7} parent=79 // pred_fallthru
        _
    $region80: #{model_forward.7} parent=5 // pred_fallthru
      _
  $region6: #{model_forward.7} parent=0 // loop_footer
    %s23 = sadd.s32 1, %s19
  $region7: #{model_forward.7} parent=0 // loop_footer_branch
    %18 = sbr.rel target = $region3
  $region8: #{model_forward.7} parent=0 // loop_exit
    _

// kernel: model_forward.10
$region0: #{model_forward.10}
  #allocation0 [shape = 'u32[]', space=smem, size = 0x4, offset = 0x4, fixed_abs, tag = 'smem constant byte address 0x4 - core index']
  #allocation1 [shape = 'u32[144,128]{1,0:T(1,128)}', space=vmem, size = 0x12000, scoped, tag = 'internal scratch']
  %s0 = inlined_call_operand.vmem [shape: f32[2,16,32], index: 0, kind: input, shape index: {}]
  %s1 = inlined_call_operand.vmem [shape: f32[2,16,32], index: 1, kind: input, shape index: {}]
  %s2 = inlined_call_operand.vmem [shape: f32[32,96], index: 2, kind: input, shape index: {}]
  %s3 = inlined_call_operand.vmem [shape: f32[1,96], index: 3, kind: input, shape index: {}]
  %s4 = inlined_call_operand.vmem [shape: f32[32,32], index: 4, kind: input, shape index: {}]
  %s5 = inlined_call_operand.vmem [shape: f32[1,32], index: 5, kind: input, shape index: {}]
  %s6 = inlined_call_operand.vmem [shape: f32[1,32], index: 6, kind: input, shape index: {}]
  %s7 = inlined_call_operand.vmem [shape: f32[1,32], index: 7, kind: input, shape index: {}]
  %s8 = inlined_call_operand.vmem [shape: f32[32,32], index: 8, kind: input, shape index: {}]
  %s9 = inlined_call_operand.vmem [shape: f32[1,32], index: 9, kind: input, shape index: {}]
  %s10 = inlined_call_operand.vmem [shape: f32[32,64], index: 10, kind: input, shape index: {}]
  %s11 = inlined_call_operand.vmem [shape: f32[1,64], index: 11, kind: input, shape index: {}]
  %s12 = inlined_call_operand.vmem [shape: f32[32,32], index: 12, kind: input, shape index: {}]
  %s13 = inlined_call_operand.vmem [shape: f32[1,32], index: 13, kind: input, shape index: {}]
  %s14 = inlined_call_operand.vmem [shape: f32[1,32], index: 14, kind: input, shape index: {}]
  %s15 = inlined_call_operand.vmem [shape: f32[1,32], index: 15, kind: input, shape index: {}]
  %s16 = inlined_call_operand.vmem [shape: f32[32,64], index: 16, kind: input, shape index: {}]
  %s17 = inlined_call_operand.vmem [shape: f32[1,64], index: 17, kind: input, shape index: {}]
  %s18 = inlined_call_operand.vmem [shape: f32[64,32], index: 18, kind: input, shape index: {}]
  %s19 = inlined_call_operand.vmem [shape: f32[1,32], index: 19, kind: input, shape index: {}]
  %s20 = inlined_call_operand.vmem [shape: f32[1,32], index: 20, kind: input, shape index: {}]
  %s21 = inlined_call_operand.vmem [shape: f32[1,32], index: 21, kind: input, shape index: {}]
  %s22 = inlined_call_operand.vmem [shape: f32[2,16,32], index: 22, kind: output, shape index: {}]
  %s23 = sld [smem:[#allocation0]]
  $region121: #{model_forward.10} parent=0
    _
  %s25 = ssub.s32 1, %s23
  %s26 = scalar_select 0, %s25, %s23
  loop: start=0, step=1, limit=4
  $region2: #{model_forward.10} parent=0 // loop_pre_header
    _
  $region3: #{model_forward.10} parent=0 // loop_header
    %s28 = sphi 0, %s32
    %p29 = scmp.ge.s32.totalorder %s28, 4
    %s38 = sphi 0, %s40
    %s41 = sphi 0, %s38
    %s42 = sphi 0, %s41
    %s58 = sphi 0, %s42
    %s64 = sphi 0, %s66
    %s67 = sphi 0, %s64
    %s68 = sphi 0, %s67
    %s84 = sphi 0, %s68
    %s88 = sphi 0, %s88
    %s90 = sphi 0, %s88
    %s91 = sphi 0, %s90
    %s105 = sphi 0, %s91
    %s109 = sphi 0, %s109
    %s111 = sphi 0, %s109
    %s112 = sphi 0, %s111
    %s126 = sphi 0, %s112
    %s130 = sphi 0, %s130
    %s132 = sphi 0, %s130
    %s133 = sphi 0, %s132
    %s147 = sphi 0, %s133
    %s151 = sphi 0, %s151
    %s153 = sphi 0, %s151
    %s154 = sphi 0, %s153
    %s168 = sphi 0, %s154
    %s172 = sphi 0, %s172
    %s174 = sphi 0, %s172
    %s175 = sphi 0, %s174
    %s189 = sphi 0, %s175
    %s193 = sphi 0, %s193
    %s195 = sphi 0, %s193
    %s196 = sphi 0, %s195
    %s210 = sphi 0, %s196
    %s214 = sphi 0, %s214
    %s216 = sphi 0, %s214
    %s217 = sphi 0, %s216
    %s231 = sphi 0, %s217
    %s235 = sphi 0, %s235
    %s237 = sphi 0, %s235
    %s238 = sphi 0, %s237
    %s252 = sphi 0, %s238
    %s256 = sphi 0, %s256
    %s258 = sphi 0, %s256
    %s259 = sphi 0, %s258
    %s273 = sphi 0, %s259
    %s277 = sphi 0, %s277
    %s279 = sphi 0, %s277
    %s280 = sphi 0, %s279
    %s294 = sphi 0, %s280
    %s298 = sphi 0, %s298
    %s300 = sphi 0, %s298
    %s301 = sphi 0, %s300
    %s315 = sphi 0, %s301
    %s319 = sphi 0, %s319
    %s321 = sphi 0, %s319
    %s322 = sphi 0, %s321
    %s336 = sphi 0, %s322
    %s340 = sphi 0, %s340
    %s342 = sphi 0, %s340
    %s343 = sphi 0, %s342
    %s357 = sphi 0, %s343
    %s361 = sphi 0, %s361
    %s363 = sphi 0, %s361
    %s364 = sphi 0, %s363
    %s378 = sphi 0, %s364
    %s382 = sphi 0, %s382
    %s384 = sphi 0, %s382
    %s385 = sphi 0, %s384
    %s399 = sphi 0, %s385
    %s403 = sphi 0, %s403
    %s405 = sphi 0, %s403
    %s406 = sphi 0, %s405
    %s420 = sphi 0, %s406
    %s424 = sphi 0, %s424
    %s426 = sphi 0, %s424
    %s427 = sphi 0, %s426
    %s441 = sphi 0, %s427
    %s445 = sphi 0, %s445
    %s447 = sphi 0, %s445
    %s448 = sphi 0, %s447
    %s462 = sphi 0, %s448
    %s466 = sphi 0, %s466
    %s468 = sphi 0, %s466
    %s469 = sphi 0, %s468
    %s483 = sphi 0, %s469
    %s487 = sphi 0, %s487
    %s489 = sphi 0, %s487
    %s490 = sphi 0, %s489
    %s504 = sphi 0, %s490
    %s510 = sphi 0, %s512
    %s513 = sphi 0, %s510
    %s514 = sphi 0, %s513
    %s530 = sphi 0, %s514
  $region4: #{model_forward.10} parent=0 // loop_header_branch
    %31 = sbr.rel (%p29) target = $region8
  $region5: #{model_forward.10} parent=0 // loop_body
    %s33 = ssub.s32 %s28, 1
    %s34 = ssub.s32 %s28, 2
    %s35 = sadd.s32 %s28, 1
    %s36 = ssub.s32 %s28, %s35
    %p37 = scmp.eq.s32.totalorder %s36, 0
    %s39 = sadd.s32 %s38, 1
    %s40 = scalar_select %p37, %s38, %s39
    %p43 = pneg %p37
    %p44 = scmp.eq.s32.totalorder %s28, 1
    %p45 = por %p43, %p44
    %p46 = scmp.ne.s32.totalorder %s38, %s41
    %p47 = scmp.eq.s32.totalorder %s28, 0
    %p48 = por %p46, %p47
    %p49 = scmp.ne.s32.totalorder %s38, %s41
    %p50 = scmp.eq.s32.totalorder %s33, 1
    %p51 = por %p49, %p50
    %p52 = scmp.ne.s32.totalorder %s41, %s42
    %p53 = scmp.eq.s32.totalorder %s33, 0
    %p54 = por %p52, %p53
    %p55 = scmp.ne.s32.totalorder %s41, %s42
    %p56 = scmp.eq.s32.totalorder %s34, 1
    %p57 = por %p55, %p56
    %p59 = scmp.ne.s32.totalorder %s42, %s58
    %p60 = scmp.eq.s32.totalorder %s34, 0
    %p61 = por %p59, %p60
    %s62 = ssub.s32 %s28, %s35
    %p63 = scmp.eq.s32.totalorder %s62, 0
    %s65 = sadd.s32 %s64, 1
    %s66 = scalar_select %p63, %s64, %s65
    %p69 = pneg %p63
    %p70 = scmp.eq.s32.totalorder %s28, 1
    %p71 = por %p69, %p70
    %p72 = scmp.ne.s32.totalorder %s64, %s67
    %p73 = scmp.eq.s32.totalorder %s28, 0
    %p74 = por %p72, %p73
    %p75 = scmp.ne.s32.totalorder %s64, %s67
    %p76 = scmp.eq.s32.totalorder %s33, 1
    %p77 = por %p75, %p76
    %p78 = scmp.ne.s32.totalorder %s67, %s68
    %p79 = scmp.eq.s32.totalorder %s33, 0
    %p80 = por %p78, %p79
    %p81 = scmp.ne.s32.totalorder %s67, %s68
    %p82 = scmp.eq.s32.totalorder %s34, 1
    %p83 = por %p81, %p82
    %p85 = scmp.ne.s32.totalorder %s68, %s84
    %p86 = scmp.eq.s32.totalorder %s34, 0
    %p87 = por %p85, %p86
    %s89 = sadd.s32 %s88, 1
    %p92 = scmp.eq.s32.totalorder %s28, 1
    %p93 = scmp.ne.s32.totalorder %s88, %s90
    %p94 = scmp.eq.s32.totalorder %s28, 0
    %p95 = por %p93, %p94
    %p96 = scmp.ne.s32.totalorder %s88, %s90
    %p97 = scmp.eq.s32.totalorder %s33, 1
    %p98 = por %p96, %p97
    %p99 = scmp.ne.s32.totalorder %s90, %s91
    %p100 = scmp.eq.s32.totalorder %s33, 0
    %p101 = por %p99, %p100
    %p102 = scmp.ne.s32.totalorder %s90, %s91
    %p103 = scmp.eq.s32.totalorder %s34, 1
    %p104 = por %p102, %p103
    %p106 = scmp.ne.s32.totalorder %s91, %s105
    %p107 = scmp.eq.s32.totalorder %s34, 0
    %p108 = por %p106, %p107
    %s110 = sadd.s32 %s109, 1
    %p113 = scmp.eq.s32.totalorder %s28, 1
    %p114 = scmp.ne.s32.totalorder %s109, %s111
    %p115 = scmp.eq.s32.totalorder %s28, 0
    %p116 = por %p114, %p115
    %p117 = scmp.ne.s32.totalorder %s109, %s111
    %p118 = scmp.eq.s32.totalorder %s33, 1
    %p119 = por %p117, %p118
    %p120 = scmp.ne.s32.totalorder %s111, %s112
    %p121 = scmp.eq.s32.totalorder %s33, 0
    %p122 = por %p120, %p121
    %p123 = scmp.ne.s32.totalorder %s111, %s112
    %p124 = scmp.eq.s32.totalorder %s34, 1
    %p125 = por %p123, %p124
    %p127 = scmp.ne.s32.totalorder %s112, %s126
    %p128 = scmp.eq.s32.totalorder %s34, 0
    %p129 = por %p127, %p128
    %s131 = sadd.s32 %s130, 1
    %p134 = scmp.eq.s32.totalorder %s28, 1
    %p135 = scmp.ne.s32.totalorder %s130, %s132
    %p136 = scmp.eq.s32.totalorder %s28, 0
    %p137 = por %p135, %p136
    %p138 = scmp.ne.s32.totalorder %s130, %s132
    %p139 = scmp.eq.s32.totalorder %s33, 1
    %p140 = por %p138, %p139
    %p141 = scmp.ne.s32.totalorder %s132, %s133
    %p142 = scmp.eq.s32.totalorder %s33, 0
    %p143 = por %p141, %p142
    %p144 = scmp.ne.s32.totalorder %s132, %s133
    %p145 = scmp.eq.s32.totalorder %s34, 1
    %p146 = por %p144, %p145
    %p148 = scmp.ne.s32.totalorder %s133, %s147
    %p149 = scmp.eq.s32.totalorder %s34, 0
    %p150 = por %p148, %p149
    %s152 = sadd.s32 %s151, 1
    %p155 = scmp.eq.s32.totalorder %s28, 1
    %p156 = scmp.ne.s32.totalorder %s151, %s153
    %p157 = scmp.eq.s32.totalorder %s28, 0
    %p158 = por %p156, %p157
    %p159 = scmp.ne.s32.totalorder %s151, %s153
    %p160 = scmp.eq.s32.totalorder %s33, 1
    %p161 = por %p159, %p160
    %p162 = scmp.ne.s32.totalorder %s153, %s154
    %p163 = scmp.eq.s32.totalorder %s33, 0
    %p164 = por %p162, %p163
    %p165 = scmp.ne.s32.totalorder %s153, %s154
    %p166 = scmp.eq.s32.totalorder %s34, 1
    %p167 = por %p165, %p166
    %p169 = scmp.ne.s32.totalorder %s154, %s168
    %p170 = scmp.eq.s32.totalorder %s34, 0
    %p171 = por %p169, %p170
    %s173 = sadd.s32 %s172, 1
    %p176 = scmp.eq.s32.totalorder %s28, 1
    %p177 = scmp.ne.s32.totalorder %s172, %s174
    %p178 = scmp.eq.s32.totalorder %s28, 0
    %p179 = por %p177, %p178
    %p180 = scmp.ne.s32.totalorder %s172, %s174
    %p181 = scmp.eq.s32.totalorder %s33, 1
    %p182 = por %p180, %p181
    %p183 = scmp.ne.s32.totalorder %s174, %s175
    %p184 = scmp.eq.s32.totalorder %s33, 0
    %p185 = por %p183, %p184
    %p186 = scmp.ne.s32.totalorder %s174, %s175
    %p187 = scmp.eq.s32.totalorder %s34, 1
    %p188 = por %p186, %p187
    %p190 = scmp.ne.s32.totalorder %s175, %s189
    %p191 = scmp.eq.s32.totalorder %s34, 0
    %p192 = por %p190, %p191
    %s194 = sadd.s32 %s193, 1
    %p197 = scmp.eq.s32.totalorder %s28, 1
    %p198 = scmp.ne.s32.totalorder %s193, %s195
    %p199 = scmp.eq.s32.totalorder %s28, 0
    %p200 = por %p198, %p199
    %p201 = scmp.ne.s32.totalorder %s193, %s195
    %p202 = scmp.eq.s32.totalorder %s33, 1
    %p203 = por %p201, %p202
    %p204 = scmp.ne.s32.totalorder %s195, %s196
    %p205 = scmp.eq.s32.totalorder %s33, 0
    %p206 = por %p204, %p205
    %p207 = scmp.ne.s32.totalorder %s195, %s196
    %p208 = scmp.eq.s32.totalorder %s34, 1
    %p209 = por %p207, %p208
    %p211 = scmp.ne.s32.totalorder %s196, %s210
    %p212 = scmp.eq.s32.totalorder %s34, 0
    %p213 = por %p211, %p212
    %s215 = sadd.s32 %s214, 1
    %p218 = scmp.eq.s32.totalorder %s28, 1
    %p219 = scmp.ne.s32.totalorder %s214, %s216
    %p220 = scmp.eq.s32.totalorder %s28, 0
    %p221 = por %p219, %p220
    %p222 = scmp.ne.s32.totalorder %s214, %s216
    %p223 = scmp.eq.s32.totalorder %s33, 1
    %p224 = por %p222, %p223
    %p225 = scmp.ne.s32.totalorder %s216, %s217
    %p226 = scmp.eq.s32.totalorder %s33, 0
    %p227 = por %p225, %p226
    %p228 = scmp.ne.s32.totalorder %s216, %s217
    %p229 = scmp.eq.s32.totalorder %s34, 1
    %p230 = por %p228, %p229
    %p232 = scmp.ne.s32.totalorder %s217, %s231
    %p233 = scmp.eq.s32.totalorder %s34, 0
    %p234 = por %p232, %p233
    %s236 = sadd.s32 %s235, 1
    %p239 = scmp.eq.s32.totalorder %s28, 1
    %p240 = scmp.ne.s32.totalorder %s235, %s237
    %p241 = scmp.eq.s32.totalorder %s28, 0
    %p242 = por %p240, %p241
    %p243 = scmp.ne.s32.totalorder %s235, %s237
    %p244 = scmp.eq.s32.totalorder %s33, 1
    %p245 = por %p243, %p244
    %p246 = scmp.ne.s32.totalorder %s237, %s238
    %p247 = scmp.eq.s32.totalorder %s33, 0
    %p248 = por %p246, %p247
    %p249 = scmp.ne.s32.totalorder %s237, %s238
    %p250 = scmp.eq.s32.totalorder %s34, 1
    %p251 = por %p249, %p250
    %p253 = scmp.ne.s32.totalorder %s238, %s252
    %p254 = scmp.eq.s32.totalorder %s34, 0
    %p255 = por %p253, %p254
    %s257 = sadd.s32 %s256, 1
    %p260 = scmp.eq.s32.totalorder %s28, 1
    %p261 = scmp.ne.s32.totalorder %s256, %s258
    %p262 = scmp.eq.s32.totalorder %s28, 0
    %p263 = por %p261, %p262
    %p264 = scmp.ne.s32.totalorder %s256, %s258
    %p265 = scmp.eq.s32.totalorder %s33, 1
    %p266 = por %p264, %p265
    %p267 = scmp.ne.s32.totalorder %s258, %s259
    %p268 = scmp.eq.s32.totalorder %s33, 0
    %p269 = por %p267, %p268
    %p270 = scmp.ne.s32.totalorder %s258, %s259
    %p271 = scmp.eq.s32.totalorder %s34, 1
    %p272 = por %p270, %p271
    %p274 = scmp.ne.s32.totalorder %s259, %s273
    %p275 = scmp.eq.s32.totalorder %s34, 0
    %p276 = por %p274, %p275
    %s278 = sadd.s32 %s277, 1
    %p281 = scmp.eq.s32.totalorder %s28, 1
    %p282 = scmp.ne.s32.totalorder %s277, %s279
    %p283 = scmp.eq.s32.totalorder %s28, 0
    %p284 = por %p282, %p283
    %p285 = scmp.ne.s32.totalorder %s277, %s279
    %p286 = scmp.eq.s32.totalorder %s33, 1
    %p287 = por %p285, %p286
    %p288 = scmp.ne.s32.totalorder %s279, %s280
    %p289 = scmp.eq.s32.totalorder %s33, 0
    %p290 = por %p288, %p289
    %p291 = scmp.ne.s32.totalorder %s279, %s280
    %p292 = scmp.eq.s32.totalorder %s34, 1
    %p293 = por %p291, %p292
    %p295 = scmp.ne.s32.totalorder %s280, %s294
    %p296 = scmp.eq.s32.totalorder %s34, 0
    %p297 = por %p295, %p296
    %s299 = sadd.s32 %s298, 1
    %p302 = scmp.eq.s32.totalorder %s28, 1
    %p303 = scmp.ne.s32.totalorder %s298, %s300
    %p304 = scmp.eq.s32.totalorder %s28, 0
    %p305 = por %p303, %p304
    %p306 = scmp.ne.s32.totalorder %s298, %s300
    %p307 = scmp.eq.s32.totalorder %s33, 1
    %p308 = por %p306, %p307
    %p309 = scmp.ne.s32.totalorder %s300, %s301
    %p310 = scmp.eq.s32.totalorder %s33, 0
    %p311 = por %p309, %p310
    %p312 = scmp.ne.s32.totalorder %s300, %s301
    %p313 = scmp.eq.s32.totalorder %s34, 1
    %p314 = por %p312, %p313
    %p316 = scmp.ne.s32.totalorder %s301, %s315
    %p317 = scmp.eq.s32.totalorder %s34, 0
    %p318 = por %p316, %p317
    %s320 = sadd.s32 %s319, 1
    %p323 = scmp.eq.s32.totalorder %s28, 1
    %p324 = scmp.ne.s32.totalorder %s319, %s321
    %p325 = scmp.eq.s32.totalorder %s28, 0
    %p326 = por %p324, %p325
    %p327 = scmp.ne.s32.totalorder %s319, %s321
    %p328 = scmp.eq.s32.totalorder %s33, 1
    %p329 = por %p327, %p328
    %p330 = scmp.ne.s32.totalorder %s321, %s322
    %p331 = scmp.eq.s32.totalorder %s33, 0
    %p332 = por %p330, %p331
    %p333 = scmp.ne.s32.totalorder %s321, %s322
    %p334 = scmp.eq.s32.totalorder %s34, 1
    %p335 = por %p333, %p334
    %p337 = scmp.ne.s32.totalorder %s322, %s336
    %p338 = scmp.eq.s32.totalorder %s34, 0
    %p339 = por %p337, %p338
    %s341 = sadd.s32 %s340, 1
    %p344 = scmp.eq.s32.totalorder %s28, 1
    %p345 = scmp.ne.s32.totalorder %s340, %s342
    %p346 = scmp.eq.s32.totalorder %s28, 0
    %p347 = por %p345, %p346
    %p348 = scmp.ne.s32.totalorder %s340, %s342
    %p349 = scmp.eq.s32.totalorder %s33, 1
    %p350 = por %p348, %p349
    %p351 = scmp.ne.s32.totalorder %s342, %s343
    %p352 = scmp.eq.s32.totalorder %s33, 0
    %p353 = por %p351, %p352
    %p354 = scmp.ne.s32.totalorder %s342, %s343
    %p355 = scmp.eq.s32.totalorder %s34, 1
    %p356 = por %p354, %p355
    %p358 = scmp.ne.s32.totalorder %s343, %s357
    %p359 = scmp.eq.s32.totalorder %s34, 0
    %p360 = por %p358, %p359
    %s362 = sadd.s32 %s361, 1
    %p365 = scmp.eq.s32.totalorder %s28, 1
    %p366 = scmp.ne.s32.totalorder %s361, %s363
    %p367 = scmp.eq.s32.totalorder %s28, 0
    %p368 = por %p366, %p367
    %p369 = scmp.ne.s32.totalorder %s361, %s363
    %p370 = scmp.eq.s32.totalorder %s33, 1
    %p371 = por %p369, %p370
    %p372 = scmp.ne.s32.totalorder %s363, %s364
    %p373 = scmp.eq.s32.totalorder %s33, 0
    %p374 = por %p372, %p373
    %p375 = scmp.ne.s32.totalorder %s363, %s364
    %p376 = scmp.eq.s32.totalorder %s34, 1
    %p377 = por %p375, %p376
    %p379 = scmp.ne.s32.totalorder %s364, %s378
    %p380 = scmp.eq.s32.totalorder %s34, 0
    %p381 = por %p379, %p380
    %s383 = sadd.s32 %s382, 1
    %p386 = scmp.eq.s32.totalorder %s28, 1
    %p387 = scmp.ne.s32.totalorder %s382, %s384
    %p388 = scmp.eq.s32.totalorder %s28, 0
    %p389 = por %p387, %p388
    %p390 = scmp.ne.s32.totalorder %s382, %s384
    %p391 = scmp.eq.s32.totalorder %s33, 1
    %p392 = por %p390, %p391
    %p393 = scmp.ne.s32.totalorder %s384, %s385
    %p394 = scmp.eq.s32.totalorder %s33, 0
    %p395 = por %p393, %p394
    %p396 = scmp.ne.s32.totalorder %s384, %s385
    %p397 = scmp.eq.s32.totalorder %s34, 1
    %p398 = por %p396, %p397
    %p400 = scmp.ne.s32.totalorder %s385, %s399
    %p401 = scmp.eq.s32.totalorder %s34, 0
    %p402 = por %p400, %p401
    %s404 = sadd.s32 %s403, 1
    %p407 = scmp.eq.s32.totalorder %s28, 1
    %p408 = scmp.ne.s32.totalorder %s403, %s405
    %p409 = scmp.eq.s32.totalorder %s28, 0
    %p410 = por %p408, %p409
    %p411 = scmp.ne.s32.totalorder %s403, %s405
    %p412 = scmp.eq.s32.totalorder %s33, 1
    %p413 = por %p411, %p412
    %p414 = scmp.ne.s32.totalorder %s405, %s406
    %p415 = scmp.eq.s32.totalorder %s33, 0
    %p416 = por %p414, %p415
    %p417 = scmp.ne.s32.totalorder %s405, %s406
    %p418 = scmp.eq.s32.totalorder %s34, 1
    %p419 = por %p417, %p418
    %p421 = scmp.ne.s32.totalorder %s406, %s420
    %p422 = scmp.eq.s32.totalorder %s34, 0
    %p423 = por %p421, %p422
    %s425 = sadd.s32 %s424, 1
    %p428 = scmp.eq.s32.totalorder %s28, 1
    %p429 = scmp.ne.s32.totalorder %s424, %s426
    %p430 = scmp.eq.s32.totalorder %s28, 0
    %p431 = por %p429, %p430
    %p432 = scmp.ne.s32.totalorder %s424, %s426
    %p433 = scmp.eq.s32.totalorder %s33, 1
    %p434 = por %p432, %p433
    %p435 = scmp.ne.s32.totalorder %s426, %s427
    %p436 = scmp.eq.s32.totalorder %s33, 0
    %p437 = por %p435, %p436
    %p438 = scmp.ne.s32.totalorder %s426, %s427
    %p439 = scmp.eq.s32.totalorder %s34, 1
    %p440 = por %p438, %p439
    %p442 = scmp.ne.s32.totalorder %s427, %s441
    %p443 = scmp.eq.s32.totalorder %s34, 0
    %p444 = por %p442, %p443
    %s446 = sadd.s32 %s445, 1
    %p449 = scmp.eq.s32.totalorder %s28, 1
    %p450 = scmp.ne.s32.totalorder %s445, %s447
    %p451 = scmp.eq.s32.totalorder %s28, 0
    %p452 = por %p450, %p451
    %p453 = scmp.ne.s32.totalorder %s445, %s447
    %p454 = scmp.eq.s32.totalorder %s33, 1
    %p455 = por %p453, %p454
    %p456 = scmp.ne.s32.totalorder %s447, %s448
    %p457 = scmp.eq.s32.totalorder %s33, 0
    %p458 = por %p456, %p457
    %p459 = scmp.ne.s32.totalorder %s447, %s448
    %p460 = scmp.eq.s32.totalorder %s34, 1
    %p461 = por %p459, %p460
    %p463 = scmp.ne.s32.totalorder %s448, %s462
    %p464 = scmp.eq.s32.totalorder %s34, 0
    %p465 = por %p463, %p464
    %s467 = sadd.s32 %s466, 1
    %p470 = scmp.eq.s32.totalorder %s28, 1
    %p471 = scmp.ne.s32.totalorder %s466, %s468
    %p472 = scmp.eq.s32.totalorder %s28, 0
    %p473 = por %p471, %p472
    %p474 = scmp.ne.s32.totalorder %s466, %s468
    %p475 = scmp.eq.s32.totalorder %s33, 1
    %p476 = por %p474, %p475
    %p477 = scmp.ne.s32.totalorder %s468, %s469
    %p478 = scmp.eq.s32.totalorder %s33, 0
    %p479 = por %p477, %p478
    %p480 = scmp.ne.s32.totalorder %s468, %s469
    %p481 = scmp.eq.s32.totalorder %s34, 1
    %p482 = por %p480, %p481
    %p484 = scmp.ne.s32.totalorder %s469, %s483
    %p485 = scmp.eq.s32.totalorder %s34, 0
    %p486 = por %p484, %p485
    %s488 = sadd.s32 %s487, 1
    %p491 = scmp.eq.s32.totalorder %s28, 1
    %p492 = scmp.ne.s32.totalorder %s487, %s489
    %p493 = scmp.eq.s32.totalorder %s28, 0
    %p494 = por %p492, %p493
    %p495 = scmp.ne.s32.totalorder %s487, %s489
    %p496 = scmp.eq.s32.totalorder %s33, 1
    %p497 = por %p495, %p496
    %p498 = scmp.ne.s32.totalorder %s489, %s490
    %p499 = scmp.eq.s32.totalorder %s33, 0
    %p500 = por %p498, %p499
    %p501 = scmp.ne.s32.totalorder %s489, %s490
    %p502 = scmp.eq.s32.totalorder %s34, 1
    %p503 = por %p501, %p502
    %p505 = scmp.ne.s32.totalorder %s490, %s504
    %p506 = scmp.eq.s32.totalorder %s34, 0
    %p507 = por %p505, %p506
    %s508 = ssub.s32 %s28, %s35
    %p509 = scmp.eq.s32.totalorder %s508, 0
    %s511 = sadd.s32 %s510, 1
    %s512 = scalar_select %p509, %s510, %s511
    %p515 = pneg %p509
    %p516 = scmp.eq.s32.totalorder %s28, 1
    %p517 = por %p515, %p516
    %p518 = scmp.ne.s32.totalorder %s510, %s513
    %p519 = scmp.eq.s32.totalorder %s28, 0
    %p520 = por %p518, %p519
    %p521 = scmp.ne.s32.totalorder %s510, %s513
    %p522 = scmp.eq.s32.totalorder %s33, 1
    %p523 = por %p521, %p522
    %p524 = scmp.ne.s32.totalorder %s513, %s514
    %p525 = scmp.eq.s32.totalorder %s33, 0
    %p526 = por %p524, %p525
    %p527 = scmp.ne.s32.totalorder %s513, %s514
    %p528 = scmp.eq.s32.totalorder %s34, 1
    %p529 = por %p527, %p528
    %p531 = scmp.ne.s32.totalorder %s514, %s530
    %p532 = scmp.eq.s32.totalorder %s34, 0
    %p533 = por %p531, %p532
    %p534 = scmp.le.s32.totalorder 1, %s28
    %p535 = scmp.lt.s32.totalorder %s28, 3
    %p536 = pnand %p534, %p535
    %p537 = pneg %p536
    // Predicated region
    $region9: #{model_forward.10} parent=5 // pred_check
      _
    $region10: #{model_forward.10} parent=5 // pred_check_branch
      %539 = sbr.rel (%p536) target = $region12
    $region11: #{model_forward.10} parent=5 // pred_region
      %s540 = ssub.s32 %s28, 1
      // Predicated region
      $region13: #{model_forward.10} parent=11 // pred_check
        %p541 = pneg %p101
      $region14: #{model_forward.10} parent=11 // pred_check_branch
        %543 = sbr.rel (%p541) target = $region16
      $region15: #{model_forward.10} parent=11 // pred_region
        _
      $region16: #{model_forward.10} parent=11 // pred_fallthru
        _
      // Predicated region
      $region17: #{model_forward.10} parent=11 // pred_check
        %p544 = pneg %p122
      $region18: #{model_forward.10} parent=11 // pred_check_branch
        %546 = sbr.rel (%p544) target = $region20
      $region19: #{model_forward.10} parent=11 // pred_region
        _
      $region20: #{model_forward.10} parent=11 // pred_fallthru
        _
      // Predicated region
      $region21: #{model_forward.10} parent=11 // pred_check
        %p547 = pneg %p143
      $region22: #{model_forward.10} parent=11 // pred_check_branch
        %549 = sbr.rel (%p547) target = $region24
      $region23: #{model_forward.10} parent=11 // pred_region
        _
      $region24: #{model_forward.10} parent=11 // pred_fallthru
        _
      // Predicated region
      $region25: #{model_forward.10} parent=11 // pred_check
        %p550 = pneg %p164
      $region26: #{model_forward.10} parent=11 // pred_check_branch
        %552 = sbr.rel (%p550) target = $region28
      $region27: #{model_forward.10} parent=11 // pred_region
        _
      $region28: #{model_forward.10} parent=11 // pred_fallthru
        _
      // Predicated region
      $region29: #{model_forward.10} parent=11 // pred_check
        %p553 = pneg %p185
      $region30: #{model_forward.10} parent=11 // pred_check_branch
        %555 = sbr.rel (%p553) target = $region32
      $region31: #{model_forward.10} parent=11 // pred_region
        _
      $region32: #{model_forward.10} parent=11 // pred_fallthru
        _
      // Predicated region
      $region33: #{model_forward.10} parent=11 // pred_check
        %p556 = pneg %p206
      $region34: #{model_forward.10} parent=11 // pred_check_branch
        %558 = sbr.rel (%p556) target = $region36
      $region35: #{model_forward.10} parent=11 // pred_region
        _
      $region36: #{model_forward.10} parent=11 // pred_fallthru
        _
      // Predicated region
      $region37: #{model_forward.10} parent=11 // pred_check
        %p559 = pneg %p227
      $region38: #{model_forward.10} parent=11 // pred_check_branch
        %561 = sbr.rel (%p559) target = $region40
      $region39: #{model_forward.10} parent=11 // pred_region
        _
      $region40: #{model_forward.10} parent=11 // pred_fallthru
        _
      // Predicated region
      $region41: #{model_forward.10} parent=11 // pred_check
        %p562 = pneg %p248
      $region42: #{model_forward.10} parent=11 // pred_check_branch
        %564 = sbr.rel (%p562) target = $region44
      $region43: #{model_forward.10} parent=11 // pred_region
        _
      $region44: #{model_forward.10} parent=11 // pred_fallthru
        _
      // Predicated region
      $region45: #{model_forward.10} parent=11 // pred_check
        %p565 = pneg %p269
      $region46: #{model_forward.10} parent=11 // pred_check_branch
        %567 = sbr.rel (%p565) target = $region48
      $region47: #{model_forward.10} parent=11 // pred_region
        _
      $region48: #{model_forward.10} parent=11 // pred_fallthru
        _
      // Predicated region
      $region49: #{model_forward.10} parent=11 // pred_check
        %p568 = pneg %p290
      $region50: #{model_forward.10} parent=11 // pred_check_branch
        %570 = sbr.rel (%p568) target = $region52
      $region51: #{model_forward.10} parent=11 // pred_region
        _
      $region52: #{model_forward.10} parent=11 // pred_fallthru
        _
      // Predicated region
      $region53: #{model_forward.10} parent=11 // pred_check
        %p571 = pneg %p311
      $region54: #{model_forward.10} parent=11 // pred_check_branch
        %573 = sbr.rel (%p571) target = $region56
      $region55: #{model_forward.10} parent=11 // pred_region
        _
      $region56: #{model_forward.10} parent=11 // pred_fallthru
        _
      // Predicated region
      $region57: #{model_forward.10} parent=11 // pred_check
        %p574 = pneg %p332
      $region58: #{model_forward.10} parent=11 // pred_check_branch
        %576 = sbr.rel (%p574) target = $region60
      $region59: #{model_forward.10} parent=11 // pred_region
        _
      $region60: #{model_forward.10} parent=11 // pred_fallthru
        _
      // Predicated region
      $region61: #{model_forward.10} parent=11 // pred_check
        %p577 = pneg %p353
      $region62: #{model_forward.10} parent=11 // pred_check_branch
        %579 = sbr.rel (%p577) target = $region64
      $region63: #{model_forward.10} parent=11 // pred_region
        _
      $region64: #{model_forward.10} parent=11 // pred_fallthru
        _
      // Predicated region
      $region65: #{model_forward.10} parent=11 // pred_check
        %p580 = pneg %p374
      $region66: #{model_forward.10} parent=11 // pred_check_branch
        %582 = sbr.rel (%p580) target = $region68
      $region67: #{model_forward.10} parent=11 // pred_region
        _
      $region68: #{model_forward.10} parent=11 // pred_fallthru
        _
      // Predicated region
      $region69: #{model_forward.10} parent=11 // pred_check
        %p583 = pneg %p395
      $region70: #{model_forward.10} parent=11 // pred_check_branch
        %585 = sbr.rel (%p583) target = $region72
      $region71: #{model_forward.10} parent=11 // pred_region
        _
      $region72: #{model_forward.10} parent=11 // pred_fallthru
        _
      // Predicated region
      $region73: #{model_forward.10} parent=11 // pred_check
        %p586 = pneg %p416
      $region74: #{model_forward.10} parent=11 // pred_check_branch
        %588 = sbr.rel (%p586) target = $region76
      $region75: #{model_forward.10} parent=11 // pred_region
        _
      $region76: #{model_forward.10} parent=11 // pred_fallthru
        _
      // Predicated region
      $region77: #{model_forward.10} parent=11 // pred_check
        %p589 = pneg %p437
      $region78: #{model_forward.10} parent=11 // pred_check_branch
        %591 = sbr.rel (%p589) target = $region80
      $region79: #{model_forward.10} parent=11 // pred_region
        _
      $region80: #{model_forward.10} parent=11 // pred_fallthru
        _
      // Predicated region
      $region81: #{model_forward.10} parent=11 // pred_check
        %p592 = pneg %p458
      $region82: #{model_forward.10} parent=11 // pred_check_branch
        %594 = sbr.rel (%p592) target = $region84
      $region83: #{model_forward.10} parent=11 // pred_region
        _
      $region84: #{model_forward.10} parent=11 // pred_fallthru
        _
      // Predicated region
      $region85: #{model_forward.10} parent=11 // pred_check
        %p595 = pneg %p479
      $region86: #{model_forward.10} parent=11 // pred_check_branch
        %597 = sbr.rel (%p595) target = $region88
      $region87: #{model_forward.10} parent=11 // pred_region
        _
      $region88: #{model_forward.10} parent=11 // pred_fallthru
        _
      // Predicated region
      $region89: #{model_forward.10} parent=11 // pred_check
        %p598 = pneg %p500
      $region90: #{model_forward.10} parent=11 // pred_check_branch
        %600 = sbr.rel (%p598) target = $region92
      $region91: #{model_forward.10} parent=11 // pred_region
        _
      $region92: #{model_forward.10} parent=11 // pred_fallthru
        _
    $region12: #{model_forward.10} parent=5 // pred_fallthru
      _
    %p601 = scmp.lt.s32.totalorder %s28, 2
    // Predicated region
    $region93: #{model_forward.10} parent=5 // pred_check
      %p602 = pneg %p601
    $region94: #{model_forward.10} parent=5 // pred_check_branch
      %604 = sbr.rel (%p602) target = $region96
    $region95: #{model_forward.10} parent=5 // pred_region
      // Predicated region
      $region97: #{model_forward.10} parent=95 // pred_check
        %p605 = pneg %p48
      $region98: #{model_forward.10} parent=95 // pred_check_branch
        %607 = sbr.rel (%p605) target = $region100
      $region99: #{model_forward.10} parent=95 // pred_region
        %p608 = scmp.lt.s32.totalorder %s28, 1
        %s609 = scalar_select %p608, %s28, 1
        %s610 = smul.addr %s609, 2
        %s611 = smul.addr %s610, 8
        %s612 = scalar_lea.vmem %s0, %s611
      $region100: #{model_forward.10} parent=95 // pred_fallthru
        _
      // Predicated region
      $region101: #{model_forward.10} parent=95 // pred_check
        %p613 = pneg %p74
      $region102: #{model_forward.10} parent=95 // pred_check_branch
        %615 = sbr.rel (%p613) target = $region104
      $region103: #{model_forward.10} parent=95 // pred_region
        %p616 = scmp.lt.s32.totalorder %s28, 1
        %s617 = scalar_select %p616, %s28, 1
        %s618 = smul.addr %s617, 2
        %s619 = smul.addr %s618, 8
        %s620 = scalar_lea.vmem %s1, %s619
      $region104: #{model_forward.10} parent=95 // pred_fallthru
        _
    $region96: #{model_forward.10} parent=5 // pred_fallthru
      _
    %p621 = scmp.le.s32.totalorder 1, %s28
    %p622 = scmp.lt.s32.totalorder %s28, 3
    %p623 = pnand %p621, %p622
    %p624 = pneg %p623
    // Predicated region
    $region105: #{model_forward.10} parent=5 // pred_check
      _
    $region106: #{model_forward.10} parent=5 // pred_check_branch
      %626 = sbr.rel (%p623) target = $region108
    $region107: #{model_forward.10} parent=5 // pred_region
      %s627 = ssub.s32 %s28, 1
      %p628 = scmp.lt.s32.totalorder %s33, 1
      %s629 = scalar_select %p628, %s33, 1
      %s630 = smul.addr %s629, 2
      %s631 = smul.addr %s630, 8
      %s632 = scalar_lea.vmem %s0, %s631
      %p633 = pneg %p54
      %p634 = pneg %p51
      %p635 = scmp.lt.s32.totalorder %s33, 1
      %s636 = scalar_select %p635, %s33, 1
      %s637 = smul.addr %s636, 2
      %s638 = smul.addr %s637, 8
      %s639 = scalar_lea.vmem %s1, %s638
      %p640 = pneg %p80
      %p641 = pneg %p77
      %p642 = pneg %p101
      %p643 = pneg %p98
      %p644 = pneg %p122
      %p645 = pneg %p119
      %p646 = pneg %p143
      %p647 = pneg %p140
      %p648 = pneg %p164
      %p649 = pneg %p161
      %p650 = pneg %p185
      %p651 = pneg %p182
      %p652 = pneg %p206
      %p653 = pneg %p203
      %p654 = pneg %p227
      %p655 = pneg %p224
      %p656 = pneg %p248
      %p657 = pneg %p245
      %p658 = pneg %p269
      %p659 = pneg %p266
      %p660 = pneg %p290
      %p661 = pneg %p287
      %p662 = pneg %p311
      %p663 = pneg %p308
      %p664 = pneg %p332
      %p665 = pneg %p329
      %p666 = pneg %p353
      %p667 = pneg %p350
      %p668 = pneg %p374
      %p669 = pneg %p371
      %p670 = pneg %p395
      %p671 = pneg %p392
      %p672 = pneg %p416
      %p673 = pneg %p413
      %p674 = pneg %p437
      %p675 = pneg %p434
      %p676 = pneg %p458
      %p677 = pneg %p455
      %p678 = pneg %p479
      %p679 = pneg %p476
      %p680 = pneg %p500
      %p681 = pneg %p497
      %p682 = pneg %p526
      %p683 = pneg %p523
      %p684 = scmp.lt.s32.totalorder %s33, 1
      %s685 = scalar_select %p684, %s33, 1
      %s686 = smul.addr %s685, 2
      %s687 = smul.addr %s686, 8
      %s688 = scalar_lea.vmem %s22, %s687
      %p689 = scmp.lt.s32.totalorder %s33, 1
      %s690 = scalar_select %p689, %s33, 1
      %s691 = smul.addr %s690, 2
      %s692 = smul.addr %s691, 8
      %s693 = scalar_lea.vmem %s0, %s692
      %p694 = scmp.lt.s32.totalorder %s33, 1
      %s695 = scalar_select %p694, %s33, 1
      %s696 = smul.addr %s695, 2
      %s697 = smul.addr %s696, 8
      %s698 = scalar_lea.vmem %s1, %s697
      %p699 = scmp.lt.s32.totalorder %s33, 1
      %s700 = scalar_select %p699, %s33, 1
      %s701 = smul.addr %s700, 2
      %s702 = smul.addr %s701, 8
      %s703 = scalar_lea.vmem %s22, %s702
      %v704 = vld [vmem:[%s693] sm:$0xff]
      %v705 = vld [vmem:[%s693 + $0x8] sm:$0xff]
      %v706 = vld [vmem:[%s698] sm:$0xff]
      %v707 = vld [vmem:[%s698 + $0x8] sm:$0xff]
      %v708 = vld [vmem:[%s2] sm:$0xff]
      %v709 = vld [vmem:[%s2 + $0x8] sm:$0xff]
      %v710 = vld [vmem:[%s2 + $0x10] sm:$0xff]
      %v711 = vld [vmem:[%s2 + $0x18] sm:$0xff]
      %v712 = vld [vmem:[%s3] sm:$0x1]
      %v714 = vlaneseq
      %v715 = vshrl.u32 %v714, 7
      %v716 = vsub.s32 0, %v715
      %v717 = vrot.slane %v712, %v716
      %vm719 = vcmask 261120
      %v721 = vsel %vm719, %v704, 0
      %v724 = vsel %vm719, %v705, 0
      %726 = vmatprep.subr.mxu0 0.0
      %727 = vmatpush1.msra.mxu0 %v708
      %728 = vmatprep.subr.mxu0 0.0
      %729 = vmatpush1.msra.mxu0 %v709
      %730 = vmatprep.subr.mxu0 0.0
      %731 = vmatpush1.msra.mxu0 %v710
      %732 = vmatprep.subr.mxu0 0.0
      %733 = vmatpush1.msra.mxu0 %v711
      %734 = vmatprep.subr.mxu0 0.0
      %735 = vmatpush1.msra.mxu0 0.0
      %736 = vmatprep.subr.mxu0 0.0
      %737 = vmatpush1.msra.mxu0 0.0
      %738 = vmatprep.subr.mxu0 0.0
      %739 = vmatpush1.msra.mxu0 0.0
      %740 = vmatprep.subr.mxu0 0.0
      %741 = vmatpush1.msra.mxu0 0.0
      %742 = vmatprep.subr.mxu0 0.0
      %743 = vmatpush1.msra.mxu0 0.0
      %744 = vmatprep.subr.mxu0 0.0
      %745 = vmatpush1.msra.mxu0 0.0
      %746 = vmatprep.subr.mxu0 0.0
      %747 = vmatpush1.msra.mxu0 0.0
      %748 = vmatprep.subr.mxu0 0.0
      %749 = vmatpush1.msra.mxu0 0.0
      %750 = vmatprep.subr.mxu0 0.0
      %751 = vmatpush1.msra.mxu0 0.0
      %752 = vmatprep.subr.mxu0 0.0
      %753 = vmatpush1.msra.mxu0 0.0
      %754 = vmatprep.subr.mxu0 0.0
      %755 = vmatpush1.msra.mxu0 0.0
      %756 = vmatprep.subr.mxu0 0.0
      %757 = vmatpush1.msra.mxu0 0.0
      %758 = vmatprep.subr.mxu0 0.0
      %759 = vmatpush1.msra.mxu0 0.0
      %760 = vmatprep.subr.mxu0 0.0
      %761 = vmatpush1.msra.mxu0 0.0
      %762 = vmatprep.subr.mxu0 0.0
      %763 = vmatpush1.msra.mxu0 0.0
      %764 = vmatprep.subr.mxu0 0.0
      %765 = vmatpush1.msra.mxu0 0.0
      %766 = vmatprep.subr.mxu0 0.0
      %767 = vmatpush1.msra.mxu0 0.0
      %768 = vmatprep.subr.mxu0 0.0
      %769 = vmatpush1.msra.mxu0 0.0
      %770 = vmatprep.subr.mxu0 0.0
      %771 = vmatpush1.msra.mxu0 0.0
      %772 = vmatprep.subr.mxu0 0.0
      %773 = vmatpush1.msra.mxu0 0.0
      %774 = vmatprep.subr.mxu0 0.0
      %775 = vmatpush1.msra.mxu0 0.0
      %776 = vmatprep.subr.mxu0 0.0
      %777 = vmatpush1.msra.mxu0 0.0
      %778 = vmatprep.subr.mxu0 0.0
      %779 = vmatpush1.msra.mxu0 0.0
      %780 = vmatprep.subr.mxu0 0.0
      %781 = vmatpush1.msra.mxu0 0.0
      %782 = vmatprep.subr.mxu0 0.0
      %783 = vmatpush1.msra.mxu0 0.0
      %784 = vmatprep.subr.mxu0 0.0
      %785 = vmatpush1.msra.mxu0 0.0
      %786 = vmatprep.subr.mxu0 0.0
      %787 = vmatpush1.msra.mxu0 0.0
      %788 = vmatprep.subr.mxu0 0.0
      %789 = vmatpush1.msra.mxu0 0.0
      %790 = vmatprep.mubr.f32.mxu0 0.0
      %791 = vmatmul.mubr.f32.gmra.mrb[0].mxu0 %v721
      %v792 = vpop.f32.mrb[0].mxu0
      %v793 = vadd.f32 %v717, %v792
      %v794 = vpop.f32.mrb[0].mxu0
      %795 = vmatprep.mubr.f32.mxu0 0.0
      %796 = vmatmul.mubr.f32.gmra.mrb[0].mxu0 %v724
      %v797 = vpop.f32.mrb[0].mxu0
      %v798 = vadd.f32 %v717, %v797
      %v799 = vpop.f32.mrb[0].mxu0
      %800 = vdwg.mxu0
      %803 = vrot.lane.b32.xlu0 %v793, 96
      %v804 = vpop.permute.xlu0 %803
      %805 = vrot.lane.b32.xlu0 %v798, 96
      %v806 = vpop.permute.xlu0 %805
      %vm807 = vcmask 64512
      %v808 = vsel %vm807, %v793, 0
      %v810 = vsel %vm807, %v798, 0
      %v812 = vsel %vm807, %v804, 0
      %v814 = vsel %vm807, %v806, 0
      %816 = vmatprep.subr.mxu0 0.0
      %817 = vmatpush1.xpose.msra.mxu0 %v812
      %818 = vmatprep.subr.mxu0 0.0
      %819 = vmatpush1.xpose.msra.mxu0 %v814
      %820 = vmatprep.subr.mxu0 0.0
      %821 = vmatpush1.xpose.msra.mxu0 0.0
      %822 = vmatprep.subr.mxu0 0.0
      %823 = vmatpush1.xpose.msra.mxu0 0.0
      %824 = vmatprep.subr.mxu0 0.0
      %825 = vmatpush1.xpose.msra.mxu0 0.0
      %826 = vmatprep.subr.mxu0 0.0
      %827 = vmatpush1.xpose.msra.mxu0 0.0
      %828 = vmatprep.subr.mxu0 0.0
      %829 = vmatpush1.xpose.msra.mxu0 0.0
      %830 = vmatprep.subr.mxu0 0.0
      %831 = vmatpush1.xpose.msra.mxu0 0.0
      %832 = vmatprep.subr.mxu0 0.0
      %833 = vmatpush1.xpose.msra.mxu0 0.0
      %834 = vmatprep.subr.mxu0 0.0
      %835 = vmatpush1.xpose.msra.mxu0 0.0
      %836 = vmatprep.subr.mxu0 0.0
      %837 = vmatpush1.xpose.msra.mxu0 0.0
      %838 = vmatprep.subr.mxu0 0.0
      %839 = vmatpush1.xpose.msra.mxu0 0.0
      %840 = vmatprep.subr.mxu0 0.0
      %841 = vmatpush1.xpose.msra.mxu0 0.0
      %842 = vmatprep.subr.mxu0 0.0
      %843 = vmatpush1.xpose.msra.mxu0 0.0
      %844 = vmatprep.subr.mxu0 0.0
      %845 = vmatpush1.xpose.msra.mxu0 0.0
      %846 = vmatprep.subr.mxu0 0.0
      %847 = vmatpush1.xpose.msra.mxu0 0.0
      %848 = vmatprep.subr.mxu0 0.0
      %849 = vmatpush1.xpose.msra.mxu0 0.0
      %850 = vmatprep.subr.mxu0 0.0
      %851 = vmatpush1.xpose.msra.mxu0 0.0
      %852 = vmatprep.subr.mxu0 0.0
      %853 = vmatpush1.xpose.msra.mxu0 0.0
      %854 = vmatprep.subr.mxu0 0.0
      %855 = vmatpush1.xpose.msra.mxu0 0.0
      %856 = vmatprep.subr.mxu0 0.0
      %857 = vmatpush1.xpose.msra.mxu0 0.0
      %858 = vmatprep.subr.mxu0 0.0
      %859 = vmatpush1.xpose.msra.mxu0 0.0
      %860 = vmatprep.subr.mxu0 0.0
      %861 = vmatpush1.xpose.msra.mxu0 0.0
      %862 = vmatprep.subr.mxu0 0.0
      %863 = vmatpush1.xpose.msra.mxu0 0.0
      %864 = vmatprep.subr.mxu0 0.0
      %865 = vmatpush1.xpose.msra.mxu0 0.0
      %866 = vmatprep.subr.mxu0 0.0
      %867 = vmatpush1.xpose.msra.mxu0 0.0
      %868 = vmatprep.subr.mxu0 0.0
      %869 = vmatpush1.xpose.msra.mxu0 0.0
      %870 = vmatprep.subr.mxu0 0.0
      %871 = vmatpush1.xpose.msra.mxu0 0.0
      %872 = vmatprep.subr.mxu0 0.0
      %873 = vmatpush1.xpose.msra.mxu0 0.0
      %874 = vmatprep.subr.mxu0 0.0
      %875 = vmatpush1.xpose.msra.mxu0 0.0
      %876 = vmatprep.subr.mxu0 0.0
      %877 = vmatpush1.xpose.msra.mxu0 0.0
      %878 = vmatprep.subr.mxu0 0.0
      %879 = vmatpush1.xpose.msra.mxu0 0.0
      %880 = vmatprep.mubr.f32.mxu0 0.0
      %881 = vmatmul.mubr.f32.gmra.mrb[0].mxu0 %v808
      %v882 = vpop.f32.mrb[0].mxu0
      %v883 = vadd.f32 0.0, %v882
      %v884 = vpop.f32.mrb[0].mxu0
      %885 = vmatprep.mubr.f32.mxu0 0.0
      %886 = vmatmul.mubr.f32.gmra.mrb[0].mxu0 %v810
      %v887 = vpop.f32.mrb[0].mxu0
      %v888 = vadd.f32 0.0, %v887
      %v889 = vpop.f32.mrb[0].mxu0
      %890 = vdwg.mxu0
      %v891 = vmul.f32 %v883, 0.35355338
      %v892 = vmul.f32 %v888, 0.35355338
      %vm893 = vcmask 130048
      %v894 = vsel %vm893, %v891, -inf
      %895 = vmax.xlane.f32.xlu0 %v894
      %v896 = vpop.xlane.xlu0 %895
      %v897 = vsel %vm893, %v892, -inf
      %898 = vmax.xlane.f32.xlu0 %v897
      %v899 = vpop.xlane.xlu0 %898
      %v900 = vsub.f32 %v891, %v896
      %v901 = vsub.f32 %v892, %v899
      %v902 = vmul.f32 %v900, 1.442695
      %v903 = vpow.pop %v902
      %v904 = vmul.f32 %v901, 1.442695
      %v905 = vpow.pop %v904
      %v906 = vsel %vm893, %v903, 0.0
      %907 = vadd.xlane.f32.xlu0 %v906
      %v908 = vpop.xlane.xlu0 %907
      %v909 = vsel %vm893, %v905, 0.0
      %910 = vadd.xlane.f32.xlu0 %v909
      %v911 = vpop.xlane.xlu0 %910
      %v912 = vrcp.pop %v908
      %v913 = vrcp.pop %v911
      %v914 = vmul.f32 %v903, %v912
      %v915 = vmul.f32 %v905, %v913
      %916 = vrot.lane.b32.xlu0 %v793, 64
      %v917 = vpop.permute.xlu0 %916
      %918 = vrot.lane.b32.xlu0 %v798, 64
      %v919 = vpop.permute.xlu0 %918
      %v923 = vsel %vm893, %v914, 0
      %v926 = vsel %vm893, %v915, 0
      %928 = vmatprep.subr.mxu0 0.0
      %929 = vmatpush1.msra.mxu0 %v917
      %930 = vmatprep.subr.mxu0 0.0
      %931 = vmatpush1.msra.mxu0 %v919
      %932 = vmatprep.subr.mxu0 0.0
      %933 = vmatpush1.msra.mxu0 0.0
      %934 = vmatprep.subr.mxu0 0.0
      %935 = vmatpush1.msra.mxu0 0.0
      %936 = vmatprep.subr.mxu0 0.0
      %937 = vmatpush1.msra.mxu0 0.0
      %938 = vmatprep.subr.mxu0 0.0
      %939 = vmatpush1.msra.mxu0 0.0
      %940 = vmatprep.subr.mxu0 0.0
      %941 = vmatpush1.msra.mxu0 0.0
      %942 = vmatprep.subr.mxu0 0.0
      %943 = vmatpush1.msra.mxu0 0.0
      %944 = vmatprep.subr.mxu0 0.0
      %945 = vmatpush1.msra.mxu0 0.0
      %946 = vmatprep.subr.mxu0 0.0
      %947 = vmatpush1.msra.mxu0 0.0
      %948 = vmatprep.subr.mxu0 0.0
      %949 = vmatpush1.msra.mxu0 0.0
      %950 = vmatprep.subr.mxu0 0.0
      %951 = vmatpush1.msra.mxu0 0.0
      %952 = vmatprep.subr.mxu0 0.0
      %953 = vmatpush1.msra.mxu0 0.0
      %954 = vmatprep.subr.mxu0 0.0
      %955 = vmatpush1.msra.mxu0 0.0
      %956 = vmatprep.subr.mxu0 0.0
      %957 = vmatpush1.msra.mxu0 0.0
      %958 = vmatprep.subr.mxu0 0.0
      %959 = vmatpush1.msra.mxu0 0.0
      %960 = vmatprep.subr.mxu0 0.0
      %961 = vmatpush1.msra.mxu0 0.0
      %962 = vmatprep.subr.mxu0 0.0
      %963 = vmatpush1.msra.mxu0 0.0
      %964 = vmatprep.subr.mxu0 0.0
      %965 = vmatpush1.msra.mxu0 0.0
      %966 = vmatprep.subr.mxu0 0.0
      %967 = vmatpush1.msra.mxu0 0.0
      %968 = vmatprep.subr.mxu0 0.0
      %969 = vmatpush1.msra.mxu0 0.0
      %970 = vmatprep.subr.mxu0 0.0
      %971 = vmatpush1.msra.mxu0 0.0
      %972 = vmatprep.subr.mxu0 0.0
      %973 = vmatpush1.msra.mxu0 0.0
      %974 = vmatprep.subr.mxu0 0.0
      %975 = vmatpush1.msra.mxu0 0.0
      %976 = vmatprep.subr.mxu0 0.0
      %977 = vmatpush1.msra.mxu0 0.0
      %978 = vmatprep.subr.mxu0 0.0
      %979 = vmatpush1.msra.mxu0 0.0
      %980 = vmatprep.subr.mxu0 0.0
      %981 = vmatpush1.msra.mxu0 0.0
      %982 = vmatprep.subr.mxu0 0.0
      %983 = vmatpush1.msra.mxu0 0.0
      %984 = vmatprep.subr.mxu0 0.0
      %985 = vmatpush1.msra.mxu0 0.0
      %986 = vmatprep.subr.mxu0 0.0
      %987 = vmatpush1.msra.mxu0 0.0
      %988 = vmatprep.subr.mxu0 0.0
      %989 = vmatpush1.msra.mxu0 0.0
      %990 = vmatprep.subr.mxu0 0.0
      %991 = vmatpush1.msra.mxu0 0.0
      %992 = vmatprep.mubr.f32.mxu0 0.0
      %993 = vmatmul.mubr.f32.gmra.mrb[0].mxu0 %v923
      %v994 = vpop.f32.mrb[0].mxu0
      %v995 = vadd.f32 0.0, %v994
      %v996 = vpop.f32.mrb[0].mxu0
      %997 = vmatprep.mubr.f32.mxu0 0.0
      %998 = vmatmul.mubr.f32.gmra.mrb[0].mxu0 %v926
      %v999 = vpop.f32.mrb[0].mxu0
      %v1000 = vadd.f32 0.0, %v999
      %v1001 = vpop.f32.mrb[0].mxu0
      %1002 = vdwg.mxu0
      %1003 = vrot.lane.b32.xlu0 %v793, 120
      %v1004 = vpop.permute.xlu0 %1003
      %1005 = vrot.lane.b32.xlu0 %v798, 120
      %v1006 = vpop.permute.xlu0 %1005
      %1007 = vrot.lane.b32.xlu0 %v793, 88
      %v1008 = vpop.permute.xlu0 %1007
      %1009 = vrot.lane.b32.xlu0 %v798, 88
      %v1010 = vpop.permute.xlu0 %1009
      %v1011 = vsel %vm807, %v1004, 0
      %v1013 = vsel %vm807, %v1006, 0
      %v1015 = vsel %vm807, %v1008, 0
      %v1017 = vsel %vm807, %v1010, 0
      %1019 = vmatprep.subr.mxu0 0.0
      %1020 = vmatpush1.xpose.msra.mxu0 %v1015
      %1021 = vmatprep.subr.mxu0 0.0
      %1022 = vmatpush1.xpose.msra.mxu0 %v1017
      %1023 = vmatprep.subr.mxu0 0.0
      %1024 = vmatpush1.xpose.msra.mxu0 0.0
      %1025 = vmatprep.subr.mxu0 0.0
      %1026 = vmatpush1.xpose.msra.mxu0 0.0
      %1027 = vmatprep.subr.mxu0 0.0
      %1028 = vmatpush1.xpose.msra.mxu0 0.0
      %1029 = vmatprep.subr.mxu0 0.0
      %1030 = vmatpush1.xpose.msra.mxu0 0.0
      %1031 = vmatprep.subr.mxu0 0.0
      %1032 = vmatpush1.xpose.msra.mxu0 0.0
      %1033 = vmatprep.subr.mxu0 0.0
      %1034 = vmatpush1.xpose.msra.mxu0 0.0
      %1035 = vmatprep.subr.mxu0 0.0
      %1036 = vmatpush1.xpose.msra.mxu0 0.0
      %1037 = vmatprep.subr.mxu0 0.0
      %1038 = vmatpush1.xpose.msra.mxu0 0.0
      %1039 = vmatprep.subr.mxu0 0.0
      %1040 = vmatpush1.xpose.msra.mxu0 0.0
      %1041 = vmatprep.subr.mxu0 0.0
      %1042 = vmatpush1.xpose.msra.mxu0 0.0
      %1043 = vmatprep.subr.mxu0 0.0
      %1044 = vmatpush1.xpose.msra.mxu0 0.0
      %1045 = vmatprep.subr.mxu0 0.0
      %1046 = vmatpush1.xpose.msra.mxu0 0.0
      %1047 = vmatprep.subr.mxu0 0.0
      %1048 = vmatpush1.xpose.msra.mxu0 0.0
      %1049 = vmatprep.subr.mxu0 0.0
      %1050 = vmatpush1.xpose.msra.mxu0 0.0
      %1051 = vmatprep.subr.mxu0 0.0
      %1052 = vmatpush1.xpose.msra.mxu0 0.0
      %1053 = vmatprep.subr.mxu0 0.0
      %1054 = vmatpush1.xpose.msra.mxu0 0.0
      %1055 = vmatprep.subr.mxu0 0.0
      %1056 = vmatpush1.xpose.msra.mxu0 0.0
      %1057 = vmatprep.subr.mxu0 0.0
      %1058 = vmatpush1.xpose.msra.mxu0 0.0
      %1059 = vmatprep.subr.mxu0 0.0
      %1060 = vmatpush1.xpose.msra.mxu0 0.0
      %1061 = vmatprep.subr.mxu0 0.0
      %1062 = vmatpush1.xpose.msra.mxu0 0.0
      %1063 = vmatprep.subr.mxu0 0.0
      %1064 = vmatpush1.xpose.msra.mxu0 0.0
      %1065 = vmatprep.subr.mxu0 0.0
      %1066 = vmatpush1.xpose.msra.mxu0 0.0
      %1067 = vmatprep.subr.mxu0 0.0
      %1068 = vmatpush1.xpose.msra.mxu0 0.0
      %1069 = vmatprep.subr.mxu0 0.0
      %1070 = vmatpush1.xpose.msra.mxu0 0.0
      %1071 = vmatprep.subr.mxu0 0.0
      %1072 = vmatpush1.xpose.msra.mxu0 0.0
      %1073 = vmatprep.subr.mxu0 0.0
      %1074 = vmatpush1.xpose.msra.mxu0 0.0
      %1075 = vmatprep.subr.mxu0 0.0
      %1076 = vmatpush1.xpose.msra.mxu0 0.0
      %1077 = vmatprep.subr.mxu0 0.0
      %1078 = vmatpush1.xpose.msra.mxu0 0.0
      %1079 = vmatprep.subr.mxu0 0.0
      %1080 = vmatpush1.xpose.msra.mxu0 0.0
      %1081 = vmatprep.subr.mxu0 0.0
      %1082 = vmatpush1.xpose.msra.mxu0 0.0
      %1083 = vmatprep.mubr.f32.mxu0 0.0
      %1084 = vmatmul.mubr.f32.gmra.mrb[0].mxu0 %v1011
      %v1085 = vpop.f32.mrb[0].mxu0
      %v1086 = vadd.f32 0.0, %v1085
      %v1087 = vpop.f32.mrb[0].mxu0
      %1088 = vmatprep.mubr.f32.mxu0 0.0
      %1089 = vmatmul.mubr.f32.gmra.mrb[0].mxu0 %v1013
      %v1090 = vpop.f32.mrb[0].mxu0
      %v1091 = vadd.f32 0.0, %v1090
      %v1092 = vpop.f32.mrb[0].mxu0
      %1093 = vdwg.mxu0
      %v1094 = vmul.f32 %v1086, 0.35355338
      %v1095 = vmul.f32 %v1091, 0.35355338
      %v1096 = vsel %vm893, %v1094, -inf
      %1097 = vmax.xlane.f32.xlu0 %v1096
      %v1098 = vpop.xlane.xlu0 %1097
      %v1099 = vsel %vm893, %v1095, -inf
      %1100 = vmax.xlane.f32.xlu0 %v1099
      %v1101 = vpop.xlane.xlu0 %1100
      %v1102 = vsub.f32 %v1094, %v1098
      %v1103 = vsub.f32 %v1095, %v1101
      %v1104 = vmul.f32 %v1102, 1.442695
      %v1105 = vpow.pop %v1104
      %v1106 = vmul.f32 %v1103, 1.442695
      %v1107 = vpow.pop %v1106
      %v1108 = vsel %vm893, %v1105, 0.0
      %1109 = vadd.xlane.f32.xlu0 %v1108
      %v1110 = vpop.xlane.xlu0 %1109
      %v1111 = vsel %vm893, %v1107, 0.0
      %1112 = vadd.xlane.f32.xlu0 %v1111
      %v1113 = vpop.xlane.xlu0 %1112
      %v1114 = vrcp.pop %v1110
      %v1115 = vrcp.pop %v1113
      %v1116 = vmul.f32 %v1105, %v1114
      %v1117 = vmul.f32 %v1107, %v1115
      %1118 = vrot.lane.b32.xlu0 %v793, 56
      %v1119 = vpop.permute.xlu0 %1118
      %1120 = vrot.lane.b32.xlu0 %v798, 56
      %v1121 = vpop.permute.xlu0 %1120
      %v1125 = vsel %vm893, %v1116, 0
      %v1128 = vsel %vm893, %v1117, 0
      %1130 = vmatprep.subr.mxu0 0.0
      %1131 = vmatpush1.msra.mxu0 %v1119
      %1132 = vmatprep.subr.mxu0 0.0
      %1133 = vmatpush1.msra.mxu0 %v1121
      %1134 = vmatprep.subr.mxu0 0.0
      %1135 = vmatpush1.msra.mxu0 0.0
      %1136 = vmatprep.subr.mxu0 0.0
      %1137 = vmatpush1.msra.mxu0 0.0
      %1138 = vmatprep.subr.mxu0 0.0
      %1139 = vmatpush1.msra.mxu0 0.0
      %1140 = vmatprep.subr.mxu0 0.0
      %1141 = vmatpush1.msra.mxu0 0.0
      %1142 = vmatprep.subr.mxu0 0.0
      %1143 = vmatpush1.msra.mxu0 0.0
      %1144 = vmatprep.subr.mxu0 0.0
      %1145 = vmatpush1.msra.mxu0 0.0
      %1146 = vmatprep.subr.mxu0 0.0
      %1147 = vmatpush1.msra.mxu0 0.0
      %1148 = vmatprep.subr.mxu0 0.0
      %1149 = vmatpush1.msra.mxu0 0.0
      %1150 = vmatprep.subr.mxu0 0.0
      %1151 = vmatpush1.msra.mxu0 0.0
      %1152 = vmatprep.subr.mxu0 0.0
      %1153 = vmatpush1.msra.mxu0 0.0
      %1154 = vmatprep.subr.mxu0 0.0
      %1155 = vmatpush1.msra.mxu0 0.0
      %1156 = vmatprep.subr.mxu0 0.0
      %1157 = vmatpush1.msra.mxu0 0.0
      %1158 = vmatprep.subr.mxu0 0.0
      %1159 = vmatpush1.msra.mxu0 0.0
      %1160 = vmatprep.subr.mxu0 0.0
      %1161 = vmatpush1.msra.mxu0 0.0
      %1162 = vmatprep.subr.mxu0 0.0
      %1163 = vmatpush1.msra.mxu0 0.0
      %1164 = vmatprep.subr.mxu0 0.0
      %1165 = vmatpush1.msra.mxu0 0.0
      %1166 = vmatprep.subr.mxu0 0.0
      %1167 = vmatpush1.msra.mxu0 0.0
      %1168 = vmatprep.subr.mxu0 0.0
      %1169 = vmatpush1.msra.mxu0 0.0
      %1170 = vmatprep.subr.mxu0 0.0
      %1171 = vmatpush1.msra.mxu0 0.0
      %1172 = vmatprep.subr.mxu0 0.0
      %1173 = vmatpush1.msra.mxu0 0.0
      %1174 = vmatprep.subr.mxu0 0.0
      %1175 = vmatpush1.msra.mxu0 0.0
      %1176 = vmatprep.subr.mxu0 0.0
      %1177 = vmatpush1.msra.mxu0 0.0
      %1178 = vmatprep.subr.mxu0 0.0
      %1179 = vmatpush1.msra.mxu0 0.0
      %1180 = vmatprep.subr.mxu0 0.0
      %1181 = vmatpush1.msra.mxu0 0.0
      %1182 = vmatprep.subr.mxu0 0.0
      %1183 = vmatpush1.msra.mxu0 0.0
      %1184 = vmatprep.subr.mxu0 0.0
      %1185 = vmatpush1.msra.mxu0 0.0
      %1186 = vmatprep.subr.mxu0 0.0
      %1187 = vmatpush1.msra.mxu0 0.0
      %1188 = vmatprep.subr.mxu0 0.0
      %1189 = vmatpush1.msra.mxu0 0.0
      %1190 = vmatprep.subr.mxu0 0.0
      %1191 = vmatpush1.msra.mxu0 0.0
      %1192 = vmatprep.subr.mxu0 0.0
      %1193 = vmatpush1.msra.mxu0 0.0
      %1194 = vmatprep.mubr.f32.mxu0 0.0
      %1195 = vmatmul.mubr.f32.gmra.mrb[0].mxu0 %v1125
      %v1196 = vpop.f32.mrb[0].mxu0
      %v1197 = vadd.f32 0.0, %v1196
      %v1198 = vpop.f32.mrb[0].mxu0
      %1199 = vmatprep.mubr.f32.mxu0 0.0
      %1200 = vmatmul.mubr.f32.gmra.mrb[0].mxu0 %v1128
      %v1201 = vpop.f32.mrb[0].mxu0
      %v1202 = vadd.f32 0.0, %v1201
      %v1203 = vpop.f32.mrb[0].mxu0
      %1204 = vdwg.mxu0
      %1205 = vrot.lane.b32.xlu0 %v793, 112
      %v1206 = vpop.permute.xlu0 %1205
      %1207 = vrot.lane.b32.xlu0 %v798, 112
      %v1208 = vpop.permute.xlu0 %1207
      %1209 = vrot.lane.b32.xlu0 %v793, 80
      %v1210 = vpop.permute.xlu0 %1209
      %1211 = vrot.lane.b32.xlu0 %v798, 80
      %v1212 = vpop.permute.xlu0 %1211
      %v1213 = vsel %vm807, %v1206, 0
      %v1215 = vsel %vm807, %v1208, 0
      %v1217 = vsel %vm807, %v1210, 0
      %v1219 = vsel %vm807, %v1212, 0
      %1221 = vmatprep.subr.mxu0 0.0
      %1222 = vmatpush1.xpose.msra.mxu0 %v1217
      %1223 = vmatprep.subr.mxu0 0.0
      %1224 = vmatpush1.xpose.msra.mxu0 %v1219
      %1225 = vmatprep.subr.mxu0 0.0
      %1226 = vmatpush1.xpose.msra.mxu0 0.0
      %1227 = vmatprep.subr.mxu0 0.0
      %1228 = vmatpush1.xpose.msra.mxu0 0.0
      %1229 = vmatprep.subr.mxu0 0.0
      %1230 = vmatpush1.xpose.msra.mxu0 0.0
      %1231 = vmatprep.subr.mxu0 0.0
      %1232 = vmatpush1.xpose.msra.mxu0 0.0
      %1233 = vmatprep.subr.mxu0 0.0
      %1234 = vmatpush1.xpose.msra.mxu0 0.0
      %1235 = vmatprep.subr.mxu0 0.0
      %1236 = vmatpush1.xpose.msra.mxu0 0.0
      %1237 = vmatprep.subr.mxu0 0.0
      %1238 = vmatpush1.xpose.msra.mxu0 0.0
      %1239 = vmatprep.subr.mxu0 0.0
      %1240 = vmatpush1.xpose.msra.mxu0 0.0
      %1241 = vmatprep.subr.mxu0 0.0
      %1242 = vmatpush1.xpose.msra.mxu0 0.0
      %1243 = vmatprep.subr.mxu0 0.0
      %1244 = vmatpush1.xpose.msra.mxu0 0.0
      %1245 = vmatprep.subr.mxu0 0.0
      %1246 = vmatpush1.xpose.msra.mxu0 0.0
      %1247 = vmatprep.subr.mxu0 0.0
      %1248 = vmatpush1.xpose.msra.mxu0 0.0
      %1249 = vmatprep.subr.mxu0 0.0
      %1250 = vmatpush1.xpose.msra.mxu0 0.0
      %1251 = vmatprep.subr.mxu0 0.0
      %1252 = vmatpush1.xpose.msra.mxu0 0.0
      %1253 = vmatprep.subr.mxu0 0.0
      %1254 = vmatpush1.xpose.msra.mxu0 0.0
      %1255 = vmatprep.subr.mxu0 0.0
      %1256 = vmatpush1.xpose.msra.mxu0 0.0
      %1257 = vmatprep.subr.mxu0 0.0
      %1258 = vmatpush1.xpose.msra.mxu0 0.0
      %1259 = vmatprep.subr.mxu0 0.0
      %1260 = vmatpush1.xpose.msra.mxu0 0.0
      %1261 = vmatprep.subr.mxu0 0.0
      %1262 = vmatpush1.xpose.msra.mxu0 0.0
      %1263 = vmatprep.subr.mxu0 0.0
      %1264 = vmatpush1.xpose.msra.mxu0 0.0
      %1265 = vmatprep.subr.mxu0 0.0
      %1266 = vmatpush1.xpose.msra.mxu0 0.0
      %1267 = vmatprep.subr.mxu0 0.0
      %1268 = vmatpush1.xpose.msra.mxu0 0.0
      %1269 = vmatprep.subr.mxu0 0.0
      %1270 = vmatpush1.xpose.msra.mxu0 0.0
      %1271 = vmatprep.subr.mxu0 0.0
      %1272 = vmatpush1.xpose.msra.mxu0 0.0
      %1273 = vmatprep.subr.mxu0 0.0
      %1274 = vmatpush1.xpose.msra.mxu0 0.0
      %1275 = vmatprep.subr.mxu0 0.0
      %1276 = vmatpush1.xpose.msra.mxu0 0.0
      %1277 = vmatprep.subr.mxu0 0.0
      %1278 = vmatpush1.xpose.msra.mxu0 0.0
      %1279 = vmatprep.subr.mxu0 0.0
      %1280 = vmatpush1.xpose.msra.mxu0 0.0
      %1281 = vmatprep.subr.mxu0 0.0
      %1282 = vmatpush1.xpose.msra.mxu0 0.0
      %1283 = vmatprep.subr.mxu0 0.0
      %1284 = vmatpush1.xpose.msra.mxu0 0.0
      %1285 = vmatprep.mubr.f32.mxu0 0.0
      %1286 = vmatmul.mubr.f32.gmra.mrb[0].mxu0 %v1213
      %v1287 = vpop.f32.mrb[0].mxu0
      %v1288 = vadd.f32 0.0, %v1287
      %v1289 = vpop.f32.mrb[0].mxu0
      %1290 = vmatprep.mubr.f32.mxu0 0.0
      %1291 = vmatmul.mubr.f32.gmra.mrb[0].mxu0 %v1215
      %v1292 = vpop.f32.mrb[0].mxu0
      %v1293 = vadd.f32 0.0, %v1292
      %v1294 = vpop.f32.mrb[0].mxu0
      %1295 = vdwg.mxu0
      %v1296 = vmul.f32 %v1288, 0.35355338
      %v1297 = vmul.f32 %v1293, 0.35355338
      %v1298 = vsel %vm893, %v1296, -inf
      %1299 = vmax.xlane.f32.xlu0 %v1298
      %v1300 = vpop.xlane.xlu0 %1299
      %v1301 = vsel %vm893, %v1297, -inf
      %1302 = vmax.xlane.f32.xlu0 %v1301
      %v1303 = vpop.xlane.xlu0 %1302
      %v1304 = vsub.f32 %v1296, %v1300
      %v1305 = vsub.f32 %v1297, %v1303
      %v1306 = vmul.f32 %v1304, 1.442695
      %v1307 = vpow.pop %v1306
      %v1308 = vmul.f32 %v1305, 1.442695
      %v1309 = vpow.pop %v1308
      %v1310 = vsel %vm893, %v1307, 0.0
      %1311 = vadd.xlane.f32.xlu0 %v1310
      %v1312 = vpop.xlane.xlu0 %1311
      %v1313 = vsel %vm893, %v1309, 0.0
      %1314 = vadd.xlane.f32.xlu0 %v1313
      %v1315 = vpop.xlane.xlu0 %1314
      %v1316 = vrcp.pop %v1312
      %v1317 = vrcp.pop %v1315
      %v1318 = vmul.f32 %v1307, %v1316
      %v1319 = vmul.f32 %v1309, %v1317
      %1320 = vrot.lane.b32.xlu0 %v793, 48
      %v1321 = vpop.permute.xlu0 %1320
      %1322 = vrot.lane.b32.xlu0 %v798, 48
      %v1323 = vpop.permute.xlu0 %1322
      %v1327 = vsel %vm893, %v1318, 0
      %v1330 = vsel %vm893, %v1319, 0
      %1332 = vmatprep.subr.mxu0 0.0
      %1333 = vmatpush1.msra.mxu0 %v1321
      %1334 = vmatprep.subr.mxu0 0.0
      %1335 = vmatpush1.msra.mxu0 %v1323
      %1336 = vmatprep.subr.mxu0 0.0
      %1337 = vmatpush1.msra.mxu0 0.0
      %1338 = vmatprep.subr.mxu0 0.0
      %1339 = vmatpush1.msra.mxu0 0.0
      %1340 = vmatprep.subr.mxu0 0.0
      %1341 = vmatpush1.msra.mxu0 0.0
      %1342 = vmatprep.subr.mxu0 0.0
      %1343 = vmatpush1.msra.mxu0 0.0
      %1344 = vmatprep.subr.mxu0 0.0
      %1345 = vmatpush1.msra.mxu0 0.0
      %1346 = vmatprep.subr.mxu0 0.0
      %1347 = vmatpush1.msra.mxu0 0.0
      %1348 = vmatprep.subr.mxu0 0.0
      %1349 = vmatpush1.msra.mxu0 0.0
      %1350 = vmatprep.subr.mxu0 0.0
      %1351 = vmatpush1.msra.mxu0 0.0
      %1352 = vmatprep.subr.mxu0 0.0
      %1353 = vmatpush1.msra.mxu0 0.0
      %1354 = vmatprep.subr.mxu0 0.0
      %1355 = vmatpush1.msra.mxu0 0.0
      %1356 = vmatprep.subr.mxu0 0.0
      %1357 = vmatpush1.msra.mxu0 0.0
      %1358 = vmatprep.subr.mxu0 0.0
      %1359 = vmatpush1.msra.mxu0 0.0
      %1360 = vmatprep.subr.mxu0 0.0
      %1361 = vmatpush1.msra.mxu0 0.0
      %1362 = vmatprep.subr.mxu0 0.0
      %1363 = vmatpush1.msra.mxu0 0.0
      %1364 = vmatprep.subr.mxu0 0.0
      %1365 = vmatpush1.msra.mxu0 0.0
      %1366 = vmatprep.subr.mxu0 0.0
      %1367 = vmatpush1.msra.mxu0 0.0
      %1368 = vmatprep.subr.mxu0 0.0
      %1369 = vmatpush1.msra.mxu0 0.0
      %1370 = vmatprep.subr.mxu0 0.0
      %1371 = vmatpush1.msra.mxu0 0.0
      %1372 = vmatprep.subr.mxu0 0.0
      %1373 = vmatpush1.msra.mxu0 0.0
      %1374 = vmatprep.subr.mxu0 0.0
      %1375 = vmatpush1.msra.mxu0 0.0
      %1376 = vmatprep.subr.mxu0 0.0
      %1377 = vmatpush1.msra.mxu0 0.0
      %1378 = vmatprep.subr.mxu0 0.0
      %1379 = vmatpush1.msra.mxu0 0.0
      %1380 = vmatprep.subr.mxu0 0.0
      %1381 = vmatpush1.msra.mxu0 0.0
      %1382 = vmatprep.subr.mxu0 0.0
      %1383 = vmatpush1.msra.mxu0 0.0
      %1384 = vmatprep.subr.mxu0 0.0
      %1385 = vmatpush1.msra.mxu0 0.0
      %1386 = vmatprep.subr.mxu0 0.0
      %1387 = vmatpush1.msra.mxu0 0.0
      %1388 = vmatprep.subr.mxu0 0.0
      %1389 = vmatpush1.msra.mxu0 0.0
      %1390 = vmatprep.subr.mxu0 0.0
      %1391 = vmatpush1.msra.mxu0 0.0
      %1392 = vmatprep.subr.mxu0 0.0
      %1393 = vmatpush1.msra.mxu0 0.0
      %1394 = vmatprep.subr.mxu0 0.0
      %1395 = vmatpush1.msra.mxu0 0.0
      %1396 = vmatprep.mubr.f32.mxu0 0.0
      %1397 = vmatmul.mubr.f32.gmra.mrb[0].mxu0 %v1327
      %v1398 = vpop.f32.mrb[0].mxu0
      %v1399 = vadd.f32 0.0, %v1398
      %v1400 = vpop.f32.mrb[0].mxu0
      %1401 = vmatprep.mubr.f32.mxu0 0.0
      %1402 = vmatmul.mubr.f32.gmra.mrb[0].mxu0 %v1330
      %v1403 = vpop.f32.mrb[0].mxu0
      %v1404 = vadd.f32 0.0, %v1403
      %v1405 = vpop.f32.mrb[0].mxu0
      %1406 = vdwg.mxu0
      %1407 = vrot.lane.b32.xlu0 %v793, 104
      %v1408 = vpop.permute.xlu0 %1407
      %1409 = vrot.lane.b32.xlu0 %v798, 104
      %v1410 = vpop.permute.xlu0 %1409
      %1411 = vrot.lane.b32.xlu0 %v793, 72
      %v1412 = vpop.permute.xlu0 %1411
      %1413 = vrot.lane.b32.xlu0 %v798, 72
      %v1414 = vpop.permute.xlu0 %1413
      %v1415 = vsel %vm807, %v1408, 0
      %v1417 = vsel %vm807, %v1410, 0
      %v1419 = vsel %vm807, %v1412, 0
      %v1421 = vsel %vm807, %v1414, 0
      %1423 = vmatprep.subr.mxu0 0.0
      %1424 = vmatpush1.xpose.msra.mxu0 %v1419
      %1425 = vmatprep.subr.mxu0 0.0
      %1426 = vmatpush1.xpose.msra.mxu0 %v1421
      %1427 = vmatprep.subr.mxu0 0.0
      %1428 = vmatpush1.xpose.msra.mxu0 0.0
      %1429 = vmatprep.subr.mxu0 0.0
      %1430 = vmatpush1.xpose.msra.mxu0 0.0
      %1431 = vmatprep.subr.mxu0 0.0
      %1432 = vmatpush1.xpose.msra.mxu0 0.0
      %1433 = vmatprep.subr.mxu0 0.0
      %1434 = vmatpush1.xpose.msra.mxu0 0.0
      %1435 = vmatprep.subr.mxu0 0.0
      %1436 = vmatpush1.xpose.msra.mxu0 0.0
      %1437 = vmatprep.subr.mxu0 0.0
      %1438 = vmatpush1.xpose.msra.mxu0 0.0
      %1439 = vmatprep.subr.mxu0 0.0
      %1440 = vmatpush1.xpose.msra.mxu0 0.0
      %1441 = vmatprep.subr.mxu0 0.0
      %1442 = vmatpush1.xpose.msra.mxu0 0.0
      %1443 = vmatprep.subr.mxu0 0.0
      %1444 = vmatpush1.xpose.msra.mxu0 0.0
      %1445 = vmatprep.subr.mxu0 0.0
      %1446 = vmatpush1.xpose.msra.mxu0 0.0
      %1447 = vmatprep.subr.mxu0 0.0
      %1448 = vmatpush1.xpose.msra.mxu0 0.0
      %1449 = vmatprep.subr.mxu0 0.0
      %1450 = vmatpush1.xpose.msra.mxu0 0.0
      %1451 = vmatprep.subr.mxu0 0.0
      %1452 = vmatpush1.xpose.msra.mxu0 0.0
      %1453 = vmatprep.subr.mxu0 0.0
      %1454 = vmatpush1.xpose.msra.mxu0 0.0
      %1455 = vmatprep.subr.mxu0 0.0
      %1456 = vmatpush1.xpose.msra.mxu0 0.0
      %1457 = vmatprep.subr.mxu0 0.0
      %1458 = vmatpush1.xpose.msra.mxu0 0.0
      %1459 = vmatprep.subr.mxu0 0.0
      %1460 = vmatpush1.xpose.msra.mxu0 0.0
      %1461 = vmatprep.subr.mxu0 0.0
      %1462 = vmatpush1.xpose.msra.mxu0 0.0
      %1463 = vmatprep.subr.mxu0 0.0
      %1464 = vmatpush1.xpose.msra.mxu0 0.0
      %1465 = vmatprep.subr.mxu0 0.0
      %1466 = vmatpush1.xpose.msra.mxu0 0.0
      %1467 = vmatprep.subr.mxu0 0.0
      %1468 = vmatpush1.xpose.msra.mxu0 0.0
      %1469 = vmatprep.subr.mxu0 0.0
      %1470 = vmatpush1.xpose.msra.mxu0 0.0
      %1471 = vmatprep.subr.mxu0 0.0
      %1472 = vmatpush1.xpose.msra.mxu0 0.0
      %1473 = vmatprep.subr.mxu0 0.0
      %1474 = vmatpush1.xpose.msra.mxu0 0.0
      %1475 = vmatprep.subr.mxu0 0.0
      %1476 = vmatpush1.xpose.msra.mxu0 0.0
      %1477 = vmatprep.subr.mxu0 0.0
      %1478 = vmatpush1.xpose.msra.mxu0 0.0
      %1479 = vmatprep.subr.mxu0 0.0
      %1480 = vmatpush1.xpose.msra.mxu0 0.0
      %1481 = vmatprep.subr.mxu0 0.0
      %1482 = vmatpush1.xpose.msra.mxu0 0.0
      %1483 = vmatprep.subr.mxu0 0.0
      %1484 = vmatpush1.xpose.msra.mxu0 0.0
      %1485 = vmatprep.subr.mxu0 0.0
      %1486 = vmatpush1.xpose.msra.mxu0 0.0
      %1487 = vmatprep.mubr.f32.mxu0 0.0
      %1488 = vmatmul.mubr.f32.gmra.mrb[0].mxu0 %v1415
      %v1489 = vpop.f32.mrb[0].mxu0
      %v1490 = vadd.f32 0.0, %v1489
      %v1491 = vpop.f32.mrb[0].mxu0
      %1492 = vmatprep.mubr.f32.mxu0 0.0
      %1493 = vmatmul.mubr.f32.gmra.mrb[0].mxu0 %v1417
      %v1494 = vpop.f32.mrb[0].mxu0
      %v1495 = vadd.f32 0.0, %v1494
      %v1496 = vpop.f32.mrb[0].mxu0
      %1497 = vdwg.mxu0
      %v1498 = vmul.f32 %v1490, 0.35355338
      %v1499 = vmul.f32 %v1495, 0.35355338
      %v1500 = vsel %vm893, %v1498, -inf
      %1501 = vmax.xlane.f32.xlu0 %v1500
      %v1502 = vpop.xlane.xlu0 %1501
      %v1503 = vsel %vm893, %v1499, -inf
      %1504 = vmax.xlane.f32.xlu0 %v1503
      %v1505 = vpop.xlane.xlu0 %1504
      %v1506 = vsub.f32 %v1498, %v1502
      %v1507 = vsub.f32 %v1499, %v1505
      %v1508 = vmul.f32 %v1506, 1.442695
      %v1509 = vpow.pop %v1508
      %v1510 = vmul.f32 %v1507, 1.442695
      %v1511 = vpow.pop %v1510
      %v1512 = vsel %vm893, %v1509, 0.0
      %1513 = vadd.xlane.f32.xlu0 %v1512
      %v1514 = vpop.xlane.xlu0 %1513
      %v1515 = vsel %vm893, %v1511, 0.0
      %1516 = vadd.xlane.f32.xlu0 %v1515
      %v1517 = vpop.xlane.xlu0 %1516
      %v1518 = vrcp.pop %v1514
      %v1519 = vrcp.pop %v1517
      %v1520 = vmul.f32 %v1509, %v1518
      %v1521 = vmul.f32 %v1511, %v1519
      %1522 = vrot.lane.b32.xlu0 %v793, 40
      %v1523 = vpop.permute.xlu0 %1522
      %1524 = vrot.lane.b32.xlu0 %v798, 40
      %v1525 = vpop.permute.xlu0 %1524
      %v1529 = vsel %vm893, %v1520, 0
      %v1532 = vsel %vm893, %v1521, 0
      %1534 = vmatprep.subr.mxu0 0.0
      %1535 = vmatpush1.msra.mxu0 %v1523
      %1536 = vmatprep.subr.mxu0 0.0
      %1537 = vmatpush1.msra.mxu0 %v1525
      %1538 = vmatprep.subr.mxu0 0.0
      %1539 = vmatpush1.msra.mxu0 0.0
      %1540 = vmatprep.subr.mxu0 0.0
      %1541 = vmatpush1.msra.mxu0 0.0
      %1542 = vmatprep.subr.mxu0 0.0
      %1543 = vmatpush1.msra.mxu0 0.0
      %1544 = vmatprep.subr.mxu0 0.0
      %1545 = vmatpush1.msra.mxu0 0.0
      %1546 = vmatprep.subr.mxu0 0.0
      %1547 = vmatpush1.msra.mxu0 0.0
      %1548 = vmatprep.subr.mxu0 0.0
      %1549 = vmatpush1.msra.mxu0 0.0
      %1550 = vmatprep.subr.mxu0 0.0
      %1551 = vmatpush1.msra.mxu0 0.0
      %1552 = vmatprep.subr.mxu0 0.0
      %1553 = vmatpush1.msra.mxu0 0.0
      %1554 = vmatprep.subr.mxu0 0.0
      %1555 = vmatpush1.msra.mxu0 0.0
      %1556 = vmatprep.subr.mxu0 0.0
      %1557 = vmatpush1.msra.mxu0 0.0
      %1558 = vmatprep.subr.mxu0 0.0
      %1559 = vmatpush1.msra.mxu0 0.0
      %1560 = vmatprep.subr.mxu0 0.0
      %1561 = vmatpush1.msra.mxu0 0.0
      %1562 = vmatprep.subr.mxu0 0.0
      %1563 = vmatpush1.msra.mxu0 0.0
      %1564 = vmatprep.subr.mxu0 0.0
      %1565 = vmatpush1.msra.mxu0 0.0
      %1566 = vmatprep.subr.mxu0 0.0
      %1567 = vmatpush1.msra.mxu0 0.0
      %1568 = vmatprep.subr.mxu0 0.0
      %1569 = vmatpush1.msra.mxu0 0.0
      %1570 = vmatprep.subr.mxu0 0.0
      %1571 = vmatpush1.msra.mxu0 0.0
      %1572 = vmatprep.subr.mxu0 0.0
      %1573 = vmatpush1.msra.mxu0 0.0
      %1574 = vmatprep.subr.mxu0 0.0
      %1575 = vmatpush1.msra.mxu0 0.0
      %1576 = vmatprep.subr.mxu0 0.0
      %1577 = vmatpush1.msra.mxu0 0.0
      %1578 = vmatprep.subr.mxu0 0.0
      %1579 = vmatpush1.msra.mxu0 0.0
      %1580 = vmatprep.subr.mxu0 0.0
      %1581 = vmatpush1.msra.mxu0 0.0
      %1582 = vmatprep.subr.mxu0 0.0
      %1583 = vmatpush1.msra.mxu0 0.0
      %1584 = vmatprep.subr.mxu0 0.0
      %1585 = vmatpush1.msra.mxu0 0.0
      %1586 = vmatprep.subr.mxu0 0.0
      %1587 = vmatpush1.msra.mxu0 0.0
      %1588 = vmatprep.subr.mxu0 0.0
      %1589 = vmatpush1.msra.mxu0 0.0
      %1590 = vmatprep.subr.mxu0 0.0
      %1591 = vmatpush1.msra.mxu0 0.0
      %1592 = vmatprep.subr.mxu0 0.0
      %1593 = vmatpush1.msra.mxu0 0.0
      %1594 = vmatprep.subr.mxu0 0.0
      %1595 = vmatpush1.msra.mxu0 0.0
      %1596 = vmatprep.subr.mxu0 0.0
      %1597 = vmatpush1.msra.mxu0 0.0
      %1598 = vmatprep.mubr.f32.mxu0 0.0
      %1599 = vmatmul.mubr.f32.gmra.mrb[0].mxu0 %v1529
      %v1600 = vpop.f32.mrb[0].mxu0
      %v1601 = vadd.f32 0.0, %v1600
      %v1602 = vpop.f32.mrb[0].mxu0
      %1603 = vmatprep.mubr.f32.mxu0 0.0
      %1604 = vmatmul.mubr.f32.gmra.mrb[0].mxu0 %v1532
      %v1605 = vpop.f32.mrb[0].mxu0
      %v1606 = vadd.f32 0.0, %v1605
      %v1607 = vpop.f32.mrb[0].mxu0
      %1608 = vdwg.mxu0
      %1611 = vrot.lane.b32.xlu0 %v1197, 8
      %v1612 = vpop.permute.xlu0 %1611
      %1613 = vrot.lane.b32.xlu0 %v1202, 8
      %v1614 = vpop.permute.xlu0 %1613
      %1619 = vrot.lane.b32.xlu0 %v1399, 16
      %v1620 = vpop.permute.xlu0 %1619
      %1621 = vrot.lane.b32.xlu0 %v1404, 16
      %v1622 = vpop.permute.xlu0 %1621
      %1627 = vrot.lane.b32.xlu0 %v1601, 24
      %v1628 = vpop.permute.xlu0 %1627
      %1629 = vrot.lane.b32.xlu0 %v1606, 24
      %v1630 = vpop.permute.xlu0 %1629
      %v1633 = vsel %vm807, %v995, %v1612
      %v1634 = vsel %vm807, %v1000, %v1614
      %v1635 = vsel %vm893, %v1633, %v1620
      %v1636 = vsel %vm893, %v1634, %v1622
      %vm1637 = vcmask 195584
      %v1638 = vsel %vm1637, %v1635, %v1628
      %v1639 = vsel %vm1637, %v1636, %v1630
      %v1640 = vld [vmem:[%s4] sm:$0xff]
      %v1641 = vld [vmem:[%s4 + $0x8] sm:$0xff]
      %v1642 = vld [vmem:[%s4 + $0x10] sm:$0xff]
      %v1643 = vld [vmem:[%s4 + $0x18] sm:$0xff]
      %v1644 = vld [vmem:[%s5] sm:$0x1]
      %v1646 = vlaneseq
      %v1647 = vshrl.u32 %v1646, 7
      %v1648 = vsub.s32 0, %v1647
      %v1649 = vrot.slane %v1644, %v1648
      %v1652 = vsel %vm719, %v1638, 0
      %v1655 = vsel %vm719, %v1639, 0
      %1657 = vmatprep.subr.mxu0 0.0
      %1658 = vmatpush1.msra.mxu0 %v1640
      %1659 = vmatprep.subr.mxu0 0.0
      %1660 = vmatpush1.msra.mxu0 %v1641
      %1661 = vmatprep.subr.mxu0 0.0
      %1662 = vmatpush1.msra.mxu0 %v1642
      %1663 = vmatprep.subr.mxu0 0.0
      %1664 = vmatpush1.msra.mxu0 %v1643
      %1665 = vmatprep.subr.mxu0 0.0
      %1666 = vmatpush1.msra.mxu0 0.0
      %1667 = vmatprep.subr.mxu0 0.0
      %1668 = vmatpush1.msra.mxu0 0.0
      %1669 = vmatprep.subr.mxu0 0.0
      %1670 = vmatpush1.msra.mxu0 0.0
      %1671 = vmatprep.subr.mxu0 0.0
      %1672 = vmatpush1.msra.mxu0 0.0
      %1673 = vmatprep.subr.mxu0 0.0
      %1674 = vmatpush1.msra.mxu0 0.0
      %1675 = vmatprep.subr.mxu0 0.0
      %1676 = vmatpush1.msra.mxu0 0.0
      %1677 = vmatprep.subr.mxu0 0.0
      %1678 = vmatpush1.msra.mxu0 0.0
      %1679 = vmatprep.subr.mxu0 0.0
      %1680 = vmatpush1.msra.mxu0 0.0
      %1681 = vmatprep.subr.mxu0 0.0
      %1682 = vmatpush1.msra.mxu0 0.0
      %1683 = vmatprep.subr.mxu0 0.0
      %1684 = vmatpush1.msra.mxu0 0.0
      %1685 = vmatprep.subr.mxu0 0.0
      %1686 = vmatpush1.msra.mxu0 0.0
      %1687 = vmatprep.subr.mxu0 0.0
      %1688 = vmatpush1.msra.mxu0 0.0
      %1689 = vmatprep.subr.mxu0 0.0
      %1690 = vmatpush1.msra.mxu0 0.0
      %1691 = vmatprep.subr.mxu0 0.0
      %1692 = vmatpush1.msra.mxu0 0.0
      %1693 = vmatprep.subr.mxu0 0.0
      %1694 = vmatpush1.msra.mxu0 0.0
      %1695 = vmatprep.subr.mxu0 0.0
      %1696 = vmatpush1.msra.mxu0 0.0
      %1697 = vmatprep.subr.mxu0 0.0
      %1698 = vmatpush1.msra.mxu0 0.0
      %1699 = vmatprep.subr.mxu0 0.0
      %1700 = vmatpush1.msra.mxu0 0.0
      %1701 = vmatprep.subr.mxu0 0.0
      %1702 = vmatpush1.msra.mxu0 0.0
      %1703 = vmatprep.subr.mxu0 0.0
      %1704 = vmatpush1.msra.mxu0 0.0
      %1705 = vmatprep.subr.mxu0 0.0
      %1706 = vmatpush1.msra.mxu0 0.0
      %1707 = vmatprep.subr.mxu0 0.0
      %1708 = vmatpush1.msra.mxu0 0.0
      %1709 = vmatprep.subr.mxu0 0.0
      %1710 = vmatpush1.msra.mxu0 0.0
      %1711 = vmatprep.subr.mxu0 0.0
      %1712 = vmatpush1.msra.mxu0 0.0
      %1713 = vmatprep.subr.mxu0 0.0
      %1714 = vmatpush1.msra.mxu0 0.0
      %1715 = vmatprep.subr.mxu0 0.0
      %1716 = vmatpush1.msra.mxu0 0.0
      %1717 = vmatprep.subr.mxu0 0.0
      %1718 = vmatpush1.msra.mxu0 0.0
      %1719 = vmatprep.subr.mxu0 0.0
      %1720 = vmatpush1.msra.mxu0 0.0
      %1721 = vmatprep.mubr.f32.mxu0 0.0
      %1722 = vmatmul.mubr.f32.gmra.mrb[0].mxu0 %v1652
      %v1723 = vpop.f32.mrb[0].mxu0
      %v1724 = vadd.f32 %v1649, %v1723
      %v1725 = vpop.f32.mrb[0].mxu0
      %1726 = vmatprep.mubr.f32.mxu0 0.0
      %1727 = vmatmul.mubr.f32.gmra.mrb[0].mxu0 %v1655
      %v1728 = vpop.f32.mrb[0].mxu0
      %v1729 = vadd.f32 %v1649, %v1728
      %v1730 = vpop.f32.mrb[0].mxu0
      %1731 = vdwg.mxu0
      %v1732 = vadd.f32 %v704, %v1724
      %v1733 = vadd.f32 %v705, %v1729
      %v1734 = vld [vmem:[%s6] sm:$0x1]
      %v1735 = vld [vmem:[%s7] sm:$0x1]
      %v1736 = vsel %vm719, %v1732, 0.0
      %1737 = vadd.xlane.f32.xlu0 %v1736
      %v1738 = vpop.xlane.xlu0 %1737
      %v1739 = vsel %vm719, %v1733, 0.0
      %1740 = vadd.xlane.f32.xlu0 %v1739
      %v1741 = vpop.xlane.xlu0 %1740
      %v1742 = vrcp.pop 32.0
      %v1743 = vmul.f32 %v1738, %v1742
      %v1744 = vmul.f32 %v1741, %v1742
      %v1745 = vsub.f32 %v1732, %v1743
      %v1746 = vsub.f32 %v1733, %v1744
      %v1747 = vmul.f32 %v1745, %v1745
      %v1748 = vmul.f32 %v1746, %v1746
      %v1749 = vsel %vm719, %v1747, 0.0
      %1750 = vadd.xlane.f32.xlu0 %v1749
      %v1751 = vpop.xlane.xlu0 %1750
      %v1752 = vsel %vm719, %v1748, 0.0
      %1753 = vadd.xlane.f32.xlu0 %v1752
      %v1754 = vpop.xlane.xlu0 %1753
      %v1755 = vmul.f32 %v1751, %v1742
      %v1756 = vmul.f32 %v1754, %v1742
      %v1757 = vadd.f32 %v1755, 1e-05
      %v1758 = vadd.f32 %v1756, 1e-05
      %v1759 = vrsqrt.pop %v1757
      %v1760 = vrsqrt.pop %v1758
      %v1761 = vmul.f32 %v1745, %v1759
      %v1762 = vmul.f32 %v1746, %v1760
      %v1764 = vlaneseq
      %v1765 = vshrl.u32 %v1764, 7
      %v1766 = vsub.s32 0, %v1765
      %v1767 = vrot.slane %v1734, %v1766
      %v1769 = vmul.f32 %v1761, %v1767
      %v1770 = vmul.f32 %v1762, %v1767
      %v1772 = vlaneseq
      %v1773 = vshrl.u32 %v1772, 7
      %v1774 = vsub.s32 0, %v1773
      %v1775 = vrot.slane %v1735, %v1774
      %v1777 = vadd.f32 %v1769, %v1775
      %v1778 = vadd.f32 %v1770, %v1775
      %v1779 = vld [vmem:[%s8] sm:$0xff]
      %v1780 = vld [vmem:[%s8 + $0x8] sm:$0xff]
      %v1781 = vld [vmem:[%s8 + $0x10] sm:$0xff]
      %v1782 = vld [vmem:[%s8 + $0x18] sm:$0xff]
      %v1783 = vld [vmem:[%s9] sm:$0x1]
      %v1785 = vlaneseq
      %v1786 = vshrl.u32 %v1785, 7
      %v1787 = vsub.s32 0, %v1786
      %v1788 = vrot.slane %v1783, %v1787
      %v1791 = vsel %vm719, %v1777, 0
      %v1794 = vsel %vm719, %v1778, 0
      %1796 = vmatprep.subr.mxu0 0.0
      %1797 = vmatpush1.msra.mxu0 %v1779
      %1798 = vmatprep.subr.mxu0 0.0
      %1799 = vmatpush1.msra.mxu0 %v1780
      %1800 = vmatprep.subr.mxu0 0.0
      %1801 = vmatpush1.msra.mxu0 %v1781
      %1802 = vmatprep.subr.mxu0 0.0
      %1803 = vmatpush1.msra.mxu0 %v1782
      %1804 = vmatprep.subr.mxu0 0.0
      %1805 = vmatpush1.msra.mxu0 0.0
      %1806 = vmatprep.subr.mxu0 0.0
      %1807 = vmatpush1.msra.mxu0 0.0
      %1808 = vmatprep.subr.mxu0 0.0
      %1809 = vmatpush1.msra.mxu0 0.0
      %1810 = vmatprep.subr.mxu0 0.0
      %1811 = vmatpush1.msra.mxu0 0.0
      %1812 = vmatprep.subr.mxu0 0.0
      %1813 = vmatpush1.msra.mxu0 0.0
      %1814 = vmatprep.subr.mxu0 0.0
      %1815 = vmatpush1.msra.mxu0 0.0
      %1816 = vmatprep.subr.mxu0 0.0
      %1817 = vmatpush1.msra.mxu0 0.0
      %1818 = vmatprep.subr.mxu0 0.0
      %1819 = vmatpush1.msra.mxu0 0.0
      %1820 = vmatprep.subr.mxu0 0.0
      %1821 = vmatpush1.msra.mxu0 0.0
      %1822 = vmatprep.subr.mxu0 0.0
      %1823 = vmatpush1.msra.mxu0 0.0
      %1824 = vmatprep.subr.mxu0 0.0
      %1825 = vmatpush1.msra.mxu0 0.0
      %1826 = vmatprep.subr.mxu0 0.0
      %1827 = vmatpush1.msra.mxu0 0.0
      %1828 = vmatprep.subr.mxu0 0.0
      %1829 = vmatpush1.msra.mxu0 0.0
      %1830 = vmatprep.subr.mxu0 0.0
      %1831 = vmatpush1.msra.mxu0 0.0
      %1832 = vmatprep.subr.mxu0 0.0
      %1833 = vmatpush1.msra.mxu0 0.0
      %1834 = vmatprep.subr.mxu0 0.0
      %1835 = vmatpush1.msra.mxu0 0.0
      %1836 = vmatprep.subr.mxu0 0.0
      %1837 = vmatpush1.msra.mxu0 0.0
      %1838 = vmatprep.subr.mxu0 0.0
      %1839 = vmatpush1.msra.mxu0 0.0
      %1840 = vmatprep.subr.mxu0 0.0
      %1841 = vmatpush1.msra.mxu0 0.0
      %1842 = vmatprep.subr.mxu0 0.0
      %1843 = vmatpush1.msra.mxu0 0.0
      %1844 = vmatprep.subr.mxu0 0.0
      %1845 = vmatpush1.msra.mxu0 0.0
      %1846 = vmatprep.subr.mxu0 0.0
      %1847 = vmatpush1.msra.mxu0 0.0
      %1848 = vmatprep.subr.mxu0 0.0
      %1849 = vmatpush1.msra.mxu0 0.0
      %1850 = vmatprep.subr.mxu0 0.0
      %1851 = vmatpush1.msra.mxu0 0.0
      %1852 = vmatprep.subr.mxu0 0.0
      %1853 = vmatpush1.msra.mxu0 0.0
      %1854 = vmatprep.subr.mxu0 0.0
      %1855 = vmatpush1.msra.mxu0 0.0
      %1856 = vmatprep.subr.mxu0 0.0
      %1857 = vmatpush1.msra.mxu0 0.0
      %1858 = vmatprep.subr.mxu0 0.0
      %1859 = vmatpush1.msra.mxu0 0.0
      %1860 = vmatprep.mubr.f32.mxu0 0.0
      %1861 = vmatmul.mubr.f32.gmra.mrb[0].mxu0 %v1791
      %v1862 = vpop.f32.mrb[0].mxu0
      %v1863 = vadd.f32 %v1788, %v1862
      %v1864 = vpop.f32.mrb[0].mxu0
      %1865 = vmatprep.mubr.f32.mxu0 0.0
      %1866 = vmatmul.mubr.f32.gmra.mrb[0].mxu0 %v1794
      %v1867 = vpop.f32.mrb[0].mxu0
      %v1868 = vadd.f32 %v1788, %v1867
      %v1869 = vpop.f32.mrb[0].mxu0
      %1870 = vdwg.mxu0
      %v1871 = vld [vmem:[%s10] sm:$0xff]
      %v1872 = vld [vmem:[%s10 + $0x8] sm:$0xff]
      %v1873 = vld [vmem:[%s10 + $0x10] sm:$0xff]
      %v1874 = vld [vmem:[%s10 + $0x18] sm:$0xff]
      %v1875 = vld [vmem:[%s11] sm:$0x1]
      %v1877 = vlaneseq
      %v1878 = vshrl.u32 %v1877, 7
      %v1879 = vsub.s32 0, %v1878
      %v1880 = vrot.slane %v1875, %v1879
      %v1883 = vsel %vm719, %v706, 0
      %v1886 = vsel %vm719, %v707, 0
      %1888 = vmatprep.subr.mxu0 0.0
      %1889 = vmatpush1.msra.mxu0 %v1871
      %1890 = vmatprep.subr.mxu0 0.0
      %1891 = vmatpush1.msra.mxu0 %v1872
      %1892 = vmatprep.subr.mxu0 0.0
      %1893 = vmatpush1.msra.mxu0 %v1873
      %1894 = vmatprep.subr.mxu0 0.0
      %1895 = vmatpush1.msra.mxu0 %v1874
      %1896 = vmatprep.subr.mxu0 0.0
      %1897 = vmatpush1.msra.mxu0 0.0
      %1898 = vmatprep.subr.mxu0 0.0
      %1899 = vmatpush1.msra.mxu0 0.0
      %1900 = vmatprep.subr.mxu0 0.0
      %1901 = vmatpush1.msra.mxu0 0.0
      %1902 = vmatprep.subr.mxu0 0.0
      %1903 = vmatpush1.msra.mxu0 0.0
      %1904 = vmatprep.subr.mxu0 0.0
      %1905 = vmatpush1.msra.mxu0 0.0
      %1906 = vmatprep.subr.mxu0 0.0
      %1907 = vmatpush1.msra.mxu0 0.0
      %1908 = vmatprep.subr.mxu0 0.0
      %1909 = vmatpush1.msra.mxu0 0.0
      %1910 = vmatprep.subr.mxu0 0.0
      %1911 = vmatpush1.msra.mxu0 0.0
      %1912 = vmatprep.subr.mxu0 0.0
      %1913 = vmatpush1.msra.mxu0 0.0
      %1914 = vmatprep.subr.mxu0 0.0
      %1915 = vmatpush1.msra.mxu0 0.0
      %1916 = vmatprep.subr.mxu0 0.0
      %1917 = vmatpush1.msra.mxu0 0.0
      %1918 = vmatprep.subr.mxu0 0.0
      %1919 = vmatpush1.msra.mxu0 0.0
      %1920 = vmatprep.subr.mxu0 0.0
      %1921 = vmatpush1.msra.mxu0 0.0
      %1922 = vmatprep.subr.mxu0 0.0
      %1923 = vmatpush1.msra.mxu0 0.0
      %1924 = vmatprep.subr.mxu0 0.0
      %1925 = vmatpush1.msra.mxu0 0.0
      %1926 = vmatprep.subr.mxu0 0.0
      %1927 = vmatpush1.msra.mxu0 0.0
      %1928 = vmatprep.subr.mxu0 0.0
      %1929 = vmatpush1.msra.mxu0 0.0
      %1930 = vmatprep.subr.mxu0 0.0
      %1931 = vmatpush1.msra.mxu0 0.0
      %1932 = vmatprep.subr.mxu0 0.0
      %1933 = vmatpush1.msra.mxu0 0.0
      %1934 = vmatprep.subr.mxu0 0.0
      %1935 = vmatpush1.msra.mxu0 0.0
      %1936 = vmatprep.subr.mxu0 0.0
      %1937 = vmatpush1.msra.mxu0 0.0
      %1938 = vmatprep.subr.mxu0 0.0
      %1939 = vmatpush1.msra.mxu0 0.0
      %1940 = vmatprep.subr.mxu0 0.0
      %1941 = vmatpush1.msra.mxu0 0.0
      %1942 = vmatprep.subr.mxu0 0.0
      %1943 = vmatpush1.msra.mxu0 0.0
      %1944 = vmatprep.subr.mxu0 0.0
      %1945 = vmatpush1.msra.mxu0 0.0
      %1946 = vmatprep.subr.mxu0 0.0
      %1947 = vmatpush1.msra.mxu0 0.0
      %1948 = vmatprep.subr.mxu0 0.0
      %1949 = vmatpush1.msra.mxu0 0.0
      %1950 = vmatprep.subr.mxu0 0.0
      %1951 = vmatpush1.msra.mxu0 0.0
      %1952 = vmatprep.mubr.f32.mxu0 0.0
      %1953 = vmatmul.mubr.f32.gmra.mrb[0].mxu0 %v1883
      %v1954 = vpop.f32.mrb[0].mxu0
      %v1955 = vadd.f32 %v1880, %v1954
      %v1956 = vpop.f32.mrb[0].mxu0
      %1957 = vmatprep.mubr.f32.mxu0 0.0
      %1958 = vmatmul.mubr.f32.gmra.mrb[0].mxu0 %v1886
      %v1959 = vpop.f32.mrb[0].mxu0
      %v1960 = vadd.f32 %v1880, %v1959
      %v1961 = vpop.f32.mrb[0].mxu0
      %1962 = vdwg.mxu0
      %v1964 = vsel %vm807, %v1863, 0
      %v1967 = vsel %vm807, %v1868, 0
      %v1970 = vsel %vm807, %v1955, 0
      %v1973 = vsel %vm807, %v1960, 0
      %1975 = vmatprep.subr.mxu0 0.0
      %1976 = vmatpush1.xpose.msra.mxu0 %v1970
      %1977 = vmatprep.subr.mxu0 0.0
      %1978 = vmatpush1.xpose.msra.mxu0 %v1973
      %1979 = vmatprep.subr.mxu0 0.0
      %1980 = vmatpush1.xpose.msra.mxu0 0.0
      %1981 = vmatprep.subr.mxu0 0.0
      %1982 = vmatpush1.xpose.msra.mxu0 0.0
      %1983 = vmatprep.subr.mxu0 0.0
      %1984 = vmatpush1.xpose.msra.mxu0 0.0
      %1985 = vmatprep.subr.mxu0 0.0
      %1986 = vmatpush1.xpose.msra.mxu0 0.0
      %1987 = vmatprep.subr.mxu0 0.0
      %1988 = vmatpush1.xpose.msra.mxu0 0.0
      %1989 = vmatprep.subr.mxu0 0.0
      %1990 = vmatpush1.xpose.msra.mxu0 0.0
      %1991 = vmatprep.subr.mxu0 0.0
      %1992 = vmatpush1.xpose.msra.mxu0 0.0
      %1993 = vmatprep.subr.mxu0 0.0
      %1994 = vmatpush1.xpose.msra.mxu0 0.0
      %1995 = vmatprep.subr.mxu0 0.0
      %1996 = vmatpush1.xpose.msra.mxu0 0.0
      %1997 = vmatprep.subr.mxu0 0.0
      %1998 = vmatpush1.xpose.msra.mxu0 0.0
      %1999 = vmatprep.subr.mxu0 0.0
      %2000 = vmatpush1.xpose.msra.mxu0 0.0
      %2001 = vmatprep.subr.mxu0 0.0
      %2002 = vmatpush1.xpose.msra.mxu0 0.0
      %2003 = vmatprep.subr.mxu0 0.0
      %2004 = vmatpush1.xpose.msra.mxu0 0.0
      %2005 = vmatprep.subr.mxu0 0.0
      %2006 = vmatpush1.xpose.msra.mxu0 0.0
      %2007 = vmatprep.subr.mxu0 0.0
      %2008 = vmatpush1.xpose.msra.mxu0 0.0
      %2009 = vmatprep.subr.mxu0 0.0
      %2010 = vmatpush1.xpose.msra.mxu0 0.0
      %2011 = vmatprep.subr.mxu0 0.0
      %2012 = vmatpush1.xpose.msra.mxu0 0.0
      %2013 = vmatprep.subr.mxu0 0.0
      %2014 = vmatpush1.xpose.msra.mxu0 0.0
      %2015 = vmatprep.subr.mxu0 0.0
      %2016 = vmatpush1.xpose.msra.mxu0 0.0
      %2017 = vmatprep.subr.mxu0 0.0
      %2018 = vmatpush1.xpose.msra.mxu0 0.0
      %2019 = vmatprep.subr.mxu0 0.0
      %2020 = vmatpush1.xpose.msra.mxu0 0.0
      %2021 = vmatprep.subr.mxu0 0.0
      %2022 = vmatpush1.xpose.msra.mxu0 0.0
      %2023 = vmatprep.subr.mxu0 0.0
      %2024 = vmatpush1.xpose.msra.mxu0 0.0
      %2025 = vmatprep.subr.mxu0 0.0
      %2026 = vmatpush1.xpose.msra.mxu0 0.0
      %2027 = vmatprep.subr.mxu0 0.0
      %2028 = vmatpush1.xpose.msra.mxu0 0.0
      %2029 = vmatprep.subr.mxu0 0.0
      %2030 = vmatpush1.xpose.msra.mxu0 0.0
      %2031 = vmatprep.subr.mxu0 0.0
      %2032 = vmatpush1.xpose.msra.mxu0 0.0
      %2033 = vmatprep.subr.mxu0 0.0
      %2034 = vmatpush1.xpose.msra.mxu0 0.0
      %2035 = vmatprep.subr.mxu0 0.0
      %2036 = vmatpush1.xpose.msra.mxu0 0.0
      %2037 = vmatprep.subr.mxu0 0.0
      %2038 = vmatpush1.xpose.msra.mxu0 0.0
      %2039 = vmatprep.mubr.f32.mxu0 0.0
      %2040 = vmatmul.mubr.f32.gmra.mrb[0].mxu0 %v1964
      %v2041 = vpop.f32.mrb[0].mxu0
      %v2042 = vadd.f32 0.0, %v2041
      %v2043 = vpop.f32.mrb[0].mxu0
      %2044 = vmatprep.mubr.f32.mxu0 0.0
      %2045 = vmatmul.mubr.f32.gmra.mrb[0].mxu0 %v1967
      %v2046 = vpop.f32.mrb[0].mxu0
      %v2047 = vadd.f32 0.0, %v2046
      %v2048 = vpop.f32.mrb[0].mxu0
      %2049 = vdwg.mxu0
      %v2050 = vmul.f32 %v2042, 0.35355338
      %v2051 = vmul.f32 %v2047, 0.35355338
      %v2052 = vsel %vm893, %v2050, -inf
      %2053 = vmax.xlane.f32.xlu0 %v2052
      %v2054 = vpop.xlane.xlu0 %2053
      %v2055 = vsel %vm893, %v2051, -inf
      %2056 = vmax.xlane.f32.xlu0 %v2055
      %v2057 = vpop.xlane.xlu0 %2056
      %v2058 = vsub.f32 %v2050, %v2054
      %v2059 = vsub.f32 %v2051, %v2057
      %v2060 = vmul.f32 %v2058, 1.442695
      %v2061 = vpow.pop %v2060
      %v2062 = vmul.f32 %v2059, 1.442695
      %v2063 = vpow.pop %v2062
      %v2064 = vsel %vm893, %v2061, 0.0
      %2065 = vadd.xlane.f32.xlu0 %v2064
      %v2066 = vpop.xlane.xlu0 %2065
      %v2067 = vsel %vm893, %v2063, 0.0
      %2068 = vadd.xlane.f32.xlu0 %v2067
      %v2069 = vpop.xlane.xlu0 %2068
      %v2070 = vrcp.pop %v2066
      %v2071 = vrcp.pop %v2069
      %v2072 = vmul.f32 %v2061, %v2070
      %v2073 = vmul.f32 %v2063, %v2071
      %2074 = vrot.lane.b32.xlu0 %v1955, 96
      %v2075 = vpop.permute.xlu0 %2074
      %2076 = vrot.lane.b32.xlu0 %v1960, 96
      %v2077 = vpop.permute.xlu0 %2076
      %v2081 = vsel %vm893, %v2072, 0
      %v2084 = vsel %vm893, %v2073, 0
      %2086 = vmatprep.subr.mxu0 0.0
      %2087 = vmatpush1.msra.mxu0 %v2075
      %2088 = vmatprep.subr.mxu0 0.0
      %2089 = vmatpush1.msra.mxu0 %v2077
      %2090 = vmatprep.subr.mxu0 0.0
      %2091 = vmatpush1.msra.mxu0 0.0
      %2092 = vmatprep.subr.mxu0 0.0
      %2093 = vmatpush1.msra.mxu0 0.0
      %2094 = vmatprep.subr.mxu0 0.0
      %2095 = vmatpush1.msra.mxu0 0.0
      %2096 = vmatprep.subr.mxu0 0.0
      %2097 = vmatpush1.msra.mxu0 0.0
      %2098 = vmatprep.subr.mxu0 0.0
      %2099 = vmatpush1.msra.mxu0 0.0
      %2100 = vmatprep.subr.mxu0 0.0
      %2101 = vmatpush1.msra.mxu0 0.0
      %2102 = vmatprep.subr.mxu0 0.0
      %2103 = vmatpush1.msra.mxu0 0.0
      %2104 = vmatprep.subr.mxu0 0.0
      %2105 = vmatpush1.msra.mxu0 0.0
      %2106 = vmatprep.subr.mxu0 0.0
      %2107 = vmatpush1.msra.mxu0 0.0
      %2108 = vmatprep.subr.mxu0 0.0
      %2109 = vmatpush1.msra.mxu0 0.0
      %2110 = vmatprep.subr.mxu0 0.0
      %2111 = vmatpush1.msra.mxu0 0.0
      %2112 = vmatprep.subr.mxu0 0.0
      %2113 = vmatpush1.msra.mxu0 0.0
      %2114 = vmatprep.subr.mxu0 0.0
      %2115 = vmatpush1.msra.mxu0 0.0
      %2116 = vmatprep.subr.mxu0 0.0
      %2117 = vmatpush1.msra.mxu0 0.0
      %2118 = vmatprep.subr.mxu0 0.0
      %2119 = vmatpush1.msra.mxu0 0.0
      %2120 = vmatprep.subr.mxu0 0.0
      %2121 = vmatpush1.msra.mxu0 0.0
      %2122 = vmatprep.subr.mxu0 0.0
      %2123 = vmatpush1.msra.mxu0 0.0
      %2124 = vmatprep.subr.mxu0 0.0
      %2125 = vmatpush1.msra.mxu0 0.0
      %2126 = vmatprep.subr.mxu0 0.0
      %2127 = vmatpush1.msra.mxu0 0.0
      %2128 = vmatprep.subr.mxu0 0.0
      %2129 = vmatpush1.msra.mxu0 0.0
      %2130 = vmatprep.subr.mxu0 0.0
      %2131 = vmatpush1.msra.mxu0 0.0
      %2132 = vmatprep.subr.mxu0 0.0
      %2133 = vmatpush1.msra.mxu0 0.0
      %2134 = vmatprep.subr.mxu0 0.0
      %2135 = vmatpush1.msra.mxu0 0.0
      %2136 = vmatprep.subr.mxu0 0.0
      %2137 = vmatpush1.msra.mxu0 0.0
      %2138 = vmatprep.subr.mxu0 0.0
      %2139 = vmatpush1.msra.mxu0 0.0
      %2140 = vmatprep.subr.mxu0 0.0
      %2141 = vmatpush1.msra.mxu0 0.0
      %2142 = vmatprep.subr.mxu0 0.0
      %2143 = vmatpush1.msra.mxu0 0.0
      %2144 = vmatprep.subr.mxu0 0.0
      %2145 = vmatpush1.msra.mxu0 0.0
      %2146 = vmatprep.subr.mxu0 0.0
      %2147 = vmatpush1.msra.mxu0 0.0
      %2148 = vmatprep.subr.mxu0 0.0
      %2149 = vmatpush1.msra.mxu0 0.0
      %2150 = vmatprep.mubr.f32.mxu0 0.0
      %2151 = vmatmul.mubr.f32.gmra.mrb[0].mxu0 %v2081
      %v2152 = vpop.f32.mrb[0].mxu0
      %v2153 = vadd.f32 0.0, %v2152
      %v2154 = vpop.f32.mrb[0].mxu0
      %2155 = vmatprep.mubr.f32.mxu0 0.0
      %2156 = vmatmul.mubr.f32.gmra.mrb[0].mxu0 %v2084
      %v2157 = vpop.f32.mrb[0].mxu0
      %v2158 = vadd.f32 0.0, %v2157
      %v2159 = vpop.f32.mrb[0].mxu0
      %2160 = vdwg.mxu0
      %2161 = vrot.lane.b32.xlu0 %v1863, 120
      %v2162 = vpop.permute.xlu0 %2161
      %2163 = vrot.lane.b32.xlu0 %v1868, 120
      %v2164 = vpop.permute.xlu0 %2163
      %2165 = vrot.lane.b32.xlu0 %v1955, 120
      %v2166 = vpop.permute.xlu0 %2165
      %2167 = vrot.lane.b32.xlu0 %v1960, 120
      %v2168 = vpop.permute.xlu0 %2167
      %v2169 = vsel %vm807, %v2162, 0
      %v2171 = vsel %vm807, %v2164, 0
      %v2173 = vsel %vm807, %v2166, 0
      %v2175 = vsel %vm807, %v2168, 0
      %2177 = vmatprep.subr.mxu0 0.0
      %2178 = vmatpush1.xpose.msra.mxu0 %v2173
      %2179 = vmatprep.subr.mxu0 0.0
      %2180 = vmatpush1.xpose.msra.mxu0 %v2175
      %2181 = vmatprep.subr.mxu0 0.0
      %2182 = vmatpush1.xpose.msra.mxu0 0.0
      %2183 = vmatprep.subr.mxu0 0.0
      %2184 = vmatpush1.xpose.msra.mxu0 0.0
      %2185 = vmatprep.subr.mxu0 0.0
      %2186 = vmatpush1.xpose.msra.mxu0 0.0
      %2187 = vmatprep.subr.mxu0 0.0
      %2188 = vmatpush1.xpose.msra.mxu0 0.0
      %2189 = vmatprep.subr.mxu0 0.0
      %2190 = vmatpush1.xpose.msra.mxu0 0.0
      %2191 = vmatprep.subr.mxu0 0.0
      %2192 = vmatpush1.xpose.msra.mxu0 0.0
      %2193 = vmatprep.subr.mxu0 0.0
      %2194 = vmatpush1.xpose.msra.mxu0 0.0
      %2195 = vmatprep.subr.mxu0 0.0
      %2196 = vmatpush1.xpose.msra.mxu0 0.0
      %2197 = vmatprep.subr.mxu0 0.0
      %2198 = vmatpush1.xpose.msra.mxu0 0.0
      %2199 = vmatprep.subr.mxu0 0.0
      %2200 = vmatpush1.xpose.msra.mxu0 0.0
      %2201 = vmatprep.subr.mxu0 0.0
      %2202 = vmatpush1.xpose.msra.mxu0 0.0
      %2203 = vmatprep.subr.mxu0 0.0
      %2204 = vmatpush1.xpose.msra.mxu0 0.0
      %2205 = vmatprep.subr.mxu0 0.0
      %2206 = vmatpush1.xpose.msra.mxu0 0.0
      %2207 = vmatprep.subr.mxu0 0.0
      %2208 = vmatpush1.xpose.msra.mxu0 0.0
      %2209 = vmatprep.subr.mxu0 0.0
      %2210 = vmatpush1.xpose.msra.mxu0 0.0
      %2211 = vmatprep.subr.mxu0 0.0
      %2212 = vmatpush1.xpose.msra.mxu0 0.0
      %2213 = vmatprep.subr.mxu0 0.0
      %2214 = vmatpush1.xpose.msra.mxu0 0.0
      %2215 = vmatprep.subr.mxu0 0.0
      %2216 = vmatpush1.xpose.msra.mxu0 0.0
      %2217 = vmatprep.subr.mxu0 0.0
      %2218 = vmatpush1.xpose.msra.mxu0 0.0
      %2219 = vmatprep.subr.mxu0 0.0
      %2220 = vmatpush1.xpose.msra.mxu0 0.0
      %2221 = vmatprep.subr.mxu0 0.0
      %2222 = vmatpush1.xpose.msra.mxu0 0.0
      %2223 = vmatprep.subr.mxu0 0.0
      %2224 = vmatpush1.xpose.msra.mxu0 0.0
      %2225 = vmatprep.subr.mxu0 0.0
      %2226 = vmatpush1.xpose.msra.mxu0 0.0
      %2227 = vmatprep.subr.mxu0 0.0
      %2228 = vmatpush1.xpose.msra.mxu0 0.0
      %2229 = vmatprep.subr.mxu0 0.0
      %2230 = vmatpush1.xpose.msra.mxu0 0.0
      %2231 = vmatprep.subr.mxu0 0.0
      %2232 = vmatpush1.xpose.msra.mxu0 0.0
      %2233 = vmatprep.subr.mxu0 0.0
      %2234 = vmatpush1.xpose.msra.mxu0 0.0
      %2235 = vmatprep.subr.mxu0 0.0
      %2236 = vmatpush1.xpose.msra.mxu0 0.0
      %2237 = vmatprep.subr.mxu0 0.0
      %2238 = vmatpush1.xpose.msra.mxu0 0.0
      %2239 = vmatprep.subr.mxu0 0.0
      %2240 = vmatpush1.xpose.msra.mxu0 0.0
      %2241 = vmatprep.mubr.f32.mxu0 0.0
      %2242 = vmatmul.mubr.f32.gmra.mrb[0].mxu0 %v2169
      %v2243 = vpop.f32.mrb[0].mxu0
      %v2244 = vadd.f32 0.0, %v2243
      %v2245 = vpop.f32.mrb[0].mxu0
      %2246 = vmatprep.mubr.f32.mxu0 0.0
      %2247 = vmatmul.mubr.f32.gmra.mrb[0].mxu0 %v2171
      %v2248 = vpop.f32.mrb[0].mxu0
      %v2249 = vadd.f32 0.0, %v2248
      %v2250 = vpop.f32.mrb[0].mxu0
      %2251 = vdwg.mxu0
      %v2252 = vmul.f32 %v2244, 0.35355338
      %v2253 = vmul.f32 %v2249, 0.35355338
      %v2254 = vsel %vm893, %v2252, -inf
      %2255 = vmax.xlane.f32.xlu0 %v2254
      %v2256 = vpop.xlane.xlu0 %2255
      %v2257 = vsel %vm893, %v2253, -inf
      %2258 = vmax.xlane.f32.xlu0 %v2257
      %v2259 = vpop.xlane.xlu0 %2258
      %v2260 = vsub.f32 %v2252, %v2256
      %v2261 = vsub.f32 %v2253, %v2259
      %v2262 = vmul.f32 %v2260, 1.442695
      %v2263 = vpow.pop %v2262
      %v2264 = vmul.f32 %v2261, 1.442695
      %v2265 = vpow.pop %v2264
      %v2266 = vsel %vm893, %v2263, 0.0
      %2267 = vadd.xlane.f32.xlu0 %v2266
      %v2268 = vpop.xlane.xlu0 %2267
      %v2269 = vsel %vm893, %v2265, 0.0
      %2270 = vadd.xlane.f32.xlu0 %v2269
      %v2271 = vpop.xlane.xlu0 %2270
      %v2272 = vrcp.pop %v2268
      %v2273 = vrcp.pop %v2271
      %v2274 = vmul.f32 %v2263, %v2272
      %v2275 = vmul.f32 %v2265, %v2273
      %2276 = vrot.lane.b32.xlu0 %v1955, 88
      %v2277 = vpop.permute.xlu0 %2276
      %2278 = vrot.lane.b32.xlu0 %v1960, 88
      %v2279 = vpop.permute.xlu0 %2278
      %v2283 = vsel %vm893, %v2274, 0
      %v2286 = vsel %vm893, %v2275, 0
      %2288 = vmatprep.subr.mxu0 0.0
      %2289 = vmatpush1.msra.mxu0 %v2277
      %2290 = vmatprep.subr.mxu0 0.0
      %2291 = vmatpush1.msra.mxu0 %v2279
      %2292 = vmatprep.subr.mxu0 0.0
      %2293 = vmatpush1.msra.mxu0 0.0
      %2294 = vmatprep.subr.mxu0 0.0
      %2295 = vmatpush1.msra.mxu0 0.0
      %2296 = vmatprep.subr.mxu0 0.0
      %2297 = vmatpush1.msra.mxu0 0.0
      %2298 = vmatprep.subr.mxu0 0.0
      %2299 = vmatpush1.msra.mxu0 0.0
      %2300 = vmatprep.subr.mxu0 0.0
      %2301 = vmatpush1.msra.mxu0 0.0
      %2302 = vmatprep.subr.mxu0 0.0
      %2303 = vmatpush1.msra.mxu0 0.0
      %2304 = vmatprep.subr.mxu0 0.0
      %2305 = vmatpush1.msra.mxu0 0.0
      %2306 = vmatprep.subr.mxu0 0.0
      %2307 = vmatpush1.msra.mxu0 0.0
      %2308 = vmatprep.subr.mxu0 0.0
      %2309 = vmatpush1.msra.mxu0 0.0
      %2310 = vmatprep.subr.mxu0 0.0
      %2311 = vmatpush1.msra.mxu0 0.0
      %2312 = vmatprep.subr.mxu0 0.0
      %2313 = vmatpush1.msra.mxu0 0.0
      %2314 = vmatprep.subr.mxu0 0.0
      %2315 = vmatpush1.msra.mxu0 0.0
      %2316 = vmatprep.subr.mxu0 0.0
      %2317 = vmatpush1.msra.mxu0 0.0
      %2318 = vmatprep.subr.mxu0 0.0
      %2319 = vmatpush1.msra.mxu0 0.0
      %2320 = vmatprep.subr.mxu0 0.0
      %2321 = vmatpush1.msra.mxu0 0.0
      %2322 = vmatprep.subr.mxu0 0.0
      %2323 = vmatpush1.msra.mxu0 0.0
      %2324 = vmatprep.subr.mxu0 0.0
      %2325 = vmatpush1.msra.mxu0 0.0
      %2326 = vmatprep.subr.mxu0 0.0
      %2327 = vmatpush1.msra.mxu0 0.0
      %2328 = vmatprep.subr.mxu0 0.0
      %2329 = vmatpush1.msra.mxu0 0.0
      %2330 = vmatprep.subr.mxu0 0.0
      %2331 = vmatpush1.msra.mxu0 0.0
      %2332 = vmatprep.subr.mxu0 0.0
      %2333 = vmatpush1.msra.mxu0 0.0
      %2334 = vmatprep.subr.mxu0 0.0
      %2335 = vmatpush1.msra.mxu0 0.0
      %2336 = vmatprep.subr.mxu0 0.0
      %2337 = vmatpush1.msra.mxu0 0.0
      %2338 = vmatprep.subr.mxu0 0.0
      %2339 = vmatpush1.msra.mxu0 0.0
      %2340 = vmatprep.subr.mxu0 0.0
      %2341 = vmatpush1.msra.mxu0 0.0
      %2342 = vmatprep.subr.mxu0 0.0
      %2343 = vmatpush1.msra.mxu0 0.0
      %2344 = vmatprep.subr.mxu0 0.0
      %2345 = vmatpush1.msra.mxu0 0.0
      %2346 = vmatprep.subr.mxu0 0.0
      %2347 = vmatpush1.msra.mxu0 0.0
      %2348 = vmatprep.subr.mxu0 0.0
      %2349 = vmatpush1.msra.mxu0 0.0
      %2350 = vmatprep.subr.mxu0 0.0
      %2351 = vmatpush1.msra.mxu0 0.0
      %2352 = vmatprep.mubr.f32.mxu0 0.0
      %2353 = vmatmul.mubr.f32.gmra.mrb[0].mxu0 %v2283
      %v2354 = vpop.f32.mrb[0].mxu0
      %v2355 = vadd.f32 0.0, %v2354
      %v2356 = vpop.f32.mrb[0].mxu0
      %2357 = vmatprep.mubr.f32.mxu0 0.0
      %2358 = vmatmul.mubr.f32.gmra.mrb[0].mxu0 %v2286
      %v2359 = vpop.f32.mrb[0].mxu0
      %v2360 = vadd.f32 0.0, %v2359
      %v2361 = vpop.f32.mrb[0].mxu0
      %2362 = vdwg.mxu0
      %2363 = vrot.lane.b32.xlu0 %v1863, 112
      %v2364 = vpop.permute.xlu0 %2363
      %2365 = vrot.lane.b32.xlu0 %v1868, 112
      %v2366 = vpop.permute.xlu0 %2365
      %2367 = vrot.lane.b32.xlu0 %v1955, 112
      %v2368 = vpop.permute.xlu0 %2367
      %2369 = vrot.lane.b32.xlu0 %v1960, 112
      %v2370 = vpop.permute.xlu0 %2369
      %v2371 = vsel %vm807, %v2364, 0
      %v2373 = vsel %vm807, %v2366, 0
      %v2375 = vsel %vm807, %v2368, 0
      %v2377 = vsel %vm807, %v2370, 0
      %2379 = vmatprep.subr.mxu0 0.0
      %2380 = vmatpush1.xpose.msra.mxu0 %v2375
      %2381 = vmatprep.subr.mxu0 0.0
      %2382 = vmatpush1.xpose.msra.mxu0 %v2377
      %2383 = vmatprep.subr.mxu0 0.0
      %2384 = vmatpush1.xpose.msra.mxu0 0.0
      %2385 = vmatprep.subr.mxu0 0.0
      %2386 = vmatpush1.xpose.msra.mxu0 0.0
      %2387 = vmatprep.subr.mxu0 0.0
      %2388 = vmatpush1.xpose.msra.mxu0 0.0
      %2389 = vmatprep.subr.mxu0 0.0
      %2390 = vmatpush1.xpose.msra.mxu0 0.0
      %2391 = vmatprep.subr.mxu0 0.0
      %2392 = vmatpush1.xpose.msra.mxu0 0.0
      %2393 = vmatprep.subr.mxu0 0.0
      %2394 = vmatpush1.xpose.msra.mxu0 0.0
      %2395 = vmatprep.subr.mxu0 0.0
      %2396 = vmatpush1.xpose.msra.mxu0 0.0
      %2397 = vmatprep.subr.mxu0 0.0
      %2398 = vmatpush1.xpose.msra.mxu0 0.0
      %2399 = vmatprep.subr.mxu0 0.0
      %2400 = vmatpush1.xpose.msra.mxu0 0.0
      %2401 = vmatprep.subr.mxu0 0.0
      %2402 = vmatpush1.xpose.msra.mxu0 0.0
      %2403 = vmatprep.subr.mxu0 0.0
      %2404 = vmatpush1.xpose.msra.mxu0 0.0
      %2405 = vmatprep.subr.mxu0 0.0
      %2406 = vmatpush1.xpose.msra.mxu0 0.0
      %2407 = vmatprep.subr.mxu0 0.0
      %2408 = vmatpush1.xpose.msra.mxu0 0.0
      %2409 = vmatprep.subr.mxu0 0.0
      %2410 = vmatpush1.xpose.msra.mxu0 0.0
      %2411 = vmatprep.subr.mxu0 0.0
      %2412 = vmatpush1.xpose.msra.mxu0 0.0
      %2413 = vmatprep.subr.mxu0 0.0
      %2414 = vmatpush1.xpose.msra.mxu0 0.0
      %2415 = vmatprep.subr.mxu0 0.0
      %2416 = vmatpush1.xpose.msra.mxu0 0.0
      %2417 = vmatprep.subr.mxu0 0.0
      %2418 = vmatpush1.xpose.msra.mxu0 0.0
      %2419 = vmatprep.subr.mxu0 0.0
      %2420 = vmatpush1.xpose.msra.mxu0 0.0
      %2421 = vmatprep.subr.mxu0 0.0
      %2422 = vmatpush1.xpose.msra.mxu0 0.0
      %2423 = vmatprep.subr.mxu0 0.0
      %2424 = vmatpush1.xpose.msra.mxu0 0.0
      %2425 = vmatprep.subr.mxu0 0.0
      %2426 = vmatpush1.xpose.msra.mxu0 0.0
      %2427 = vmatprep.subr.mxu0 0.0
      %2428 = vmatpush1.xpose.msra.mxu0 0.0
      %2429 = vmatprep.subr.mxu0 0.0
      %2430 = vmatpush1.xpose.msra.mxu0 0.0
      %2431 = vmatprep.subr.mxu0 0.0
      %2432 = vmatpush1.xpose.msra.mxu0 0.0
      %2433 = vmatprep.subr.mxu0 0.0
      %2434 = vmatpush1.xpose.msra.mxu0 0.0
      %2435 = vmatprep.subr.mxu0 0.0
      %2436 = vmatpush1.xpose.msra.mxu0 0.0
      %2437 = vmatprep.subr.mxu0 0.0
      %2438 = vmatpush1.xpose.msra.mxu0 0.0
      %2439 = vmatprep.subr.mxu0 0.0
      %2440 = vmatpush1.xpose.msra.mxu0 0.0
      %2441 = vmatprep.subr.mxu0 0.0
      %2442 = vmatpush1.xpose.msra.mxu0 0.0
      %2443 = vmatprep.mubr.f32.mxu0 0.0
      %2444 = vmatmul.mubr.f32.gmra.mrb[0].mxu0 %v2371
      %v2445 = vpop.f32.mrb[0].mxu0
      %v2446 = vadd.f32 0.0, %v2445
      %v2447 = vpop.f32.mrb[0].mxu0
      %2448 = vmatprep.mubr.f32.mxu0 0.0
      %2449 = vmatmul.mubr.f32.gmra.mrb[0].mxu0 %v2373
      %v2450 = vpop.f32.mrb[0].mxu0
      %v2451 = vadd.f32 0.0, %v2450
      %v2452 = vpop.f32.mrb[0].mxu0
      %2453 = vdwg.mxu0
      %v2454 = vmul.f32 %v2446, 0.35355338
      %v2455 = vmul.f32 %v2451, 0.35355338
      %v2456 = vsel %vm893, %v2454, -inf
      %2457 = vmax.xlane.f32.xlu0 %v2456
      %v2458 = vpop.xlane.xlu0 %2457
      %v2459 = vsel %vm893, %v2455, -inf
      %2460 = vmax.xlane.f32.xlu0 %v2459
      %v2461 = vpop.xlane.xlu0 %2460
      %v2462 = vsub.f32 %v2454, %v2458
      %v2463 = vsub.f32 %v2455, %v2461
      %v2464 = vmul.f32 %v2462, 1.442695
      %v2465 = vpow.pop %v2464
      %v2466 = vmul.f32 %v2463, 1.442695
      %v2467 = vpow.pop %v2466
      %v2468 = vsel %vm893, %v2465, 0.0
      %2469 = vadd.xlane.f32.xlu0 %v2468
      %v2470 = vpop.xlane.xlu0 %2469
      %v2471 = vsel %vm893, %v2467, 0.0
      %2472 = vadd.xlane.f32.xlu0 %v2471
      %v2473 = vpop.xlane.xlu0 %2472
      %v2474 = vrcp.pop %v2470
      %v2475 = vrcp.pop %v2473
      %v2476 = vmul.f32 %v2465, %v2474
      %v2477 = vmul.f32 %v2467, %v2475
      %2478 = vrot.lane.b32.xlu0 %v1955, 80
      %v2479 = vpop.permute.xlu0 %2478
      %2480 = vrot.lane.b32.xlu0 %v1960, 80
      %v2481 = vpop.permute.xlu0 %2480
      %v2485 = vsel %vm893, %v2476, 0
      %v2488 = vsel %vm893, %v2477, 0
      %2490 = vmatprep.subr.mxu0 0.0
      %2491 = vmatpush1.msra.mxu0 %v2479
      %2492 = vmatprep.subr.mxu0 0.0
      %2493 = vmatpush1.msra.mxu0 %v2481
      %2494 = vmatprep.subr.mxu0 0.0
      %2495 = vmatpush1.msra.mxu0 0.0
      %2496 = vmatprep.subr.mxu0 0.0
      %2497 = vmatpush1.msra.mxu0 0.0
      %2498 = vmatprep.subr.mxu0 0.0
      %2499 = vmatpush1.msra.mxu0 0.0
      %2500 = vmatprep.subr.mxu0 0.0
      %2501 = vmatpush1.msra.mxu0 0.0
      %2502 = vmatprep.subr.mxu0 0.0
      %2503 = vmatpush1.msra.mxu0 0.0
      %2504 = vmatprep.subr.mxu0 0.0
      %2505 = vmatpush1.msra.mxu0 0.0
      %2506 = vmatprep.subr.mxu0 0.0
      %2507 = vmatpush1.msra.mxu0 0.0
      %2508 = vmatprep.subr.mxu0 0.0
      %2509 = vmatpush1.msra.mxu0 0.0
      %2510 = vmatprep.subr.mxu0 0.0
      %2511 = vmatpush1.msra.mxu0 0.0
      %2512 = vmatprep.subr.mxu0 0.0
      %2513 = vmatpush1.msra.mxu0 0.0
      %2514 = vmatprep.subr.mxu0 0.0
      %2515 = vmatpush1.msra.mxu0 0.0
      %2516 = vmatprep.subr.mxu0 0.0
      %2517 = vmatpush1.msra.mxu0 0.0
      %2518 = vmatprep.subr.mxu0 0.0
      %2519 = vmatpush1.msra.mxu0 0.0
      %2520 = vmatprep.subr.mxu0 0.0
      %2521 = vmatpush1.msra.mxu0 0.0
      %2522 = vmatprep.subr.mxu0 0.0
      %2523 = vmatpush1.msra.mxu0 0.0
      %2524 = vmatprep.subr.mxu0 0.0
      %2525 = vmatpush1.msra.mxu0 0.0
      %2526 = vmatprep.subr.mxu0 0.0
      %2527 = vmatpush1.msra.mxu0 0.0
      %2528 = vmatprep.subr.mxu0 0.0
      %2529 = vmatpush1.msra.mxu0 0.0
      %2530 = vmatprep.subr.mxu0 0.0
      %2531 = vmatpush1.msra.mxu0 0.0
      %2532 = vmatprep.subr.mxu0 0.0
      %2533 = vmatpush1.msra.mxu0 0.0
      %2534 = vmatprep.subr.mxu0 0.0
      %2535 = vmatpush1.msra.mxu0 0.0
      %2536 = vmatprep.subr.mxu0 0.0
      %2537 = vmatpush1.msra.mxu0 0.0
      %2538 = vmatprep.subr.mxu0 0.0
      %2539 = vmatpush1.msra.mxu0 0.0
      %2540 = vmatprep.subr.mxu0 0.0
      %2541 = vmatpush1.msra.mxu0 0.0
      %2542 = vmatprep.subr.mxu0 0.0
      %2543 = vmatpush1.msra.mxu0 0.0
      %2544 = vmatprep.subr.mxu0 0.0
      %2545 = vmatpush1.msra.mxu0 0.0
      %2546 = vmatprep.subr.mxu0 0.0
      %2547 = vmatpush1.msra.mxu0 0.0
      %2548 = vmatprep.subr.mxu0 0.0
      %2549 = vmatpush1.msra.mxu0 0.0
      %2550 = vmatprep.subr.mxu0 0.0
      %2551 = vmatpush1.msra.mxu0 0.0
      %2552 = vmatprep.subr.mxu0 0.0
      %2553 = vmatpush1.msra.mxu0 0.0
      %2554 = vmatprep.mubr.f32.mxu0 0.0
      %2555 = vmatmul.mubr.f32.gmra.mrb[0].mxu0 %v2485
      %v2556 = vpop.f32.mrb[0].mxu0
      %v2557 = vadd.f32 0.0, %v2556
      %v2558 = vpop.f32.mrb[0].mxu0
      %2559 = vmatprep.mubr.f32.mxu0 0.0
      %2560 = vmatmul.mubr.f32.gmra.mrb[0].mxu0 %v2488
      %v2561 = vpop.f32.mrb[0].mxu0
      %v2562 = vadd.f32 0.0, %v2561
      %v2563 = vpop.f32.mrb[0].mxu0
      %2564 = vdwg.mxu0
      %2565 = vrot.lane.b32.xlu0 %v1863, 104
      %v2566 = vpop.permute.xlu0 %2565
      %2567 = vrot.lane.b32.xlu0 %v1868, 104
      %v2568 = vpop.permute.xlu0 %2567
      %2569 = vrot.lane.b32.xlu0 %v1955, 104
      %v2570 = vpop.permute.xlu0 %2569
      %2571 = vrot.lane.b32.xlu0 %v1960, 104
      %v2572 = vpop.permute.xlu0 %2571
      %v2573 = vsel %vm807, %v2566, 0
      %v2575 = vsel %vm807, %v2568, 0
      %v2577 = vsel %vm807, %v2570, 0
      %v2579 = vsel %vm807, %v2572, 0
      %2581 = vmatprep.subr.mxu0 0.0
      %2582 = vmatpush1.xpose.msra.mxu0 %v2577
      %2583 = vmatprep.subr.mxu0 0.0
      %2584 = vmatpush1.xpose.msra.mxu0 %v2579
      %2585 = vmatprep.subr.mxu0 0.0
      %2586 = vmatpush1.xpose.msra.mxu0 0.0
      %2587 = vmatprep.subr.mxu0 0.0
      %2588 = vmatpush1.xpose.msra.mxu0 0.0
      %2589 = vmatprep.subr.mxu0 0.0
      %2590 = vmatpush1.xpose.msra.mxu0 0.0
      %2591 = vmatprep.subr.mxu0 0.0
      %2592 = vmatpush1.xpose.msra.mxu0 0.0
      %2593 = vmatprep.subr.mxu0 0.0
      %2594 = vmatpush1.xpose.msra.mxu0 0.0
      %2595 = vmatprep.subr.mxu0 0.0
      %2596 = vmatpush1.xpose.msra.mxu0 0.0
      %2597 = vmatprep.subr.mxu0 0.0
      %2598 = vmatpush1.xpose.msra.mxu0 0.0
      %2599 = vmatprep.subr.mxu0 0.0
      %2600 = vmatpush1.xpose.msra.mxu0 0.0
      %2601 = vmatprep.subr.mxu0 0.0
      %2602 = vmatpush1.xpose.msra.mxu0 0.0
      %2603 = vmatprep.subr.mxu0 0.0
      %2604 = vmatpush1.xpose.msra.mxu0 0.0
      %2605 = vmatprep.subr.mxu0 0.0
      %2606 = vmatpush1.xpose.msra.mxu0 0.0
      %2607 = vmatprep.subr.mxu0 0.0
      %2608 = vmatpush1.xpose.msra.mxu0 0.0
      %2609 = vmatprep.subr.mxu0 0.0
      %2610 = vmatpush1.xpose.msra.mxu0 0.0
      %2611 = vmatprep.subr.mxu0 0.0
      %2612 = vmatpush1.xpose.msra.mxu0 0.0
      %2613 = vmatprep.subr.mxu0 0.0
      %2614 = vmatpush1.xpose.msra.mxu0 0.0
      %2615 = vmatprep.subr.mxu0 0.0
      %2616 = vmatpush1.xpose.msra.mxu0 0.0
      %2617 = vmatprep.subr.mxu0 0.0
      %2618 = vmatpush1.xpose.msra.mxu0 0.0
      %2619 = vmatprep.subr.mxu0 0.0
      %2620 = vmatpush1.xpose.msra.mxu0 0.0
      %2621 = vmatprep.subr.mxu0 0.0
      %2622 = vmatpush1.xpose.msra.mxu0 0.0
      %2623 = vmatprep.subr.mxu0 0.0
      %2624 = vmatpush1.xpose.msra.mxu0 0.0
      %2625 = vmatprep.subr.mxu0 0.0
      %2626 = vmatpush1.xpose.msra.mxu0 0.0
      %2627 = vmatprep.subr.mxu0 0.0
      %2628 = vmatpush1.xpose.msra.mxu0 0.0
      %2629 = vmatprep.subr.mxu0 0.0
      %2630 = vmatpush1.xpose.msra.mxu0 0.0
      %2631 = vmatprep.subr.mxu0 0.0
      %2632 = vmatpush1.xpose.msra.mxu0 0.0
      %2633 = vmatprep.subr.mxu0 0.0
      %2634 = vmatpush1.xpose.msra.mxu0 0.0
      %2635 = vmatprep.subr.mxu0 0.0
      %2636 = vmatpush1.xpose.msra.mxu0 0.0
      %2637 = vmatprep.subr.mxu0 0.0
      %2638 = vmatpush1.xpose.msra.mxu0 0.0
      %2639 = vmatprep.subr.mxu0 0.0
      %2640 = vmatpush1.xpose.msra.mxu0 0.0
      %2641 = vmatprep.subr.mxu0 0.0
      %2642 = vmatpush1.xpose.msra.mxu0 0.0
      %2643 = vmatprep.subr.mxu0 0.0
      %2644 = vmatpush1.xpose.msra.mxu0 0.0
      %2645 = vmatprep.mubr.f32.mxu0 0.0
      %2646 = vmatmul.mubr.f32.gmra.mrb[0].mxu0 %v2573
      %v2647 = vpop.f32.mrb[0].mxu0
      %v2648 = vadd.f32 0.0, %v2647
      %v2649 = vpop.f32.mrb[0].mxu0
      %2650 = vmatprep.mubr.f32.mxu0 0.0
      %2651 = vmatmul.mubr.f32.gmra.mrb[0].mxu0 %v2575
      %v2652 = vpop.f32.mrb[0].mxu0
      %v2653 = vadd.f32 0.0, %v2652
      %v2654 = vpop.f32.mrb[0].mxu0
      %2655 = vdwg.mxu0
      %v2656 = vmul.f32 %v2648, 0.35355338
      %v2657 = vmul.f32 %v2653, 0.35355338
      %v2658 = vsel %vm893, %v2656, -inf
      %2659 = vmax.xlane.f32.xlu0 %v2658
      %v2660 = vpop.xlane.xlu0 %2659
      %v2661 = vsel %vm893, %v2657, -inf
      %2662 = vmax.xlane.f32.xlu0 %v2661
      %v2663 = vpop.xlane.xlu0 %2662
      %v2664 = vsub.f32 %v2656, %v2660
      %v2665 = vsub.f32 %v2657, %v2663
      %v2666 = vmul.f32 %v2664, 1.442695
      %v2667 = vpow.pop %v2666
      %v2668 = vmul.f32 %v2665, 1.442695
      %v2669 = vpow.pop %v2668
      %v2670 = vsel %vm893, %v2667, 0.0
      %2671 = vadd.xlane.f32.xlu0 %v2670
      %v2672 = vpop.xlane.xlu0 %2671
      %v2673 = vsel %vm893, %v2669, 0.0
      %2674 = vadd.xlane.f32.xlu0 %v2673
      %v2675 = vpop.xlane.xlu0 %2674
      %v2676 = vrcp.pop %v2672
      %v2677 = vrcp.pop %v2675
      %v2678 = vmul.f32 %v2667, %v2676
      %v2679 = vmul.f32 %v2669, %v2677
      %2680 = vrot.lane.b32.xlu0 %v1955, 72
      %v2681 = vpop.permute.xlu0 %2680
      %2682 = vrot.lane.b32.xlu0 %v1960, 72
      %v2683 = vpop.permute.xlu0 %2682
      %v2687 = vsel %vm893, %v2678, 0
      %v2690 = vsel %vm893, %v2679, 0
      %2692 = vmatprep.subr.mxu0 0.0
      %2693 = vmatpush1.msra.mxu0 %v2681
      %2694 = vmatprep.subr.mxu0 0.0
      %2695 = vmatpush1.msra.mxu0 %v2683
      %2696 = vmatprep.subr.mxu0 0.0
      %2697 = vmatpush1.msra.mxu0 0.0
      %2698 = vmatprep.subr.mxu0 0.0
      %2699 = vmatpush1.msra.mxu0 0.0
      %2700 = vmatprep.subr.mxu0 0.0
      %2701 = vmatpush1.msra.mxu0 0.0
      %2702 = vmatprep.subr.mxu0 0.0
      %2703 = vmatpush1.msra.mxu0 0.0
      %2704 = vmatprep.subr.mxu0 0.0
      %2705 = vmatpush1.msra.mxu0 0.0
      %2706 = vmatprep.subr.mxu0 0.0
      %2707 = vmatpush1.msra.mxu0 0.0
      %2708 = vmatprep.subr.mxu0 0.0
      %2709 = vmatpush1.msra.mxu0 0.0
      %2710 = vmatprep.subr.mxu0 0.0
      %2711 = vmatpush1.msra.mxu0 0.0
      %2712 = vmatprep.subr.mxu0 0.0
      %2713 = vmatpush1.msra.mxu0 0.0
      %2714 = vmatprep.subr.mxu0 0.0
      %2715 = vmatpush1.msra.mxu0 0.0
      %2716 = vmatprep.subr.mxu0 0.0
      %2717 = vmatpush1.msra.mxu0 0.0
      %2718 = vmatprep.subr.mxu0 0.0
      %2719 = vmatpush1.msra.mxu0 0.0
      %2720 = vmatprep.subr.mxu0 0.0
      %2721 = vmatpush1.msra.mxu0 0.0
      %2722 = vmatprep.subr.mxu0 0.0
      %2723 = vmatpush1.msra.mxu0 0.0
      %2724 = vmatprep.subr.mxu0 0.0
      %2725 = vmatpush1.msra.mxu0 0.0
      %2726 = vmatprep.subr.mxu0 0.0
      %2727 = vmatpush1.msra.mxu0 0.0
      %2728 = vmatprep.subr.mxu0 0.0
      %2729 = vmatpush1.msra.mxu0 0.0
      %2730 = vmatprep.subr.mxu0 0.0
      %2731 = vmatpush1.msra.mxu0 0.0
      %2732 = vmatprep.subr.mxu0 0.0
      %2733 = vmatpush1.msra.mxu0 0.0
      %2734 = vmatprep.subr.mxu0 0.0
      %2735 = vmatpush1.msra.mxu0 0.0
      %2736 = vmatprep.subr.mxu0 0.0
      %2737 = vmatpush1.msra.mxu0 0.0
      %2738 = vmatprep.subr.mxu0 0.0
      %2739 = vmatpush1.msra.mxu0 0.0
      %2740 = vmatprep.subr.mxu0 0.0
      %2741 = vmatpush1.msra.mxu0 0.0
      %2742 = vmatprep.subr.mxu0 0.0
      %2743 = vmatpush1.msra.mxu0 0.0
      %2744 = vmatprep.subr.mxu0 0.0
      %2745 = vmatpush1.msra.mxu0 0.0
      %2746 = vmatprep.subr.mxu0 0.0
      %2747 = vmatpush1.msra.mxu0 0.0
      %2748 = vmatprep.subr.mxu0 0.0
      %2749 = vmatpush1.msra.mxu0 0.0
      %2750 = vmatprep.subr.mxu0 0.0
      %2751 = vmatpush1.msra.mxu0 0.0
      %2752 = vmatprep.subr.mxu0 0.0
      %2753 = vmatpush1.msra.mxu0 0.0
      %2754 = vmatprep.subr.mxu0 0.0
      %2755 = vmatpush1.msra.mxu0 0.0
      %2756 = vmatprep.mubr.f32.mxu0 0.0
      %2757 = vmatmul.mubr.f32.gmra.mrb[0].mxu0 %v2687
      %v2758 = vpop.f32.mrb[0].mxu0
      %v2759 = vadd.f32 0.0, %v2758
      %v2760 = vpop.f32.mrb[0].mxu0
      %2761 = vmatprep.mubr.f32.mxu0 0.0
      %2762 = vmatmul.mubr.f32.gmra.mrb[0].mxu0 %v2690
      %v2763 = vpop.f32.mrb[0].mxu0
      %v2764 = vadd.f32 0.0, %v2763
      %v2765 = vpop.f32.mrb[0].mxu0
      %2766 = vdwg.mxu0
      %2769 = vrot.lane.b32.xlu0 %v2355, 8
      %v2770 = vpop.permute.xlu0 %2769
      %2771 = vrot.lane.b32.xlu0 %v2360, 8
      %v2772 = vpop.permute.xlu0 %2771
      %2777 = vrot.lane.b32.xlu0 %v2557, 16
      %v2778 = vpop.permute.xlu0 %2777
      %2779 = vrot.lane.b32.xlu0 %v2562, 16
      %v2780 = vpop.permute.xlu0 %2779
      %2785 = vrot.lane.b32.xlu0 %v2759, 24
      %v2786 = vpop.permute.xlu0 %2785
      %2787 = vrot.lane.b32.xlu0 %v2764, 24
      %v2788 = vpop.permute.xlu0 %2787
      %v2791 = vsel %vm807, %v2153, %v2770
      %v2792 = vsel %vm807, %v2158, %v2772
      %v2793 = vsel %vm893, %v2791, %v2778
      %v2794 = vsel %vm893, %v2792, %v2780
      %v2795 = vsel %vm1637, %v2793, %v2786
      %v2796 = vsel %vm1637, %v2794, %v2788
      %v2797 = vld [vmem:[%s12] sm:$0xff]
      %v2798 = vld [vmem:[%s12 + $0x8] sm:$0xff]
      %v2799 = vld [vmem:[%s12 + $0x10] sm:$0xff]
      %v2800 = vld [vmem:[%s12 + $0x18] sm:$0xff]
      %v2801 = vld [vmem:[%s13] sm:$0x1]
      %v2803 = vlaneseq
      %v2804 = vshrl.u32 %v2803, 7
      %v2805 = vsub.s32 0, %v2804
      %v2806 = vrot.slane %v2801, %v2805
      %v2809 = vsel %vm719, %v2795, 0
      %v2812 = vsel %vm719, %v2796, 0
      %2814 = vmatprep.subr.mxu0 0.0
      %2815 = vmatpush1.msra.mxu0 %v2797
      %2816 = vmatprep.subr.mxu0 0.0
      %2817 = vmatpush1.msra.mxu0 %v2798
      %2818 = vmatprep.subr.mxu0 0.0
      %2819 = vmatpush1.msra.mxu0 %v2799
      %2820 = vmatprep.subr.mxu0 0.0
      %2821 = vmatpush1.msra.mxu0 %v2800
      %2822 = vmatprep.subr.mxu0 0.0
      %2823 = vmatpush1.msra.mxu0 0.0
      %2824 = vmatprep.subr.mxu0 0.0
      %2825 = vmatpush1.msra.mxu0 0.0
      %2826 = vmatprep.subr.mxu0 0.0
      %2827 = vmatpush1.msra.mxu0 0.0
      %2828 = vmatprep.subr.mxu0 0.0
      %2829 = vmatpush1.msra.mxu0 0.0
      %2830 = vmatprep.subr.mxu0 0.0
      %2831 = vmatpush1.msra.mxu0 0.0
      %2832 = vmatprep.subr.mxu0 0.0
      %2833 = vmatpush1.msra.mxu0 0.0
      %2834 = vmatprep.subr.mxu0 0.0
      %2835 = vmatpush1.msra.mxu0 0.0
      %2836 = vmatprep.subr.mxu0 0.0
      %2837 = vmatpush1.msra.mxu0 0.0
      %2838 = vmatprep.subr.mxu0 0.0
      %2839 = vmatpush1.msra.mxu0 0.0
      %2840 = vmatprep.subr.mxu0 0.0
      %2841 = vmatpush1.msra.mxu0 0.0
      %2842 = vmatprep.subr.mxu0 0.0
      %2843 = vmatpush1.msra.mxu0 0.0
      %2844 = vmatprep.subr.mxu0 0.0
      %2845 = vmatpush1.msra.mxu0 0.0
      %2846 = vmatprep.subr.mxu0 0.0
      %2847 = vmatpush1.msra.mxu0 0.0
      %2848 = vmatprep.subr.mxu0 0.0
      %2849 = vmatpush1.msra.mxu0 0.0
      %2850 = vmatprep.subr.mxu0 0.0
      %2851 = vmatpush1.msra.mxu0 0.0
      %2852 = vmatprep.subr.mxu0 0.0
      %2853 = vmatpush1.msra.mxu0 0.0
      %2854 = vmatprep.subr.mxu0 0.0
      %2855 = vmatpush1.msra.mxu0 0.0
      %2856 = vmatprep.subr.mxu0 0.0
      %2857 = vmatpush1.msra.mxu0 0.0
      %2858 = vmatprep.subr.mxu0 0.0
      %2859 = vmatpush1.msra.mxu0 0.0
      %2860 = vmatprep.subr.mxu0 0.0
      %2861 = vmatpush1.msra.mxu0 0.0
      %2862 = vmatprep.subr.mxu0 0.0
      %2863 = vmatpush1.msra.mxu0 0.0
      %2864 = vmatprep.subr.mxu0 0.0
      %2865 = vmatpush1.msra.mxu0 0.0
      %2866 = vmatprep.subr.mxu0 0.0
      %2867 = vmatpush1.msra.mxu0 0.0
      %2868 = vmatprep.subr.mxu0 0.0
      %2869 = vmatpush1.msra.mxu0 0.0
      %2870 = vmatprep.subr.mxu0 0.0
      %2871 = vmatpush1.msra.mxu0 0.0
      %2872 = vmatprep.subr.mxu0 0.0
      %2873 = vmatpush1.msra.mxu0 0.0
      %2874 = vmatprep.subr.mxu0 0.0
      %2875 = vmatpush1.msra.mxu0 0.0
      %2876 = vmatprep.subr.mxu0 0.0
      %2877 = vmatpush1.msra.mxu0 0.0
      %2878 = vmatprep.mubr.f32.mxu0 0.0
      %2879 = vmatmul.mubr.f32.gmra.mrb[0].mxu0 %v2809
      %v2880 = vpop.f32.mrb[0].mxu0
      %v2881 = vadd.f32 %v2806, %v2880
      %v2882 = vpop.f32.mrb[0].mxu0
      %2883 = vmatprep.mubr.f32.mxu0 0.0
      %2884 = vmatmul.mubr.f32.gmra.mrb[0].mxu0 %v2812
      %v2885 = vpop.f32.mrb[0].mxu0
      %v2886 = vadd.f32 %v2806, %v2885
      %v2887 = vpop.f32.mrb[0].mxu0
      %2888 = vdwg.mxu0
      %v2889 = vadd.f32 %v1777, %v2881
      %v2890 = vadd.f32 %v1778, %v2886
      %v2891 = vld [vmem:[%s14] sm:$0x1]
      %v2892 = vld [vmem:[%s15] sm:$0x1]
      %v2893 = vsel %vm719, %v2889, 0.0
      %2894 = vadd.xlane.f32.xlu0 %v2893
      %v2895 = vpop.xlane.xlu0 %2894
      %v2896 = vsel %vm719, %v2890, 0.0
      %2897 = vadd.xlane.f32.xlu0 %v2896
      %v2898 = vpop.xlane.xlu0 %2897
      %v2899 = vmul.f32 %v2895, %v1742
      %v2900 = vmul.f32 %v2898, %v1742
      %v2901 = vsub.f32 %v2889, %v2899
      %v2902 = vsub.f32 %v2890, %v2900
      %v2903 = vmul.f32 %v2901, %v2901
      %v2904 = vmul.f32 %v2902, %v2902
      %v2905 = vsel %vm719, %v2903, 0.0
      %2906 = vadd.xlane.f32.xlu0 %v2905
      %v2907 = vpop.xlane.xlu0 %2906
      %v2908 = vsel %vm719, %v2904, 0.0
      %2909 = vadd.xlane.f32.xlu0 %v2908
      %v2910 = vpop.xlane.xlu0 %2909
      %v2911 = vmul.f32 %v2907, %v1742
      %v2912 = vmul.f32 %v2910, %v1742
      %v2913 = vadd.f32 %v2911, 1e-05
      %v2914 = vadd.f32 %v2912, 1e-05
      %v2915 = vrsqrt.pop %v2913
      %v2916 = vrsqrt.pop %v2914
      %v2917 = vmul.f32 %v2901, %v2915
      %v2918 = vmul.f32 %v2902, %v2916
      %v2920 = vlaneseq
      %v2921 = vshrl.u32 %v2920, 7
      %v2922 = vsub.s32 0, %v2921
      %v2923 = vrot.slane %v2891, %v2922
      %v2925 = vmul.f32 %v2917, %v2923
      %v2926 = vmul.f32 %v2918, %v2923
      %v2928 = vlaneseq
      %v2929 = vshrl.u32 %v2928, 7
      %v2930 = vsub.s32 0, %v2929
      %v2931 = vrot.slane %v2892, %v2930
      %v2933 = vadd.f32 %v2925, %v2931
      %v2934 = vadd.f32 %v2926, %v2931
      %v2935 = vld [vmem:[%s16] sm:$0xff]
      %v2936 = vld [vmem:[%s16 + $0x8] sm:$0xff]
      %v2937 = vld [vmem:[%s16 + $0x10] sm:$0xff]
      %v2938 = vld [vmem:[%s16 + $0x18] sm:$0xff]
      %v2939 = vld [vmem:[%s17] sm:$0x1]
      %v2941 = vlaneseq
      %v2942 = vshrl.u32 %v2941, 7
      %v2943 = vsub.s32 0, %v2942
      %v2944 = vrot.slane %v2939, %v2943
      %v2947 = vsel %vm719, %v2933, 0
      %v2950 = vsel %vm719, %v2934, 0
      %2952 = vmatprep.subr.mxu0 0.0
      %2953 = vmatpush1.msra.mxu0 %v2935
      %2954 = vmatprep.subr.mxu0 0.0
      %2955 = vmatpush1.msra.mxu0 %v2936
      %2956 = vmatprep.subr.mxu0 0.0
      %2957 = vmatpush1.msra.mxu0 %v2937
      %2958 = vmatprep.subr.mxu0 0.0
      %2959 = vmatpush1.msra.mxu0 %v2938
      %2960 = vmatprep.subr.mxu0 0.0
      %2961 = vmatpush1.msra.mxu0 0.0
      %2962 = vmatprep.subr.mxu0 0.0
      %2963 = vmatpush1.msra.mxu0 0.0
      %2964 = vmatprep.subr.mxu0 0.0
      %2965 = vmatpush1.msra.mxu0 0.0
      %2966 = vmatprep.subr.mxu0 0.0
      %2967 = vmatpush1.msra.mxu0 0.0
      %2968 = vmatprep.subr.mxu0 0.0
      %2969 = vmatpush1.msra.mxu0 0.0
      %2970 = vmatprep.subr.mxu0 0.0
      %2971 = vmatpush1.msra.mxu0 0.0
      %2972 = vmatprep.subr.mxu0 0.0
      %2973 = vmatpush1.msra.mxu0 0.0
      %2974 = vmatprep.subr.mxu0 0.0
      %2975 = vmatpush1.msra.mxu0 0.0
      %2976 = vmatprep.subr.mxu0 0.0
      %2977 = vmatpush1.msra.mxu0 0.0
      %2978 = vmatprep.subr.mxu0 0.0
      %2979 = vmatpush1.msra.mxu0 0.0
      %2980 = vmatprep.subr.mxu0 0.0
      %2981 = vmatpush1.msra.mxu0 0.0
      %2982 = vmatprep.subr.mxu0 0.0
      %2983 = vmatpush1.msra.mxu0 0.0
      %2984 = vmatprep.subr.mxu0 0.0
      %2985 = vmatpush1.msra.mxu0 0.0
      %2986 = vmatprep.subr.mxu0 0.0
      %2987 = vmatpush1.msra.mxu0 0.0
      %2988 = vmatprep.subr.mxu0 0.0
      %2989 = vmatpush1.msra.mxu0 0.0
      %2990 = vmatprep.subr.mxu0 0.0
      %2991 = vmatpush1.msra.mxu0 0.0
      %2992 = vmatprep.subr.mxu0 0.0
      %2993 = vmatpush1.msra.mxu0 0.0
      %2994 = vmatprep.subr.mxu0 0.0
      %2995 = vmatpush1.msra.mxu0 0.0
      %2996 = vmatprep.subr.mxu0 0.0
      %2997 = vmatpush1.msra.mxu0 0.0
      %2998 = vmatprep.subr.mxu0 0.0
      %2999 = vmatpush1.msra.mxu0 0.0
      %3000 = vmatprep.subr.mxu0 0.0
      %3001 = vmatpush1.msra.mxu0 0.0
      %3002 = vmatprep.subr.mxu0 0.0
      %3003 = vmatpush1.msra.mxu0 0.0
      %3004 = vmatprep.subr.mxu0 0.0
      %3005 = vmatpush1.msra.mxu0 0.0
      %3006 = vmatprep.subr.mxu0 0.0
      %3007 = vmatpush1.msra.mxu0 0.0
      %3008 = vmatprep.subr.mxu0 0.0
      %3009 = vmatpush1.msra.mxu0 0.0
      %3010 = vmatprep.subr.mxu0 0.0
      %3011 = vmatpush1.msra.mxu0 0.0
      %3012 = vmatprep.subr.mxu0 0.0
      %3013 = vmatpush1.msra.mxu0 0.0
      %3014 = vmatprep.subr.mxu0 0.0
      %3015 = vmatpush1.msra.mxu0 0.0
      %3016 = vmatprep.mubr.f32.mxu0 0.0
      %3017 = vmatmul.mubr.f32.gmra.mrb[0].mxu0 %v2947
      %v3018 = vpop.f32.mrb[0].mxu0
      %v3019 = vadd.f32 %v2944, %v3018
      %v3020 = vpop.f32.mrb[0].mxu0
      %3021 = vmatprep.mubr.f32.mxu0 0.0
      %3022 = vmatmul.mubr.f32.gmra.mrb[0].mxu0 %v2950
      %v3023 = vpop.f32.mrb[0].mxu0
      %v3024 = vadd.f32 %v2944, %v3023
      %v3025 = vpop.f32.mrb[0].mxu0
      %3026 = vdwg.mxu0
      %v3027 = vmul.f32 %v3019, %v3019
      %v3028 = vmul.f32 %v3024, %v3024
      %v3029 = vmul.f32 %v3019, %v3027
      %v3030 = vmul.f32 %v3024, %v3028
      %v3031 = vmul.f32 %v3029, 0.044715
      %v3032 = vmul.f32 %v3030, 0.044715
      %v3033 = vadd.f32 %v3019, %v3031
      %v3034 = vadd.f32 %v3024, %v3032
      %v3035 = vmul.f32 %v3033, 0.7978846
      %v3036 = vmul.f32 %v3034, 0.7978846
      %v3037 = vtanh.pop %v3035
      %v3038 = vtanh.pop %v3036
      %v3039 = vadd.f32 %v3037, 1.0
      %v3040 = vadd.f32 %v3038, 1.0
      %v3041 = vmul.f32 %v3039, 0.5
      %v3042 = vmul.f32 %v3040, 0.5
      %v3043 = vmul.f32 %v3019, %v3041
      %v3044 = vmul.f32 %v3024, %v3042
      %v3045 = vld [vmem:[%s18] sm:$0xff]
      %v3046 = vld [vmem:[%s18 + $0x8] sm:$0xff]
      %v3047 = vld [vmem:[%s18 + $0x10] sm:$0xff]
      %v3048 = vld [vmem:[%s18 + $0x18] sm:$0xff]
      %v3049 = vld [vmem:[%s18 + $0x20] sm:$0xff]
      %v3050 = vld [vmem:[%s18 + $0x28] sm:$0xff]
      %v3051 = vld [vmem:[%s18 + $0x30] sm:$0xff]
      %v3052 = vld [vmem:[%s18 + $0x38] sm:$0xff]
      %v3053 = vld [vmem:[%s19] sm:$0x1]
      %v3055 = vlaneseq
      %v3056 = vshrl.u32 %v3055, 7
      %v3057 = vsub.s32 0, %v3056
      %v3058 = vrot.slane %v3053, %v3057
      %vm3060 = vcmask 523264
      %v3062 = vsel %vm3060, %v3043, 0
      %v3065 = vsel %vm3060, %v3044, 0
      %3067 = vmatprep.subr.mxu0 0.0
      %3068 = vmatpush1.msra.mxu0 %v3045
      %3069 = vmatprep.subr.mxu0 0.0
      %3070 = vmatpush1.msra.mxu0 %v3046
      %3071 = vmatprep.subr.mxu0 0.0
      %3072 = vmatpush1.msra.mxu0 %v3047
      %3073 = vmatprep.subr.mxu0 0.0
      %3074 = vmatpush1.msra.mxu0 %v3048
      %3075 = vmatprep.subr.mxu0 0.0
      %3076 = vmatpush1.msra.mxu0 %v3049
      %3077 = vmatprep.subr.mxu0 0.0
      %3078 = vmatpush1.msra.mxu0 %v3050
      %3079 = vmatprep.subr.mxu0 0.0
      %3080 = vmatpush1.msra.mxu0 %v3051
      %3081 = vmatprep.subr.mxu0 0.0
      %3082 = vmatpush1.msra.mxu0 %v3052
      %3083 = vmatprep.subr.mxu0 0.0
      %3084 = vmatpush1.msra.mxu0 0.0
      %3085 = vmatprep.subr.mxu0 0.0
      %3086 = vmatpush1.msra.mxu0 0.0
      %3087 = vmatprep.subr.mxu0 0.0
      %3088 = vmatpush1.msra.mxu0 0.0
      %3089 = vmatprep.subr.mxu0 0.0
      %3090 = vmatpush1.msra.mxu0 0.0
      %3091 = vmatprep.subr.mxu0 0.0
      %3092 = vmatpush1.msra.mxu0 0.0
      %3093 = vmatprep.subr.mxu0 0.0
      %3094 = vmatpush1.msra.mxu0 0.0
      %3095 = vmatprep.subr.mxu0 0.0
      %3096 = vmatpush1.msra.mxu0 0.0
      %3097 = vmatprep.subr.mxu0 0.0
      %3098 = vmatpush1.msra.mxu0 0.0
      %3099 = vmatprep.subr.mxu0 0.0
      %3100 = vmatpush1.msra.mxu0 0.0
      %3101 = vmatprep.subr.mxu0 0.0
      %3102 = vmatpush1.msra.mxu0 0.0
      %3103 = vmatprep.subr.mxu0 0.0
      %3104 = vmatpush1.msra.mxu0 0.0
      %3105 = vmatprep.subr.mxu0 0.0
      %3106 = vmatpush1.msra.mxu0 0.0
      %3107 = vmatprep.subr.mxu0 0.0
      %3108 = vmatpush1.msra.mxu0 0.0
      %3109 = vmatprep.subr.mxu0 0.0
      %3110 = vmatpush1.msra.mxu0 0.0
      %3111 = vmatprep.subr.mxu0 0.0
      %3112 = vmatpush1.msra.mxu0 0.0
      %3113 = vmatprep.subr.mxu0 0.0
      %3114 = vmatpush1.msra.mxu0 0.0
      %3115 = vmatprep.subr.mxu0 0.0
      %3116 = vmatpush1.msra.mxu0 0.0
      %3117 = vmatprep.subr.mxu0 0.0
      %3118 = vmatpush1.msra.mxu0 0.0
      %3119 = vmatprep.subr.mxu0 0.0
      %3120 = vmatpush1.msra.mxu0 0.0
      %3121 = vmatprep.subr.mxu0 0.0
      %3122 = vmatpush1.msra.mxu0 0.0
      %3123 = vmatprep.subr.mxu0 0.0
      %3124 = vmatpush1.msra.mxu0 0.0
      %3125 = vmatprep.subr.mxu0 0.0
      %3126 = vmatpush1.msra.mxu0 0.0
      %3127 = vmatprep.subr.mxu0 0.0
      %3128 = vmatpush1.msra.mxu0 0.0
      %3129 = vmatprep.subr.mxu0 0.0
      %3130 = vmatpush1.msra.mxu0 0.0
      %3131 = vmatprep.mubr.f32.mxu0 0.0
      %3132 = vmatmul.mubr.f32.gmra.mrb[0].mxu0 %v3062
      %v3133 = vpop.f32.mrb[0].mxu0
      %v3134 = vadd.f32 %v3058, %v3133
      %v3135 = vpop.f32.mrb[0].mxu0
      %3136 = vmatprep.mubr.f32.mxu0 0.0
      %3137 = vmatmul.mubr.f32.gmra.mrb[0].mxu0 %v3065
      %v3138 = vpop.f32.mrb[0].mxu0
      %v3139 = vadd.f32 %v3058, %v3138
      %v3140 = vpop.f32.mrb[0].mxu0
      %3141 = vdwg.mxu0
      %v3142 = vadd.f32 %v2933, %v3134
      %v3143 = vadd.f32 %v2934, %v3139
      %v3144 = vld [vmem:[%s20] sm:$0x1]
      %v3145 = vld [vmem:[%s21] sm:$0x1]
      %v3146 = vsel %vm719, %v3142, 0.0
      %3147 = vadd.xlane.f32.xlu0 %v3146
      %v3148 = vpop.xlane.xlu0 %3147
      %v3149 = vsel %vm719, %v3143, 0.0
      %3150 = vadd.xlane.f32.xlu0 %v3149
      %v3151 = vpop.xlane.xlu0 %3150
      %v3152 = vmul.f32 %v3148, %v1742
      %v3153 = vmul.f32 %v3151, %v1742
      %v3154 = vsub.f32 %v3142, %v3152
      %v3155 = vsub.f32 %v3143, %v3153
      %v3156 = vmul.f32 %v3154, %v3154
      %v3157 = vmul.f32 %v3155, %v3155
      %v3158 = vsel %vm719, %v3156, 0.0
      %3159 = vadd.xlane.f32.xlu0 %v3158
      %v3160 = vpop.xlane.xlu0 %3159
      %v3161 = vsel %vm719, %v3157, 0.0
      %3162 = vadd.xlane.f32.xlu0 %v3161
      %v3163 = vpop.xlane.xlu0 %3162
      %v3164 = vmul.f32 %v3160, %v1742
      %v3165 = vmul.f32 %v3163, %v1742
      %v3166 = vadd.f32 %v3164, 1e-05
      %v3167 = vadd.f32 %v3165, 1e-05
      %v3168 = vrsqrt.pop %v3166
      %v3169 = vrsqrt.pop %v3167
      %v3170 = vmul.f32 %v3154, %v3168
      %v3171 = vmul.f32 %v3155, %v3169
      %v3173 = vlaneseq
      %v3174 = vshrl.u32 %v3173, 7
      %v3175 = vsub.s32 0, %v3174
      %v3176 = vrot.slane %v3144, %v3175
      %v3178 = vmul.f32 %v3170, %v3176
      %v3179 = vmul.f32 %v3171, %v3176
      %v3181 = vlaneseq
      %v3182 = vshrl.u32 %v3181, 7
      %v3183 = vsub.s32 0, %v3182
      %v3184 = vrot.slane %v3145, %v3183
      %v3186 = vadd.f32 %v3178, %v3184
      %v3187 = vadd.f32 %v3179, %v3184
      %3188 = vst.msk [vmem:[%s703] sm:$0xff] %vm719, %v3186
      %3189 = vst.msk [vmem:[%s703 + $0x8] sm:$0xff] %vm719, %v3187
      %p3190 = scmp.lt.s32.totalorder %s33, 1
      %s3191 = scalar_select %p3190, %s33, 1
      %s3192 = smul.addr %s3191, 2
      %s3193 = smul.addr %s3192, 8
      %s3194 = scalar_lea.vmem %s22, %s3193
      // Predicated region
      $region109: #{model_forward.10} parent=107 // pred_check
        %p3195 = pneg %p523
      $region110: #{model_forward.10} parent=107 // pred_check_branch
        %3197 = sbr.rel (%p3195) target = $region112
      $region111: #{model_forward.10} parent=107 // pred_region
        _
      $region112: #{model_forward.10} parent=107 // pred_fallthru
        _
    $region108: #{model_forward.10} parent=5 // pred_fallthru
      _
    %p3198 = scmp.le.s32.totalorder 2, %s28
    // Predicated region
    $region113: #{model_forward.10} parent=5 // pred_check
      %p3199 = pneg %p3198
    $region114: #{model_forward.10} parent=5 // pred_check_branch
      %3201 = sbr.rel (%p3199) target = $region116
    $region115: #{model_forward.10} parent=5 // pred_region
      %s3202 = ssub.s32 %s28, 2
      // Predicated region
      $region117: #{model_forward.10} parent=115 // pred_check
        %p3203 = pneg %p529
      $region118: #{model_forward.10} parent=115 // pred_check_branch
        %3205 = sbr.rel (%p3203) target = $region120
      $region119: #{model_forward.10} parent=115 // pred_region
        %p3206 = scmp.lt.s32.totalorder %s34, 1
        %s3207 = scalar_select %p3206, %s34, 1
        %s3208 = smul.addr %s3207, 2
        %s3209 = smul.addr %s3208, 8
        %s3210 = scalar_lea.vmem %s22, %s3209
      $region120: #{model_forward.10} parent=115 // pred_fallthru
        _
    $region116: #{model_forward.10} parent=5 // pred_fallthru
      _
  $region6: #{model_forward.10} parent=0 // loop_footer
    %s32 = sadd.s32 1, %s28
  $region7: #{model_forward.10} parent=0 // loop_footer_branch
    %27 = sbr.rel target = $region3
  $region8: #{model_forward.10} parent=0 // loop_exit
    _

// kernel: model_forward.11
$region0: #{model_forward.11}
  #allocation0 [shape = 'u32[]', space=smem, size = 0x4, offset = 0x4, fixed_abs, tag = 'smem constant byte address 0x4 - core index']
  #allocation1 [shape = 'u32[144,128]{1,0:T(1,128)}', space=vmem, size = 0x12000, scoped, tag = 'internal scratch']
  %s0 = inlined_call_operand.vmem [shape: f32[2,16,32], index: 0, kind: input, shape index: {}]
  %s1 = inlined_call_operand.vmem [shape: f32[1,32], index: 1, kind: input, shape index: {}]
  %s2 = inlined_call_operand.vmem [shape: f32[1,32], index: 2, kind: input, shape index: {}]
  %s3 = inlined_call_operand.vmem [shape: f32[32,4], index: 3, kind: input, shape index: {}]
  %s4 = inlined_call_operand.vmem [shape: f32[1,4], index: 4, kind: input, shape index: {}]
  %s5 = inlined_call_operand.vmem [shape: f32[2,16,4], index: 5, kind: output, shape index: {}]
  %s6 = sld [smem:[#allocation0]]
  $region53: #{model_forward.11} parent=0
    _
  %s8 = ssub.s32 1, %s6
  %s9 = scalar_select 0, %s8, %s6
  loop: start=0, step=1, limit=4
  $region2: #{model_forward.11} parent=0 // loop_pre_header
    _
  $region3: #{model_forward.11} parent=0 // loop_header
    %s11 = sphi 0, %s15
    %p12 = scmp.ge.s32.totalorder %s11, 4
    %s21 = sphi 0, %s23
    %s24 = sphi 0, %s21
    %s25 = sphi 0, %s24
    %s41 = sphi 0, %s25
    %s45 = sphi 0, %s45
    %s47 = sphi 0, %s45
    %s48 = sphi 0, %s47
    %s62 = sphi 0, %s48
    %s66 = sphi 0, %s66
    %s68 = sphi 0, %s66
    %s69 = sphi 0, %s68
    %s83 = sphi 0, %s69
    %s87 = sphi 0, %s87
    %s89 = sphi 0, %s87
    %s90 = sphi 0, %s89
    %s104 = sphi 0, %s90
    %s108 = sphi 0, %s108
    %s110 = sphi 0, %s108
    %s111 = sphi 0, %s110
    %s125 = sphi 0, %s111
    %s131 = sphi 0, %s133
    %s134 = sphi 0, %s131
    %s135 = sphi 0, %s134
    %s151 = sphi 0, %s135
  $region4: #{model_forward.11} parent=0 // loop_header_branch
    %14 = sbr.rel (%p12) target = $region8
  $region5: #{model_forward.11} parent=0 // loop_body
    %s16 = ssub.s32 %s11, 1
    %s17 = ssub.s32 %s11, 2
    %s18 = sadd.s32 %s11, 1
    %s19 = ssub.s32 %s11, %s18
    %p20 = scmp.eq.s32.totalorder %s19, 0
    %s22 = sadd.s32 %s21, 1
    %s23 = scalar_select %p20, %s21, %s22
    %p26 = pneg %p20
    %p27 = scmp.eq.s32.totalorder %s11, 1
    %p28 = por %p26, %p27
    %p29 = scmp.ne.s32.totalorder %s21, %s24
    %p30 = scmp.eq.s32.totalorder %s11, 0
    %p31 = por %p29, %p30
    %p32 = scmp.ne.s32.totalorder %s21, %s24
    %p33 = scmp.eq.s32.totalorder %s16, 1
    %p34 = por %p32, %p33
    %p35 = scmp.ne.s32.totalorder %s24, %s25
    %p36 = scmp.eq.s32.totalorder %s16, 0
    %p37 = por %p35, %p36
    %p38 = scmp.ne.s32.totalorder %s24, %s25
    %p39 = scmp.eq.s32.totalorder %s17, 1
    %p40 = por %p38, %p39
    %p42 = scmp.ne.s32.totalorder %s25, %s41
    %p43 = scmp.eq.s32.totalorder %s17, 0
    %p44 = por %p42, %p43
    %s46 = sadd.s32 %s45, 1
    %p49 = scmp.eq.s32.totalorder %s11, 1
    %p50 = scmp.ne.s32.totalorder %s45, %s47
    %p51 = scmp.eq.s32.totalorder %s11, 0
    %p52 = por %p50, %p51
    %p53 = scmp.ne.s32.totalorder %s45, %s47
    %p54 = scmp.eq.s32.totalorder %s16, 1
    %p55 = por %p53, %p54
    %p56 = scmp.ne.s32.totalorder %s47, %s48
    %p57 = scmp.eq.s32.totalorder %s16, 0
    %p58 = por %p56, %p57
    %p59 = scmp.ne.s32.totalorder %s47, %s48
    %p60 = scmp.eq.s32.totalorder %s17, 1
    %p61 = por %p59, %p60
    %p63 = scmp.ne.s32.totalorder %s48, %s62
    %p64 = scmp.eq.s32.totalorder %s17, 0
    %p65 = por %p63, %p64
    %s67 = sadd.s32 %s66, 1
    %p70 = scmp.eq.s32.totalorder %s11, 1
    %p71 = scmp.ne.s32.totalorder %s66, %s68
    %p72 = scmp.eq.s32.totalorder %s11, 0
    %p73 = por %p71, %p72
    %p74 = scmp.ne.s32.totalorder %s66, %s68
    %p75 = scmp.eq.s32.totalorder %s16, 1
    %p76 = por %p74, %p75
    %p77 = scmp.ne.s32.totalorder %s68, %s69
    %p78 = scmp.eq.s32.totalorder %s16, 0
    %p79 = por %p77, %p78
    %p80 = scmp.ne.s32.totalorder %s68, %s69
    %p81 = scmp.eq.s32.totalorder %s17, 1
    %p82 = por %p80, %p81
    %p84 = scmp.ne.s32.totalorder %s69, %s83
    %p85 = scmp.eq.s32.totalorder %s17, 0
    %p86 = por %p84, %p85
    %s88 = sadd.s32 %s87, 1
    %p91 = scmp.eq.s32.totalorder %s11, 1
    %p92 = scmp.ne.s32.totalorder %s87, %s89
    %p93 = scmp.eq.s32.totalorder %s11, 0
    %p94 = por %p92, %p93
    %p95 = scmp.ne.s32.totalorder %s87, %s89
    %p96 = scmp.eq.s32.totalorder %s16, 1
    %p97 = por %p95, %p96
    %p98 = scmp.ne.s32.totalorder %s89, %s90
    %p99 = scmp.eq.s32.totalorder %s16, 0
    %p100 = por %p98, %p99
    %p101 = scmp.ne.s32.totalorder %s89, %s90
    %p102 = scmp.eq.s32.totalorder %s17, 1
    %p103 = por %p101, %p102
    %p105 = scmp.ne.s32.totalorder %s90, %s104
    %p106 = scmp.eq.s32.totalorder %s17, 0
    %p107 = por %p105, %p106
    %s109 = sadd.s32 %s108, 1
    %p112 = scmp.eq.s32.totalorder %s11, 1
    %p113 = scmp.ne.s32.totalorder %s108, %s110
    %p114 = scmp.eq.s32.totalorder %s11, 0
    %p115 = por %p113, %p114
    %p116 = scmp.ne.s32.totalorder %s108, %s110
    %p117 = scmp.eq.s32.totalorder %s16, 1
    %p118 = por %p116, %p117
    %p119 = scmp.ne.s32.totalorder %s110, %s111
    %p120 = scmp.eq.s32.totalorder %s16, 0
    %p121 = por %p119, %p120
    %p122 = scmp.ne.s32.totalorder %s110, %s111
    %p123 = scmp.eq.s32.totalorder %s17, 1
    %p124 = por %p122, %p123
    %p126 = scmp.ne.s32.totalorder %s111, %s125
    %p127 = scmp.eq.s32.totalorder %s17, 0
    %p128 = por %p126, %p127
    %s129 = ssub.s32 %s11, %s18
    %p130 = scmp.eq.s32.totalorder %s129, 0
    %s132 = sadd.s32 %s131, 1
    %s133 = scalar_select %p130, %s131, %s132
    %p136 = pneg %p130
    %p137 = scmp.eq.s32.totalorder %s11, 1
    %p138 = por %p136, %p137
    %p139 = scmp.ne.s32.totalorder %s131, %s134
    %p140 = scmp.eq.s32.totalorder %s11, 0
    %p141 = por %p139, %p140
    %p142 = scmp.ne.s32.totalorder %s131, %s134
    %p143 = scmp.eq.s32.totalorder %s16, 1
    %p144 = por %p142, %p143
    %p145 = scmp.ne.s32.totalorder %s134, %s135
    %p146 = scmp.eq.s32.totalorder %s16, 0
    %p147 = por %p145, %p146
    %p148 = scmp.ne.s32.totalorder %s134, %s135
    %p149 = scmp.eq.s32.totalorder %s17, 1
    %p150 = por %p148, %p149
    %p152 = scmp.ne.s32.totalorder %s135, %s151
    %p153 = scmp.eq.s32.totalorder %s17, 0
    %p154 = por %p152, %p153
    %p155 = scmp.le.s32.totalorder 1, %s11
    %p156 = scmp.lt.s32.totalorder %s11, 3
    %p157 = pnand %p155, %p156
    %p158 = pneg %p157
    // Predicated region
    $region9: #{model_forward.11} parent=5 // pred_check
      _
    $region10: #{model_forward.11} parent=5 // pred_check_branch
      %160 = sbr.rel (%p157) target = $region12
    $region11: #{model_forward.11} parent=5 // pred_region
      %s161 = ssub.s32 %s11, 1
      // Predicated region
      $region13: #{model_forward.11} parent=11 // pred_check
        %p162 = pneg %p58
      $region14: #{model_forward.11} parent=11 // pred_check_branch
        %164 = sbr.rel (%p162) target = $region16
      $region15: #{model_forward.11} parent=11 // pred_region
        _
      $region16: #{model_forward.11} parent=11 // pred_fallthru
        _
      // Predicated region
      $region17: #{model_forward.11} parent=11 // pred_check
        %p165 = pneg %p79
      $region18: #{model_forward.11} parent=11 // pred_check_branch
        %167 = sbr.rel (%p165) target = $region20
      $region19: #{model_forward.11} parent=11 // pred_region
        _
      $region20: #{model_forward.11} parent=11 // pred_fallthru
        _
      // Predicated region
      $region21: #{model_forward.11} parent=11 // pred_check
        %p168 = pneg %p100
      $region22: #{model_forward.11} parent=11 // pred_check_branch
        %170 = sbr.rel (%p168) target = $region24
      $region23: #{model_forward.11} parent=11 // pred_region
        _
      $region24: #{model_forward.11} parent=11 // pred_fallthru
        _
      // Predicated region
      $region25: #{model_forward.11} parent=11 // pred_check
        %p171 = pneg %p121
      $region26: #{model_forward.11} parent=11 // pred_check_branch
        %173 = sbr.rel (%p171) target = $region28
      $region27: #{model_forward.11} parent=11 // pred_region
        _
      $region28: #{model_forward.11} parent=11 // pred_fallthru
        _
    $region12: #{model_forward.11} parent=5 // pred_fallthru
      _
    %p174 = scmp.lt.s32.totalorder %s11, 2
    // Predicated region
    $region29: #{model_forward.11} parent=5 // pred_check
      %p175 = pneg %p174
    $region30: #{model_forward.11} parent=5 // pred_check_branch
      %177 = sbr.rel (%p175) target = $region32
    $region31: #{model_forward.11} parent=5 // pred_region
      // Predicated region
      $region33: #{model_forward.11} parent=31 // pred_check
        %p178 = pneg %p31
      $region34: #{model_forward.11} parent=31 // pred_check_branch
        %180 = sbr.rel (%p178) target = $region36
      $region35: #{model_forward.11} parent=31 // pred_region
        %p181 = scmp.lt.s32.totalorder %s11, 1
        %s182 = scalar_select %p181, %s11, 1
        %s183 = smul.addr %s182, 2
        %s184 = smul.addr %s183, 8
        %s185 = scalar_lea.vmem %s0, %s184
      $region36: #{model_forward.11} parent=31 // pred_fallthru
        _
    $region32: #{model_forward.11} parent=5 // pred_fallthru
      _
    %p186 = scmp.le.s32.totalorder 1, %s11
    %p187 = scmp.lt.s32.totalorder %s11, 3
    %p188 = pnand %p186, %p187
    %p189 = pneg %p188
    // Predicated region
    $region37: #{model_forward.11} parent=5 // pred_check
      _
    $region38: #{model_forward.11} parent=5 // pred_check_branch
      %191 = sbr.rel (%p188) target = $region40
    $region39: #{model_forward.11} parent=5 // pred_region
      %s192 = ssub.s32 %s11, 1
      %p193 = scmp.lt.s32.totalorder %s16, 1
      %s194 = scalar_select %p193, %s16, 1
      %s195 = smul.addr %s194, 2
      %s196 = smul.addr %s195, 8
      %s197 = scalar_lea.vmem %s0, %s196
      %p198 = pneg %p37
      %p199 = pneg %p34
      %p200 = pneg %p58
      %p201 = pneg %p55
      %p202 = pneg %p79
      %p203 = pneg %p76
      %p204 = pneg %p100
      %p205 = pneg %p97
      %p206 = pneg %p121
      %p207 = pneg %p118
      %p208 = pneg %p147
      %p209 = pneg %p144
      %p210 = scmp.lt.s32.totalorder %s16, 1
      %s211 = scalar_select %p210, %s16, 1
      %s212 = smul.addr %s211, 2
      %s213 = smul.addr %s212, 8
      %s214 = scalar_lea.vmem %s5, %s213
      %p215 = scmp.lt.s32.totalorder %s16, 1
      %s216 = scalar_select %p215, %s16, 1
      %s217 = smul.addr %s216, 2
      %s218 = smul.addr %s217, 8
      %s219 = scalar_lea.vmem %s0, %s218
      %p220 = scmp.lt.s32.totalorder %s16, 1
      %s221 = scalar_select %p220, %s16, 1
      %s222 = smul.addr %s221, 2
      %s223 = smul.addr %s222, 8
      %s224 = scalar_lea.vmem %s5, %s223
      %v225 = vld [vmem:[%s219] sm:$0xff]
      %v226 = vld [vmem:[%s219 + $0x8] sm:$0xff]
      %v227 = vld [vmem:[%s1] sm:$0x1]
      %v228 = vld [vmem:[%s2] sm:$0x1]
      %vm229 = vcmask 261120
      %v230 = vsel %vm229, %v225, 0.0
      %231 = vadd.xlane.f32.xlu0 %v230
      %v232 = vpop.xlane.xlu0 %231
      %v233 = vsel %vm229, %v226, 0.0
      %234 = vadd.xlane.f32.xlu0 %v233
      %v235 = vpop.xlane.xlu0 %234
      %v236 = vrcp.pop 32.0
      %v237 = vmul.f32 %v232, %v236
      %v238 = vmul.f32 %v235, %v236
      %v239 = vsub.f32 %v225, %v237
      %v240 = vsub.f32 %v226, %v238
      %v241 = vmul.f32 %v239, %v239
      %v242 = vmul.f32 %v240, %v240
      %v243 = vsel %vm229, %v241, 0.0
      %244 = vadd.xlane.f32.xlu0 %v243
      %v245 = vpop.xlane.xlu0 %244
      %v246 = vsel %vm229, %v242, 0.0
      %247 = vadd.xlane.f32.xlu0 %v246
      %v248 = vpop.xlane.xlu0 %247
      %v249 = vmul.f32 %v245, %v236
      %v250 = vmul.f32 %v248, %v236
      %v251 = vadd.f32 %v249, 1e-05
      %v252 = vadd.f32 %v250, 1e-05
      %v253 = vrsqrt.pop %v251
      %v254 = vrsqrt.pop %v252
      %v255 = vmul.f32 %v239, %v253
      %v256 = vmul.f32 %v240, %v254
      %v258 = vlaneseq
      %v259 = vshrl.u32 %v258, 7
      %v260 = vsub.s32 0, %v259
      %v261 = vrot.slane %v227, %v260
      %v263 = vmul.f32 %v255, %v261
      %v264 = vmul.f32 %v256, %v261
      %v266 = vlaneseq
      %v267 = vshrl.u32 %v266, 7
      %v268 = vsub.s32 0, %v267
      %v269 = vrot.slane %v228, %v268
      %v271 = vadd.f32 %v263, %v269
      %v272 = vadd.f32 %v264, %v269
      %v273 = vld [vmem:[%s3] sm:$0xff]
      %v274 = vld [vmem:[%s3 + $0x8] sm:$0xff]
      %v275 = vld [vmem:[%s3 + $0x10] sm:$0xff]
      %v276 = vld [vmem:[%s3 + $0x18] sm:$0xff]
      %v277 = vld [vmem:[%s4] sm:$0x1]
      %v279 = vlaneseq
      %v280 = vshrl.u32 %v279, 7
      %v281 = vsub.s32 0, %v280
      %v282 = vrot.slane %v277, %v281
      %v285 = vsel %vm229, %v271, 0
      %v288 = vsel %vm229, %v272, 0
      %290 = vmatprep.subr.mxu0 0.0
      %291 = vmatpush1.msra.mxu0 %v273
      %292 = vmatprep.subr.mxu0 0.0
      %293 = vmatpush1.msra.mxu0 %v274
      %294 = vmatprep.subr.mxu0 0.0
      %295 = vmatpush1.msra.mxu0 %v275
      %296 = vmatprep.subr.mxu0 0.0
      %297 = vmatpush1.msra.mxu0 %v276
      %298 = vmatprep.subr.mxu0 0.0
      %299 = vmatpush1.msra.mxu0 0.0
      %300 = vmatprep.subr.mxu0 0.0
      %301 = vmatpush1.msra.mxu0 0.0
      %302 = vmatprep.subr.mxu0 0.0
      %303 = vmatpush1.msra.mxu0 0.0
      %304 = vmatprep.subr.mxu0 0.0
      %305 = vmatpush1.msra.mxu0 0.0
      %306 = vmatprep.subr.mxu0 0.0
      %307 = vmatpush1.msra.mxu0 0.0
      %308 = vmatprep.subr.mxu0 0.0
      %309 = vmatpush1.msra.mxu0 0.0
      %310 = vmatprep.subr.mxu0 0.0
      %311 = vmatpush1.msra.mxu0 0.0
      %312 = vmatprep.subr.mxu0 0.0
      %313 = vmatpush1.msra.mxu0 0.0
      %314 = vmatprep.subr.mxu0 0.0
      %315 = vmatpush1.msra.mxu0 0.0
      %316 = vmatprep.subr.mxu0 0.0
      %317 = vmatpush1.msra.mxu0 0.0
      %318 = vmatprep.subr.mxu0 0.0
      %319 = vmatpush1.msra.mxu0 0.0
      %320 = vmatprep.subr.mxu0 0.0
      %321 = vmatpush1.msra.mxu0 0.0
      %322 = vmatprep.subr.mxu0 0.0
      %323 = vmatpush1.msra.mxu0 0.0
      %324 = vmatprep.subr.mxu0 0.0
      %325 = vmatpush1.msra.mxu0 0.0
      %326 = vmatprep.subr.mxu0 0.0
      %327 = vmatpush1.msra.mxu0 0.0
      %328 = vmatprep.subr.mxu0 0.0
      %329 = vmatpush1.msra.mxu0 0.0
      %330 = vmatprep.subr.mxu0 0.0
      %331 = vmatpush1.msra.mxu0 0.0
      %332 = vmatprep.subr.mxu0 0.0
      %333 = vmatpush1.msra.mxu0 0.0
      %334 = vmatprep.subr.mxu0 0.0
      %335 = vmatpush1.msra.mxu0 0.0
      %336 = vmatprep.subr.mxu0 0.0
      %337 = vmatpush1.msra.mxu0 0.0
      %338 = vmatprep.subr.mxu0 0.0
      %339 = vmatpush1.msra.mxu0 0.0
      %340 = vmatprep.subr.mxu0 0.0
      %341 = vmatpush1.msra.mxu0 0.0
      %342 = vmatprep.subr.mxu0 0.0
      %343 = vmatpush1.msra.mxu0 0.0
      %344 = vmatprep.subr.mxu0 0.0
      %345 = vmatpush1.msra.mxu0 0.0
      %346 = vmatprep.subr.mxu0 0.0
      %347 = vmatpush1.msra.mxu0 0.0
      %348 = vmatprep.subr.mxu0 0.0
      %349 = vmatpush1.msra.mxu0 0.0
      %350 = vmatprep.subr.mxu0 0.0
      %351 = vmatpush1.msra.mxu0 0.0
      %352 = vmatprep.subr.mxu0 0.0
      %353 = vmatpush1.msra.mxu0 0.0
      %354 = vmatprep.mubr.f32.mxu0 0.0
      %355 = vmatmul.mubr.f32.gmra.mrb[0].mxu0 %v285
      %v356 = vpop.f32.mrb[0].mxu0
      %v357 = vadd.f32 %v282, %v356
      %v358 = vpop.f32.mrb[0].mxu0
      %359 = vmatprep.mubr.f32.mxu0 0.0
      %360 = vmatmul.mubr.f32.gmra.mrb[0].mxu0 %v288
      %v361 = vpop.f32.mrb[0].mxu0
      %v362 = vadd.f32 %v282, %v361
      %v363 = vpop.f32.mrb[0].mxu0
      %364 = vdwg.mxu0
      %vm365 = vcmask 31744
      %366 = vst.msk [vmem:[%s224] sm:$0xff] %vm365, %v357
      %367 = vst.msk [vmem:[%s224 + $0x8] sm:$0xff] %vm365, %v362
      %p368 = scmp.lt.s32.totalorder %s16, 1
      %s369 = scalar_select %p368, %s16, 1
      %s370 = smul.addr %s369, 2
      %s371 = smul.addr %s370, 8
      %s372 = scalar_lea.vmem %s5, %s371
      // Predicated region
      $region41: #{model_forward.11} parent=39 // pred_check
        %p373 = pneg %p144
      $region42: #{model_forward.11} parent=39 // pred_check_branch
        %375 = sbr.rel (%p373) target = $region44
      $region43: #{model_forward.11} parent=39 // pred_region
        _
      $region44: #{model_forward.11} parent=39 // pred_fallthru
        _
    $region40: #{model_forward.11} parent=5 // pred_fallthru
      _
    %p376 = scmp.le.s32.totalorder 2, %s11
    // Predicated region
    $region45: #{model_forward.11} parent=5 // pred_check
      %p377 = pneg %p376
    $region46: #{model_forward.11} parent=5 // pred_check_branch
      %379 = sbr.rel (%p377) target = $region48
    $region47: #{model_forward.11} parent=5 // pred_region
      %s380 = ssub.s32 %s11, 2
      // Predicated region
      $region49: #{model_forward.11} parent=47 // pred_check
        %p381 = pneg %p150
      $region50: #{model_forward.11} parent=47 // pred_check_branch
        %383 = sbr.rel (%p381) target = $region52
      $region51: #{model_forward.11} parent=47 // pred_region
        %p384 = scmp.lt.s32.totalorder %s17, 1
        %s385 = scalar_select %p384, %s17, 1
        %s386 = smul.addr %s385, 2
        %s387 = smul.addr %s386, 8
        %s388 = scalar_lea.vmem %s5, %s387
      $region52: #{model_forward.11} parent=47 // pred_fallthru
        _
    $region48: #{model_forward.11} parent=5 // pred_fallthru
      _
  $region6: #{model_forward.11} parent=0 // loop_footer
    %s15 = sadd.s32 1, %s11
  $region7: #{model_forward.11} parent=0 // loop_footer_branch
    %10 = sbr.rel target = $region3
  $region8: #{model_forward.11} parent=0 // loop_exit
    _

</llo_original>
